<compile_context>
chip_gen: v7x
topology: tpu7x:2x2x1
jax: 0.10.0
libtpu: 0.0.40
codegen_flags: <defaults>
</compile_context>

<pallas_src>
import math

import jax
import jax.numpy as jnp
import numpy as np
from jax.experimental import pallas as pl
from jax.experimental.pallas import tpu as pltpu

LN_EPS = 1e-5  # PyTorch nn.LayerNorm default


def _round_up(x, m):
    return ((x + m - 1) // m) * m


def _cdiv(a, b):
    return (a + b - 1) // b


def _vmem_capacity_bytes():
    """Per-core VMEM capacity; conservative fallback if the query is unavailable."""
    try:
        return int(pltpu.get_tpu_info().vmem_capacity_bytes)
    except Exception:
        return 64 << 20  # assume the smallest recent generation (v7x: 64 MiB / TC)


# ----------------------------------------------------------------------------
# Kernel
# ----------------------------------------------------------------------------
def _make_mlp_kernel(layer_meta, use_relu, matmul_dtype, matmul_precision):
    """layer_meta: tuple of (true_width, padded_width, has_ln, apply_act) per layer."""
    act = (lambda v: jnp.maximum(v, 0.0)) if use_relu else jnp.tanh

    def layernorm(h, gamma, beta, d_true, d_pad):
        # Two-pass statistics (matches torch.nn.LayerNorm numerics).
        if d_pad == d_true:
            mu = jnp.mean(h, axis=-1, keepdims=True)
            diff = h - mu
            var = jnp.mean(diff * diff, axis=-1, keepdims=True)
        else:
            # Padded columns are exactly zero (zero-padded W columns + zero bias), so a
            # plain row-sum is already the true-width sum; the mask only has to kill the
            # (0 - mu)^2 contributions in the variance.  Divisor is the true width.
            inv_d = jnp.float32(1.0 / d_true)
            mu = jnp.sum(h, axis=-1, keepdims=True) * inv_d
            lane = jax.lax.broadcasted_iota(jnp.int32, h.shape, 1)
            diff = jnp.where(lane < d_true, h - mu, 0.0)
            var = jnp.sum(diff * diff, axis=-1, keepdims=True) * inv_d
        # gamma/beta are zero in padded lanes -> padded activations stay exactly 0.
        return (h - mu) * jax.lax.rsqrt(var + LN_EPS) * gamma + beta

    def kernel(*refs):
        x_ref = refs[0]
        out_ref = refs[-1]
        prefs = refs[1:-1]

        h = x_ref[...]
        for li, (d_true, d_pad, has_ln, apply_act) in enumerate(layer_meta):
            w_ref = prefs[2 * li]        # (p_in, p_out) in matmul dtype
            vec_ref = prefs[2 * li + 1]  # (3, p_out) f32: rows = [bias, gamma, beta]
            h = jnp.dot(h.astype(matmul_dtype), w_ref[...],
                        preferred_element_type=jnp.float32,
                        precision=matmul_precision)
            h = h + vec_ref[0:1, :]                       # bias
            if has_ln:
                h = layernorm(h, vec_ref[1:2, :], vec_ref[2:3, :], d_true, d_pad)
            if apply_act:
                h = act(h)
        out_ref[...] = h.astype(out_ref.dtype)

    return kernel


# ----------------------------------------------------------------------------
# Wrapper
# ----------------------------------------------------------------------------
def mlp_forward(x, params, *, use_relu=True, output_layernorm=False,
                auto_flatten=False, flatten_start_dim=1,
                matmul_dtype=jnp.float32,
                precision=jax.lax.Precision.HIGHEST,
                max_block_rows=1024, min_grid_steps=4):
    """Pallas MLP forward matching the PyTorch MLP module.

    matmul_dtype=jnp.bfloat16 runs the MXU at native bf16 rate and halves weight
    DMA/VMEM (weights and x are cast in the wrapper, not per grid step).
    precision=jax.lax.Precision.HIGH halves MXU passes for the f32 path if exact
    HIGHEST parity is not required.
    """
    if auto_flatten:
        x = x.reshape(x.shape[:flatten_start_dim] + (-1,))
    lead = x.shape[:-1]
    in_dim = x.shape[-1]

    mm_dtype = jnp.dtype(matmul_dtype)
    w_itemsize = mm_dtype.itemsize
    mm_prec = precision if mm_dtype == jnp.dtype(jnp.float32) else None

    x2 = x.reshape(-1, in_dim).astype(mm_dtype)
    B = x2.shape[0]

    num_layers = len(params["w"])
    dims = [in_dim] + [int(w.shape[1]) for w in params["w"]]
    out_dim = dims[-1]
    # Lane-dense (128-multiple) padded width for every layer output, incl. the final one.
    pdims = [in_dim] + [_round_up(d, 128) for d in dims[1:]]
    out_dim_p = pdims[-1]

    # --- prepare padded, lane-dense parameters --------------------------------
    weights, vecs, layer_meta = [], [], []
    for li in range(num_layers):
        d_in, d_out = dims[li], dims[li + 1]
        p_in, p_out = pdims[li], pdims[li + 1]
        w = jnp.asarray(params["w"][li], jnp.float32)
        w = jnp.pad(w, ((0, p_in - d_in), (0, p_out - d_out))).astype(mm_dtype)
        b = jnp.pad(jnp.asarray(params["b"][li], jnp.float32).reshape(-1),
                    (0, p_out - d_out))
        has_ln = (li < num_layers - 1) or output_layernorm
        if has_ln:
            g = jnp.pad(jnp.asarray(params["ln_g"][li], jnp.float32).reshape(-1),
                        (0, p_out - d_out))
            t = jnp.pad(jnp.asarray(params["ln_b"][li], jnp.float32).reshape(-1),
                        (0, p_out - d_out))
        else:
            g = jnp.zeros((p_out,), jnp.float32)
            t = jnp.zeros((p_out,), jnp.float32)
        weights.append(w)
        vecs.append(jnp.stack([b, g, t], axis=0))   # (3, p_out): one DMA per layer
        layer_meta.append((d_out, p_out, has_ln, li < num_layers - 1))

    # --- generation-aware tile sizing -----------------------------------------
    vmem_cap = _vmem_capacity_bytes()
    vmem_budget = int(vmem_cap * 0.7)

    const_bytes = (sum(int(np.prod(w.shape)) * w_itemsize for w in weights)
                   + sum(int(np.prod(v.shape)) * 4 for v in vecs))
    x_buffers = 3 if vmem_cap >= (96 << 20) else 2   # deeper x pipeline on v5e/v6e
    max_pad = max(pdims)
    per_row = (x_buffers * in_dim * w_itemsize        # streamed input tiles
               + 2 * out_dim_p * 4                    # double-buffered output
               + 4 * max_pad * 4)                     # f32 activations + casts
    budget_rows = (vmem_budget - 2 * const_bytes) // per_row  # 2x consts = worst case
    tile = min(max_block_rows, max(8, (int(budget_rows) // 8) * 8))
    # Keep >= min_grid_steps grid steps so both v7x TensorCores get work.
    tile = min(tile, max(8, _round_up(_cdiv(max(B, 1), min_grid_steps), 8)))
    tile = max(8, min(tile, _round_up(max(B, 1), 8)))

    Bp = _round_up(max(B, 1), tile)
    if Bp != B:
        x2 = jnp.pad(x2, ((0, Bp - B), (0, 0)))
    grid = (Bp // tile,)

    args = [x2]
    for w, v in zip(weights, vecs):
        args += [w, v]

    def _vmem_limit(n_const_buf, n_x_buf):
        est = (n_const_buf * const_bytes
               + n_x_buf * tile * in_dim * w_itemsize
               + 2 * tile * out_dim_p * 4
               + 4 * tile * max_pad * 4
               + (2 << 20))
        return int(min(max(est, 16 << 20), int(vmem_cap * 0.9)))

    kernel = _make_mlp_kernel(tuple(layer_meta), use_relu, mm_dtype, mm_prec)
    out_shape = jax.ShapeDtypeStruct((Bp, out_dim_p), jnp.float32)
    out_spec = pl.BlockSpec((tile, out_dim_p), lambda i: (i, 0))

    def _run(use_buffered):
        if use_buffered:
            # Constant-index weight blocks are fetched once -> single buffer halves
            # their VMEM residency; deeper buffering on the streamed x input hides
            # DMA latency when per-step compute is small.
            const_kw = dict(pipeline_mode=pl.Buffered(1))
            x_kw = dict(pipeline_mode=pl.Buffered(x_buffers))
            n_const_buf, n_x_buf = 1, x_buffers
        else:
            const_kw, x_kw = {}, {}
            n_const_buf, n_x_buf = 2, 2

        in_specs = [pl.BlockSpec((tile, in_dim), lambda i: (i, 0), **x_kw)]
        for a in args[1:]:
            nd = a.ndim
            in_specs.append(
                pl.BlockSpec(a.shape, lambda i, nd=nd: (0,) * nd, **const_kw))

        return pl.pallas_call(
            kernel,
            out_shape=out_shape,
            grid=grid,
            in_specs=in_specs,
            out_specs=out_spec,
            compiler_params=pltpu.CompilerParams(
                dimension_semantics=("parallel",),
                vmem_limit_bytes=_vmem_limit(n_const_buf, n_x_buf)),
        )(*args)

    try:
        out = _run(True)
    except Exception:
        # Fallback for builds where BlockSpec pipeline_mode is not supported.
        out = _run(False)

    out = out[:B, :out_dim]
    return out.reshape(lead + (out_dim,))


# ----------------------------------------------------------------------------
# Parameter init (orthogonal weights per layer_init, zero biases, LN gamma=1/beta=0)
# ----------------------------------------------------------------------------
def init_mlp_params(key, input_size, hidden_size, output_size, num_layers,
                    output_layernorm=False, init_std=1.0):
    dims = [input_size] + [hidden_size] * (num_layers - 1) + [output_size]
    ws, bs, gs, ts = [], [], [], []
    for i in range(num_layers):
        key, k = jax.random.split(key)
        std = math.sqrt(2) if i < num_layers - 1 else init_std
        ws.append(jax.nn.initializers.orthogonal(scale=std)(
            k, (dims[i], dims[i + 1]), jnp.float32))
        bs.append(jnp.zeros((1, dims[i + 1]), jnp.float32))
    n_ln = (num_layers - 1) + (1 if output_layernorm else 0)
    for i in range(n_ln):
        d = dims[i + 1] if i < num_layers - 1 else dims[-1]
        gs.append(jnp.ones((1, d), jnp.float32))
        ts.append(jnp.zeros((1, d), jnp.float32))
    return {"w": ws, "b": bs, "ln_g": gs, "ln_b": ts}


# ----------------------------------------------------------------------------
# Pure-JAX reference (mirrors the PyTorch module exactly)
# ----------------------------------------------------------------------------
def mlp_reference(x, params, *, use_relu=True, output_layernorm=False,
                  auto_flatten=False, flatten_start_dim=1):
    if auto_flatten:
        x = x.reshape(x.shape[:flatten_start_dim] + (-1,))
    act = jax.nn.relu if use_relu else jnp.tanh

    def ln(v, g, t):
        mu = jnp.mean(v, -1, keepdims=True)
        var = jnp.mean((v - mu) ** 2, -1, keepdims=True)
        return (v - mu) / jnp.sqrt(var + LN_EPS) * g + t

    num_layers = len(params["w"])
    h = x
    for i in range(num_layers - 1):
        h = jnp.dot(h, params["w"][i], precision=jax.lax.Precision.HIGHEST) + params["b"][i]
        h = act(ln(h, params["ln_g"][i], params["ln_b"][i]))
    h = jnp.dot(h, params["w"][-1], precision=jax.lax.Precision.HIGHEST) + params["b"][-1]
    if output_layernorm:
        h = ln(h, params["ln_g"][-1], params["ln_b"][-1])
    return h


# ----------------------------------------------------------------------------
if __name__ == "__main__":
    key = jax.random.PRNGKey(0)
    k1, k2, k3, k4 = jax.random.split(key, 4)

    # Config A: auto_flatten over an image-like input, ReLU, no output LayerNorm.
    B, C, H, W = 2, 4, 16, 16
    hidden, out_sz, n_layers = 32, 8, 3
    x_img = jax.random.normal(k1, (B, C, H, W), jnp.float32)
    pA = init_mlp_params(k2, C * H * W, hidden, out_sz, n_layers)
    yA = mlp_forward(x_img, pA, use_relu=True, auto_flatten=True)
    yA_ref = mlp_reference(x_img, pA, use_relu=True, auto_flatten=True)

    # Config B: Tanh activation + output LayerNorm, plain 2-D input.
    B2, in2, hid2, out2, nl2 = 8, 64, 32, 16, 4
    x_2d = jax.random.normal(k3, (B2, in2), jnp.float32)
    pB = init_mlp_params(k4, in2, hid2, out2, nl2, output_layernorm=True, init_std=1.0)
    yB = mlp_forward(x_2d, pB, use_relu=False, output_layernorm=True)
    yB_ref = mlp_reference(x_2d, pB, use_relu=False, output_layernorm=True)

    # Config C: bf16 MXU path (weights/input cast in the wrapper) — loose sanity check.
    yC = mlp_forward(x_img, pA, use_relu=True, auto_flatten=True,
                     matmul_dtype=jnp.bfloat16)

    jax.block_until_ready((yA, yB, yC))

    assert yA.shape == (B, out_sz), yA.shape
    assert yB.shape == (B2, out2), yB.shape
    assert yC.shape == (B, out_sz), yC.shape
    np.testing.assert_allclose(np.asarray(yA), np.asarray(yA_ref), rtol=5e-4, atol=1e-4)
    np.testing.assert_allclose(np.asarray(yB), np.asarray(yB_ref), rtol=5e-4, atol=1e-4)
    np.testing.assert_allclose(np.asarray(yC), np.asarray(yA_ref), rtol=1e-1, atol=1e-1)
    print("KERNEL_OK")
</pallas_src>

<mosaic_0001>
module attributes {stable_mosaic.version = 11 : i64} {
  func.func @kernel(%arg0: i32, %arg1: memref<8x1024xf32, #tpu.memory_space<vmem>>, %arg2: memref<1024x128xf32, #tpu.memory_space<vmem>>, %arg3: memref<3x128xf32, #tpu.memory_space<vmem>>, %arg4: memref<128x128xf32, #tpu.memory_space<vmem>>, %arg5: memref<3x128xf32, #tpu.memory_space<vmem>>, %arg6: memref<128x128xf32, #tpu.memory_space<vmem>>, %arg7: memref<3x128xf32, #tpu.memory_space<vmem>>, %arg8: memref<8x128xf32, #tpu.memory_space<vmem>>) attributes {dimension_semantics = [#tpu.dimension_semantics<parallel>], iteration_bounds = array<i64: 1>, scalar_prefetch = 0 : i64, scratch_operands = 0 : i64, tpu.core_type = #tpu.core_type<tc>, window_params = [{pipeline_mode = #tpu.pipeline_mode<double_buffered>, transform_indices = @transform_0, window_bounds = array<i64: 8, 1024>}, {pipeline_mode = #tpu.pipeline_mode<synchronous>, transform_indices = @transform_1, window_bounds = array<i64: 1024, 128>}, {pipeline_mode = #tpu.pipeline_mode<synchronous>, transform_indices = @transform_2, window_bounds = array<i64: 3, 128>}, {pipeline_mode = #tpu.pipeline_mode<synchronous>, transform_indices = @transform_3, window_bounds = array<i64: 128, 128>}, {pipeline_mode = #tpu.pipeline_mode<synchronous>, transform_indices = @transform_4, window_bounds = array<i64: 3, 128>}, {pipeline_mode = #tpu.pipeline_mode<synchronous>, transform_indices = @transform_5, window_bounds = array<i64: 128, 128>}, {pipeline_mode = #tpu.pipeline_mode<synchronous>, transform_indices = @transform_6, window_bounds = array<i64: 3, 128>}, {transform_indices = @transform_7, window_bounds = array<i64: 8, 128>}]} {
    %c0 = arith.constant 0 : index
    %c0_0 = arith.constant 0 : index
    %0 = vector.load %arg1[%c0, %c0_0] : memref<8x1024xf32, #tpu.memory_space<vmem>>, vector<8x1024xf32>
    %c0_1 = arith.constant 0 : index
    %c0_2 = arith.constant 0 : index
    %1 = vector.load %arg2[%c0_1, %c0_2] : memref<1024x128xf32, #tpu.memory_space<vmem>>, vector<1024x128xf32>
    %cst = arith.constant dense<0.000000e+00> : vector<8x128xf32>
    %2 = tpu.matmul %0, %1, %cst {dimension_numbers = #tpu.dot_dimension_numbers<[1], [0], [0], [1], [0, 0, 1, 1], [], []>, precision = #tpu.contract_precision<fp32>} : vector<8x1024xf32>, vector<1024x128xf32>, vector<8x128xf32> -> vector<8x128xf32>
    %c0_3 = arith.constant 0 : index
    %c0_4 = arith.constant 0 : index
    %3 = vector.load %arg3[%c0_3, %c0_4] : memref<3x128xf32, #tpu.memory_space<vmem>>, vector<1x128xf32>
    %4 = vector.broadcast %3 : vector<1x128xf32> to vector<8x128xf32>
    %5 = arith.addf %2, %4 : vector<8x128xf32>
    %c1 = arith.constant 1 : index
    %c0_5 = arith.constant 0 : index
    %6 = vector.load %arg3[%c1, %c0_5] : memref<3x128xf32, #tpu.memory_space<vmem>>, vector<1x128xf32>
    %c2 = arith.constant 2 : index
    %c0_6 = arith.constant 0 : index
    %7 = vector.load %arg3[%c2, %c0_6] : memref<3x128xf32, #tpu.memory_space<vmem>>, vector<1x128xf32>
    %cst_7 = arith.constant dense<0.000000e+00> : vector<8xf32>
    %8 = vector.multi_reduction <add>, %5, %cst_7 [1] : vector<8x128xf32> to vector<8xf32>
    %9 = vector.shape_cast %8 : vector<8xf32> to vector<8x1xf32>
    %cst_8 = arith.constant 3.125000e-02 : f32
    %10 = vector.broadcast %cst_8 : f32 to vector<8x1xf32>
    %11 = arith.mulf %9, %10 : vector<8x1xf32>
    %12 = tpu.iota {dimensions = array<i32: 1>} : vector<8x128xi32>
    %c32_i32 = arith.constant 32 : i32
    %13 = vector.broadcast %c32_i32 : i32 to vector<8x128xi32>
    %14 = arith.cmpi slt, %12, %13 : vector<8x128xi32>
    %15 = vector.broadcast %11 : vector<8x1xf32> to vector<8x128xf32>
    %16 = arith.subf %5, %15 : vector<8x128xf32>
    %cst_9 = arith.constant 0.000000e+00 : f32
    %17 = vector.broadcast %cst_9 : f32 to vector<8x128xf32>
    %18 = arith.select %14, %16, %17 : vector<8x128xi1>, vector<8x128xf32>
    %19 = arith.mulf %18, %18 : vector<8x128xf32>
    %cst_10 = arith.constant dense<0.000000e+00> : vector<8xf32>
    %20 = vector.multi_reduction <add>, %19, %cst_10 [1] : vector<8x128xf32> to vector<8xf32>
    %21 = vector.shape_cast %20 : vector<8xf32> to vector<8x1xf32>
    %cst_11 = arith.constant 3.125000e-02 : f32
    %22 = vector.broadcast %cst_11 : f32 to vector<8x1xf32>
    %23 = arith.mulf %21, %22 : vector<8x1xf32>
    %24 = vector.broadcast %11 : vector<8x1xf32> to vector<8x128xf32>
    %25 = arith.subf %5, %24 : vector<8x128xf32>
    %cst_12 = arith.constant 9.99999974E-6 : f32
    %26 = vector.broadcast %cst_12 : f32 to vector<8x1xf32>
    %27 = arith.addf %23, %26 : vector<8x1xf32>
    %28 = math.rsqrt %27 : vector<8x1xf32>
    %29 = vector.broadcast %28 : vector<8x1xf32> to vector<8x128xf32>
    %30 = arith.mulf %25, %29 : vector<8x128xf32>
    %31 = vector.broadcast %6 : vector<1x128xf32> to vector<8x128xf32>
    %32 = arith.mulf %30, %31 : vector<8x128xf32>
    %33 = vector.broadcast %7 : vector<1x128xf32> to vector<8x128xf32>
    %34 = arith.addf %32, %33 : vector<8x128xf32>
    %cst_13 = arith.constant 0.000000e+00 : f32
    %35 = vector.broadcast %cst_13 : f32 to vector<8x128xf32>
    %36 = arith.maximumf %34, %35 : vector<8x128xf32>
    %c0_14 = arith.constant 0 : index
    %c0_15 = arith.constant 0 : index
    %37 = vector.load %arg4[%c0_14, %c0_15] : memref<128x128xf32, #tpu.memory_space<vmem>>, vector<128x128xf32>
    %cst_16 = arith.constant dense<0.000000e+00> : vector<8x128xf32>
    %38 = tpu.matmul %36, %37, %cst_16 {dimension_numbers = #tpu.dot_dimension_numbers<[1], [0], [0], [1], [0, 0, 1, 1], [], []>, precision = #tpu.contract_precision<fp32>} : vector<8x128xf32>, vector<128x128xf32>, vector<8x128xf32> -> vector<8x128xf32>
    %c0_17 = arith.constant 0 : index
    %c0_18 = arith.constant 0 : index
    %39 = vector.load %arg5[%c0_17, %c0_18] : memref<3x128xf32, #tpu.memory_space<vmem>>, vector<1x128xf32>
    %40 = vector.broadcast %39 : vector<1x128xf32> to vector<8x128xf32>
    %41 = arith.addf %38, %40 : vector<8x128xf32>
    %c1_19 = arith.constant 1 : index
    %c0_20 = arith.constant 0 : index
    %42 = vector.load %arg5[%c1_19, %c0_20] : memref<3x128xf32, #tpu.memory_space<vmem>>, vector<1x128xf32>
    %c2_21 = arith.constant 2 : index
    %c0_22 = arith.constant 0 : index
    %43 = vector.load %arg5[%c2_21, %c0_22] : memref<3x128xf32, #tpu.memory_space<vmem>>, vector<1x128xf32>
    %cst_23 = arith.constant dense<0.000000e+00> : vector<8xf32>
    %44 = vector.multi_reduction <add>, %41, %cst_23 [1] : vector<8x128xf32> to vector<8xf32>
    %45 = vector.shape_cast %44 : vector<8xf32> to vector<8x1xf32>
    %cst_24 = arith.constant 3.125000e-02 : f32
    %46 = vector.broadcast %cst_24 : f32 to vector<8x1xf32>
    %47 = arith.mulf %45, %46 : vector<8x1xf32>
    %48 = tpu.iota {dimensions = array<i32: 1>} : vector<8x128xi32>
    %c32_i32_25 = arith.constant 32 : i32
    %49 = vector.broadcast %c32_i32_25 : i32 to vector<8x128xi32>
    %50 = arith.cmpi slt, %48, %49 : vector<8x128xi32>
    %51 = vector.broadcast %47 : vector<8x1xf32> to vector<8x128xf32>
    %52 = arith.subf %41, %51 : vector<8x128xf32>
    %cst_26 = arith.constant 0.000000e+00 : f32
    %53 = vector.broadcast %cst_26 : f32 to vector<8x128xf32>
    %54 = arith.select %50, %52, %53 : vector<8x128xi1>, vector<8x128xf32>
    %55 = arith.mulf %54, %54 : vector<8x128xf32>
    %cst_27 = arith.constant dense<0.000000e+00> : vector<8xf32>
    %56 = vector.multi_reduction <add>, %55, %cst_27 [1] : vector<8x128xf32> to vector<8xf32>
    %57 = vector.shape_cast %56 : vector<8xf32> to vector<8x1xf32>
    %cst_28 = arith.constant 3.125000e-02 : f32
    %58 = vector.broadcast %cst_28 : f32 to vector<8x1xf32>
    %59 = arith.mulf %57, %58 : vector<8x1xf32>
    %60 = vector.broadcast %47 : vector<8x1xf32> to vector<8x128xf32>
    %61 = arith.subf %41, %60 : vector<8x128xf32>
    %cst_29 = arith.constant 9.99999974E-6 : f32
    %62 = vector.broadcast %cst_29 : f32 to vector<8x1xf32>
    %63 = arith.addf %59, %62 : vector<8x1xf32>
    %64 = math.rsqrt %63 : vector<8x1xf32>
    %65 = vector.broadcast %64 : vector<8x1xf32> to vector<8x128xf32>
    %66 = arith.mulf %61, %65 : vector<8x128xf32>
    %67 = vector.broadcast %42 : vector<1x128xf32> to vector<8x128xf32>
    %68 = arith.mulf %66, %67 : vector<8x128xf32>
    %69 = vector.broadcast %43 : vector<1x128xf32> to vector<8x128xf32>
    %70 = arith.addf %68, %69 : vector<8x128xf32>
    %cst_30 = arith.constant 0.000000e+00 : f32
    %71 = vector.broadcast %cst_30 : f32 to vector<8x128xf32>
    %72 = arith.maximumf %70, %71 : vector<8x128xf32>
    %c0_31 = arith.constant 0 : index
    %c0_32 = arith.constant 0 : index
    %73 = vector.load %arg6[%c0_31, %c0_32] : memref<128x128xf32, #tpu.memory_space<vmem>>, vector<128x128xf32>
    %cst_33 = arith.constant dense<0.000000e+00> : vector<8x128xf32>
    %74 = tpu.matmul %72, %73, %cst_33 {dimension_numbers = #tpu.dot_dimension_numbers<[1], [0], [0], [1], [0, 0, 1, 1], [], []>, precision = #tpu.contract_precision<fp32>} : vector<8x128xf32>, vector<128x128xf32>, vector<8x128xf32> -> vector<8x128xf32>
    %c0_34 = arith.constant 0 : index
    %c0_35 = arith.constant 0 : index
    %75 = vector.load %arg7[%c0_34, %c0_35] : memref<3x128xf32, #tpu.memory_space<vmem>>, vector<1x128xf32>
    %76 = vector.broadcast %75 : vector<1x128xf32> to vector<8x128xf32>
    %77 = arith.addf %74, %76 : vector<8x128xf32>
    %c0_36 = arith.constant 0 : index
    %c0_37 = arith.constant 0 : index
    %78 = vector.load %arg8[%c0_36, %c0_37] : memref<8x128xf32, #tpu.memory_space<vmem>>, vector<8x128xf32>
    tpu.vector_store %arg8[%c0_36, %c0_37], %77 {strides = array<i32>} : memref<8x128xf32, #tpu.memory_space<vmem>>, vector<8x128xf32>,
    return
  }
  func.func @transform_0(%arg0: i32) -> (i32, i32) {
    %c0_i32 = arith.constant 0 : i32
    %c0_i32_0 = arith.constant 0 : i32
    return %arg0, %c0_i32 : i32, i32
  }
  func.func @transform_1(%arg0: i32) -> (i32, i32) {
    %c0_i32 = arith.constant 0 : i32
    %c0_i32_0 = arith.constant 0 : i32
    %c0_i32_1 = arith.constant 0 : i32
    return %c0_i32, %c0_i32_0 : i32, i32
  }
  func.func @transform_2(%arg0: i32) -> (i32, i32) {
    %c0_i32 = arith.constant 0 : i32
    %c0_i32_0 = arith.constant 0 : i32
    %c0_i32_1 = arith.constant 0 : i32
    return %c0_i32, %c0_i32_0 : i32, i32
  }
  func.func @transform_3(%arg0: i32) -> (i32, i32) {
    %c0_i32 = arith.constant 0 : i32
    %c0_i32_0 = arith.constant 0 : i32
    %c0_i32_1 = arith.constant 0 : i32
    return %c0_i32, %c0_i32_0 : i32, i32
  }
  func.func @transform_4(%arg0: i32) -> (i32, i32) {
    %c0_i32 = arith.constant 0 : i32
    %c0_i32_0 = arith.constant 0 : i32
    %c0_i32_1 = arith.constant 0 : i32
    return %c0_i32, %c0_i32_0 : i32, i32
  }
  func.func @transform_5(%arg0: i32) -> (i32, i32) {
    %c0_i32 = arith.constant 0 : i32
    %c0_i32_0 = arith.constant 0 : i32
    %c0_i32_1 = arith.constant 0 : i32
    return %c0_i32, %c0_i32_0 : i32, i32
  }
  func.func @transform_6(%arg0: i32) -> (i32, i32) {
    %c0_i32 = arith.constant 0 : i32
    %c0_i32_0 = arith.constant 0 : i32
    %c0_i32_1 = arith.constant 0 : i32
    return %c0_i32, %c0_i32_0 : i32, i32
  }
  func.func @transform_7(%arg0: i32) -> (i32, i32) {
    %c0_i32 = arith.constant 0 : i32
    %c0_i32_0 = arith.constant 0 : i32
    return %arg0, %c0_i32 : i32, i32
  }
}

module attributes {stable_mosaic.version = 11 : i64} {
  func.func @kernel(%arg0: i32, %arg1: memref<8x1024xf32, #tpu.memory_space<vmem>>, %arg2: memref<1024x128xf32, #tpu.memory_space<vmem>>, %arg3: memref<3x128xf32, #tpu.memory_space<vmem>>, %arg4: memref<128x128xf32, #tpu.memory_space<vmem>>, %arg5: memref<3x128xf32, #tpu.memory_space<vmem>>, %arg6: memref<128x128xf32, #tpu.memory_space<vmem>>, %arg7: memref<3x128xf32, #tpu.memory_space<vmem>>, %arg8: memref<8x128xf32, #tpu.memory_space<vmem>>) attributes {dimension_semantics = [#tpu.dimension_semantics<parallel>], iteration_bounds = array<i64: 1>, scalar_prefetch = 0 : i64, scratch_operands = 0 : i64, tpu.core_type = #tpu.core_type<tc>, window_params = [{transform_indices = @transform_0, window_bounds = array<i64: 8, 1024>}, {pipeline_mode = #tpu.pipeline_mode<synchronous>, transform_indices = @transform_1, window_bounds = array<i64: 1024, 128>}, {pipeline_mode = #tpu.pipeline_mode<synchronous>, transform_indices = @transform_2, window_bounds = array<i64: 3, 128>}, {pipeline_mode = #tpu.pipeline_mode<synchronous>, transform_indices = @transform_3, window_bounds = array<i64: 128, 128>}, {pipeline_mode = #tpu.pipeline_mode<synchronous>, transform_indices = @transform_4, window_bounds = array<i64: 3, 128>}, {pipeline_mode = #tpu.pipeline_mode<synchronous>, transform_indices = @transform_5, window_bounds = array<i64: 128, 128>}, {pipeline_mode = #tpu.pipeline_mode<synchronous>, transform_indices = @transform_6, window_bounds = array<i64: 3, 128>}, {transform_indices = @transform_7, window_bounds = array<i64: 8, 128>}]} {
    %c0 = arith.constant 0 : index
    %c0_0 = arith.constant 0 : index
    %0 = vector.load %arg1[%c0, %c0_0] : memref<8x1024xf32, #tpu.memory_space<vmem>>, vector<8x1024xf32>
    %c0_1 = arith.constant 0 : index
    %c0_2 = arith.constant 0 : index
    %1 = vector.load %arg2[%c0_1, %c0_2] : memref<1024x128xf32, #tpu.memory_space<vmem>>, vector<1024x128xf32>
    %cst = arith.constant dense<0.000000e+00> : vector<8x128xf32>
    %2 = tpu.matmul %0, %1, %cst {dimension_numbers = #tpu.dot_dimension_numbers<[1], [0], [0], [1], [0, 0, 1, 1], [], []>, precision = #tpu.contract_precision<fp32>} : vector<8x1024xf32>, vector<1024x128xf32>, vector<8x128xf32> -> vector<8x128xf32>
    %c0_3 = arith.constant 0 : index
    %c0_4 = arith.constant 0 : index
    %3 = vector.load %arg3[%c0_3, %c0_4] : memref<3x128xf32, #tpu.memory_space<vmem>>, vector<1x128xf32>
    %4 = vector.broadcast %3 : vector<1x128xf32> to vector<8x128xf32>
    %5 = arith.addf %2, %4 : vector<8x128xf32>
    %c1 = arith.constant 1 : index
    %c0_5 = arith.constant 0 : index
    %6 = vector.load %arg3[%c1, %c0_5] : memref<3x128xf32, #tpu.memory_space<vmem>>, vector<1x128xf32>
    %c2 = arith.constant 2 : index
    %c0_6 = arith.constant 0 : index
    %7 = vector.load %arg3[%c2, %c0_6] : memref<3x128xf32, #tpu.memory_space<vmem>>, vector<1x128xf32>
    %cst_7 = arith.constant dense<0.000000e+00> : vector<8xf32>
    %8 = vector.multi_reduction <add>, %5, %cst_7 [1] : vector<8x128xf32> to vector<8xf32>
    %9 = vector.shape_cast %8 : vector<8xf32> to vector<8x1xf32>
    %cst_8 = arith.constant 3.125000e-02 : f32
    %10 = vector.broadcast %cst_8 : f32 to vector<8x1xf32>
    %11 = arith.mulf %9, %10 : vector<8x1xf32>
    %12 = tpu.iota {dimensions = array<i32: 1>} : vector<8x128xi32>
    %c32_i32 = arith.constant 32 : i32
    %13 = vector.broadcast %c32_i32 : i32 to vector<8x128xi32>
    %14 = arith.cmpi slt, %12, %13 : vector<8x128xi32>
    %15 = vector.broadcast %11 : vector<8x1xf32> to vector<8x128xf32>
    %16 = arith.subf %5, %15 : vector<8x128xf32>
    %cst_9 = arith.constant 0.000000e+00 : f32
    %17 = vector.broadcast %cst_9 : f32 to vector<8x128xf32>
    %18 = arith.select %14, %16, %17 : vector<8x128xi1>, vector<8x128xf32>
    %19 = arith.mulf %18, %18 : vector<8x128xf32>
    %cst_10 = arith.constant dense<0.000000e+00> : vector<8xf32>
    %20 = vector.multi_reduction <add>, %19, %cst_10 [1] : vector<8x128xf32> to vector<8xf32>
    %21 = vector.shape_cast %20 : vector<8xf32> to vector<8x1xf32>
    %cst_11 = arith.constant 3.125000e-02 : f32
    %22 = vector.broadcast %cst_11 : f32 to vector<8x1xf32>
    %23 = arith.mulf %21, %22 : vector<8x1xf32>
    %24 = vector.broadcast %11 : vector<8x1xf32> to vector<8x128xf32>
    %25 = arith.subf %5, %24 : vector<8x128xf32>
    %cst_12 = arith.constant 9.99999974E-6 : f32
    %26 = vector.broadcast %cst_12 : f32 to vector<8x1xf32>
    %27 = arith.addf %23, %26 : vector<8x1xf32>
    %28 = math.rsqrt %27 : vector<8x1xf32>
    %29 = vector.broadcast %28 : vector<8x1xf32> to vector<8x128xf32>
    %30 = arith.mulf %25, %29 : vector<8x128xf32>
    %31 = vector.broadcast %6 : vector<1x128xf32> to vector<8x128xf32>
    %32 = arith.mulf %30, %31 : vector<8x128xf32>
    %33 = vector.broadcast %7 : vector<1x128xf32> to vector<8x128xf32>
    %34 = arith.addf %32, %33 : vector<8x128xf32>
    %cst_13 = arith.constant 0.000000e+00 : f32
    %35 = vector.broadcast %cst_13 : f32 to vector<8x128xf32>
    %36 = arith.maximumf %34, %35 : vector<8x128xf32>
    %c0_14 = arith.constant 0 : index
    %c0_15 = arith.constant 0 : index
    %37 = vector.load %arg4[%c0_14, %c0_15] : memref<128x128xf32, #tpu.memory_space<vmem>>, vector<128x128xf32>
    %cst_16 = arith.constant dense<0.000000e+00> : vector<8x128xf32>
    %38 = tpu.matmul %36, %37, %cst_16 {dimension_numbers = #tpu.dot_dimension_numbers<[1], [0], [0], [1], [0, 0, 1, 1], [], []>, precision = #tpu.contract_precision<fp32>} : vector<8x128xf32>, vector<128x128xf32>, vector<8x128xf32> -> vector<8x128xf32>
    %c0_17 = arith.constant 0 : index
    %c0_18 = arith.constant 0 : index
    %39 = vector.load %arg5[%c0_17, %c0_18] : memref<3x128xf32, #tpu.memory_space<vmem>>, vector<1x128xf32>
    %40 = vector.broadcast %39 : vector<1x128xf32> to vector<8x128xf32>
    %41 = arith.addf %38, %40 : vector<8x128xf32>
    %c1_19 = arith.constant 1 : index
    %c0_20 = arith.constant 0 : index
    %42 = vector.load %arg5[%c1_19, %c0_20] : memref<3x128xf32, #tpu.memory_space<vmem>>, vector<1x128xf32>
    %c2_21 = arith.constant 2 : index
    %c0_22 = arith.constant 0 : index
    %43 = vector.load %arg5[%c2_21, %c0_22] : memref<3x128xf32, #tpu.memory_space<vmem>>, vector<1x128xf32>
    %cst_23 = arith.constant dense<0.000000e+00> : vector<8xf32>
    %44 = vector.multi_reduction <add>, %41, %cst_23 [1] : vector<8x128xf32> to vector<8xf32>
    %45 = vector.shape_cast %44 : vector<8xf32> to vector<8x1xf32>
    %cst_24 = arith.constant 3.125000e-02 : f32
    %46 = vector.broadcast %cst_24 : f32 to vector<8x1xf32>
    %47 = arith.mulf %45, %46 : vector<8x1xf32>
    %48 = tpu.iota {dimensions = array<i32: 1>} : vector<8x128xi32>
    %c32_i32_25 = arith.constant 32 : i32
    %49 = vector.broadcast %c32_i32_25 : i32 to vector<8x128xi32>
    %50 = arith.cmpi slt, %48, %49 : vector<8x128xi32>
    %51 = vector.broadcast %47 : vector<8x1xf32> to vector<8x128xf32>
    %52 = arith.subf %41, %51 : vector<8x128xf32>
    %cst_26 = arith.constant 0.000000e+00 : f32
    %53 = vector.broadcast %cst_26 : f32 to vector<8x128xf32>
    %54 = arith.select %50, %52, %53 : vector<8x128xi1>, vector<8x128xf32>
    %55 = arith.mulf %54, %54 : vector<8x128xf32>
    %cst_27 = arith.constant dense<0.000000e+00> : vector<8xf32>
    %56 = vector.multi_reduction <add>, %55, %cst_27 [1] : vector<8x128xf32> to vector<8xf32>
    %57 = vector.shape_cast %56 : vector<8xf32> to vector<8x1xf32>
    %cst_28 = arith.constant 3.125000e-02 : f32
    %58 = vector.broadcast %cst_28 : f32 to vector<8x1xf32>
    %59 = arith.mulf %57, %58 : vector<8x1xf32>
    %60 = vector.broadcast %47 : vector<8x1xf32> to vector<8x128xf32>
    %61 = arith.subf %41, %60 : vector<8x128xf32>
    %cst_29 = arith.constant 9.99999974E-6 : f32
    %62 = vector.broadcast %cst_29 : f32 to vector<8x1xf32>
    %63 = arith.addf %59, %62 : vector<8x1xf32>
    %64 = math.rsqrt %63 : vector<8x1xf32>
    %65 = vector.broadcast %64 : vector<8x1xf32> to vector<8x128xf32>
    %66 = arith.mulf %61, %65 : vector<8x128xf32>
    %67 = vector.broadcast %42 : vector<1x128xf32> to vector<8x128xf32>
    %68 = arith.mulf %66, %67 : vector<8x128xf32>
    %69 = vector.broadcast %43 : vector<1x128xf32> to vector<8x128xf32>
    %70 = arith.addf %68, %69 : vector<8x128xf32>
    %cst_30 = arith.constant 0.000000e+00 : f32
    %71 = vector.broadcast %cst_30 : f32 to vector<8x128xf32>
    %72 = arith.maximumf %70, %71 : vector<8x128xf32>
    %c0_31 = arith.constant 0 : index
    %c0_32 = arith.constant 0 : index
    %73 = vector.load %arg6[%c0_31, %c0_32] : memref<128x128xf32, #tpu.memory_space<vmem>>, vector<128x128xf32>
    %cst_33 = arith.constant dense<0.000000e+00> : vector<8x128xf32>
    %74 = tpu.matmul %72, %73, %cst_33 {dimension_numbers = #tpu.dot_dimension_numbers<[1], [0], [0], [1], [0, 0, 1, 1], [], []>, precision = #tpu.contract_precision<fp32>} : vector<8x128xf32>, vector<128x128xf32>, vector<8x128xf32> -> vector<8x128xf32>
    %c0_34 = arith.constant 0 : index
    %c0_35 = arith.constant 0 : index
    %75 = vector.load %arg7[%c0_34, %c0_35] : memref<3x128xf32, #tpu.memory_space<vmem>>, vector<1x128xf32>
    %76 = vector.broadcast %75 : vector<1x128xf32> to vector<8x128xf32>
    %77 = arith.addf %74, %76 : vector<8x128xf32>
    %c0_36 = arith.constant 0 : index
    %c0_37 = arith.constant 0 : index
    %78 = vector.load %arg8[%c0_36, %c0_37] : memref<8x128xf32, #tpu.memory_space<vmem>>, vector<8x128xf32>
    tpu.vector_store %arg8[%c0_36, %c0_37], %77 {strides = array<i32>} : memref<8x128xf32, #tpu.memory_space<vmem>>, vector<8x128xf32>,
    return
  }
  func.func @transform_0(%arg0: i32) -> (i32, i32) {
    %c0_i32 = arith.constant 0 : i32
    %c0_i32_0 = arith.constant 0 : i32
    return %arg0, %c0_i32 : i32, i32
  }
  func.func @transform_1(%arg0: i32) -> (i32, i32) {
    %c0_i32 = arith.constant 0 : i32
    %c0_i32_0 = arith.constant 0 : i32
    %c0_i32_1 = arith.constant 0 : i32
    return %c0_i32, %c0_i32_0 : i32, i32
  }
  func.func @transform_2(%arg0: i32) -> (i32, i32) {
    %c0_i32 = arith.constant 0 : i32
    %c0_i32_0 = arith.constant 0 : i32
    %c0_i32_1 = arith.constant 0 : i32
    return %c0_i32, %c0_i32_0 : i32, i32
  }
  func.func @transform_3(%arg0: i32) -> (i32, i32) {
    %c0_i32 = arith.constant 0 : i32
    %c0_i32_0 = arith.constant 0 : i32
    %c0_i32_1 = arith.constant 0 : i32
    return %c0_i32, %c0_i32_0 : i32, i32
  }
  func.func @transform_4(%arg0: i32) -> (i32, i32) {
    %c0_i32 = arith.constant 0 : i32
    %c0_i32_0 = arith.constant 0 : i32
    %c0_i32_1 = arith.constant 0 : i32
    return %c0_i32, %c0_i32_0 : i32, i32
  }
  func.func @transform_5(%arg0: i32) -> (i32, i32) {
    %c0_i32 = arith.constant 0 : i32
    %c0_i32_0 = arith.constant 0 : i32
    %c0_i32_1 = arith.constant 0 : i32
    return %c0_i32, %c0_i32_0 : i32, i32
  }
  func.func @transform_6(%arg0: i32) -> (i32, i32) {
    %c0_i32 = arith.constant 0 : i32
    %c0_i32_0 = arith.constant 0 : i32
    %c0_i32_1 = arith.constant 0 : i32
    return %c0_i32, %c0_i32_0 : i32, i32
  }
  func.func @transform_7(%arg0: i32) -> (i32, i32) {
    %c0_i32 = arith.constant 0 : i32
    %c0_i32_0 = arith.constant 0 : i32
    return %arg0, %c0_i32 : i32, i32
  }
}

</mosaic_0001>

<llo_original>
// kernel: tpu_custom_call.1
$region0: #{tpu_custom_call.1}
  #allocation0 [shape = 'u32[]', space=smem, size = 0x4, offset = 0x4, fixed_abs, tag = 'smem constant byte address 0x4 - core index']
  #allocation1 [shape = 'u32[144,128]{1,0:T(1,128)}', space=vmem, size = 0x12000, scoped, tag = 'internal scratch']
  %s0 = inlined_call_operand.hbm [shape: f32[8,1024], index: 0, kind: input, shape index: {}]
  %s1 = inlined_call_operand.hbm [shape: f32[1024,128], index: 1, kind: input, shape index: {}]
  %s2 = inlined_call_operand.vmem [shape: f32[3,128], index: 2, kind: input, shape index: {}]
  %s3 = inlined_call_operand.hbm [shape: f32[128,128], index: 3, kind: input, shape index: {}]
  %s4 = inlined_call_operand.vmem [shape: f32[3,128], index: 4, kind: input, shape index: {}]
  %s5 = inlined_call_operand.hbm [shape: f32[128,128], index: 5, kind: input, shape index: {}]
  %s6 = inlined_call_operand.vmem [shape: f32[3,128], index: 6, kind: input, shape index: {}]
  %s7 = inlined_call_operand.hbm [shape: f32[8,128], index: 7, kind: output, shape index: {}]
  %s8 = sld [smem:[#allocation0]]
  $region54: #{tpu_custom_call.1} parent=0
    _
  %s10 = ssub.s32 1, %s8
  %s11 = scalar_select 0, %s10, %s8
  $region1: #{tpu_custom_call.1} parent=0
    #allocation2 [shape = 'u8[32768]{0}', space=vmem, size = 0x8000, scoped, tag = 'input window, operand 0, single buffered']
    #allocation3 [shape = 's32[1]{0}', space=sflag, size = 0x4, scoped, tag = 'scoped memory for tpu_custom_call.1']
    #allocation4 [shape = 's32[1]{0}', space=sflag, size = 0x4, scoped, tag = 'scoped memory for tpu_custom_call.1']
    #allocation5 [shape = 'u8[524288]{0}', space=vmem, size = 0x80000, scoped, tag = 'input window, operand 1, single buffered']
    #allocation6 [shape = 's32[1]{0}', space=sflag, size = 0x4, scoped, tag = 'scoped memory for tpu_custom_call.1']
    #allocation7 [shape = 'u8[65536]{0}', space=vmem, size = 0x10000, scoped, tag = 'input window, operand 3, single buffered']
    #allocation8 [shape = 'u8[65536]{0}', space=vmem, size = 0x10000, scoped, tag = 'input window, operand 5, single buffered']
    #allocation9 [shape = 's32[1]{0}', space=sflag, size = 0x4, scoped, tag = 'scoped memory for tpu_custom_call.1']
    #allocation10 [shape = 'u8[4096]{0}', space=vmem, size = 0x1000, scoped, tag = 'output window, operand 0, single buffered']
    %12 = vsyncpa [#allocation3], 0
    %13 = vsyncpa [#allocation6], 0
    %14 = vsyncpa [#allocation9], 0
    %15 = vsyncpa [#allocation4], 0
    // Predicated region
    $region2: #{tpu_custom_call.1} parent=1 // pred_check
      _
    $region3: #{tpu_custom_call.1} parent=1 // pred_check_branch
      %17 = sbr.rel (0) target = $region5
    $region4: #{tpu_custom_call.1} parent=1 // pred_region
      %s19 = ssub.s32 1024, 1024
      %20 = vsyncadd [#allocation3], %s19
      %s22 = sshll.u32 [#allocation2], 4
      %s23 = int_to_ptr.vmem [resolvable:$true] %s22
      %25 = dma.hbm_to_vmem [thread:$0]  %s0, 1024, %s23, [#allocation3]
    $region5: #{tpu_custom_call.1} parent=1 // pred_fallthru
      _
    // Predicated region
    $region6: #{tpu_custom_call.1} parent=1 // pred_check
      _
    $region7: #{tpu_custom_call.1} parent=1 // pred_check_branch
      %27 = sbr.rel (0) target = $region9
    $region8: #{tpu_custom_call.1} parent=1 // pred_region
      %s29 = ssub.s32 16384, 16384
      %30 = vsyncadd [#allocation6], %s29
      %s31 = sshll.u32 [#allocation5], 4
      %s32 = int_to_ptr.vmem [resolvable:$true] %s31
      %37 = dma.hbm_to_vmem [thread:$0]  %s1, 16384, %s32, [#allocation6], 128, 128, 8
    $region9: #{tpu_custom_call.1} parent=1 // pred_fallthru
      _
    // Predicated region
    $region10: #{tpu_custom_call.1} parent=1 // pred_check
      _
    $region11: #{tpu_custom_call.1} parent=1 // pred_check_branch
      %39 = sbr.rel (0) target = $region13
    $region12: #{tpu_custom_call.1} parent=1 // pred_region
      _
    $region13: #{tpu_custom_call.1} parent=1 // pred_fallthru
      _
    // Predicated region
    $region14: #{tpu_custom_call.1} parent=1 // pred_check
      _
    $region15: #{tpu_custom_call.1} parent=1 // pred_check_branch
      %41 = sbr.rel (0) target = $region17
    $region16: #{tpu_custom_call.1} parent=1 // pred_region
      %s43 = ssub.s32 2048, 2048
      %44 = vsyncadd [#allocation6], %s43
      %s45 = sshll.u32 [#allocation7], 4
      %s46 = int_to_ptr.vmem [resolvable:$true] %s45
      %51 = dma.hbm_to_vmem [thread:$0]  %s3, 2048, %s46, [#allocation6], 128, 128, 8
    $region17: #{tpu_custom_call.1} parent=1 // pred_fallthru
      _
    // Predicated region
    $region18: #{tpu_custom_call.1} parent=1 // pred_check
      _
    $region19: #{tpu_custom_call.1} parent=1 // pred_check_branch
      %53 = sbr.rel (0) target = $region21
    $region20: #{tpu_custom_call.1} parent=1 // pred_region
      _
    $region21: #{tpu_custom_call.1} parent=1 // pred_fallthru
      _
    // Predicated region
    $region22: #{tpu_custom_call.1} parent=1 // pred_check
      _
    $region23: #{tpu_custom_call.1} parent=1 // pred_check_branch
      %55 = sbr.rel (0) target = $region25
    $region24: #{tpu_custom_call.1} parent=1 // pred_region
      %s57 = ssub.s32 2048, 2048
      %58 = vsyncadd [#allocation9], %s57
      %s59 = sshll.u32 [#allocation8], 4
      %s60 = int_to_ptr.vmem [resolvable:$true] %s59
      %65 = dma.hbm_to_vmem [thread:$0]  %s5, 2048, %s60, [#allocation9], 128, 128, 8
    $region25: #{tpu_custom_call.1} parent=1 // pred_fallthru
      _
    // Predicated region
    $region26: #{tpu_custom_call.1} parent=1 // pred_check
      _
    $region27: #{tpu_custom_call.1} parent=1 // pred_check_branch
      %67 = sbr.rel (0) target = $region29
    $region28: #{tpu_custom_call.1} parent=1 // pred_region
      _
    $region29: #{tpu_custom_call.1} parent=1 // pred_fallthru
      _
    // Predicated region
    $region30: #{tpu_custom_call.1} parent=1 // pred_check
      _
    $region31: #{tpu_custom_call.1} parent=1 // pred_check_branch
      %69 = sbr.rel (0) target = $region33
    $region32: #{tpu_custom_call.1} parent=1 // pred_region
      %70 = dma.done [#allocation3], 1024
    $region33: #{tpu_custom_call.1} parent=1 // pred_fallthru
      _
    // Predicated region
    $region34: #{tpu_custom_call.1} parent=1 // pred_check
      _
    $region35: #{tpu_custom_call.1} parent=1 // pred_check_branch
      %72 = sbr.rel (0) target = $region37
    $region36: #{tpu_custom_call.1} parent=1 // pred_region
      %73 = dma.done [#allocation6], 16384
    $region37: #{tpu_custom_call.1} parent=1 // pred_fallthru
      _
    // Predicated region
    $region38: #{tpu_custom_call.1} parent=1 // pred_check
      _
    $region39: #{tpu_custom_call.1} parent=1 // pred_check_branch
      %75 = sbr.rel (0) target = $region41
    $region40: #{tpu_custom_call.1} parent=1 // pred_region
      %76 = dma.done [#allocation6], 2048
    $region41: #{tpu_custom_call.1} parent=1 // pred_fallthru
      _
    // Predicated region
    $region42: #{tpu_custom_call.1} parent=1 // pred_check
      _
    $region43: #{tpu_custom_call.1} parent=1 // pred_check_branch
      %78 = sbr.rel (0) target = $region45
    $region44: #{tpu_custom_call.1} parent=1 // pred_region
      %79 = dma.done [#allocation9], 2048
    $region45: #{tpu_custom_call.1} parent=1 // pred_fallthru
      _
    %v80 = vld [vmem:[#allocation2] sm:$0xff]
    %v81 = vld [vmem:[#allocation2 + $0x8] sm:$0xff]
    %v82 = vld [vmem:[#allocation2 + $0x10] sm:$0xff]
    %v83 = vld [vmem:[#allocation2 + $0x18] sm:$0xff]
    %v84 = vld [vmem:[#allocation2 + $0x20] sm:$0xff]
    %v85 = vld [vmem:[#allocation2 + $0x28] sm:$0xff]
    %v86 = vld [vmem:[#allocation2 + $0x30] sm:$0xff]
    %v87 = vld [vmem:[#allocation2 + $0x38] sm:$0xff]
    %v88 = vld [vmem:[#allocation5] sm:$0xff]
    %v89 = vld [vmem:[#allocation5 + $0x8] sm:$0xff]
    %v90 = vld [vmem:[#allocation5 + $0x10] sm:$0xff]
    %v91 = vld [vmem:[#allocation5 + $0x18] sm:$0xff]
    %v92 = vld [vmem:[#allocation5 + $0x20] sm:$0xff]
    %v93 = vld [vmem:[#allocation5 + $0x28] sm:$0xff]
    %v94 = vld [vmem:[#allocation5 + $0x30] sm:$0xff]
    %v95 = vld [vmem:[#allocation5 + $0x38] sm:$0xff]
    %v96 = vld [vmem:[#allocation5 + $0x40] sm:$0xff]
    %v97 = vld [vmem:[#allocation5 + $0x48] sm:$0xff]
    %v98 = vld [vmem:[#allocation5 + $0x50] sm:$0xff]
    %v99 = vld [vmem:[#allocation5 + $0x58] sm:$0xff]
    %v100 = vld [vmem:[#allocation5 + $0x60] sm:$0xff]
    %v101 = vld [vmem:[#allocation5 + $0x68] sm:$0xff]
    %v102 = vld [vmem:[#allocation5 + $0x70] sm:$0xff]
    %v103 = vld [vmem:[#allocation5 + $0x78] sm:$0xff]
    %v104 = vld [vmem:[#allocation5 + $0x80] sm:$0xff]
    %v105 = vld [vmem:[#allocation5 + $0x88] sm:$0xff]
    %v106 = vld [vmem:[#allocation5 + $0x90] sm:$0xff]
    %v107 = vld [vmem:[#allocation5 + $0x98] sm:$0xff]
    %v108 = vld [vmem:[#allocation5 + $0xa0] sm:$0xff]
    %v109 = vld [vmem:[#allocation5 + $0xa8] sm:$0xff]
    %v110 = vld [vmem:[#allocation5 + $0xb0] sm:$0xff]
    %v111 = vld [vmem:[#allocation5 + $0xb8] sm:$0xff]
    %v112 = vld [vmem:[#allocation5 + $0xc0] sm:$0xff]
    %v113 = vld [vmem:[#allocation5 + $0xc8] sm:$0xff]
    %v114 = vld [vmem:[#allocation5 + $0xd0] sm:$0xff]
    %v115 = vld [vmem:[#allocation5 + $0xd8] sm:$0xff]
    %v116 = vld [vmem:[#allocation5 + $0xe0] sm:$0xff]
    %v117 = vld [vmem:[#allocation5 + $0xe8] sm:$0xff]
    %v118 = vld [vmem:[#allocation5 + $0xf0] sm:$0xff]
    %v119 = vld [vmem:[#allocation5 + $0xf8] sm:$0xff]
    %v120 = vld [vmem:[#allocation5 + $0x100] sm:$0xff]
    %v121 = vld [vmem:[#allocation5 + $0x108] sm:$0xff]
    %v122 = vld [vmem:[#allocation5 + $0x110] sm:$0xff]
    %v123 = vld [vmem:[#allocation5 + $0x118] sm:$0xff]
    %v124 = vld [vmem:[#allocation5 + $0x120] sm:$0xff]
    %v125 = vld [vmem:[#allocation5 + $0x128] sm:$0xff]
    %v126 = vld [vmem:[#allocation5 + $0x130] sm:$0xff]
    %v127 = vld [vmem:[#allocation5 + $0x138] sm:$0xff]
    %v128 = vld [vmem:[#allocation5 + $0x140] sm:$0xff]
    %v129 = vld [vmem:[#allocation5 + $0x148] sm:$0xff]
    %v130 = vld [vmem:[#allocation5 + $0x150] sm:$0xff]
    %v131 = vld [vmem:[#allocation5 + $0x158] sm:$0xff]
    %v132 = vld [vmem:[#allocation5 + $0x160] sm:$0xff]
    %v133 = vld [vmem:[#allocation5 + $0x168] sm:$0xff]
    %v134 = vld [vmem:[#allocation5 + $0x170] sm:$0xff]
    %v135 = vld [vmem:[#allocation5 + $0x178] sm:$0xff]
    %v136 = vld [vmem:[#allocation5 + $0x180] sm:$0xff]
    %v137 = vld [vmem:[#allocation5 + $0x188] sm:$0xff]
    %v138 = vld [vmem:[#allocation5 + $0x190] sm:$0xff]
    %v139 = vld [vmem:[#allocation5 + $0x198] sm:$0xff]
    %v140 = vld [vmem:[#allocation5 + $0x1a0] sm:$0xff]
    %v141 = vld [vmem:[#allocation5 + $0x1a8] sm:$0xff]
    %v142 = vld [vmem:[#allocation5 + $0x1b0] sm:$0xff]
    %v143 = vld [vmem:[#allocation5 + $0x1b8] sm:$0xff]
    %v144 = vld [vmem:[#allocation5 + $0x1c0] sm:$0xff]
    %v145 = vld [vmem:[#allocation5 + $0x1c8] sm:$0xff]
    %v146 = vld [vmem:[#allocation5 + $0x1d0] sm:$0xff]
    %v147 = vld [vmem:[#allocation5 + $0x1d8] sm:$0xff]
    %v148 = vld [vmem:[#allocation5 + $0x1e0] sm:$0xff]
    %v149 = vld [vmem:[#allocation5 + $0x1e8] sm:$0xff]
    %v150 = vld [vmem:[#allocation5 + $0x1f0] sm:$0xff]
    %v151 = vld [vmem:[#allocation5 + $0x1f8] sm:$0xff]
    %v152 = vld [vmem:[#allocation5 + $0x200] sm:$0xff]
    %v153 = vld [vmem:[#allocation5 + $0x208] sm:$0xff]
    %v154 = vld [vmem:[#allocation5 + $0x210] sm:$0xff]
    %v155 = vld [vmem:[#allocation5 + $0x218] sm:$0xff]
    %v156 = vld [vmem:[#allocation5 + $0x220] sm:$0xff]
    %v157 = vld [vmem:[#allocation5 + $0x228] sm:$0xff]
    %v158 = vld [vmem:[#allocation5 + $0x230] sm:$0xff]
    %v159 = vld [vmem:[#allocation5 + $0x238] sm:$0xff]
    %v160 = vld [vmem:[#allocation5 + $0x240] sm:$0xff]
    %v161 = vld [vmem:[#allocation5 + $0x248] sm:$0xff]
    %v162 = vld [vmem:[#allocation5 + $0x250] sm:$0xff]
    %v163 = vld [vmem:[#allocation5 + $0x258] sm:$0xff]
    %v164 = vld [vmem:[#allocation5 + $0x260] sm:$0xff]
    %v165 = vld [vmem:[#allocation5 + $0x268] sm:$0xff]
    %v166 = vld [vmem:[#allocation5 + $0x270] sm:$0xff]
    %v167 = vld [vmem:[#allocation5 + $0x278] sm:$0xff]
    %v168 = vld [vmem:[#allocation5 + $0x280] sm:$0xff]
    %v169 = vld [vmem:[#allocation5 + $0x288] sm:$0xff]
    %v170 = vld [vmem:[#allocation5 + $0x290] sm:$0xff]
    %v171 = vld [vmem:[#allocation5 + $0x298] sm:$0xff]
    %v172 = vld [vmem:[#allocation5 + $0x2a0] sm:$0xff]
    %v173 = vld [vmem:[#allocation5 + $0x2a8] sm:$0xff]
    %v174 = vld [vmem:[#allocation5 + $0x2b0] sm:$0xff]
    %v175 = vld [vmem:[#allocation5 + $0x2b8] sm:$0xff]
    %v176 = vld [vmem:[#allocation5 + $0x2c0] sm:$0xff]
    %v177 = vld [vmem:[#allocation5 + $0x2c8] sm:$0xff]
    %v178 = vld [vmem:[#allocation5 + $0x2d0] sm:$0xff]
    %v179 = vld [vmem:[#allocation5 + $0x2d8] sm:$0xff]
    %v180 = vld [vmem:[#allocation5 + $0x2e0] sm:$0xff]
    %v181 = vld [vmem:[#allocation5 + $0x2e8] sm:$0xff]
    %v182 = vld [vmem:[#allocation5 + $0x2f0] sm:$0xff]
    %v183 = vld [vmem:[#allocation5 + $0x2f8] sm:$0xff]
    %v184 = vld [vmem:[#allocation5 + $0x300] sm:$0xff]
    %v185 = vld [vmem:[#allocation5 + $0x308] sm:$0xff]
    %v186 = vld [vmem:[#allocation5 + $0x310] sm:$0xff]
    %v187 = vld [vmem:[#allocation5 + $0x318] sm:$0xff]
    %v188 = vld [vmem:[#allocation5 + $0x320] sm:$0xff]
    %v189 = vld [vmem:[#allocation5 + $0x328] sm:$0xff]
    %v190 = vld [vmem:[#allocation5 + $0x330] sm:$0xff]
    %v191 = vld [vmem:[#allocation5 + $0x338] sm:$0xff]
    %v192 = vld [vmem:[#allocation5 + $0x340] sm:$0xff]
    %v193 = vld [vmem:[#allocation5 + $0x348] sm:$0xff]
    %v194 = vld [vmem:[#allocation5 + $0x350] sm:$0xff]
    %v195 = vld [vmem:[#allocation5 + $0x358] sm:$0xff]
    %v196 = vld [vmem:[#allocation5 + $0x360] sm:$0xff]
    %v197 = vld [vmem:[#allocation5 + $0x368] sm:$0xff]
    %v198 = vld [vmem:[#allocation5 + $0x370] sm:$0xff]
    %v199 = vld [vmem:[#allocation5 + $0x378] sm:$0xff]
    %v200 = vld [vmem:[#allocation5 + $0x380] sm:$0xff]
    %v201 = vld [vmem:[#allocation5 + $0x388] sm:$0xff]
    %v202 = vld [vmem:[#allocation5 + $0x390] sm:$0xff]
    %v203 = vld [vmem:[#allocation5 + $0x398] sm:$0xff]
    %v204 = vld [vmem:[#allocation5 + $0x3a0] sm:$0xff]
    %v205 = vld [vmem:[#allocation5 + $0x3a8] sm:$0xff]
    %v206 = vld [vmem:[#allocation5 + $0x3b0] sm:$0xff]
    %v207 = vld [vmem:[#allocation5 + $0x3b8] sm:$0xff]
    %v208 = vld [vmem:[#allocation5 + $0x3c0] sm:$0xff]
    %v209 = vld [vmem:[#allocation5 + $0x3c8] sm:$0xff]
    %v210 = vld [vmem:[#allocation5 + $0x3d0] sm:$0xff]
    %v211 = vld [vmem:[#allocation5 + $0x3d8] sm:$0xff]
    %v212 = vld [vmem:[#allocation5 + $0x3e0] sm:$0xff]
    %v213 = vld [vmem:[#allocation5 + $0x3e8] sm:$0xff]
    %v214 = vld [vmem:[#allocation5 + $0x3f0] sm:$0xff]
    %v215 = vld [vmem:[#allocation5 + $0x3f8] sm:$0xff]
    %v216 = vld [vmem:[%s2] sm:$0x1]
    %v217 = vlaneseq
    %v218 = vshrl.u32 %v217, 7
    %v219 = vsub.s32 0, %v218
    %v220 = vrot.slane %v216, %v219
    %221 = vmatprep.subr.mxu0 0.0
    %v222 = vand.u32 %v88, 4294901760
    %223 = vmatpush1.msra.mxu0 %v222
    %224 = vmatprep.subr.mxu0 0.0
    %v225 = vand.u32 %v89, 4294901760
    %226 = vmatpush1.msra.mxu0 %v225
    %227 = vmatprep.subr.mxu0 0.0
    %v228 = vand.u32 %v90, 4294901760
    %229 = vmatpush1.msra.mxu0 %v228
    %230 = vmatprep.subr.mxu0 0.0
    %v231 = vand.u32 %v91, 4294901760
    %232 = vmatpush1.msra.mxu0 %v231
    %233 = vmatprep.subr.mxu0 0.0
    %v234 = vand.u32 %v92, 4294901760
    %235 = vmatpush1.msra.mxu0 %v234
    %236 = vmatprep.subr.mxu0 0.0
    %v237 = vand.u32 %v93, 4294901760
    %238 = vmatpush1.msra.mxu0 %v237
    %239 = vmatprep.subr.mxu0 0.0
    %v240 = vand.u32 %v94, 4294901760
    %241 = vmatpush1.msra.mxu0 %v240
    %242 = vmatprep.subr.mxu0 0.0
    %v243 = vand.u32 %v95, 4294901760
    %244 = vmatpush1.msra.mxu0 %v243
    %245 = vmatprep.subr.mxu0 0.0
    %v246 = vand.u32 %v96, 4294901760
    %247 = vmatpush1.msra.mxu0 %v246
    %248 = vmatprep.subr.mxu0 0.0
    %v249 = vand.u32 %v97, 4294901760
    %250 = vmatpush1.msra.mxu0 %v249
    %251 = vmatprep.subr.mxu0 0.0
    %v252 = vand.u32 %v98, 4294901760
    %253 = vmatpush1.msra.mxu0 %v252
    %254 = vmatprep.subr.mxu0 0.0
    %v255 = vand.u32 %v99, 4294901760
    %256 = vmatpush1.msra.mxu0 %v255
    %257 = vmatprep.subr.mxu0 0.0
    %v258 = vand.u32 %v100, 4294901760
    %259 = vmatpush1.msra.mxu0 %v258
    %260 = vmatprep.subr.mxu0 0.0
    %v261 = vand.u32 %v101, 4294901760
    %262 = vmatpush1.msra.mxu0 %v261
    %263 = vmatprep.subr.mxu0 0.0
    %v264 = vand.u32 %v102, 4294901760
    %265 = vmatpush1.msra.mxu0 %v264
    %266 = vmatprep.subr.mxu0 0.0
    %v267 = vand.u32 %v103, 4294901760
    %268 = vmatpush1.msra.mxu0 %v267
    %269 = vmatprep.subr.mxu0 0.0
    %v270 = vand.u32 %v104, 4294901760
    %271 = vmatpush1.msra.mxu0 %v270
    %272 = vmatprep.subr.mxu0 0.0
    %v273 = vand.u32 %v105, 4294901760
    %274 = vmatpush1.msra.mxu0 %v273
    %275 = vmatprep.subr.mxu0 0.0
    %v276 = vand.u32 %v106, 4294901760
    %277 = vmatpush1.msra.mxu0 %v276
    %278 = vmatprep.subr.mxu0 0.0
    %v279 = vand.u32 %v107, 4294901760
    %280 = vmatpush1.msra.mxu0 %v279
    %281 = vmatprep.subr.mxu0 0.0
    %v282 = vand.u32 %v108, 4294901760
    %283 = vmatpush1.msra.mxu0 %v282
    %284 = vmatprep.subr.mxu0 0.0
    %v285 = vand.u32 %v109, 4294901760
    %286 = vmatpush1.msra.mxu0 %v285
    %287 = vmatprep.subr.mxu0 0.0
    %v288 = vand.u32 %v110, 4294901760
    %289 = vmatpush1.msra.mxu0 %v288
    %290 = vmatprep.subr.mxu0 0.0
    %v291 = vand.u32 %v111, 4294901760
    %292 = vmatpush1.msra.mxu0 %v291
    %293 = vmatprep.subr.mxu0 0.0
    %v294 = vand.u32 %v112, 4294901760
    %295 = vmatpush1.msra.mxu0 %v294
    %296 = vmatprep.subr.mxu0 0.0
    %v297 = vand.u32 %v113, 4294901760
    %298 = vmatpush1.msra.mxu0 %v297
    %299 = vmatprep.subr.mxu0 0.0
    %v300 = vand.u32 %v114, 4294901760
    %301 = vmatpush1.msra.mxu0 %v300
    %302 = vmatprep.subr.mxu0 0.0
    %v303 = vand.u32 %v115, 4294901760
    %304 = vmatpush1.msra.mxu0 %v303
    %305 = vmatprep.subr.mxu0 0.0
    %v306 = vand.u32 %v116, 4294901760
    %307 = vmatpush1.msra.mxu0 %v306
    %308 = vmatprep.subr.mxu0 0.0
    %v309 = vand.u32 %v117, 4294901760
    %310 = vmatpush1.msra.mxu0 %v309
    %311 = vmatprep.subr.mxu0 0.0
    %v312 = vand.u32 %v118, 4294901760
    %313 = vmatpush1.msra.mxu0 %v312
    %314 = vmatprep.subr.mxu0 0.0
    %v315 = vand.u32 %v119, 4294901760
    %316 = vmatpush1.msra.mxu0 %v315
    %v317 = vand.u32 %v81, 4294901760
    %v318 = vsub.f32 %v81, %v317
    %v319 = vand.u32 %v318, 4294901760
    %v320 = vsub.f32 %v318, %v319
    %v321 = vand.u32 %v320, 4294901760
    %322 = vmatprep.mubr.f32.mxu0 %v321
    %v323 = vand.u32 %v80, 4294901760
    %v324 = vsub.f32 %v80, %v323
    %v325 = vand.u32 %v324, 4294901760
    %v326 = vsub.f32 %v324, %v325
    %v327 = vand.u32 %v326, 4294901760
    %328 = vmatmul.mubr.f32.gmra.mrb[0].mxu0 %v327
    %v329 = vpop.f32.mrb[0].mxu0
    %v330 = vadd.f32 %v220, %v329
    %v331 = vpop.f32.mrb[0].mxu0
    %332 = vdwg.mxu0
    %333 = vmatprep.subr.mxu0 0.0
    %v334 = vand.u32 %v88, 4294901760
    %v335 = vsub.f32 %v88, %v334
    %v336 = vand.u32 %v335, 4294901760
    %v337 = vsub.f32 %v335, %v336
    %v338 = vand.u32 %v337, 4294901760
    %339 = vmatpush1.msra.mxu0 %v338
    %340 = vmatprep.subr.mxu0 0.0
    %v341 = vand.u32 %v89, 4294901760
    %v342 = vsub.f32 %v89, %v341
    %v343 = vand.u32 %v342, 4294901760
    %v344 = vsub.f32 %v342, %v343
    %v345 = vand.u32 %v344, 4294901760
    %346 = vmatpush1.msra.mxu0 %v345
    %347 = vmatprep.subr.mxu0 0.0
    %v348 = vand.u32 %v90, 4294901760
    %v349 = vsub.f32 %v90, %v348
    %v350 = vand.u32 %v349, 4294901760
    %v351 = vsub.f32 %v349, %v350
    %v352 = vand.u32 %v351, 4294901760
    %353 = vmatpush1.msra.mxu0 %v352
    %354 = vmatprep.subr.mxu0 0.0
    %v355 = vand.u32 %v91, 4294901760
    %v356 = vsub.f32 %v91, %v355
    %v357 = vand.u32 %v356, 4294901760
    %v358 = vsub.f32 %v356, %v357
    %v359 = vand.u32 %v358, 4294901760
    %360 = vmatpush1.msra.mxu0 %v359
    %361 = vmatprep.subr.mxu0 0.0
    %v362 = vand.u32 %v92, 4294901760
    %v363 = vsub.f32 %v92, %v362
    %v364 = vand.u32 %v363, 4294901760
    %v365 = vsub.f32 %v363, %v364
    %v366 = vand.u32 %v365, 4294901760
    %367 = vmatpush1.msra.mxu0 %v366
    %368 = vmatprep.subr.mxu0 0.0
    %v369 = vand.u32 %v93, 4294901760
    %v370 = vsub.f32 %v93, %v369
    %v371 = vand.u32 %v370, 4294901760
    %v372 = vsub.f32 %v370, %v371
    %v373 = vand.u32 %v372, 4294901760
    %374 = vmatpush1.msra.mxu0 %v373
    %375 = vmatprep.subr.mxu0 0.0
    %v376 = vand.u32 %v94, 4294901760
    %v377 = vsub.f32 %v94, %v376
    %v378 = vand.u32 %v377, 4294901760
    %v379 = vsub.f32 %v377, %v378
    %v380 = vand.u32 %v379, 4294901760
    %381 = vmatpush1.msra.mxu0 %v380
    %382 = vmatprep.subr.mxu0 0.0
    %v383 = vand.u32 %v95, 4294901760
    %v384 = vsub.f32 %v95, %v383
    %v385 = vand.u32 %v384, 4294901760
    %v386 = vsub.f32 %v384, %v385
    %v387 = vand.u32 %v386, 4294901760
    %388 = vmatpush1.msra.mxu0 %v387
    %389 = vmatprep.subr.mxu0 0.0
    %v390 = vand.u32 %v96, 4294901760
    %v391 = vsub.f32 %v96, %v390
    %v392 = vand.u32 %v391, 4294901760
    %v393 = vsub.f32 %v391, %v392
    %v394 = vand.u32 %v393, 4294901760
    %395 = vmatpush1.msra.mxu0 %v394
    %396 = vmatprep.subr.mxu0 0.0
    %v397 = vand.u32 %v97, 4294901760
    %v398 = vsub.f32 %v97, %v397
    %v399 = vand.u32 %v398, 4294901760
    %v400 = vsub.f32 %v398, %v399
    %v401 = vand.u32 %v400, 4294901760
    %402 = vmatpush1.msra.mxu0 %v401
    %403 = vmatprep.subr.mxu0 0.0
    %v404 = vand.u32 %v98, 4294901760
    %v405 = vsub.f32 %v98, %v404
    %v406 = vand.u32 %v405, 4294901760
    %v407 = vsub.f32 %v405, %v406
    %v408 = vand.u32 %v407, 4294901760
    %409 = vmatpush1.msra.mxu0 %v408
    %410 = vmatprep.subr.mxu0 0.0
    %v411 = vand.u32 %v99, 4294901760
    %v412 = vsub.f32 %v99, %v411
    %v413 = vand.u32 %v412, 4294901760
    %v414 = vsub.f32 %v412, %v413
    %v415 = vand.u32 %v414, 4294901760
    %416 = vmatpush1.msra.mxu0 %v415
    %417 = vmatprep.subr.mxu0 0.0
    %v418 = vand.u32 %v100, 4294901760
    %v419 = vsub.f32 %v100, %v418
    %v420 = vand.u32 %v419, 4294901760
    %v421 = vsub.f32 %v419, %v420
    %v422 = vand.u32 %v421, 4294901760
    %423 = vmatpush1.msra.mxu0 %v422
    %424 = vmatprep.subr.mxu0 0.0
    %v425 = vand.u32 %v101, 4294901760
    %v426 = vsub.f32 %v101, %v425
    %v427 = vand.u32 %v426, 4294901760
    %v428 = vsub.f32 %v426, %v427
    %v429 = vand.u32 %v428, 4294901760
    %430 = vmatpush1.msra.mxu0 %v429
    %431 = vmatprep.subr.mxu0 0.0
    %v432 = vand.u32 %v102, 4294901760
    %v433 = vsub.f32 %v102, %v432
    %v434 = vand.u32 %v433, 4294901760
    %v435 = vsub.f32 %v433, %v434
    %v436 = vand.u32 %v435, 4294901760
    %437 = vmatpush1.msra.mxu0 %v436
    %438 = vmatprep.subr.mxu0 0.0
    %v439 = vand.u32 %v103, 4294901760
    %v440 = vsub.f32 %v103, %v439
    %v441 = vand.u32 %v440, 4294901760
    %v442 = vsub.f32 %v440, %v441
    %v443 = vand.u32 %v442, 4294901760
    %444 = vmatpush1.msra.mxu0 %v443
    %445 = vmatprep.subr.mxu0 0.0
    %v446 = vand.u32 %v104, 4294901760
    %v447 = vsub.f32 %v104, %v446
    %v448 = vand.u32 %v447, 4294901760
    %v449 = vsub.f32 %v447, %v448
    %v450 = vand.u32 %v449, 4294901760
    %451 = vmatpush1.msra.mxu0 %v450
    %452 = vmatprep.subr.mxu0 0.0
    %v453 = vand.u32 %v105, 4294901760
    %v454 = vsub.f32 %v105, %v453
    %v455 = vand.u32 %v454, 4294901760
    %v456 = vsub.f32 %v454, %v455
    %v457 = vand.u32 %v456, 4294901760
    %458 = vmatpush1.msra.mxu0 %v457
    %459 = vmatprep.subr.mxu0 0.0
    %v460 = vand.u32 %v106, 4294901760
    %v461 = vsub.f32 %v106, %v460
    %v462 = vand.u32 %v461, 4294901760
    %v463 = vsub.f32 %v461, %v462
    %v464 = vand.u32 %v463, 4294901760
    %465 = vmatpush1.msra.mxu0 %v464
    %466 = vmatprep.subr.mxu0 0.0
    %v467 = vand.u32 %v107, 4294901760
    %v468 = vsub.f32 %v107, %v467
    %v469 = vand.u32 %v468, 4294901760
    %v470 = vsub.f32 %v468, %v469
    %v471 = vand.u32 %v470, 4294901760
    %472 = vmatpush1.msra.mxu0 %v471
    %473 = vmatprep.subr.mxu0 0.0
    %v474 = vand.u32 %v108, 4294901760
    %v475 = vsub.f32 %v108, %v474
    %v476 = vand.u32 %v475, 4294901760
    %v477 = vsub.f32 %v475, %v476
    %v478 = vand.u32 %v477, 4294901760
    %479 = vmatpush1.msra.mxu0 %v478
    %480 = vmatprep.subr.mxu0 0.0
    %v481 = vand.u32 %v109, 4294901760
    %v482 = vsub.f32 %v109, %v481
    %v483 = vand.u32 %v482, 4294901760
    %v484 = vsub.f32 %v482, %v483
    %v485 = vand.u32 %v484, 4294901760
    %486 = vmatpush1.msra.mxu0 %v485
    %487 = vmatprep.subr.mxu0 0.0
    %v488 = vand.u32 %v110, 4294901760
    %v489 = vsub.f32 %v110, %v488
    %v490 = vand.u32 %v489, 4294901760
    %v491 = vsub.f32 %v489, %v490
    %v492 = vand.u32 %v491, 4294901760
    %493 = vmatpush1.msra.mxu0 %v492
    %494 = vmatprep.subr.mxu0 0.0
    %v495 = vand.u32 %v111, 4294901760
    %v496 = vsub.f32 %v111, %v495
    %v497 = vand.u32 %v496, 4294901760
    %v498 = vsub.f32 %v496, %v497
    %v499 = vand.u32 %v498, 4294901760
    %500 = vmatpush1.msra.mxu0 %v499
    %501 = vmatprep.subr.mxu0 0.0
    %v502 = vand.u32 %v112, 4294901760
    %v503 = vsub.f32 %v112, %v502
    %v504 = vand.u32 %v503, 4294901760
    %v505 = vsub.f32 %v503, %v504
    %v506 = vand.u32 %v505, 4294901760
    %507 = vmatpush1.msra.mxu0 %v506
    %508 = vmatprep.subr.mxu0 0.0
    %v509 = vand.u32 %v113, 4294901760
    %v510 = vsub.f32 %v113, %v509
    %v511 = vand.u32 %v510, 4294901760
    %v512 = vsub.f32 %v510, %v511
    %v513 = vand.u32 %v512, 4294901760
    %514 = vmatpush1.msra.mxu0 %v513
    %515 = vmatprep.subr.mxu0 0.0
    %v516 = vand.u32 %v114, 4294901760
    %v517 = vsub.f32 %v114, %v516
    %v518 = vand.u32 %v517, 4294901760
    %v519 = vsub.f32 %v517, %v518
    %v520 = vand.u32 %v519, 4294901760
    %521 = vmatpush1.msra.mxu0 %v520
    %522 = vmatprep.subr.mxu0 0.0
    %v523 = vand.u32 %v115, 4294901760
    %v524 = vsub.f32 %v115, %v523
    %v525 = vand.u32 %v524, 4294901760
    %v526 = vsub.f32 %v524, %v525
    %v527 = vand.u32 %v526, 4294901760
    %528 = vmatpush1.msra.mxu0 %v527
    %529 = vmatprep.subr.mxu0 0.0
    %v530 = vand.u32 %v116, 4294901760
    %v531 = vsub.f32 %v116, %v530
    %v532 = vand.u32 %v531, 4294901760
    %v533 = vsub.f32 %v531, %v532
    %v534 = vand.u32 %v533, 4294901760
    %535 = vmatpush1.msra.mxu0 %v534
    %536 = vmatprep.subr.mxu0 0.0
    %v537 = vand.u32 %v117, 4294901760
    %v538 = vsub.f32 %v117, %v537
    %v539 = vand.u32 %v538, 4294901760
    %v540 = vsub.f32 %v538, %v539
    %v541 = vand.u32 %v540, 4294901760
    %542 = vmatpush1.msra.mxu0 %v541
    %543 = vmatprep.subr.mxu0 0.0
    %v544 = vand.u32 %v118, 4294901760
    %v545 = vsub.f32 %v118, %v544
    %v546 = vand.u32 %v545, 4294901760
    %v547 = vsub.f32 %v545, %v546
    %v548 = vand.u32 %v547, 4294901760
    %549 = vmatpush1.msra.mxu0 %v548
    %550 = vmatprep.subr.mxu0 0.0
    %v551 = vand.u32 %v119, 4294901760
    %v552 = vsub.f32 %v119, %v551
    %v553 = vand.u32 %v552, 4294901760
    %v554 = vsub.f32 %v552, %v553
    %v555 = vand.u32 %v554, 4294901760
    %556 = vmatpush1.msra.mxu0 %v555
    %v557 = vand.u32 %v81, 4294901760
    %558 = vmatprep.mubr.f32.mxu0 %v557
    %v559 = vand.u32 %v80, 4294901760
    %560 = vmatmul.mubr.f32.gmra.mrb[0].mxu0 %v559
    %v561 = vpop.f32.mrb[0].mxu0
    %v562 = vadd.f32 %v330, %v561
    %v563 = vpop.f32.mrb[0].mxu0
    %564 = vdwg.mxu0
    %565 = vmatprep.subr.mxu0 0.0
    %v566 = vand.u32 %v88, 4294901760
    %v567 = vsub.f32 %v88, %v566
    %568 = vmatpush1.msra.mxu0 %v567
    %569 = vmatprep.subr.mxu0 0.0
    %v570 = vand.u32 %v89, 4294901760
    %v571 = vsub.f32 %v89, %v570
    %572 = vmatpush1.msra.mxu0 %v571
    %573 = vmatprep.subr.mxu0 0.0
    %v574 = vand.u32 %v90, 4294901760
    %v575 = vsub.f32 %v90, %v574
    %576 = vmatpush1.msra.mxu0 %v575
    %577 = vmatprep.subr.mxu0 0.0
    %v578 = vand.u32 %v91, 4294901760
    %v579 = vsub.f32 %v91, %v578
    %580 = vmatpush1.msra.mxu0 %v579
    %581 = vmatprep.subr.mxu0 0.0
    %v582 = vand.u32 %v92, 4294901760
    %v583 = vsub.f32 %v92, %v582
    %584 = vmatpush1.msra.mxu0 %v583
    %585 = vmatprep.subr.mxu0 0.0
    %v586 = vand.u32 %v93, 4294901760
    %v587 = vsub.f32 %v93, %v586
    %588 = vmatpush1.msra.mxu0 %v587
    %589 = vmatprep.subr.mxu0 0.0
    %v590 = vand.u32 %v94, 4294901760
    %v591 = vsub.f32 %v94, %v590
    %592 = vmatpush1.msra.mxu0 %v591
    %593 = vmatprep.subr.mxu0 0.0
    %v594 = vand.u32 %v95, 4294901760
    %v595 = vsub.f32 %v95, %v594
    %596 = vmatpush1.msra.mxu0 %v595
    %597 = vmatprep.subr.mxu0 0.0
    %v598 = vand.u32 %v96, 4294901760
    %v599 = vsub.f32 %v96, %v598
    %600 = vmatpush1.msra.mxu0 %v599
    %601 = vmatprep.subr.mxu0 0.0
    %v602 = vand.u32 %v97, 4294901760
    %v603 = vsub.f32 %v97, %v602
    %604 = vmatpush1.msra.mxu0 %v603
    %605 = vmatprep.subr.mxu0 0.0
    %v606 = vand.u32 %v98, 4294901760
    %v607 = vsub.f32 %v98, %v606
    %608 = vmatpush1.msra.mxu0 %v607
    %609 = vmatprep.subr.mxu0 0.0
    %v610 = vand.u32 %v99, 4294901760
    %v611 = vsub.f32 %v99, %v610
    %612 = vmatpush1.msra.mxu0 %v611
    %613 = vmatprep.subr.mxu0 0.0
    %v614 = vand.u32 %v100, 4294901760
    %v615 = vsub.f32 %v100, %v614
    %616 = vmatpush1.msra.mxu0 %v615
    %617 = vmatprep.subr.mxu0 0.0
    %v618 = vand.u32 %v101, 4294901760
    %v619 = vsub.f32 %v101, %v618
    %620 = vmatpush1.msra.mxu0 %v619
    %621 = vmatprep.subr.mxu0 0.0
    %v622 = vand.u32 %v102, 4294901760
    %v623 = vsub.f32 %v102, %v622
    %624 = vmatpush1.msra.mxu0 %v623
    %625 = vmatprep.subr.mxu0 0.0
    %v626 = vand.u32 %v103, 4294901760
    %v627 = vsub.f32 %v103, %v626
    %628 = vmatpush1.msra.mxu0 %v627
    %629 = vmatprep.subr.mxu0 0.0
    %v630 = vand.u32 %v104, 4294901760
    %v631 = vsub.f32 %v104, %v630
    %632 = vmatpush1.msra.mxu0 %v631
    %633 = vmatprep.subr.mxu0 0.0
    %v634 = vand.u32 %v105, 4294901760
    %v635 = vsub.f32 %v105, %v634
    %636 = vmatpush1.msra.mxu0 %v635
    %637 = vmatprep.subr.mxu0 0.0
    %v638 = vand.u32 %v106, 4294901760
    %v639 = vsub.f32 %v106, %v638
    %640 = vmatpush1.msra.mxu0 %v639
    %641 = vmatprep.subr.mxu0 0.0
    %v642 = vand.u32 %v107, 4294901760
    %v643 = vsub.f32 %v107, %v642
    %644 = vmatpush1.msra.mxu0 %v643
    %645 = vmatprep.subr.mxu0 0.0
    %v646 = vand.u32 %v108, 4294901760
    %v647 = vsub.f32 %v108, %v646
    %648 = vmatpush1.msra.mxu0 %v647
    %649 = vmatprep.subr.mxu0 0.0
    %v650 = vand.u32 %v109, 4294901760
    %v651 = vsub.f32 %v109, %v650
    %652 = vmatpush1.msra.mxu0 %v651
    %653 = vmatprep.subr.mxu0 0.0
    %v654 = vand.u32 %v110, 4294901760
    %v655 = vsub.f32 %v110, %v654
    %656 = vmatpush1.msra.mxu0 %v655
    %657 = vmatprep.subr.mxu0 0.0
    %v658 = vand.u32 %v111, 4294901760
    %v659 = vsub.f32 %v111, %v658
    %660 = vmatpush1.msra.mxu0 %v659
    %661 = vmatprep.subr.mxu0 0.0
    %v662 = vand.u32 %v112, 4294901760
    %v663 = vsub.f32 %v112, %v662
    %664 = vmatpush1.msra.mxu0 %v663
    %665 = vmatprep.subr.mxu0 0.0
    %v666 = vand.u32 %v113, 4294901760
    %v667 = vsub.f32 %v113, %v666
    %668 = vmatpush1.msra.mxu0 %v667
    %669 = vmatprep.subr.mxu0 0.0
    %v670 = vand.u32 %v114, 4294901760
    %v671 = vsub.f32 %v114, %v670
    %672 = vmatpush1.msra.mxu0 %v671
    %673 = vmatprep.subr.mxu0 0.0
    %v674 = vand.u32 %v115, 4294901760
    %v675 = vsub.f32 %v115, %v674
    %676 = vmatpush1.msra.mxu0 %v675
    %677 = vmatprep.subr.mxu0 0.0
    %v678 = vand.u32 %v116, 4294901760
    %v679 = vsub.f32 %v116, %v678
    %680 = vmatpush1.msra.mxu0 %v679
    %681 = vmatprep.subr.mxu0 0.0
    %v682 = vand.u32 %v117, 4294901760
    %v683 = vsub.f32 %v117, %v682
    %684 = vmatpush1.msra.mxu0 %v683
    %685 = vmatprep.subr.mxu0 0.0
    %v686 = vand.u32 %v118, 4294901760
    %v687 = vsub.f32 %v118, %v686
    %688 = vmatpush1.msra.mxu0 %v687
    %689 = vmatprep.subr.mxu0 0.0
    %v690 = vand.u32 %v119, 4294901760
    %v691 = vsub.f32 %v119, %v690
    %692 = vmatpush1.msra.mxu0 %v691
    %v693 = vand.u32 %v81, 4294901760
    %v694 = vsub.f32 %v81, %v693
    %695 = vmatprep.mubr.f32.mxu0 %v694
    %v696 = vand.u32 %v80, 4294901760
    %v697 = vsub.f32 %v80, %v696
    %698 = vmatmul.mubr.f32.gmra.mrb[0].mxu0 %v697
    %v699 = vpop.f32.mrb[0].mxu0
    %v700 = vadd.f32 %v562, %v699
    %v701 = vpop.f32.mrb[0].mxu0
    %702 = vdwg.mxu0
    %703 = vmatprep.subr.mxu0 0.0
    %v704 = vand.u32 %v88, 4294901760
    %705 = vmatpush1.msra.mxu0 %v704
    %706 = vmatprep.subr.mxu0 0.0
    %v707 = vand.u32 %v89, 4294901760
    %708 = vmatpush1.msra.mxu0 %v707
    %709 = vmatprep.subr.mxu0 0.0
    %v710 = vand.u32 %v90, 4294901760
    %711 = vmatpush1.msra.mxu0 %v710
    %712 = vmatprep.subr.mxu0 0.0
    %v713 = vand.u32 %v91, 4294901760
    %714 = vmatpush1.msra.mxu0 %v713
    %715 = vmatprep.subr.mxu0 0.0
    %v716 = vand.u32 %v92, 4294901760
    %717 = vmatpush1.msra.mxu0 %v716
    %718 = vmatprep.subr.mxu0 0.0
    %v719 = vand.u32 %v93, 4294901760
    %720 = vmatpush1.msra.mxu0 %v719
    %721 = vmatprep.subr.mxu0 0.0
    %v722 = vand.u32 %v94, 4294901760
    %723 = vmatpush1.msra.mxu0 %v722
    %724 = vmatprep.subr.mxu0 0.0
    %v725 = vand.u32 %v95, 4294901760
    %726 = vmatpush1.msra.mxu0 %v725
    %727 = vmatprep.subr.mxu0 0.0
    %v728 = vand.u32 %v96, 4294901760
    %729 = vmatpush1.msra.mxu0 %v728
    %730 = vmatprep.subr.mxu0 0.0
    %v731 = vand.u32 %v97, 4294901760
    %732 = vmatpush1.msra.mxu0 %v731
    %733 = vmatprep.subr.mxu0 0.0
    %v734 = vand.u32 %v98, 4294901760
    %735 = vmatpush1.msra.mxu0 %v734
    %736 = vmatprep.subr.mxu0 0.0
    %v737 = vand.u32 %v99, 4294901760
    %738 = vmatpush1.msra.mxu0 %v737
    %739 = vmatprep.subr.mxu0 0.0
    %v740 = vand.u32 %v100, 4294901760
    %741 = vmatpush1.msra.mxu0 %v740
    %742 = vmatprep.subr.mxu0 0.0
    %v743 = vand.u32 %v101, 4294901760
    %744 = vmatpush1.msra.mxu0 %v743
    %745 = vmatprep.subr.mxu0 0.0
    %v746 = vand.u32 %v102, 4294901760
    %747 = vmatpush1.msra.mxu0 %v746
    %748 = vmatprep.subr.mxu0 0.0
    %v749 = vand.u32 %v103, 4294901760
    %750 = vmatpush1.msra.mxu0 %v749
    %751 = vmatprep.subr.mxu0 0.0
    %v752 = vand.u32 %v104, 4294901760
    %753 = vmatpush1.msra.mxu0 %v752
    %754 = vmatprep.subr.mxu0 0.0
    %v755 = vand.u32 %v105, 4294901760
    %756 = vmatpush1.msra.mxu0 %v755
    %757 = vmatprep.subr.mxu0 0.0
    %v758 = vand.u32 %v106, 4294901760
    %759 = vmatpush1.msra.mxu0 %v758
    %760 = vmatprep.subr.mxu0 0.0
    %v761 = vand.u32 %v107, 4294901760
    %762 = vmatpush1.msra.mxu0 %v761
    %763 = vmatprep.subr.mxu0 0.0
    %v764 = vand.u32 %v108, 4294901760
    %765 = vmatpush1.msra.mxu0 %v764
    %766 = vmatprep.subr.mxu0 0.0
    %v767 = vand.u32 %v109, 4294901760
    %768 = vmatpush1.msra.mxu0 %v767
    %769 = vmatprep.subr.mxu0 0.0
    %v770 = vand.u32 %v110, 4294901760
    %771 = vmatpush1.msra.mxu0 %v770
    %772 = vmatprep.subr.mxu0 0.0
    %v773 = vand.u32 %v111, 4294901760
    %774 = vmatpush1.msra.mxu0 %v773
    %775 = vmatprep.subr.mxu0 0.0
    %v776 = vand.u32 %v112, 4294901760
    %777 = vmatpush1.msra.mxu0 %v776
    %778 = vmatprep.subr.mxu0 0.0
    %v779 = vand.u32 %v113, 4294901760
    %780 = vmatpush1.msra.mxu0 %v779
    %781 = vmatprep.subr.mxu0 0.0
    %v782 = vand.u32 %v114, 4294901760
    %783 = vmatpush1.msra.mxu0 %v782
    %784 = vmatprep.subr.mxu0 0.0
    %v785 = vand.u32 %v115, 4294901760
    %786 = vmatpush1.msra.mxu0 %v785
    %787 = vmatprep.subr.mxu0 0.0
    %v788 = vand.u32 %v116, 4294901760
    %789 = vmatpush1.msra.mxu0 %v788
    %790 = vmatprep.subr.mxu0 0.0
    %v791 = vand.u32 %v117, 4294901760
    %792 = vmatpush1.msra.mxu0 %v791
    %793 = vmatprep.subr.mxu0 0.0
    %v794 = vand.u32 %v118, 4294901760
    %795 = vmatpush1.msra.mxu0 %v794
    %796 = vmatprep.subr.mxu0 0.0
    %v797 = vand.u32 %v119, 4294901760
    %798 = vmatpush1.msra.mxu0 %v797
    %v799 = vand.u32 %v81, 4294901760
    %v800 = vsub.f32 %v81, %v799
    %v801 = vand.u32 %v800, 4294901760
    %802 = vmatprep.mubr.f32.mxu0 %v801
    %v803 = vand.u32 %v80, 4294901760
    %v804 = vsub.f32 %v80, %v803
    %v805 = vand.u32 %v804, 4294901760
    %806 = vmatmul.mubr.f32.gmra.mrb[0].mxu0 %v805
    %v807 = vpop.f32.mrb[0].mxu0
    %v808 = vadd.f32 %v700, %v807
    %v809 = vpop.f32.mrb[0].mxu0
    %810 = vdwg.mxu0
    %811 = vmatprep.subr.mxu0 0.0
    %v812 = vand.u32 %v88, 4294901760
    %v813 = vsub.f32 %v88, %v812
    %v814 = vand.u32 %v813, 4294901760
    %815 = vmatpush1.msra.mxu0 %v814
    %816 = vmatprep.subr.mxu0 0.0
    %v817 = vand.u32 %v89, 4294901760
    %v818 = vsub.f32 %v89, %v817
    %v819 = vand.u32 %v818, 4294901760
    %820 = vmatpush1.msra.mxu0 %v819
    %821 = vmatprep.subr.mxu0 0.0
    %v822 = vand.u32 %v90, 4294901760
    %v823 = vsub.f32 %v90, %v822
    %v824 = vand.u32 %v823, 4294901760
    %825 = vmatpush1.msra.mxu0 %v824
    %826 = vmatprep.subr.mxu0 0.0
    %v827 = vand.u32 %v91, 4294901760
    %v828 = vsub.f32 %v91, %v827
    %v829 = vand.u32 %v828, 4294901760
    %830 = vmatpush1.msra.mxu0 %v829
    %831 = vmatprep.subr.mxu0 0.0
    %v832 = vand.u32 %v92, 4294901760
    %v833 = vsub.f32 %v92, %v832
    %v834 = vand.u32 %v833, 4294901760
    %835 = vmatpush1.msra.mxu0 %v834
    %836 = vmatprep.subr.mxu0 0.0
    %v837 = vand.u32 %v93, 4294901760
    %v838 = vsub.f32 %v93, %v837
    %v839 = vand.u32 %v838, 4294901760
    %840 = vmatpush1.msra.mxu0 %v839
    %841 = vmatprep.subr.mxu0 0.0
    %v842 = vand.u32 %v94, 4294901760
    %v843 = vsub.f32 %v94, %v842
    %v844 = vand.u32 %v843, 4294901760
    %845 = vmatpush1.msra.mxu0 %v844
    %846 = vmatprep.subr.mxu0 0.0
    %v847 = vand.u32 %v95, 4294901760
    %v848 = vsub.f32 %v95, %v847
    %v849 = vand.u32 %v848, 4294901760
    %850 = vmatpush1.msra.mxu0 %v849
    %851 = vmatprep.subr.mxu0 0.0
    %v852 = vand.u32 %v96, 4294901760
    %v853 = vsub.f32 %v96, %v852
    %v854 = vand.u32 %v853, 4294901760
    %855 = vmatpush1.msra.mxu0 %v854
    %856 = vmatprep.subr.mxu0 0.0
    %v857 = vand.u32 %v97, 4294901760
    %v858 = vsub.f32 %v97, %v857
    %v859 = vand.u32 %v858, 4294901760
    %860 = vmatpush1.msra.mxu0 %v859
    %861 = vmatprep.subr.mxu0 0.0
    %v862 = vand.u32 %v98, 4294901760
    %v863 = vsub.f32 %v98, %v862
    %v864 = vand.u32 %v863, 4294901760
    %865 = vmatpush1.msra.mxu0 %v864
    %866 = vmatprep.subr.mxu0 0.0
    %v867 = vand.u32 %v99, 4294901760
    %v868 = vsub.f32 %v99, %v867
    %v869 = vand.u32 %v868, 4294901760
    %870 = vmatpush1.msra.mxu0 %v869
    %871 = vmatprep.subr.mxu0 0.0
    %v872 = vand.u32 %v100, 4294901760
    %v873 = vsub.f32 %v100, %v872
    %v874 = vand.u32 %v873, 4294901760
    %875 = vmatpush1.msra.mxu0 %v874
    %876 = vmatprep.subr.mxu0 0.0
    %v877 = vand.u32 %v101, 4294901760
    %v878 = vsub.f32 %v101, %v877
    %v879 = vand.u32 %v878, 4294901760
    %880 = vmatpush1.msra.mxu0 %v879
    %881 = vmatprep.subr.mxu0 0.0
    %v882 = vand.u32 %v102, 4294901760
    %v883 = vsub.f32 %v102, %v882
    %v884 = vand.u32 %v883, 4294901760
    %885 = vmatpush1.msra.mxu0 %v884
    %886 = vmatprep.subr.mxu0 0.0
    %v887 = vand.u32 %v103, 4294901760
    %v888 = vsub.f32 %v103, %v887
    %v889 = vand.u32 %v888, 4294901760
    %890 = vmatpush1.msra.mxu0 %v889
    %891 = vmatprep.subr.mxu0 0.0
    %v892 = vand.u32 %v104, 4294901760
    %v893 = vsub.f32 %v104, %v892
    %v894 = vand.u32 %v893, 4294901760
    %895 = vmatpush1.msra.mxu0 %v894
    %896 = vmatprep.subr.mxu0 0.0
    %v897 = vand.u32 %v105, 4294901760
    %v898 = vsub.f32 %v105, %v897
    %v899 = vand.u32 %v898, 4294901760
    %900 = vmatpush1.msra.mxu0 %v899
    %901 = vmatprep.subr.mxu0 0.0
    %v902 = vand.u32 %v106, 4294901760
    %v903 = vsub.f32 %v106, %v902
    %v904 = vand.u32 %v903, 4294901760
    %905 = vmatpush1.msra.mxu0 %v904
    %906 = vmatprep.subr.mxu0 0.0
    %v907 = vand.u32 %v107, 4294901760
    %v908 = vsub.f32 %v107, %v907
    %v909 = vand.u32 %v908, 4294901760
    %910 = vmatpush1.msra.mxu0 %v909
    %911 = vmatprep.subr.mxu0 0.0
    %v912 = vand.u32 %v108, 4294901760
    %v913 = vsub.f32 %v108, %v912
    %v914 = vand.u32 %v913, 4294901760
    %915 = vmatpush1.msra.mxu0 %v914
    %916 = vmatprep.subr.mxu0 0.0
    %v917 = vand.u32 %v109, 4294901760
    %v918 = vsub.f32 %v109, %v917
    %v919 = vand.u32 %v918, 4294901760
    %920 = vmatpush1.msra.mxu0 %v919
    %921 = vmatprep.subr.mxu0 0.0
    %v922 = vand.u32 %v110, 4294901760
    %v923 = vsub.f32 %v110, %v922
    %v924 = vand.u32 %v923, 4294901760
    %925 = vmatpush1.msra.mxu0 %v924
    %926 = vmatprep.subr.mxu0 0.0
    %v927 = vand.u32 %v111, 4294901760
    %v928 = vsub.f32 %v111, %v927
    %v929 = vand.u32 %v928, 4294901760
    %930 = vmatpush1.msra.mxu0 %v929
    %931 = vmatprep.subr.mxu0 0.0
    %v932 = vand.u32 %v112, 4294901760
    %v933 = vsub.f32 %v112, %v932
    %v934 = vand.u32 %v933, 4294901760
    %935 = vmatpush1.msra.mxu0 %v934
    %936 = vmatprep.subr.mxu0 0.0
    %v937 = vand.u32 %v113, 4294901760
    %v938 = vsub.f32 %v113, %v937
    %v939 = vand.u32 %v938, 4294901760
    %940 = vmatpush1.msra.mxu0 %v939
    %941 = vmatprep.subr.mxu0 0.0
    %v942 = vand.u32 %v114, 4294901760
    %v943 = vsub.f32 %v114, %v942
    %v944 = vand.u32 %v943, 4294901760
    %945 = vmatpush1.msra.mxu0 %v944
    %946 = vmatprep.subr.mxu0 0.0
    %v947 = vand.u32 %v115, 4294901760
    %v948 = vsub.f32 %v115, %v947
    %v949 = vand.u32 %v948, 4294901760
    %950 = vmatpush1.msra.mxu0 %v949
    %951 = vmatprep.subr.mxu0 0.0
    %v952 = vand.u32 %v116, 4294901760
    %v953 = vsub.f32 %v116, %v952
    %v954 = vand.u32 %v953, 4294901760
    %955 = vmatpush1.msra.mxu0 %v954
    %956 = vmatprep.subr.mxu0 0.0
    %v957 = vand.u32 %v117, 4294901760
    %v958 = vsub.f32 %v117, %v957
    %v959 = vand.u32 %v958, 4294901760
    %960 = vmatpush1.msra.mxu0 %v959
    %961 = vmatprep.subr.mxu0 0.0
    %v962 = vand.u32 %v118, 4294901760
    %v963 = vsub.f32 %v118, %v962
    %v964 = vand.u32 %v963, 4294901760
    %965 = vmatpush1.msra.mxu0 %v964
    %966 = vmatprep.subr.mxu0 0.0
    %v967 = vand.u32 %v119, 4294901760
    %v968 = vsub.f32 %v119, %v967
    %v969 = vand.u32 %v968, 4294901760
    %970 = vmatpush1.msra.mxu0 %v969
    %v971 = vand.u32 %v81, 4294901760
    %972 = vmatprep.mubr.f32.mxu0 %v971
    %v973 = vand.u32 %v80, 4294901760
    %974 = vmatmul.mubr.f32.gmra.mrb[0].mxu0 %v973
    %v975 = vpop.f32.mrb[0].mxu0
    %v976 = vadd.f32 %v808, %v975
    %v977 = vpop.f32.mrb[0].mxu0
    %978 = vdwg.mxu0
    %979 = vmatprep.subr.mxu0 0.0
    %v980 = vand.u32 %v88, 4294901760
    %981 = vmatpush1.msra.mxu0 %v980
    %982 = vmatprep.subr.mxu0 0.0
    %v983 = vand.u32 %v89, 4294901760
    %984 = vmatpush1.msra.mxu0 %v983
    %985 = vmatprep.subr.mxu0 0.0
    %v986 = vand.u32 %v90, 4294901760
    %987 = vmatpush1.msra.mxu0 %v986
    %988 = vmatprep.subr.mxu0 0.0
    %v989 = vand.u32 %v91, 4294901760
    %990 = vmatpush1.msra.mxu0 %v989
    %991 = vmatprep.subr.mxu0 0.0
    %v992 = vand.u32 %v92, 4294901760
    %993 = vmatpush1.msra.mxu0 %v992
    %994 = vmatprep.subr.mxu0 0.0
    %v995 = vand.u32 %v93, 4294901760
    %996 = vmatpush1.msra.mxu0 %v995
    %997 = vmatprep.subr.mxu0 0.0
    %v998 = vand.u32 %v94, 4294901760
    %999 = vmatpush1.msra.mxu0 %v998
    %1000 = vmatprep.subr.mxu0 0.0
    %v1001 = vand.u32 %v95, 4294901760
    %1002 = vmatpush1.msra.mxu0 %v1001
    %1003 = vmatprep.subr.mxu0 0.0
    %v1004 = vand.u32 %v96, 4294901760
    %1005 = vmatpush1.msra.mxu0 %v1004
    %1006 = vmatprep.subr.mxu0 0.0
    %v1007 = vand.u32 %v97, 4294901760
    %1008 = vmatpush1.msra.mxu0 %v1007
    %1009 = vmatprep.subr.mxu0 0.0
    %v1010 = vand.u32 %v98, 4294901760
    %1011 = vmatpush1.msra.mxu0 %v1010
    %1012 = vmatprep.subr.mxu0 0.0
    %v1013 = vand.u32 %v99, 4294901760
    %1014 = vmatpush1.msra.mxu0 %v1013
    %1015 = vmatprep.subr.mxu0 0.0
    %v1016 = vand.u32 %v100, 4294901760
    %1017 = vmatpush1.msra.mxu0 %v1016
    %1018 = vmatprep.subr.mxu0 0.0
    %v1019 = vand.u32 %v101, 4294901760
    %1020 = vmatpush1.msra.mxu0 %v1019
    %1021 = vmatprep.subr.mxu0 0.0
    %v1022 = vand.u32 %v102, 4294901760
    %1023 = vmatpush1.msra.mxu0 %v1022
    %1024 = vmatprep.subr.mxu0 0.0
    %v1025 = vand.u32 %v103, 4294901760
    %1026 = vmatpush1.msra.mxu0 %v1025
    %1027 = vmatprep.subr.mxu0 0.0
    %v1028 = vand.u32 %v104, 4294901760
    %1029 = vmatpush1.msra.mxu0 %v1028
    %1030 = vmatprep.subr.mxu0 0.0
    %v1031 = vand.u32 %v105, 4294901760
    %1032 = vmatpush1.msra.mxu0 %v1031
    %1033 = vmatprep.subr.mxu0 0.0
    %v1034 = vand.u32 %v106, 4294901760
    %1035 = vmatpush1.msra.mxu0 %v1034
    %1036 = vmatprep.subr.mxu0 0.0
    %v1037 = vand.u32 %v107, 4294901760
    %1038 = vmatpush1.msra.mxu0 %v1037
    %1039 = vmatprep.subr.mxu0 0.0
    %v1040 = vand.u32 %v108, 4294901760
    %1041 = vmatpush1.msra.mxu0 %v1040
    %1042 = vmatprep.subr.mxu0 0.0
    %v1043 = vand.u32 %v109, 4294901760
    %1044 = vmatpush1.msra.mxu0 %v1043
    %1045 = vmatprep.subr.mxu0 0.0
    %v1046 = vand.u32 %v110, 4294901760
    %1047 = vmatpush1.msra.mxu0 %v1046
    %1048 = vmatprep.subr.mxu0 0.0
    %v1049 = vand.u32 %v111, 4294901760
    %1050 = vmatpush1.msra.mxu0 %v1049
    %1051 = vmatprep.subr.mxu0 0.0
    %v1052 = vand.u32 %v112, 4294901760
    %1053 = vmatpush1.msra.mxu0 %v1052
    %1054 = vmatprep.subr.mxu0 0.0
    %v1055 = vand.u32 %v113, 4294901760
    %1056 = vmatpush1.msra.mxu0 %v1055
    %1057 = vmatprep.subr.mxu0 0.0
    %v1058 = vand.u32 %v114, 4294901760
    %1059 = vmatpush1.msra.mxu0 %v1058
    %1060 = vmatprep.subr.mxu0 0.0
    %v1061 = vand.u32 %v115, 4294901760
    %1062 = vmatpush1.msra.mxu0 %v1061
    %1063 = vmatprep.subr.mxu0 0.0
    %v1064 = vand.u32 %v116, 4294901760
    %1065 = vmatpush1.msra.mxu0 %v1064
    %1066 = vmatprep.subr.mxu0 0.0
    %v1067 = vand.u32 %v117, 4294901760
    %1068 = vmatpush1.msra.mxu0 %v1067
    %1069 = vmatprep.subr.mxu0 0.0
    %v1070 = vand.u32 %v118, 4294901760
    %1071 = vmatpush1.msra.mxu0 %v1070
    %1072 = vmatprep.subr.mxu0 0.0
    %v1073 = vand.u32 %v119, 4294901760
    %1074 = vmatpush1.msra.mxu0 %v1073
    %v1075 = vand.u32 %v81, 4294901760
    %1076 = vmatprep.mubr.f32.mxu0 %v1075
    %v1077 = vand.u32 %v80, 4294901760
    %1078 = vmatmul.mubr.f32.gmra.mrb[0].mxu0 %v1077
    %v1079 = vpop.f32.mrb[0].mxu0
    %v1080 = vadd.f32 %v976, %v1079
    %v1081 = vpop.f32.mrb[0].mxu0
    %1082 = vdwg.mxu0
    %1083 = vmatprep.subr.mxu0 0.0
    %v1084 = vand.u32 %v120, 4294901760
    %1085 = vmatpush1.msra.mxu0 %v1084
    %1086 = vmatprep.subr.mxu0 0.0
    %v1087 = vand.u32 %v121, 4294901760
    %1088 = vmatpush1.msra.mxu0 %v1087
    %1089 = vmatprep.subr.mxu0 0.0
    %v1090 = vand.u32 %v122, 4294901760
    %1091 = vmatpush1.msra.mxu0 %v1090
    %1092 = vmatprep.subr.mxu0 0.0
    %v1093 = vand.u32 %v123, 4294901760
    %1094 = vmatpush1.msra.mxu0 %v1093
    %1095 = vmatprep.subr.mxu0 0.0
    %v1096 = vand.u32 %v124, 4294901760
    %1097 = vmatpush1.msra.mxu0 %v1096
    %1098 = vmatprep.subr.mxu0 0.0
    %v1099 = vand.u32 %v125, 4294901760
    %1100 = vmatpush1.msra.mxu0 %v1099
    %1101 = vmatprep.subr.mxu0 0.0
    %v1102 = vand.u32 %v126, 4294901760
    %1103 = vmatpush1.msra.mxu0 %v1102
    %1104 = vmatprep.subr.mxu0 0.0
    %v1105 = vand.u32 %v127, 4294901760
    %1106 = vmatpush1.msra.mxu0 %v1105
    %1107 = vmatprep.subr.mxu0 0.0
    %v1108 = vand.u32 %v128, 4294901760
    %1109 = vmatpush1.msra.mxu0 %v1108
    %1110 = vmatprep.subr.mxu0 0.0
    %v1111 = vand.u32 %v129, 4294901760
    %1112 = vmatpush1.msra.mxu0 %v1111
    %1113 = vmatprep.subr.mxu0 0.0
    %v1114 = vand.u32 %v130, 4294901760
    %1115 = vmatpush1.msra.mxu0 %v1114
    %1116 = vmatprep.subr.mxu0 0.0
    %v1117 = vand.u32 %v131, 4294901760
    %1118 = vmatpush1.msra.mxu0 %v1117
    %1119 = vmatprep.subr.mxu0 0.0
    %v1120 = vand.u32 %v132, 4294901760
    %1121 = vmatpush1.msra.mxu0 %v1120
    %1122 = vmatprep.subr.mxu0 0.0
    %v1123 = vand.u32 %v133, 4294901760
    %1124 = vmatpush1.msra.mxu0 %v1123
    %1125 = vmatprep.subr.mxu0 0.0
    %v1126 = vand.u32 %v134, 4294901760
    %1127 = vmatpush1.msra.mxu0 %v1126
    %1128 = vmatprep.subr.mxu0 0.0
    %v1129 = vand.u32 %v135, 4294901760
    %1130 = vmatpush1.msra.mxu0 %v1129
    %1131 = vmatprep.subr.mxu0 0.0
    %v1132 = vand.u32 %v136, 4294901760
    %1133 = vmatpush1.msra.mxu0 %v1132
    %1134 = vmatprep.subr.mxu0 0.0
    %v1135 = vand.u32 %v137, 4294901760
    %1136 = vmatpush1.msra.mxu0 %v1135
    %1137 = vmatprep.subr.mxu0 0.0
    %v1138 = vand.u32 %v138, 4294901760
    %1139 = vmatpush1.msra.mxu0 %v1138
    %1140 = vmatprep.subr.mxu0 0.0
    %v1141 = vand.u32 %v139, 4294901760
    %1142 = vmatpush1.msra.mxu0 %v1141
    %1143 = vmatprep.subr.mxu0 0.0
    %v1144 = vand.u32 %v140, 4294901760
    %1145 = vmatpush1.msra.mxu0 %v1144
    %1146 = vmatprep.subr.mxu0 0.0
    %v1147 = vand.u32 %v141, 4294901760
    %1148 = vmatpush1.msra.mxu0 %v1147
    %1149 = vmatprep.subr.mxu0 0.0
    %v1150 = vand.u32 %v142, 4294901760
    %1151 = vmatpush1.msra.mxu0 %v1150
    %1152 = vmatprep.subr.mxu0 0.0
    %v1153 = vand.u32 %v143, 4294901760
    %1154 = vmatpush1.msra.mxu0 %v1153
    %1155 = vmatprep.subr.mxu0 0.0
    %v1156 = vand.u32 %v144, 4294901760
    %1157 = vmatpush1.msra.mxu0 %v1156
    %1158 = vmatprep.subr.mxu0 0.0
    %v1159 = vand.u32 %v145, 4294901760
    %1160 = vmatpush1.msra.mxu0 %v1159
    %1161 = vmatprep.subr.mxu0 0.0
    %v1162 = vand.u32 %v146, 4294901760
    %1163 = vmatpush1.msra.mxu0 %v1162
    %1164 = vmatprep.subr.mxu0 0.0
    %v1165 = vand.u32 %v147, 4294901760
    %1166 = vmatpush1.msra.mxu0 %v1165
    %1167 = vmatprep.subr.mxu0 0.0
    %v1168 = vand.u32 %v148, 4294901760
    %1169 = vmatpush1.msra.mxu0 %v1168
    %1170 = vmatprep.subr.mxu0 0.0
    %v1171 = vand.u32 %v149, 4294901760
    %1172 = vmatpush1.msra.mxu0 %v1171
    %1173 = vmatprep.subr.mxu0 0.0
    %v1174 = vand.u32 %v150, 4294901760
    %1175 = vmatpush1.msra.mxu0 %v1174
    %1176 = vmatprep.subr.mxu0 0.0
    %v1177 = vand.u32 %v151, 4294901760
    %1178 = vmatpush1.msra.mxu0 %v1177
    %v1179 = vand.u32 %v83, 4294901760
    %v1180 = vsub.f32 %v83, %v1179
    %v1181 = vand.u32 %v1180, 4294901760
    %v1182 = vsub.f32 %v1180, %v1181
    %v1183 = vand.u32 %v1182, 4294901760
    %1184 = vmatprep.mubr.f32.mxu0 %v1183
    %v1185 = vand.u32 %v82, 4294901760
    %v1186 = vsub.f32 %v82, %v1185
    %v1187 = vand.u32 %v1186, 4294901760
    %v1188 = vsub.f32 %v1186, %v1187
    %v1189 = vand.u32 %v1188, 4294901760
    %1190 = vmatmul.mubr.f32.gmra.mrb[0].mxu0 %v1189
    %v1191 = vpop.f32.mrb[0].mxu0
    %v1192 = vadd.f32 %v1080, %v1191
    %v1193 = vpop.f32.mrb[0].mxu0
    %1194 = vdwg.mxu0
    %1195 = vmatprep.subr.mxu0 0.0
    %v1196 = vand.u32 %v120, 4294901760
    %v1197 = vsub.f32 %v120, %v1196
    %v1198 = vand.u32 %v1197, 4294901760
    %v1199 = vsub.f32 %v1197, %v1198
    %v1200 = vand.u32 %v1199, 4294901760
    %1201 = vmatpush1.msra.mxu0 %v1200
    %1202 = vmatprep.subr.mxu0 0.0
    %v1203 = vand.u32 %v121, 4294901760
    %v1204 = vsub.f32 %v121, %v1203
    %v1205 = vand.u32 %v1204, 4294901760
    %v1206 = vsub.f32 %v1204, %v1205
    %v1207 = vand.u32 %v1206, 4294901760
    %1208 = vmatpush1.msra.mxu0 %v1207
    %1209 = vmatprep.subr.mxu0 0.0
    %v1210 = vand.u32 %v122, 4294901760
    %v1211 = vsub.f32 %v122, %v1210
    %v1212 = vand.u32 %v1211, 4294901760
    %v1213 = vsub.f32 %v1211, %v1212
    %v1214 = vand.u32 %v1213, 4294901760
    %1215 = vmatpush1.msra.mxu0 %v1214
    %1216 = vmatprep.subr.mxu0 0.0
    %v1217 = vand.u32 %v123, 4294901760
    %v1218 = vsub.f32 %v123, %v1217
    %v1219 = vand.u32 %v1218, 4294901760
    %v1220 = vsub.f32 %v1218, %v1219
    %v1221 = vand.u32 %v1220, 4294901760
    %1222 = vmatpush1.msra.mxu0 %v1221
    %1223 = vmatprep.subr.mxu0 0.0
    %v1224 = vand.u32 %v124, 4294901760
    %v1225 = vsub.f32 %v124, %v1224
    %v1226 = vand.u32 %v1225, 4294901760
    %v1227 = vsub.f32 %v1225, %v1226
    %v1228 = vand.u32 %v1227, 4294901760
    %1229 = vmatpush1.msra.mxu0 %v1228
    %1230 = vmatprep.subr.mxu0 0.0
    %v1231 = vand.u32 %v125, 4294901760
    %v1232 = vsub.f32 %v125, %v1231
    %v1233 = vand.u32 %v1232, 4294901760
    %v1234 = vsub.f32 %v1232, %v1233
    %v1235 = vand.u32 %v1234, 4294901760
    %1236 = vmatpush1.msra.mxu0 %v1235
    %1237 = vmatprep.subr.mxu0 0.0
    %v1238 = vand.u32 %v126, 4294901760
    %v1239 = vsub.f32 %v126, %v1238
    %v1240 = vand.u32 %v1239, 4294901760
    %v1241 = vsub.f32 %v1239, %v1240
    %v1242 = vand.u32 %v1241, 4294901760
    %1243 = vmatpush1.msra.mxu0 %v1242
    %1244 = vmatprep.subr.mxu0 0.0
    %v1245 = vand.u32 %v127, 4294901760
    %v1246 = vsub.f32 %v127, %v1245
    %v1247 = vand.u32 %v1246, 4294901760
    %v1248 = vsub.f32 %v1246, %v1247
    %v1249 = vand.u32 %v1248, 4294901760
    %1250 = vmatpush1.msra.mxu0 %v1249
    %1251 = vmatprep.subr.mxu0 0.0
    %v1252 = vand.u32 %v128, 4294901760
    %v1253 = vsub.f32 %v128, %v1252
    %v1254 = vand.u32 %v1253, 4294901760
    %v1255 = vsub.f32 %v1253, %v1254
    %v1256 = vand.u32 %v1255, 4294901760
    %1257 = vmatpush1.msra.mxu0 %v1256
    %1258 = vmatprep.subr.mxu0 0.0
    %v1259 = vand.u32 %v129, 4294901760
    %v1260 = vsub.f32 %v129, %v1259
    %v1261 = vand.u32 %v1260, 4294901760
    %v1262 = vsub.f32 %v1260, %v1261
    %v1263 = vand.u32 %v1262, 4294901760
    %1264 = vmatpush1.msra.mxu0 %v1263
    %1265 = vmatprep.subr.mxu0 0.0
    %v1266 = vand.u32 %v130, 4294901760
    %v1267 = vsub.f32 %v130, %v1266
    %v1268 = vand.u32 %v1267, 4294901760
    %v1269 = vsub.f32 %v1267, %v1268
    %v1270 = vand.u32 %v1269, 4294901760
    %1271 = vmatpush1.msra.mxu0 %v1270
    %1272 = vmatprep.subr.mxu0 0.0
    %v1273 = vand.u32 %v131, 4294901760
    %v1274 = vsub.f32 %v131, %v1273
    %v1275 = vand.u32 %v1274, 4294901760
    %v1276 = vsub.f32 %v1274, %v1275
    %v1277 = vand.u32 %v1276, 4294901760
    %1278 = vmatpush1.msra.mxu0 %v1277
    %1279 = vmatprep.subr.mxu0 0.0
    %v1280 = vand.u32 %v132, 4294901760
    %v1281 = vsub.f32 %v132, %v1280
    %v1282 = vand.u32 %v1281, 4294901760
    %v1283 = vsub.f32 %v1281, %v1282
    %v1284 = vand.u32 %v1283, 4294901760
    %1285 = vmatpush1.msra.mxu0 %v1284
    %1286 = vmatprep.subr.mxu0 0.0
    %v1287 = vand.u32 %v133, 4294901760
    %v1288 = vsub.f32 %v133, %v1287
    %v1289 = vand.u32 %v1288, 4294901760
    %v1290 = vsub.f32 %v1288, %v1289
    %v1291 = vand.u32 %v1290, 4294901760
    %1292 = vmatpush1.msra.mxu0 %v1291
    %1293 = vmatprep.subr.mxu0 0.0
    %v1294 = vand.u32 %v134, 4294901760
    %v1295 = vsub.f32 %v134, %v1294
    %v1296 = vand.u32 %v1295, 4294901760
    %v1297 = vsub.f32 %v1295, %v1296
    %v1298 = vand.u32 %v1297, 4294901760
    %1299 = vmatpush1.msra.mxu0 %v1298
    %1300 = vmatprep.subr.mxu0 0.0
    %v1301 = vand.u32 %v135, 4294901760
    %v1302 = vsub.f32 %v135, %v1301
    %v1303 = vand.u32 %v1302, 4294901760
    %v1304 = vsub.f32 %v1302, %v1303
    %v1305 = vand.u32 %v1304, 4294901760
    %1306 = vmatpush1.msra.mxu0 %v1305
    %1307 = vmatprep.subr.mxu0 0.0
    %v1308 = vand.u32 %v136, 4294901760
    %v1309 = vsub.f32 %v136, %v1308
    %v1310 = vand.u32 %v1309, 4294901760
    %v1311 = vsub.f32 %v1309, %v1310
    %v1312 = vand.u32 %v1311, 4294901760
    %1313 = vmatpush1.msra.mxu0 %v1312
    %1314 = vmatprep.subr.mxu0 0.0
    %v1315 = vand.u32 %v137, 4294901760
    %v1316 = vsub.f32 %v137, %v1315
    %v1317 = vand.u32 %v1316, 4294901760
    %v1318 = vsub.f32 %v1316, %v1317
    %v1319 = vand.u32 %v1318, 4294901760
    %1320 = vmatpush1.msra.mxu0 %v1319
    %1321 = vmatprep.subr.mxu0 0.0
    %v1322 = vand.u32 %v138, 4294901760
    %v1323 = vsub.f32 %v138, %v1322
    %v1324 = vand.u32 %v1323, 4294901760
    %v1325 = vsub.f32 %v1323, %v1324
    %v1326 = vand.u32 %v1325, 4294901760
    %1327 = vmatpush1.msra.mxu0 %v1326
    %1328 = vmatprep.subr.mxu0 0.0
    %v1329 = vand.u32 %v139, 4294901760
    %v1330 = vsub.f32 %v139, %v1329
    %v1331 = vand.u32 %v1330, 4294901760
    %v1332 = vsub.f32 %v1330, %v1331
    %v1333 = vand.u32 %v1332, 4294901760
    %1334 = vmatpush1.msra.mxu0 %v1333
    %1335 = vmatprep.subr.mxu0 0.0
    %v1336 = vand.u32 %v140, 4294901760
    %v1337 = vsub.f32 %v140, %v1336
    %v1338 = vand.u32 %v1337, 4294901760
    %v1339 = vsub.f32 %v1337, %v1338
    %v1340 = vand.u32 %v1339, 4294901760
    %1341 = vmatpush1.msra.mxu0 %v1340
    %1342 = vmatprep.subr.mxu0 0.0
    %v1343 = vand.u32 %v141, 4294901760
    %v1344 = vsub.f32 %v141, %v1343
    %v1345 = vand.u32 %v1344, 4294901760
    %v1346 = vsub.f32 %v1344, %v1345
    %v1347 = vand.u32 %v1346, 4294901760
    %1348 = vmatpush1.msra.mxu0 %v1347
    %1349 = vmatprep.subr.mxu0 0.0
    %v1350 = vand.u32 %v142, 4294901760
    %v1351 = vsub.f32 %v142, %v1350
    %v1352 = vand.u32 %v1351, 4294901760
    %v1353 = vsub.f32 %v1351, %v1352
    %v1354 = vand.u32 %v1353, 4294901760
    %1355 = vmatpush1.msra.mxu0 %v1354
    %1356 = vmatprep.subr.mxu0 0.0
    %v1357 = vand.u32 %v143, 4294901760
    %v1358 = vsub.f32 %v143, %v1357
    %v1359 = vand.u32 %v1358, 4294901760
    %v1360 = vsub.f32 %v1358, %v1359
    %v1361 = vand.u32 %v1360, 4294901760
    %1362 = vmatpush1.msra.mxu0 %v1361
    %1363 = vmatprep.subr.mxu0 0.0
    %v1364 = vand.u32 %v144, 4294901760
    %v1365 = vsub.f32 %v144, %v1364
    %v1366 = vand.u32 %v1365, 4294901760
    %v1367 = vsub.f32 %v1365, %v1366
    %v1368 = vand.u32 %v1367, 4294901760
    %1369 = vmatpush1.msra.mxu0 %v1368
    %1370 = vmatprep.subr.mxu0 0.0
    %v1371 = vand.u32 %v145, 4294901760
    %v1372 = vsub.f32 %v145, %v1371
    %v1373 = vand.u32 %v1372, 4294901760
    %v1374 = vsub.f32 %v1372, %v1373
    %v1375 = vand.u32 %v1374, 4294901760
    %1376 = vmatpush1.msra.mxu0 %v1375
    %1377 = vmatprep.subr.mxu0 0.0
    %v1378 = vand.u32 %v146, 4294901760
    %v1379 = vsub.f32 %v146, %v1378
    %v1380 = vand.u32 %v1379, 4294901760
    %v1381 = vsub.f32 %v1379, %v1380
    %v1382 = vand.u32 %v1381, 4294901760
    %1383 = vmatpush1.msra.mxu0 %v1382
    %1384 = vmatprep.subr.mxu0 0.0
    %v1385 = vand.u32 %v147, 4294901760
    %v1386 = vsub.f32 %v147, %v1385
    %v1387 = vand.u32 %v1386, 4294901760
    %v1388 = vsub.f32 %v1386, %v1387
    %v1389 = vand.u32 %v1388, 4294901760
    %1390 = vmatpush1.msra.mxu0 %v1389
    %1391 = vmatprep.subr.mxu0 0.0
    %v1392 = vand.u32 %v148, 4294901760
    %v1393 = vsub.f32 %v148, %v1392
    %v1394 = vand.u32 %v1393, 4294901760
    %v1395 = vsub.f32 %v1393, %v1394
    %v1396 = vand.u32 %v1395, 4294901760
    %1397 = vmatpush1.msra.mxu0 %v1396
    %1398 = vmatprep.subr.mxu0 0.0
    %v1399 = vand.u32 %v149, 4294901760
    %v1400 = vsub.f32 %v149, %v1399
    %v1401 = vand.u32 %v1400, 4294901760
    %v1402 = vsub.f32 %v1400, %v1401
    %v1403 = vand.u32 %v1402, 4294901760
    %1404 = vmatpush1.msra.mxu0 %v1403
    %1405 = vmatprep.subr.mxu0 0.0
    %v1406 = vand.u32 %v150, 4294901760
    %v1407 = vsub.f32 %v150, %v1406
    %v1408 = vand.u32 %v1407, 4294901760
    %v1409 = vsub.f32 %v1407, %v1408
    %v1410 = vand.u32 %v1409, 4294901760
    %1411 = vmatpush1.msra.mxu0 %v1410
    %1412 = vmatprep.subr.mxu0 0.0
    %v1413 = vand.u32 %v151, 4294901760
    %v1414 = vsub.f32 %v151, %v1413
    %v1415 = vand.u32 %v1414, 4294901760
    %v1416 = vsub.f32 %v1414, %v1415
    %v1417 = vand.u32 %v1416, 4294901760
    %1418 = vmatpush1.msra.mxu0 %v1417
    %v1419 = vand.u32 %v83, 4294901760
    %1420 = vmatprep.mubr.f32.mxu0 %v1419
    %v1421 = vand.u32 %v82, 4294901760
    %1422 = vmatmul.mubr.f32.gmra.mrb[0].mxu0 %v1421
    %v1423 = vpop.f32.mrb[0].mxu0
    %v1424 = vadd.f32 %v1192, %v1423
    %v1425 = vpop.f32.mrb[0].mxu0
    %1426 = vdwg.mxu0
    %1427 = vmatprep.subr.mxu0 0.0
    %v1428 = vand.u32 %v120, 4294901760
    %v1429 = vsub.f32 %v120, %v1428
    %1430 = vmatpush1.msra.mxu0 %v1429
    %1431 = vmatprep.subr.mxu0 0.0
    %v1432 = vand.u32 %v121, 4294901760
    %v1433 = vsub.f32 %v121, %v1432
    %1434 = vmatpush1.msra.mxu0 %v1433
    %1435 = vmatprep.subr.mxu0 0.0
    %v1436 = vand.u32 %v122, 4294901760
    %v1437 = vsub.f32 %v122, %v1436
    %1438 = vmatpush1.msra.mxu0 %v1437
    %1439 = vmatprep.subr.mxu0 0.0
    %v1440 = vand.u32 %v123, 4294901760
    %v1441 = vsub.f32 %v123, %v1440
    %1442 = vmatpush1.msra.mxu0 %v1441
    %1443 = vmatprep.subr.mxu0 0.0
    %v1444 = vand.u32 %v124, 4294901760
    %v1445 = vsub.f32 %v124, %v1444
    %1446 = vmatpush1.msra.mxu0 %v1445
    %1447 = vmatprep.subr.mxu0 0.0
    %v1448 = vand.u32 %v125, 4294901760
    %v1449 = vsub.f32 %v125, %v1448
    %1450 = vmatpush1.msra.mxu0 %v1449
    %1451 = vmatprep.subr.mxu0 0.0
    %v1452 = vand.u32 %v126, 4294901760
    %v1453 = vsub.f32 %v126, %v1452
    %1454 = vmatpush1.msra.mxu0 %v1453
    %1455 = vmatprep.subr.mxu0 0.0
    %v1456 = vand.u32 %v127, 4294901760
    %v1457 = vsub.f32 %v127, %v1456
    %1458 = vmatpush1.msra.mxu0 %v1457
    %1459 = vmatprep.subr.mxu0 0.0
    %v1460 = vand.u32 %v128, 4294901760
    %v1461 = vsub.f32 %v128, %v1460
    %1462 = vmatpush1.msra.mxu0 %v1461
    %1463 = vmatprep.subr.mxu0 0.0
    %v1464 = vand.u32 %v129, 4294901760
    %v1465 = vsub.f32 %v129, %v1464
    %1466 = vmatpush1.msra.mxu0 %v1465
    %1467 = vmatprep.subr.mxu0 0.0
    %v1468 = vand.u32 %v130, 4294901760
    %v1469 = vsub.f32 %v130, %v1468
    %1470 = vmatpush1.msra.mxu0 %v1469
    %1471 = vmatprep.subr.mxu0 0.0
    %v1472 = vand.u32 %v131, 4294901760
    %v1473 = vsub.f32 %v131, %v1472
    %1474 = vmatpush1.msra.mxu0 %v1473
    %1475 = vmatprep.subr.mxu0 0.0
    %v1476 = vand.u32 %v132, 4294901760
    %v1477 = vsub.f32 %v132, %v1476
    %1478 = vmatpush1.msra.mxu0 %v1477
    %1479 = vmatprep.subr.mxu0 0.0
    %v1480 = vand.u32 %v133, 4294901760
    %v1481 = vsub.f32 %v133, %v1480
    %1482 = vmatpush1.msra.mxu0 %v1481
    %1483 = vmatprep.subr.mxu0 0.0
    %v1484 = vand.u32 %v134, 4294901760
    %v1485 = vsub.f32 %v134, %v1484
    %1486 = vmatpush1.msra.mxu0 %v1485
    %1487 = vmatprep.subr.mxu0 0.0
    %v1488 = vand.u32 %v135, 4294901760
    %v1489 = vsub.f32 %v135, %v1488
    %1490 = vmatpush1.msra.mxu0 %v1489
    %1491 = vmatprep.subr.mxu0 0.0
    %v1492 = vand.u32 %v136, 4294901760
    %v1493 = vsub.f32 %v136, %v1492
    %1494 = vmatpush1.msra.mxu0 %v1493
    %1495 = vmatprep.subr.mxu0 0.0
    %v1496 = vand.u32 %v137, 4294901760
    %v1497 = vsub.f32 %v137, %v1496
    %1498 = vmatpush1.msra.mxu0 %v1497
    %1499 = vmatprep.subr.mxu0 0.0
    %v1500 = vand.u32 %v138, 4294901760
    %v1501 = vsub.f32 %v138, %v1500
    %1502 = vmatpush1.msra.mxu0 %v1501
    %1503 = vmatprep.subr.mxu0 0.0
    %v1504 = vand.u32 %v139, 4294901760
    %v1505 = vsub.f32 %v139, %v1504
    %1506 = vmatpush1.msra.mxu0 %v1505
    %1507 = vmatprep.subr.mxu0 0.0
    %v1508 = vand.u32 %v140, 4294901760
    %v1509 = vsub.f32 %v140, %v1508
    %1510 = vmatpush1.msra.mxu0 %v1509
    %1511 = vmatprep.subr.mxu0 0.0
    %v1512 = vand.u32 %v141, 4294901760
    %v1513 = vsub.f32 %v141, %v1512
    %1514 = vmatpush1.msra.mxu0 %v1513
    %1515 = vmatprep.subr.mxu0 0.0
    %v1516 = vand.u32 %v142, 4294901760
    %v1517 = vsub.f32 %v142, %v1516
    %1518 = vmatpush1.msra.mxu0 %v1517
    %1519 = vmatprep.subr.mxu0 0.0
    %v1520 = vand.u32 %v143, 4294901760
    %v1521 = vsub.f32 %v143, %v1520
    %1522 = vmatpush1.msra.mxu0 %v1521
    %1523 = vmatprep.subr.mxu0 0.0
    %v1524 = vand.u32 %v144, 4294901760
    %v1525 = vsub.f32 %v144, %v1524
    %1526 = vmatpush1.msra.mxu0 %v1525
    %1527 = vmatprep.subr.mxu0 0.0
    %v1528 = vand.u32 %v145, 4294901760
    %v1529 = vsub.f32 %v145, %v1528
    %1530 = vmatpush1.msra.mxu0 %v1529
    %1531 = vmatprep.subr.mxu0 0.0
    %v1532 = vand.u32 %v146, 4294901760
    %v1533 = vsub.f32 %v146, %v1532
    %1534 = vmatpush1.msra.mxu0 %v1533
    %1535 = vmatprep.subr.mxu0 0.0
    %v1536 = vand.u32 %v147, 4294901760
    %v1537 = vsub.f32 %v147, %v1536
    %1538 = vmatpush1.msra.mxu0 %v1537
    %1539 = vmatprep.subr.mxu0 0.0
    %v1540 = vand.u32 %v148, 4294901760
    %v1541 = vsub.f32 %v148, %v1540
    %1542 = vmatpush1.msra.mxu0 %v1541
    %1543 = vmatprep.subr.mxu0 0.0
    %v1544 = vand.u32 %v149, 4294901760
    %v1545 = vsub.f32 %v149, %v1544
    %1546 = vmatpush1.msra.mxu0 %v1545
    %1547 = vmatprep.subr.mxu0 0.0
    %v1548 = vand.u32 %v150, 4294901760
    %v1549 = vsub.f32 %v150, %v1548
    %1550 = vmatpush1.msra.mxu0 %v1549
    %1551 = vmatprep.subr.mxu0 0.0
    %v1552 = vand.u32 %v151, 4294901760
    %v1553 = vsub.f32 %v151, %v1552
    %1554 = vmatpush1.msra.mxu0 %v1553
    %v1555 = vand.u32 %v83, 4294901760
    %v1556 = vsub.f32 %v83, %v1555
    %1557 = vmatprep.mubr.f32.mxu0 %v1556
    %v1558 = vand.u32 %v82, 4294901760
    %v1559 = vsub.f32 %v82, %v1558
    %1560 = vmatmul.mubr.f32.gmra.mrb[0].mxu0 %v1559
    %v1561 = vpop.f32.mrb[0].mxu0
    %v1562 = vadd.f32 %v1424, %v1561
    %v1563 = vpop.f32.mrb[0].mxu0
    %1564 = vdwg.mxu0
    %1565 = vmatprep.subr.mxu0 0.0
    %v1566 = vand.u32 %v120, 4294901760
    %1567 = vmatpush1.msra.mxu0 %v1566
    %1568 = vmatprep.subr.mxu0 0.0
    %v1569 = vand.u32 %v121, 4294901760
    %1570 = vmatpush1.msra.mxu0 %v1569
    %1571 = vmatprep.subr.mxu0 0.0
    %v1572 = vand.u32 %v122, 4294901760
    %1573 = vmatpush1.msra.mxu0 %v1572
    %1574 = vmatprep.subr.mxu0 0.0
    %v1575 = vand.u32 %v123, 4294901760
    %1576 = vmatpush1.msra.mxu0 %v1575
    %1577 = vmatprep.subr.mxu0 0.0
    %v1578 = vand.u32 %v124, 4294901760
    %1579 = vmatpush1.msra.mxu0 %v1578
    %1580 = vmatprep.subr.mxu0 0.0
    %v1581 = vand.u32 %v125, 4294901760
    %1582 = vmatpush1.msra.mxu0 %v1581
    %1583 = vmatprep.subr.mxu0 0.0
    %v1584 = vand.u32 %v126, 4294901760
    %1585 = vmatpush1.msra.mxu0 %v1584
    %1586 = vmatprep.subr.mxu0 0.0
    %v1587 = vand.u32 %v127, 4294901760
    %1588 = vmatpush1.msra.mxu0 %v1587
    %1589 = vmatprep.subr.mxu0 0.0
    %v1590 = vand.u32 %v128, 4294901760
    %1591 = vmatpush1.msra.mxu0 %v1590
    %1592 = vmatprep.subr.mxu0 0.0
    %v1593 = vand.u32 %v129, 4294901760
    %1594 = vmatpush1.msra.mxu0 %v1593
    %1595 = vmatprep.subr.mxu0 0.0
    %v1596 = vand.u32 %v130, 4294901760
    %1597 = vmatpush1.msra.mxu0 %v1596
    %1598 = vmatprep.subr.mxu0 0.0
    %v1599 = vand.u32 %v131, 4294901760
    %1600 = vmatpush1.msra.mxu0 %v1599
    %1601 = vmatprep.subr.mxu0 0.0
    %v1602 = vand.u32 %v132, 4294901760
    %1603 = vmatpush1.msra.mxu0 %v1602
    %1604 = vmatprep.subr.mxu0 0.0
    %v1605 = vand.u32 %v133, 4294901760
    %1606 = vmatpush1.msra.mxu0 %v1605
    %1607 = vmatprep.subr.mxu0 0.0
    %v1608 = vand.u32 %v134, 4294901760
    %1609 = vmatpush1.msra.mxu0 %v1608
    %1610 = vmatprep.subr.mxu0 0.0
    %v1611 = vand.u32 %v135, 4294901760
    %1612 = vmatpush1.msra.mxu0 %v1611
    %1613 = vmatprep.subr.mxu0 0.0
    %v1614 = vand.u32 %v136, 4294901760
    %1615 = vmatpush1.msra.mxu0 %v1614
    %1616 = vmatprep.subr.mxu0 0.0
    %v1617 = vand.u32 %v137, 4294901760
    %1618 = vmatpush1.msra.mxu0 %v1617
    %1619 = vmatprep.subr.mxu0 0.0
    %v1620 = vand.u32 %v138, 4294901760
    %1621 = vmatpush1.msra.mxu0 %v1620
    %1622 = vmatprep.subr.mxu0 0.0
    %v1623 = vand.u32 %v139, 4294901760
    %1624 = vmatpush1.msra.mxu0 %v1623
    %1625 = vmatprep.subr.mxu0 0.0
    %v1626 = vand.u32 %v140, 4294901760
    %1627 = vmatpush1.msra.mxu0 %v1626
    %1628 = vmatprep.subr.mxu0 0.0
    %v1629 = vand.u32 %v141, 4294901760
    %1630 = vmatpush1.msra.mxu0 %v1629
    %1631 = vmatprep.subr.mxu0 0.0
    %v1632 = vand.u32 %v142, 4294901760
    %1633 = vmatpush1.msra.mxu0 %v1632
    %1634 = vmatprep.subr.mxu0 0.0
    %v1635 = vand.u32 %v143, 4294901760
    %1636 = vmatpush1.msra.mxu0 %v1635
    %1637 = vmatprep.subr.mxu0 0.0
    %v1638 = vand.u32 %v144, 4294901760
    %1639 = vmatpush1.msra.mxu0 %v1638
    %1640 = vmatprep.subr.mxu0 0.0
    %v1641 = vand.u32 %v145, 4294901760
    %1642 = vmatpush1.msra.mxu0 %v1641
    %1643 = vmatprep.subr.mxu0 0.0
    %v1644 = vand.u32 %v146, 4294901760
    %1645 = vmatpush1.msra.mxu0 %v1644
    %1646 = vmatprep.subr.mxu0 0.0
    %v1647 = vand.u32 %v147, 4294901760
    %1648 = vmatpush1.msra.mxu0 %v1647
    %1649 = vmatprep.subr.mxu0 0.0
    %v1650 = vand.u32 %v148, 4294901760
    %1651 = vmatpush1.msra.mxu0 %v1650
    %1652 = vmatprep.subr.mxu0 0.0
    %v1653 = vand.u32 %v149, 4294901760
    %1654 = vmatpush1.msra.mxu0 %v1653
    %1655 = vmatprep.subr.mxu0 0.0
    %v1656 = vand.u32 %v150, 4294901760
    %1657 = vmatpush1.msra.mxu0 %v1656
    %1658 = vmatprep.subr.mxu0 0.0
    %v1659 = vand.u32 %v151, 4294901760
    %1660 = vmatpush1.msra.mxu0 %v1659
    %v1661 = vand.u32 %v83, 4294901760
    %v1662 = vsub.f32 %v83, %v1661
    %v1663 = vand.u32 %v1662, 4294901760
    %1664 = vmatprep.mubr.f32.mxu0 %v1663
    %v1665 = vand.u32 %v82, 4294901760
    %v1666 = vsub.f32 %v82, %v1665
    %v1667 = vand.u32 %v1666, 4294901760
    %1668 = vmatmul.mubr.f32.gmra.mrb[0].mxu0 %v1667
    %v1669 = vpop.f32.mrb[0].mxu0
    %v1670 = vadd.f32 %v1562, %v1669
    %v1671 = vpop.f32.mrb[0].mxu0
    %1672 = vdwg.mxu0
    %1673 = vmatprep.subr.mxu0 0.0
    %v1674 = vand.u32 %v120, 4294901760
    %v1675 = vsub.f32 %v120, %v1674
    %v1676 = vand.u32 %v1675, 4294901760
    %1677 = vmatpush1.msra.mxu0 %v1676
    %1678 = vmatprep.subr.mxu0 0.0
    %v1679 = vand.u32 %v121, 4294901760
    %v1680 = vsub.f32 %v121, %v1679
    %v1681 = vand.u32 %v1680, 4294901760
    %1682 = vmatpush1.msra.mxu0 %v1681
    %1683 = vmatprep.subr.mxu0 0.0
    %v1684 = vand.u32 %v122, 4294901760
    %v1685 = vsub.f32 %v122, %v1684
    %v1686 = vand.u32 %v1685, 4294901760
    %1687 = vmatpush1.msra.mxu0 %v1686
    %1688 = vmatprep.subr.mxu0 0.0
    %v1689 = vand.u32 %v123, 4294901760
    %v1690 = vsub.f32 %v123, %v1689
    %v1691 = vand.u32 %v1690, 4294901760
    %1692 = vmatpush1.msra.mxu0 %v1691
    %1693 = vmatprep.subr.mxu0 0.0
    %v1694 = vand.u32 %v124, 4294901760
    %v1695 = vsub.f32 %v124, %v1694
    %v1696 = vand.u32 %v1695, 4294901760
    %1697 = vmatpush1.msra.mxu0 %v1696
    %1698 = vmatprep.subr.mxu0 0.0
    %v1699 = vand.u32 %v125, 4294901760
    %v1700 = vsub.f32 %v125, %v1699
    %v1701 = vand.u32 %v1700, 4294901760
    %1702 = vmatpush1.msra.mxu0 %v1701
    %1703 = vmatprep.subr.mxu0 0.0
    %v1704 = vand.u32 %v126, 4294901760
    %v1705 = vsub.f32 %v126, %v1704
    %v1706 = vand.u32 %v1705, 4294901760
    %1707 = vmatpush1.msra.mxu0 %v1706
    %1708 = vmatprep.subr.mxu0 0.0
    %v1709 = vand.u32 %v127, 4294901760
    %v1710 = vsub.f32 %v127, %v1709
    %v1711 = vand.u32 %v1710, 4294901760
    %1712 = vmatpush1.msra.mxu0 %v1711
    %1713 = vmatprep.subr.mxu0 0.0
    %v1714 = vand.u32 %v128, 4294901760
    %v1715 = vsub.f32 %v128, %v1714
    %v1716 = vand.u32 %v1715, 4294901760
    %1717 = vmatpush1.msra.mxu0 %v1716
    %1718 = vmatprep.subr.mxu0 0.0
    %v1719 = vand.u32 %v129, 4294901760
    %v1720 = vsub.f32 %v129, %v1719
    %v1721 = vand.u32 %v1720, 4294901760
    %1722 = vmatpush1.msra.mxu0 %v1721
    %1723 = vmatprep.subr.mxu0 0.0
    %v1724 = vand.u32 %v130, 4294901760
    %v1725 = vsub.f32 %v130, %v1724
    %v1726 = vand.u32 %v1725, 4294901760
    %1727 = vmatpush1.msra.mxu0 %v1726
    %1728 = vmatprep.subr.mxu0 0.0
    %v1729 = vand.u32 %v131, 4294901760
    %v1730 = vsub.f32 %v131, %v1729
    %v1731 = vand.u32 %v1730, 4294901760
    %1732 = vmatpush1.msra.mxu0 %v1731
    %1733 = vmatprep.subr.mxu0 0.0
    %v1734 = vand.u32 %v132, 4294901760
    %v1735 = vsub.f32 %v132, %v1734
    %v1736 = vand.u32 %v1735, 4294901760
    %1737 = vmatpush1.msra.mxu0 %v1736
    %1738 = vmatprep.subr.mxu0 0.0
    %v1739 = vand.u32 %v133, 4294901760
    %v1740 = vsub.f32 %v133, %v1739
    %v1741 = vand.u32 %v1740, 4294901760
    %1742 = vmatpush1.msra.mxu0 %v1741
    %1743 = vmatprep.subr.mxu0 0.0
    %v1744 = vand.u32 %v134, 4294901760
    %v1745 = vsub.f32 %v134, %v1744
    %v1746 = vand.u32 %v1745, 4294901760
    %1747 = vmatpush1.msra.mxu0 %v1746
    %1748 = vmatprep.subr.mxu0 0.0
    %v1749 = vand.u32 %v135, 4294901760
    %v1750 = vsub.f32 %v135, %v1749
    %v1751 = vand.u32 %v1750, 4294901760
    %1752 = vmatpush1.msra.mxu0 %v1751
    %1753 = vmatprep.subr.mxu0 0.0
    %v1754 = vand.u32 %v136, 4294901760
    %v1755 = vsub.f32 %v136, %v1754
    %v1756 = vand.u32 %v1755, 4294901760
    %1757 = vmatpush1.msra.mxu0 %v1756
    %1758 = vmatprep.subr.mxu0 0.0
    %v1759 = vand.u32 %v137, 4294901760
    %v1760 = vsub.f32 %v137, %v1759
    %v1761 = vand.u32 %v1760, 4294901760
    %1762 = vmatpush1.msra.mxu0 %v1761
    %1763 = vmatprep.subr.mxu0 0.0
    %v1764 = vand.u32 %v138, 4294901760
    %v1765 = vsub.f32 %v138, %v1764
    %v1766 = vand.u32 %v1765, 4294901760
    %1767 = vmatpush1.msra.mxu0 %v1766
    %1768 = vmatprep.subr.mxu0 0.0
    %v1769 = vand.u32 %v139, 4294901760
    %v1770 = vsub.f32 %v139, %v1769
    %v1771 = vand.u32 %v1770, 4294901760
    %1772 = vmatpush1.msra.mxu0 %v1771
    %1773 = vmatprep.subr.mxu0 0.0
    %v1774 = vand.u32 %v140, 4294901760
    %v1775 = vsub.f32 %v140, %v1774
    %v1776 = vand.u32 %v1775, 4294901760
    %1777 = vmatpush1.msra.mxu0 %v1776
    %1778 = vmatprep.subr.mxu0 0.0
    %v1779 = vand.u32 %v141, 4294901760
    %v1780 = vsub.f32 %v141, %v1779
    %v1781 = vand.u32 %v1780, 4294901760
    %1782 = vmatpush1.msra.mxu0 %v1781
    %1783 = vmatprep.subr.mxu0 0.0
    %v1784 = vand.u32 %v142, 4294901760
    %v1785 = vsub.f32 %v142, %v1784
    %v1786 = vand.u32 %v1785, 4294901760
    %1787 = vmatpush1.msra.mxu0 %v1786
    %1788 = vmatprep.subr.mxu0 0.0
    %v1789 = vand.u32 %v143, 4294901760
    %v1790 = vsub.f32 %v143, %v1789
    %v1791 = vand.u32 %v1790, 4294901760
    %1792 = vmatpush1.msra.mxu0 %v1791
    %1793 = vmatprep.subr.mxu0 0.0
    %v1794 = vand.u32 %v144, 4294901760
    %v1795 = vsub.f32 %v144, %v1794
    %v1796 = vand.u32 %v1795, 4294901760
    %1797 = vmatpush1.msra.mxu0 %v1796
    %1798 = vmatprep.subr.mxu0 0.0
    %v1799 = vand.u32 %v145, 4294901760
    %v1800 = vsub.f32 %v145, %v1799
    %v1801 = vand.u32 %v1800, 4294901760
    %1802 = vmatpush1.msra.mxu0 %v1801
    %1803 = vmatprep.subr.mxu0 0.0
    %v1804 = vand.u32 %v146, 4294901760
    %v1805 = vsub.f32 %v146, %v1804
    %v1806 = vand.u32 %v1805, 4294901760
    %1807 = vmatpush1.msra.mxu0 %v1806
    %1808 = vmatprep.subr.mxu0 0.0
    %v1809 = vand.u32 %v147, 4294901760
    %v1810 = vsub.f32 %v147, %v1809
    %v1811 = vand.u32 %v1810, 4294901760
    %1812 = vmatpush1.msra.mxu0 %v1811
    %1813 = vmatprep.subr.mxu0 0.0
    %v1814 = vand.u32 %v148, 4294901760
    %v1815 = vsub.f32 %v148, %v1814
    %v1816 = vand.u32 %v1815, 4294901760
    %1817 = vmatpush1.msra.mxu0 %v1816
    %1818 = vmatprep.subr.mxu0 0.0
    %v1819 = vand.u32 %v149, 4294901760
    %v1820 = vsub.f32 %v149, %v1819
    %v1821 = vand.u32 %v1820, 4294901760
    %1822 = vmatpush1.msra.mxu0 %v1821
    %1823 = vmatprep.subr.mxu0 0.0
    %v1824 = vand.u32 %v150, 4294901760
    %v1825 = vsub.f32 %v150, %v1824
    %v1826 = vand.u32 %v1825, 4294901760
    %1827 = vmatpush1.msra.mxu0 %v1826
    %1828 = vmatprep.subr.mxu0 0.0
    %v1829 = vand.u32 %v151, 4294901760
    %v1830 = vsub.f32 %v151, %v1829
    %v1831 = vand.u32 %v1830, 4294901760
    %1832 = vmatpush1.msra.mxu0 %v1831
    %v1833 = vand.u32 %v83, 4294901760
    %1834 = vmatprep.mubr.f32.mxu0 %v1833
    %v1835 = vand.u32 %v82, 4294901760
    %1836 = vmatmul.mubr.f32.gmra.mrb[0].mxu0 %v1835
    %v1837 = vpop.f32.mrb[0].mxu0
    %v1838 = vadd.f32 %v1670, %v1837
    %v1839 = vpop.f32.mrb[0].mxu0
    %1840 = vdwg.mxu0
    %1841 = vmatprep.subr.mxu0 0.0
    %v1842 = vand.u32 %v120, 4294901760
    %1843 = vmatpush1.msra.mxu0 %v1842
    %1844 = vmatprep.subr.mxu0 0.0
    %v1845 = vand.u32 %v121, 4294901760
    %1846 = vmatpush1.msra.mxu0 %v1845
    %1847 = vmatprep.subr.mxu0 0.0
    %v1848 = vand.u32 %v122, 4294901760
    %1849 = vmatpush1.msra.mxu0 %v1848
    %1850 = vmatprep.subr.mxu0 0.0
    %v1851 = vand.u32 %v123, 4294901760
    %1852 = vmatpush1.msra.mxu0 %v1851
    %1853 = vmatprep.subr.mxu0 0.0
    %v1854 = vand.u32 %v124, 4294901760
    %1855 = vmatpush1.msra.mxu0 %v1854
    %1856 = vmatprep.subr.mxu0 0.0
    %v1857 = vand.u32 %v125, 4294901760
    %1858 = vmatpush1.msra.mxu0 %v1857
    %1859 = vmatprep.subr.mxu0 0.0
    %v1860 = vand.u32 %v126, 4294901760
    %1861 = vmatpush1.msra.mxu0 %v1860
    %1862 = vmatprep.subr.mxu0 0.0
    %v1863 = vand.u32 %v127, 4294901760
    %1864 = vmatpush1.msra.mxu0 %v1863
    %1865 = vmatprep.subr.mxu0 0.0
    %v1866 = vand.u32 %v128, 4294901760
    %1867 = vmatpush1.msra.mxu0 %v1866
    %1868 = vmatprep.subr.mxu0 0.0
    %v1869 = vand.u32 %v129, 4294901760
    %1870 = vmatpush1.msra.mxu0 %v1869
    %1871 = vmatprep.subr.mxu0 0.0
    %v1872 = vand.u32 %v130, 4294901760
    %1873 = vmatpush1.msra.mxu0 %v1872
    %1874 = vmatprep.subr.mxu0 0.0
    %v1875 = vand.u32 %v131, 4294901760
    %1876 = vmatpush1.msra.mxu0 %v1875
    %1877 = vmatprep.subr.mxu0 0.0
    %v1878 = vand.u32 %v132, 4294901760
    %1879 = vmatpush1.msra.mxu0 %v1878
    %1880 = vmatprep.subr.mxu0 0.0
    %v1881 = vand.u32 %v133, 4294901760
    %1882 = vmatpush1.msra.mxu0 %v1881
    %1883 = vmatprep.subr.mxu0 0.0
    %v1884 = vand.u32 %v134, 4294901760
    %1885 = vmatpush1.msra.mxu0 %v1884
    %1886 = vmatprep.subr.mxu0 0.0
    %v1887 = vand.u32 %v135, 4294901760
    %1888 = vmatpush1.msra.mxu0 %v1887
    %1889 = vmatprep.subr.mxu0 0.0
    %v1890 = vand.u32 %v136, 4294901760
    %1891 = vmatpush1.msra.mxu0 %v1890
    %1892 = vmatprep.subr.mxu0 0.0
    %v1893 = vand.u32 %v137, 4294901760
    %1894 = vmatpush1.msra.mxu0 %v1893
    %1895 = vmatprep.subr.mxu0 0.0
    %v1896 = vand.u32 %v138, 4294901760
    %1897 = vmatpush1.msra.mxu0 %v1896
    %1898 = vmatprep.subr.mxu0 0.0
    %v1899 = vand.u32 %v139, 4294901760
    %1900 = vmatpush1.msra.mxu0 %v1899
    %1901 = vmatprep.subr.mxu0 0.0
    %v1902 = vand.u32 %v140, 4294901760
    %1903 = vmatpush1.msra.mxu0 %v1902
    %1904 = vmatprep.subr.mxu0 0.0
    %v1905 = vand.u32 %v141, 4294901760
    %1906 = vmatpush1.msra.mxu0 %v1905
    %1907 = vmatprep.subr.mxu0 0.0
    %v1908 = vand.u32 %v142, 4294901760
    %1909 = vmatpush1.msra.mxu0 %v1908
    %1910 = vmatprep.subr.mxu0 0.0
    %v1911 = vand.u32 %v143, 4294901760
    %1912 = vmatpush1.msra.mxu0 %v1911
    %1913 = vmatprep.subr.mxu0 0.0
    %v1914 = vand.u32 %v144, 4294901760
    %1915 = vmatpush1.msra.mxu0 %v1914
    %1916 = vmatprep.subr.mxu0 0.0
    %v1917 = vand.u32 %v145, 4294901760
    %1918 = vmatpush1.msra.mxu0 %v1917
    %1919 = vmatprep.subr.mxu0 0.0
    %v1920 = vand.u32 %v146, 4294901760
    %1921 = vmatpush1.msra.mxu0 %v1920
    %1922 = vmatprep.subr.mxu0 0.0
    %v1923 = vand.u32 %v147, 4294901760
    %1924 = vmatpush1.msra.mxu0 %v1923
    %1925 = vmatprep.subr.mxu0 0.0
    %v1926 = vand.u32 %v148, 4294901760
    %1927 = vmatpush1.msra.mxu0 %v1926
    %1928 = vmatprep.subr.mxu0 0.0
    %v1929 = vand.u32 %v149, 4294901760
    %1930 = vmatpush1.msra.mxu0 %v1929
    %1931 = vmatprep.subr.mxu0 0.0
    %v1932 = vand.u32 %v150, 4294901760
    %1933 = vmatpush1.msra.mxu0 %v1932
    %1934 = vmatprep.subr.mxu0 0.0
    %v1935 = vand.u32 %v151, 4294901760
    %1936 = vmatpush1.msra.mxu0 %v1935
    %v1937 = vand.u32 %v83, 4294901760
    %1938 = vmatprep.mubr.f32.mxu0 %v1937
    %v1939 = vand.u32 %v82, 4294901760
    %1940 = vmatmul.mubr.f32.gmra.mrb[0].mxu0 %v1939
    %v1941 = vpop.f32.mrb[0].mxu0
    %v1942 = vadd.f32 %v1838, %v1941
    %v1943 = vpop.f32.mrb[0].mxu0
    %1944 = vdwg.mxu0
    %1945 = vmatprep.subr.mxu0 0.0
    %v1946 = vand.u32 %v152, 4294901760
    %1947 = vmatpush1.msra.mxu0 %v1946
    %1948 = vmatprep.subr.mxu0 0.0
    %v1949 = vand.u32 %v153, 4294901760
    %1950 = vmatpush1.msra.mxu0 %v1949
    %1951 = vmatprep.subr.mxu0 0.0
    %v1952 = vand.u32 %v154, 4294901760
    %1953 = vmatpush1.msra.mxu0 %v1952
    %1954 = vmatprep.subr.mxu0 0.0
    %v1955 = vand.u32 %v155, 4294901760
    %1956 = vmatpush1.msra.mxu0 %v1955
    %1957 = vmatprep.subr.mxu0 0.0
    %v1958 = vand.u32 %v156, 4294901760
    %1959 = vmatpush1.msra.mxu0 %v1958
    %1960 = vmatprep.subr.mxu0 0.0
    %v1961 = vand.u32 %v157, 4294901760
    %1962 = vmatpush1.msra.mxu0 %v1961
    %1963 = vmatprep.subr.mxu0 0.0
    %v1964 = vand.u32 %v158, 4294901760
    %1965 = vmatpush1.msra.mxu0 %v1964
    %1966 = vmatprep.subr.mxu0 0.0
    %v1967 = vand.u32 %v159, 4294901760
    %1968 = vmatpush1.msra.mxu0 %v1967
    %1969 = vmatprep.subr.mxu0 0.0
    %v1970 = vand.u32 %v160, 4294901760
    %1971 = vmatpush1.msra.mxu0 %v1970
    %1972 = vmatprep.subr.mxu0 0.0
    %v1973 = vand.u32 %v161, 4294901760
    %1974 = vmatpush1.msra.mxu0 %v1973
    %1975 = vmatprep.subr.mxu0 0.0
    %v1976 = vand.u32 %v162, 4294901760
    %1977 = vmatpush1.msra.mxu0 %v1976
    %1978 = vmatprep.subr.mxu0 0.0
    %v1979 = vand.u32 %v163, 4294901760
    %1980 = vmatpush1.msra.mxu0 %v1979
    %1981 = vmatprep.subr.mxu0 0.0
    %v1982 = vand.u32 %v164, 4294901760
    %1983 = vmatpush1.msra.mxu0 %v1982
    %1984 = vmatprep.subr.mxu0 0.0
    %v1985 = vand.u32 %v165, 4294901760
    %1986 = vmatpush1.msra.mxu0 %v1985
    %1987 = vmatprep.subr.mxu0 0.0
    %v1988 = vand.u32 %v166, 4294901760
    %1989 = vmatpush1.msra.mxu0 %v1988
    %1990 = vmatprep.subr.mxu0 0.0
    %v1991 = vand.u32 %v167, 4294901760
    %1992 = vmatpush1.msra.mxu0 %v1991
    %1993 = vmatprep.subr.mxu0 0.0
    %v1994 = vand.u32 %v168, 4294901760
    %1995 = vmatpush1.msra.mxu0 %v1994
    %1996 = vmatprep.subr.mxu0 0.0
    %v1997 = vand.u32 %v169, 4294901760
    %1998 = vmatpush1.msra.mxu0 %v1997
    %1999 = vmatprep.subr.mxu0 0.0
    %v2000 = vand.u32 %v170, 4294901760
    %2001 = vmatpush1.msra.mxu0 %v2000
    %2002 = vmatprep.subr.mxu0 0.0
    %v2003 = vand.u32 %v171, 4294901760
    %2004 = vmatpush1.msra.mxu0 %v2003
    %2005 = vmatprep.subr.mxu0 0.0
    %v2006 = vand.u32 %v172, 4294901760
    %2007 = vmatpush1.msra.mxu0 %v2006
    %2008 = vmatprep.subr.mxu0 0.0
    %v2009 = vand.u32 %v173, 4294901760
    %2010 = vmatpush1.msra.mxu0 %v2009
    %2011 = vmatprep.subr.mxu0 0.0
    %v2012 = vand.u32 %v174, 4294901760
    %2013 = vmatpush1.msra.mxu0 %v2012
    %2014 = vmatprep.subr.mxu0 0.0
    %v2015 = vand.u32 %v175, 4294901760
    %2016 = vmatpush1.msra.mxu0 %v2015
    %2017 = vmatprep.subr.mxu0 0.0
    %v2018 = vand.u32 %v176, 4294901760
    %2019 = vmatpush1.msra.mxu0 %v2018
    %2020 = vmatprep.subr.mxu0 0.0
    %v2021 = vand.u32 %v177, 4294901760
    %2022 = vmatpush1.msra.mxu0 %v2021
    %2023 = vmatprep.subr.mxu0 0.0
    %v2024 = vand.u32 %v178, 4294901760
    %2025 = vmatpush1.msra.mxu0 %v2024
    %2026 = vmatprep.subr.mxu0 0.0
    %v2027 = vand.u32 %v179, 4294901760
    %2028 = vmatpush1.msra.mxu0 %v2027
    %2029 = vmatprep.subr.mxu0 0.0
    %v2030 = vand.u32 %v180, 4294901760
    %2031 = vmatpush1.msra.mxu0 %v2030
    %2032 = vmatprep.subr.mxu0 0.0
    %v2033 = vand.u32 %v181, 4294901760
    %2034 = vmatpush1.msra.mxu0 %v2033
    %2035 = vmatprep.subr.mxu0 0.0
    %v2036 = vand.u32 %v182, 4294901760
    %2037 = vmatpush1.msra.mxu0 %v2036
    %2038 = vmatprep.subr.mxu0 0.0
    %v2039 = vand.u32 %v183, 4294901760
    %2040 = vmatpush1.msra.mxu0 %v2039
    %v2041 = vand.u32 %v85, 4294901760
    %v2042 = vsub.f32 %v85, %v2041
    %v2043 = vand.u32 %v2042, 4294901760
    %v2044 = vsub.f32 %v2042, %v2043
    %v2045 = vand.u32 %v2044, 4294901760
    %2046 = vmatprep.mubr.f32.mxu0 %v2045
    %v2047 = vand.u32 %v84, 4294901760
    %v2048 = vsub.f32 %v84, %v2047
    %v2049 = vand.u32 %v2048, 4294901760
    %v2050 = vsub.f32 %v2048, %v2049
    %v2051 = vand.u32 %v2050, 4294901760
    %2052 = vmatmul.mubr.f32.gmra.mrb[0].mxu0 %v2051
    %v2053 = vpop.f32.mrb[0].mxu0
    %v2054 = vadd.f32 %v1942, %v2053
    %v2055 = vpop.f32.mrb[0].mxu0
    %2056 = vdwg.mxu0
    %2057 = vmatprep.subr.mxu0 0.0
    %v2058 = vand.u32 %v152, 4294901760
    %v2059 = vsub.f32 %v152, %v2058
    %v2060 = vand.u32 %v2059, 4294901760
    %v2061 = vsub.f32 %v2059, %v2060
    %v2062 = vand.u32 %v2061, 4294901760
    %2063 = vmatpush1.msra.mxu0 %v2062
    %2064 = vmatprep.subr.mxu0 0.0
    %v2065 = vand.u32 %v153, 4294901760
    %v2066 = vsub.f32 %v153, %v2065
    %v2067 = vand.u32 %v2066, 4294901760
    %v2068 = vsub.f32 %v2066, %v2067
    %v2069 = vand.u32 %v2068, 4294901760
    %2070 = vmatpush1.msra.mxu0 %v2069
    %2071 = vmatprep.subr.mxu0 0.0
    %v2072 = vand.u32 %v154, 4294901760
    %v2073 = vsub.f32 %v154, %v2072
    %v2074 = vand.u32 %v2073, 4294901760
    %v2075 = vsub.f32 %v2073, %v2074
    %v2076 = vand.u32 %v2075, 4294901760
    %2077 = vmatpush1.msra.mxu0 %v2076
    %2078 = vmatprep.subr.mxu0 0.0
    %v2079 = vand.u32 %v155, 4294901760
    %v2080 = vsub.f32 %v155, %v2079
    %v2081 = vand.u32 %v2080, 4294901760
    %v2082 = vsub.f32 %v2080, %v2081
    %v2083 = vand.u32 %v2082, 4294901760
    %2084 = vmatpush1.msra.mxu0 %v2083
    %2085 = vmatprep.subr.mxu0 0.0
    %v2086 = vand.u32 %v156, 4294901760
    %v2087 = vsub.f32 %v156, %v2086
    %v2088 = vand.u32 %v2087, 4294901760
    %v2089 = vsub.f32 %v2087, %v2088
    %v2090 = vand.u32 %v2089, 4294901760
    %2091 = vmatpush1.msra.mxu0 %v2090
    %2092 = vmatprep.subr.mxu0 0.0
    %v2093 = vand.u32 %v157, 4294901760
    %v2094 = vsub.f32 %v157, %v2093
    %v2095 = vand.u32 %v2094, 4294901760
    %v2096 = vsub.f32 %v2094, %v2095
    %v2097 = vand.u32 %v2096, 4294901760
    %2098 = vmatpush1.msra.mxu0 %v2097
    %2099 = vmatprep.subr.mxu0 0.0
    %v2100 = vand.u32 %v158, 4294901760
    %v2101 = vsub.f32 %v158, %v2100
    %v2102 = vand.u32 %v2101, 4294901760
    %v2103 = vsub.f32 %v2101, %v2102
    %v2104 = vand.u32 %v2103, 4294901760
    %2105 = vmatpush1.msra.mxu0 %v2104
    %2106 = vmatprep.subr.mxu0 0.0
    %v2107 = vand.u32 %v159, 4294901760
    %v2108 = vsub.f32 %v159, %v2107
    %v2109 = vand.u32 %v2108, 4294901760
    %v2110 = vsub.f32 %v2108, %v2109
    %v2111 = vand.u32 %v2110, 4294901760
    %2112 = vmatpush1.msra.mxu0 %v2111
    %2113 = vmatprep.subr.mxu0 0.0
    %v2114 = vand.u32 %v160, 4294901760
    %v2115 = vsub.f32 %v160, %v2114
    %v2116 = vand.u32 %v2115, 4294901760
    %v2117 = vsub.f32 %v2115, %v2116
    %v2118 = vand.u32 %v2117, 4294901760
    %2119 = vmatpush1.msra.mxu0 %v2118
    %2120 = vmatprep.subr.mxu0 0.0
    %v2121 = vand.u32 %v161, 4294901760
    %v2122 = vsub.f32 %v161, %v2121
    %v2123 = vand.u32 %v2122, 4294901760
    %v2124 = vsub.f32 %v2122, %v2123
    %v2125 = vand.u32 %v2124, 4294901760
    %2126 = vmatpush1.msra.mxu0 %v2125
    %2127 = vmatprep.subr.mxu0 0.0
    %v2128 = vand.u32 %v162, 4294901760
    %v2129 = vsub.f32 %v162, %v2128
    %v2130 = vand.u32 %v2129, 4294901760
    %v2131 = vsub.f32 %v2129, %v2130
    %v2132 = vand.u32 %v2131, 4294901760
    %2133 = vmatpush1.msra.mxu0 %v2132
    %2134 = vmatprep.subr.mxu0 0.0
    %v2135 = vand.u32 %v163, 4294901760
    %v2136 = vsub.f32 %v163, %v2135
    %v2137 = vand.u32 %v2136, 4294901760
    %v2138 = vsub.f32 %v2136, %v2137
    %v2139 = vand.u32 %v2138, 4294901760
    %2140 = vmatpush1.msra.mxu0 %v2139
    %2141 = vmatprep.subr.mxu0 0.0
    %v2142 = vand.u32 %v164, 4294901760
    %v2143 = vsub.f32 %v164, %v2142
    %v2144 = vand.u32 %v2143, 4294901760
    %v2145 = vsub.f32 %v2143, %v2144
    %v2146 = vand.u32 %v2145, 4294901760
    %2147 = vmatpush1.msra.mxu0 %v2146
    %2148 = vmatprep.subr.mxu0 0.0
    %v2149 = vand.u32 %v165, 4294901760
    %v2150 = vsub.f32 %v165, %v2149
    %v2151 = vand.u32 %v2150, 4294901760
    %v2152 = vsub.f32 %v2150, %v2151
    %v2153 = vand.u32 %v2152, 4294901760
    %2154 = vmatpush1.msra.mxu0 %v2153
    %2155 = vmatprep.subr.mxu0 0.0
    %v2156 = vand.u32 %v166, 4294901760
    %v2157 = vsub.f32 %v166, %v2156
    %v2158 = vand.u32 %v2157, 4294901760
    %v2159 = vsub.f32 %v2157, %v2158
    %v2160 = vand.u32 %v2159, 4294901760
    %2161 = vmatpush1.msra.mxu0 %v2160
    %2162 = vmatprep.subr.mxu0 0.0
    %v2163 = vand.u32 %v167, 4294901760
    %v2164 = vsub.f32 %v167, %v2163
    %v2165 = vand.u32 %v2164, 4294901760
    %v2166 = vsub.f32 %v2164, %v2165
    %v2167 = vand.u32 %v2166, 4294901760
    %2168 = vmatpush1.msra.mxu0 %v2167
    %2169 = vmatprep.subr.mxu0 0.0
    %v2170 = vand.u32 %v168, 4294901760
    %v2171 = vsub.f32 %v168, %v2170
    %v2172 = vand.u32 %v2171, 4294901760
    %v2173 = vsub.f32 %v2171, %v2172
    %v2174 = vand.u32 %v2173, 4294901760
    %2175 = vmatpush1.msra.mxu0 %v2174
    %2176 = vmatprep.subr.mxu0 0.0
    %v2177 = vand.u32 %v169, 4294901760
    %v2178 = vsub.f32 %v169, %v2177
    %v2179 = vand.u32 %v2178, 4294901760
    %v2180 = vsub.f32 %v2178, %v2179
    %v2181 = vand.u32 %v2180, 4294901760
    %2182 = vmatpush1.msra.mxu0 %v2181
    %2183 = vmatprep.subr.mxu0 0.0
    %v2184 = vand.u32 %v170, 4294901760
    %v2185 = vsub.f32 %v170, %v2184
    %v2186 = vand.u32 %v2185, 4294901760
    %v2187 = vsub.f32 %v2185, %v2186
    %v2188 = vand.u32 %v2187, 4294901760
    %2189 = vmatpush1.msra.mxu0 %v2188
    %2190 = vmatprep.subr.mxu0 0.0
    %v2191 = vand.u32 %v171, 4294901760
    %v2192 = vsub.f32 %v171, %v2191
    %v2193 = vand.u32 %v2192, 4294901760
    %v2194 = vsub.f32 %v2192, %v2193
    %v2195 = vand.u32 %v2194, 4294901760
    %2196 = vmatpush1.msra.mxu0 %v2195
    %2197 = vmatprep.subr.mxu0 0.0
    %v2198 = vand.u32 %v172, 4294901760
    %v2199 = vsub.f32 %v172, %v2198
    %v2200 = vand.u32 %v2199, 4294901760
    %v2201 = vsub.f32 %v2199, %v2200
    %v2202 = vand.u32 %v2201, 4294901760
    %2203 = vmatpush1.msra.mxu0 %v2202
    %2204 = vmatprep.subr.mxu0 0.0
    %v2205 = vand.u32 %v173, 4294901760
    %v2206 = vsub.f32 %v173, %v2205
    %v2207 = vand.u32 %v2206, 4294901760
    %v2208 = vsub.f32 %v2206, %v2207
    %v2209 = vand.u32 %v2208, 4294901760
    %2210 = vmatpush1.msra.mxu0 %v2209
    %2211 = vmatprep.subr.mxu0 0.0
    %v2212 = vand.u32 %v174, 4294901760
    %v2213 = vsub.f32 %v174, %v2212
    %v2214 = vand.u32 %v2213, 4294901760
    %v2215 = vsub.f32 %v2213, %v2214
    %v2216 = vand.u32 %v2215, 4294901760
    %2217 = vmatpush1.msra.mxu0 %v2216
    %2218 = vmatprep.subr.mxu0 0.0
    %v2219 = vand.u32 %v175, 4294901760
    %v2220 = vsub.f32 %v175, %v2219
    %v2221 = vand.u32 %v2220, 4294901760
    %v2222 = vsub.f32 %v2220, %v2221
    %v2223 = vand.u32 %v2222, 4294901760
    %2224 = vmatpush1.msra.mxu0 %v2223
    %2225 = vmatprep.subr.mxu0 0.0
    %v2226 = vand.u32 %v176, 4294901760
    %v2227 = vsub.f32 %v176, %v2226
    %v2228 = vand.u32 %v2227, 4294901760
    %v2229 = vsub.f32 %v2227, %v2228
    %v2230 = vand.u32 %v2229, 4294901760
    %2231 = vmatpush1.msra.mxu0 %v2230
    %2232 = vmatprep.subr.mxu0 0.0
    %v2233 = vand.u32 %v177, 4294901760
    %v2234 = vsub.f32 %v177, %v2233
    %v2235 = vand.u32 %v2234, 4294901760
    %v2236 = vsub.f32 %v2234, %v2235
    %v2237 = vand.u32 %v2236, 4294901760
    %2238 = vmatpush1.msra.mxu0 %v2237
    %2239 = vmatprep.subr.mxu0 0.0
    %v2240 = vand.u32 %v178, 4294901760
    %v2241 = vsub.f32 %v178, %v2240
    %v2242 = vand.u32 %v2241, 4294901760
    %v2243 = vsub.f32 %v2241, %v2242
    %v2244 = vand.u32 %v2243, 4294901760
    %2245 = vmatpush1.msra.mxu0 %v2244
    %2246 = vmatprep.subr.mxu0 0.0
    %v2247 = vand.u32 %v179, 4294901760
    %v2248 = vsub.f32 %v179, %v2247
    %v2249 = vand.u32 %v2248, 4294901760
    %v2250 = vsub.f32 %v2248, %v2249
    %v2251 = vand.u32 %v2250, 4294901760
    %2252 = vmatpush1.msra.mxu0 %v2251
    %2253 = vmatprep.subr.mxu0 0.0
    %v2254 = vand.u32 %v180, 4294901760
    %v2255 = vsub.f32 %v180, %v2254
    %v2256 = vand.u32 %v2255, 4294901760
    %v2257 = vsub.f32 %v2255, %v2256
    %v2258 = vand.u32 %v2257, 4294901760
    %2259 = vmatpush1.msra.mxu0 %v2258
    %2260 = vmatprep.subr.mxu0 0.0
    %v2261 = vand.u32 %v181, 4294901760
    %v2262 = vsub.f32 %v181, %v2261
    %v2263 = vand.u32 %v2262, 4294901760
    %v2264 = vsub.f32 %v2262, %v2263
    %v2265 = vand.u32 %v2264, 4294901760
    %2266 = vmatpush1.msra.mxu0 %v2265
    %2267 = vmatprep.subr.mxu0 0.0
    %v2268 = vand.u32 %v182, 4294901760
    %v2269 = vsub.f32 %v182, %v2268
    %v2270 = vand.u32 %v2269, 4294901760
    %v2271 = vsub.f32 %v2269, %v2270
    %v2272 = vand.u32 %v2271, 4294901760
    %2273 = vmatpush1.msra.mxu0 %v2272
    %2274 = vmatprep.subr.mxu0 0.0
    %v2275 = vand.u32 %v183, 4294901760
    %v2276 = vsub.f32 %v183, %v2275
    %v2277 = vand.u32 %v2276, 4294901760
    %v2278 = vsub.f32 %v2276, %v2277
    %v2279 = vand.u32 %v2278, 4294901760
    %2280 = vmatpush1.msra.mxu0 %v2279
    %v2281 = vand.u32 %v85, 4294901760
    %2282 = vmatprep.mubr.f32.mxu0 %v2281
    %v2283 = vand.u32 %v84, 4294901760
    %2284 = vmatmul.mubr.f32.gmra.mrb[0].mxu0 %v2283
    %v2285 = vpop.f32.mrb[0].mxu0
    %v2286 = vadd.f32 %v2054, %v2285
    %v2287 = vpop.f32.mrb[0].mxu0
    %2288 = vdwg.mxu0
    %2289 = vmatprep.subr.mxu0 0.0
    %v2290 = vand.u32 %v152, 4294901760
    %v2291 = vsub.f32 %v152, %v2290
    %2292 = vmatpush1.msra.mxu0 %v2291
    %2293 = vmatprep.subr.mxu0 0.0
    %v2294 = vand.u32 %v153, 4294901760
    %v2295 = vsub.f32 %v153, %v2294
    %2296 = vmatpush1.msra.mxu0 %v2295
    %2297 = vmatprep.subr.mxu0 0.0
    %v2298 = vand.u32 %v154, 4294901760
    %v2299 = vsub.f32 %v154, %v2298
    %2300 = vmatpush1.msra.mxu0 %v2299
    %2301 = vmatprep.subr.mxu0 0.0
    %v2302 = vand.u32 %v155, 4294901760
    %v2303 = vsub.f32 %v155, %v2302
    %2304 = vmatpush1.msra.mxu0 %v2303
    %2305 = vmatprep.subr.mxu0 0.0
    %v2306 = vand.u32 %v156, 4294901760
    %v2307 = vsub.f32 %v156, %v2306
    %2308 = vmatpush1.msra.mxu0 %v2307
    %2309 = vmatprep.subr.mxu0 0.0
    %v2310 = vand.u32 %v157, 4294901760
    %v2311 = vsub.f32 %v157, %v2310
    %2312 = vmatpush1.msra.mxu0 %v2311
    %2313 = vmatprep.subr.mxu0 0.0
    %v2314 = vand.u32 %v158, 4294901760
    %v2315 = vsub.f32 %v158, %v2314
    %2316 = vmatpush1.msra.mxu0 %v2315
    %2317 = vmatprep.subr.mxu0 0.0
    %v2318 = vand.u32 %v159, 4294901760
    %v2319 = vsub.f32 %v159, %v2318
    %2320 = vmatpush1.msra.mxu0 %v2319
    %2321 = vmatprep.subr.mxu0 0.0
    %v2322 = vand.u32 %v160, 4294901760
    %v2323 = vsub.f32 %v160, %v2322
    %2324 = vmatpush1.msra.mxu0 %v2323
    %2325 = vmatprep.subr.mxu0 0.0
    %v2326 = vand.u32 %v161, 4294901760
    %v2327 = vsub.f32 %v161, %v2326
    %2328 = vmatpush1.msra.mxu0 %v2327
    %2329 = vmatprep.subr.mxu0 0.0
    %v2330 = vand.u32 %v162, 4294901760
    %v2331 = vsub.f32 %v162, %v2330
    %2332 = vmatpush1.msra.mxu0 %v2331
    %2333 = vmatprep.subr.mxu0 0.0
    %v2334 = vand.u32 %v163, 4294901760
    %v2335 = vsub.f32 %v163, %v2334
    %2336 = vmatpush1.msra.mxu0 %v2335
    %2337 = vmatprep.subr.mxu0 0.0
    %v2338 = vand.u32 %v164, 4294901760
    %v2339 = vsub.f32 %v164, %v2338
    %2340 = vmatpush1.msra.mxu0 %v2339
    %2341 = vmatprep.subr.mxu0 0.0
    %v2342 = vand.u32 %v165, 4294901760
    %v2343 = vsub.f32 %v165, %v2342
    %2344 = vmatpush1.msra.mxu0 %v2343
    %2345 = vmatprep.subr.mxu0 0.0
    %v2346 = vand.u32 %v166, 4294901760
    %v2347 = vsub.f32 %v166, %v2346
    %2348 = vmatpush1.msra.mxu0 %v2347
    %2349 = vmatprep.subr.mxu0 0.0
    %v2350 = vand.u32 %v167, 4294901760
    %v2351 = vsub.f32 %v167, %v2350
    %2352 = vmatpush1.msra.mxu0 %v2351
    %2353 = vmatprep.subr.mxu0 0.0
    %v2354 = vand.u32 %v168, 4294901760
    %v2355 = vsub.f32 %v168, %v2354
    %2356 = vmatpush1.msra.mxu0 %v2355
    %2357 = vmatprep.subr.mxu0 0.0
    %v2358 = vand.u32 %v169, 4294901760
    %v2359 = vsub.f32 %v169, %v2358
    %2360 = vmatpush1.msra.mxu0 %v2359
    %2361 = vmatprep.subr.mxu0 0.0
    %v2362 = vand.u32 %v170, 4294901760
    %v2363 = vsub.f32 %v170, %v2362
    %2364 = vmatpush1.msra.mxu0 %v2363
    %2365 = vmatprep.subr.mxu0 0.0
    %v2366 = vand.u32 %v171, 4294901760
    %v2367 = vsub.f32 %v171, %v2366
    %2368 = vmatpush1.msra.mxu0 %v2367
    %2369 = vmatprep.subr.mxu0 0.0
    %v2370 = vand.u32 %v172, 4294901760
    %v2371 = vsub.f32 %v172, %v2370
    %2372 = vmatpush1.msra.mxu0 %v2371
    %2373 = vmatprep.subr.mxu0 0.0
    %v2374 = vand.u32 %v173, 4294901760
    %v2375 = vsub.f32 %v173, %v2374
    %2376 = vmatpush1.msra.mxu0 %v2375
    %2377 = vmatprep.subr.mxu0 0.0
    %v2378 = vand.u32 %v174, 4294901760
    %v2379 = vsub.f32 %v174, %v2378
    %2380 = vmatpush1.msra.mxu0 %v2379
    %2381 = vmatprep.subr.mxu0 0.0
    %v2382 = vand.u32 %v175, 4294901760
    %v2383 = vsub.f32 %v175, %v2382
    %2384 = vmatpush1.msra.mxu0 %v2383
    %2385 = vmatprep.subr.mxu0 0.0
    %v2386 = vand.u32 %v176, 4294901760
    %v2387 = vsub.f32 %v176, %v2386
    %2388 = vmatpush1.msra.mxu0 %v2387
    %2389 = vmatprep.subr.mxu0 0.0
    %v2390 = vand.u32 %v177, 4294901760
    %v2391 = vsub.f32 %v177, %v2390
    %2392 = vmatpush1.msra.mxu0 %v2391
    %2393 = vmatprep.subr.mxu0 0.0
    %v2394 = vand.u32 %v178, 4294901760
    %v2395 = vsub.f32 %v178, %v2394
    %2396 = vmatpush1.msra.mxu0 %v2395
    %2397 = vmatprep.subr.mxu0 0.0
    %v2398 = vand.u32 %v179, 4294901760
    %v2399 = vsub.f32 %v179, %v2398
    %2400 = vmatpush1.msra.mxu0 %v2399
    %2401 = vmatprep.subr.mxu0 0.0
    %v2402 = vand.u32 %v180, 4294901760
    %v2403 = vsub.f32 %v180, %v2402
    %2404 = vmatpush1.msra.mxu0 %v2403
    %2405 = vmatprep.subr.mxu0 0.0
    %v2406 = vand.u32 %v181, 4294901760
    %v2407 = vsub.f32 %v181, %v2406
    %2408 = vmatpush1.msra.mxu0 %v2407
    %2409 = vmatprep.subr.mxu0 0.0
    %v2410 = vand.u32 %v182, 4294901760
    %v2411 = vsub.f32 %v182, %v2410
    %2412 = vmatpush1.msra.mxu0 %v2411
    %2413 = vmatprep.subr.mxu0 0.0
    %v2414 = vand.u32 %v183, 4294901760
    %v2415 = vsub.f32 %v183, %v2414
    %2416 = vmatpush1.msra.mxu0 %v2415
    %v2417 = vand.u32 %v85, 4294901760
    %v2418 = vsub.f32 %v85, %v2417
    %2419 = vmatprep.mubr.f32.mxu0 %v2418
    %v2420 = vand.u32 %v84, 4294901760
    %v2421 = vsub.f32 %v84, %v2420
    %2422 = vmatmul.mubr.f32.gmra.mrb[0].mxu0 %v2421
    %v2423 = vpop.f32.mrb[0].mxu0
    %v2424 = vadd.f32 %v2286, %v2423
    %v2425 = vpop.f32.mrb[0].mxu0
    %2426 = vdwg.mxu0
    %2427 = vmatprep.subr.mxu0 0.0
    %v2428 = vand.u32 %v152, 4294901760
    %2429 = vmatpush1.msra.mxu0 %v2428
    %2430 = vmatprep.subr.mxu0 0.0
    %v2431 = vand.u32 %v153, 4294901760
    %2432 = vmatpush1.msra.mxu0 %v2431
    %2433 = vmatprep.subr.mxu0 0.0
    %v2434 = vand.u32 %v154, 4294901760
    %2435 = vmatpush1.msra.mxu0 %v2434
    %2436 = vmatprep.subr.mxu0 0.0
    %v2437 = vand.u32 %v155, 4294901760
    %2438 = vmatpush1.msra.mxu0 %v2437
    %2439 = vmatprep.subr.mxu0 0.0
    %v2440 = vand.u32 %v156, 4294901760
    %2441 = vmatpush1.msra.mxu0 %v2440
    %2442 = vmatprep.subr.mxu0 0.0
    %v2443 = vand.u32 %v157, 4294901760
    %2444 = vmatpush1.msra.mxu0 %v2443
    %2445 = vmatprep.subr.mxu0 0.0
    %v2446 = vand.u32 %v158, 4294901760
    %2447 = vmatpush1.msra.mxu0 %v2446
    %2448 = vmatprep.subr.mxu0 0.0
    %v2449 = vand.u32 %v159, 4294901760
    %2450 = vmatpush1.msra.mxu0 %v2449
    %2451 = vmatprep.subr.mxu0 0.0
    %v2452 = vand.u32 %v160, 4294901760
    %2453 = vmatpush1.msra.mxu0 %v2452
    %2454 = vmatprep.subr.mxu0 0.0
    %v2455 = vand.u32 %v161, 4294901760
    %2456 = vmatpush1.msra.mxu0 %v2455
    %2457 = vmatprep.subr.mxu0 0.0
    %v2458 = vand.u32 %v162, 4294901760
    %2459 = vmatpush1.msra.mxu0 %v2458
    %2460 = vmatprep.subr.mxu0 0.0
    %v2461 = vand.u32 %v163, 4294901760
    %2462 = vmatpush1.msra.mxu0 %v2461
    %2463 = vmatprep.subr.mxu0 0.0
    %v2464 = vand.u32 %v164, 4294901760
    %2465 = vmatpush1.msra.mxu0 %v2464
    %2466 = vmatprep.subr.mxu0 0.0
    %v2467 = vand.u32 %v165, 4294901760
    %2468 = vmatpush1.msra.mxu0 %v2467
    %2469 = vmatprep.subr.mxu0 0.0
    %v2470 = vand.u32 %v166, 4294901760
    %2471 = vmatpush1.msra.mxu0 %v2470
    %2472 = vmatprep.subr.mxu0 0.0
    %v2473 = vand.u32 %v167, 4294901760
    %2474 = vmatpush1.msra.mxu0 %v2473
    %2475 = vmatprep.subr.mxu0 0.0
    %v2476 = vand.u32 %v168, 4294901760
    %2477 = vmatpush1.msra.mxu0 %v2476
    %2478 = vmatprep.subr.mxu0 0.0
    %v2479 = vand.u32 %v169, 4294901760
    %2480 = vmatpush1.msra.mxu0 %v2479
    %2481 = vmatprep.subr.mxu0 0.0
    %v2482 = vand.u32 %v170, 4294901760
    %2483 = vmatpush1.msra.mxu0 %v2482
    %2484 = vmatprep.subr.mxu0 0.0
    %v2485 = vand.u32 %v171, 4294901760
    %2486 = vmatpush1.msra.mxu0 %v2485
    %2487 = vmatprep.subr.mxu0 0.0
    %v2488 = vand.u32 %v172, 4294901760
    %2489 = vmatpush1.msra.mxu0 %v2488
    %2490 = vmatprep.subr.mxu0 0.0
    %v2491 = vand.u32 %v173, 4294901760
    %2492 = vmatpush1.msra.mxu0 %v2491
    %2493 = vmatprep.subr.mxu0 0.0
    %v2494 = vand.u32 %v174, 4294901760
    %2495 = vmatpush1.msra.mxu0 %v2494
    %2496 = vmatprep.subr.mxu0 0.0
    %v2497 = vand.u32 %v175, 4294901760
    %2498 = vmatpush1.msra.mxu0 %v2497
    %2499 = vmatprep.subr.mxu0 0.0
    %v2500 = vand.u32 %v176, 4294901760
    %2501 = vmatpush1.msra.mxu0 %v2500
    %2502 = vmatprep.subr.mxu0 0.0
    %v2503 = vand.u32 %v177, 4294901760
    %2504 = vmatpush1.msra.mxu0 %v2503
    %2505 = vmatprep.subr.mxu0 0.0
    %v2506 = vand.u32 %v178, 4294901760
    %2507 = vmatpush1.msra.mxu0 %v2506
    %2508 = vmatprep.subr.mxu0 0.0
    %v2509 = vand.u32 %v179, 4294901760
    %2510 = vmatpush1.msra.mxu0 %v2509
    %2511 = vmatprep.subr.mxu0 0.0
    %v2512 = vand.u32 %v180, 4294901760
    %2513 = vmatpush1.msra.mxu0 %v2512
    %2514 = vmatprep.subr.mxu0 0.0
    %v2515 = vand.u32 %v181, 4294901760
    %2516 = vmatpush1.msra.mxu0 %v2515
    %2517 = vmatprep.subr.mxu0 0.0
    %v2518 = vand.u32 %v182, 4294901760
    %2519 = vmatpush1.msra.mxu0 %v2518
    %2520 = vmatprep.subr.mxu0 0.0
    %v2521 = vand.u32 %v183, 4294901760
    %2522 = vmatpush1.msra.mxu0 %v2521
    %v2523 = vand.u32 %v85, 4294901760
    %v2524 = vsub.f32 %v85, %v2523
    %v2525 = vand.u32 %v2524, 4294901760
    %2526 = vmatprep.mubr.f32.mxu0 %v2525
    %v2527 = vand.u32 %v84, 4294901760
    %v2528 = vsub.f32 %v84, %v2527
    %v2529 = vand.u32 %v2528, 4294901760
    %2530 = vmatmul.mubr.f32.gmra.mrb[0].mxu0 %v2529
    %v2531 = vpop.f32.mrb[0].mxu0
    %v2532 = vadd.f32 %v2424, %v2531
    %v2533 = vpop.f32.mrb[0].mxu0
    %2534 = vdwg.mxu0
    %2535 = vmatprep.subr.mxu0 0.0
    %v2536 = vand.u32 %v152, 4294901760
    %v2537 = vsub.f32 %v152, %v2536
    %v2538 = vand.u32 %v2537, 4294901760
    %2539 = vmatpush1.msra.mxu0 %v2538
    %2540 = vmatprep.subr.mxu0 0.0
    %v2541 = vand.u32 %v153, 4294901760
    %v2542 = vsub.f32 %v153, %v2541
    %v2543 = vand.u32 %v2542, 4294901760
    %2544 = vmatpush1.msra.mxu0 %v2543
    %2545 = vmatprep.subr.mxu0 0.0
    %v2546 = vand.u32 %v154, 4294901760
    %v2547 = vsub.f32 %v154, %v2546
    %v2548 = vand.u32 %v2547, 4294901760
    %2549 = vmatpush1.msra.mxu0 %v2548
    %2550 = vmatprep.subr.mxu0 0.0
    %v2551 = vand.u32 %v155, 4294901760
    %v2552 = vsub.f32 %v155, %v2551
    %v2553 = vand.u32 %v2552, 4294901760
    %2554 = vmatpush1.msra.mxu0 %v2553
    %2555 = vmatprep.subr.mxu0 0.0
    %v2556 = vand.u32 %v156, 4294901760
    %v2557 = vsub.f32 %v156, %v2556
    %v2558 = vand.u32 %v2557, 4294901760
    %2559 = vmatpush1.msra.mxu0 %v2558
    %2560 = vmatprep.subr.mxu0 0.0
    %v2561 = vand.u32 %v157, 4294901760
    %v2562 = vsub.f32 %v157, %v2561
    %v2563 = vand.u32 %v2562, 4294901760
    %2564 = vmatpush1.msra.mxu0 %v2563
    %2565 = vmatprep.subr.mxu0 0.0
    %v2566 = vand.u32 %v158, 4294901760
    %v2567 = vsub.f32 %v158, %v2566
    %v2568 = vand.u32 %v2567, 4294901760
    %2569 = vmatpush1.msra.mxu0 %v2568
    %2570 = vmatprep.subr.mxu0 0.0
    %v2571 = vand.u32 %v159, 4294901760
    %v2572 = vsub.f32 %v159, %v2571
    %v2573 = vand.u32 %v2572, 4294901760
    %2574 = vmatpush1.msra.mxu0 %v2573
    %2575 = vmatprep.subr.mxu0 0.0
    %v2576 = vand.u32 %v160, 4294901760
    %v2577 = vsub.f32 %v160, %v2576
    %v2578 = vand.u32 %v2577, 4294901760
    %2579 = vmatpush1.msra.mxu0 %v2578
    %2580 = vmatprep.subr.mxu0 0.0
    %v2581 = vand.u32 %v161, 4294901760
    %v2582 = vsub.f32 %v161, %v2581
    %v2583 = vand.u32 %v2582, 4294901760
    %2584 = vmatpush1.msra.mxu0 %v2583
    %2585 = vmatprep.subr.mxu0 0.0
    %v2586 = vand.u32 %v162, 4294901760
    %v2587 = vsub.f32 %v162, %v2586
    %v2588 = vand.u32 %v2587, 4294901760
    %2589 = vmatpush1.msra.mxu0 %v2588
    %2590 = vmatprep.subr.mxu0 0.0
    %v2591 = vand.u32 %v163, 4294901760
    %v2592 = vsub.f32 %v163, %v2591
    %v2593 = vand.u32 %v2592, 4294901760
    %2594 = vmatpush1.msra.mxu0 %v2593
    %2595 = vmatprep.subr.mxu0 0.0
    %v2596 = vand.u32 %v164, 4294901760
    %v2597 = vsub.f32 %v164, %v2596
    %v2598 = vand.u32 %v2597, 4294901760
    %2599 = vmatpush1.msra.mxu0 %v2598
    %2600 = vmatprep.subr.mxu0 0.0
    %v2601 = vand.u32 %v165, 4294901760
    %v2602 = vsub.f32 %v165, %v2601
    %v2603 = vand.u32 %v2602, 4294901760
    %2604 = vmatpush1.msra.mxu0 %v2603
    %2605 = vmatprep.subr.mxu0 0.0
    %v2606 = vand.u32 %v166, 4294901760
    %v2607 = vsub.f32 %v166, %v2606
    %v2608 = vand.u32 %v2607, 4294901760
    %2609 = vmatpush1.msra.mxu0 %v2608
    %2610 = vmatprep.subr.mxu0 0.0
    %v2611 = vand.u32 %v167, 4294901760
    %v2612 = vsub.f32 %v167, %v2611
    %v2613 = vand.u32 %v2612, 4294901760
    %2614 = vmatpush1.msra.mxu0 %v2613
    %2615 = vmatprep.subr.mxu0 0.0
    %v2616 = vand.u32 %v168, 4294901760
    %v2617 = vsub.f32 %v168, %v2616
    %v2618 = vand.u32 %v2617, 4294901760
    %2619 = vmatpush1.msra.mxu0 %v2618
    %2620 = vmatprep.subr.mxu0 0.0
    %v2621 = vand.u32 %v169, 4294901760
    %v2622 = vsub.f32 %v169, %v2621
    %v2623 = vand.u32 %v2622, 4294901760
    %2624 = vmatpush1.msra.mxu0 %v2623
    %2625 = vmatprep.subr.mxu0 0.0
    %v2626 = vand.u32 %v170, 4294901760
    %v2627 = vsub.f32 %v170, %v2626
    %v2628 = vand.u32 %v2627, 4294901760
    %2629 = vmatpush1.msra.mxu0 %v2628
    %2630 = vmatprep.subr.mxu0 0.0
    %v2631 = vand.u32 %v171, 4294901760
    %v2632 = vsub.f32 %v171, %v2631
    %v2633 = vand.u32 %v2632, 4294901760
    %2634 = vmatpush1.msra.mxu0 %v2633
    %2635 = vmatprep.subr.mxu0 0.0
    %v2636 = vand.u32 %v172, 4294901760
    %v2637 = vsub.f32 %v172, %v2636
    %v2638 = vand.u32 %v2637, 4294901760
    %2639 = vmatpush1.msra.mxu0 %v2638
    %2640 = vmatprep.subr.mxu0 0.0
    %v2641 = vand.u32 %v173, 4294901760
    %v2642 = vsub.f32 %v173, %v2641
    %v2643 = vand.u32 %v2642, 4294901760
    %2644 = vmatpush1.msra.mxu0 %v2643
    %2645 = vmatprep.subr.mxu0 0.0
    %v2646 = vand.u32 %v174, 4294901760
    %v2647 = vsub.f32 %v174, %v2646
    %v2648 = vand.u32 %v2647, 4294901760
    %2649 = vmatpush1.msra.mxu0 %v2648
    %2650 = vmatprep.subr.mxu0 0.0
    %v2651 = vand.u32 %v175, 4294901760
    %v2652 = vsub.f32 %v175, %v2651
    %v2653 = vand.u32 %v2652, 4294901760
    %2654 = vmatpush1.msra.mxu0 %v2653
    %2655 = vmatprep.subr.mxu0 0.0
    %v2656 = vand.u32 %v176, 4294901760
    %v2657 = vsub.f32 %v176, %v2656
    %v2658 = vand.u32 %v2657, 4294901760
    %2659 = vmatpush1.msra.mxu0 %v2658
    %2660 = vmatprep.subr.mxu0 0.0
    %v2661 = vand.u32 %v177, 4294901760
    %v2662 = vsub.f32 %v177, %v2661
    %v2663 = vand.u32 %v2662, 4294901760
    %2664 = vmatpush1.msra.mxu0 %v2663
    %2665 = vmatprep.subr.mxu0 0.0
    %v2666 = vand.u32 %v178, 4294901760
    %v2667 = vsub.f32 %v178, %v2666
    %v2668 = vand.u32 %v2667, 4294901760
    %2669 = vmatpush1.msra.mxu0 %v2668
    %2670 = vmatprep.subr.mxu0 0.0
    %v2671 = vand.u32 %v179, 4294901760
    %v2672 = vsub.f32 %v179, %v2671
    %v2673 = vand.u32 %v2672, 4294901760
    %2674 = vmatpush1.msra.mxu0 %v2673
    %2675 = vmatprep.subr.mxu0 0.0
    %v2676 = vand.u32 %v180, 4294901760
    %v2677 = vsub.f32 %v180, %v2676
    %v2678 = vand.u32 %v2677, 4294901760
    %2679 = vmatpush1.msra.mxu0 %v2678
    %2680 = vmatprep.subr.mxu0 0.0
    %v2681 = vand.u32 %v181, 4294901760
    %v2682 = vsub.f32 %v181, %v2681
    %v2683 = vand.u32 %v2682, 4294901760
    %2684 = vmatpush1.msra.mxu0 %v2683
    %2685 = vmatprep.subr.mxu0 0.0
    %v2686 = vand.u32 %v182, 4294901760
    %v2687 = vsub.f32 %v182, %v2686
    %v2688 = vand.u32 %v2687, 4294901760
    %2689 = vmatpush1.msra.mxu0 %v2688
    %2690 = vmatprep.subr.mxu0 0.0
    %v2691 = vand.u32 %v183, 4294901760
    %v2692 = vsub.f32 %v183, %v2691
    %v2693 = vand.u32 %v2692, 4294901760
    %2694 = vmatpush1.msra.mxu0 %v2693
    %v2695 = vand.u32 %v85, 4294901760
    %2696 = vmatprep.mubr.f32.mxu0 %v2695
    %v2697 = vand.u32 %v84, 4294901760
    %2698 = vmatmul.mubr.f32.gmra.mrb[0].mxu0 %v2697
    %v2699 = vpop.f32.mrb[0].mxu0
    %v2700 = vadd.f32 %v2532, %v2699
    %v2701 = vpop.f32.mrb[0].mxu0
    %2702 = vdwg.mxu0
    %2703 = vmatprep.subr.mxu0 0.0
    %v2704 = vand.u32 %v152, 4294901760
    %2705 = vmatpush1.msra.mxu0 %v2704
    %2706 = vmatprep.subr.mxu0 0.0
    %v2707 = vand.u32 %v153, 4294901760
    %2708 = vmatpush1.msra.mxu0 %v2707
    %2709 = vmatprep.subr.mxu0 0.0
    %v2710 = vand.u32 %v154, 4294901760
    %2711 = vmatpush1.msra.mxu0 %v2710
    %2712 = vmatprep.subr.mxu0 0.0
    %v2713 = vand.u32 %v155, 4294901760
    %2714 = vmatpush1.msra.mxu0 %v2713
    %2715 = vmatprep.subr.mxu0 0.0
    %v2716 = vand.u32 %v156, 4294901760
    %2717 = vmatpush1.msra.mxu0 %v2716
    %2718 = vmatprep.subr.mxu0 0.0
    %v2719 = vand.u32 %v157, 4294901760
    %2720 = vmatpush1.msra.mxu0 %v2719
    %2721 = vmatprep.subr.mxu0 0.0
    %v2722 = vand.u32 %v158, 4294901760
    %2723 = vmatpush1.msra.mxu0 %v2722
    %2724 = vmatprep.subr.mxu0 0.0
    %v2725 = vand.u32 %v159, 4294901760
    %2726 = vmatpush1.msra.mxu0 %v2725
    %2727 = vmatprep.subr.mxu0 0.0
    %v2728 = vand.u32 %v160, 4294901760
    %2729 = vmatpush1.msra.mxu0 %v2728
    %2730 = vmatprep.subr.mxu0 0.0
    %v2731 = vand.u32 %v161, 4294901760
    %2732 = vmatpush1.msra.mxu0 %v2731
    %2733 = vmatprep.subr.mxu0 0.0
    %v2734 = vand.u32 %v162, 4294901760
    %2735 = vmatpush1.msra.mxu0 %v2734
    %2736 = vmatprep.subr.mxu0 0.0
    %v2737 = vand.u32 %v163, 4294901760
    %2738 = vmatpush1.msra.mxu0 %v2737
    %2739 = vmatprep.subr.mxu0 0.0
    %v2740 = vand.u32 %v164, 4294901760
    %2741 = vmatpush1.msra.mxu0 %v2740
    %2742 = vmatprep.subr.mxu0 0.0
    %v2743 = vand.u32 %v165, 4294901760
    %2744 = vmatpush1.msra.mxu0 %v2743
    %2745 = vmatprep.subr.mxu0 0.0
    %v2746 = vand.u32 %v166, 4294901760
    %2747 = vmatpush1.msra.mxu0 %v2746
    %2748 = vmatprep.subr.mxu0 0.0
    %v2749 = vand.u32 %v167, 4294901760
    %2750 = vmatpush1.msra.mxu0 %v2749
    %2751 = vmatprep.subr.mxu0 0.0
    %v2752 = vand.u32 %v168, 4294901760
    %2753 = vmatpush1.msra.mxu0 %v2752
    %2754 = vmatprep.subr.mxu0 0.0
    %v2755 = vand.u32 %v169, 4294901760
    %2756 = vmatpush1.msra.mxu0 %v2755
    %2757 = vmatprep.subr.mxu0 0.0
    %v2758 = vand.u32 %v170, 4294901760
    %2759 = vmatpush1.msra.mxu0 %v2758
    %2760 = vmatprep.subr.mxu0 0.0
    %v2761 = vand.u32 %v171, 4294901760
    %2762 = vmatpush1.msra.mxu0 %v2761
    %2763 = vmatprep.subr.mxu0 0.0
    %v2764 = vand.u32 %v172, 4294901760
    %2765 = vmatpush1.msra.mxu0 %v2764
    %2766 = vmatprep.subr.mxu0 0.0
    %v2767 = vand.u32 %v173, 4294901760
    %2768 = vmatpush1.msra.mxu0 %v2767
    %2769 = vmatprep.subr.mxu0 0.0
    %v2770 = vand.u32 %v174, 4294901760
    %2771 = vmatpush1.msra.mxu0 %v2770
    %2772 = vmatprep.subr.mxu0 0.0
    %v2773 = vand.u32 %v175, 4294901760
    %2774 = vmatpush1.msra.mxu0 %v2773
    %2775 = vmatprep.subr.mxu0 0.0
    %v2776 = vand.u32 %v176, 4294901760
    %2777 = vmatpush1.msra.mxu0 %v2776
    %2778 = vmatprep.subr.mxu0 0.0
    %v2779 = vand.u32 %v177, 4294901760
    %2780 = vmatpush1.msra.mxu0 %v2779
    %2781 = vmatprep.subr.mxu0 0.0
    %v2782 = vand.u32 %v178, 4294901760
    %2783 = vmatpush1.msra.mxu0 %v2782
    %2784 = vmatprep.subr.mxu0 0.0
    %v2785 = vand.u32 %v179, 4294901760
    %2786 = vmatpush1.msra.mxu0 %v2785
    %2787 = vmatprep.subr.mxu0 0.0
    %v2788 = vand.u32 %v180, 4294901760
    %2789 = vmatpush1.msra.mxu0 %v2788
    %2790 = vmatprep.subr.mxu0 0.0
    %v2791 = vand.u32 %v181, 4294901760
    %2792 = vmatpush1.msra.mxu0 %v2791
    %2793 = vmatprep.subr.mxu0 0.0
    %v2794 = vand.u32 %v182, 4294901760
    %2795 = vmatpush1.msra.mxu0 %v2794
    %2796 = vmatprep.subr.mxu0 0.0
    %v2797 = vand.u32 %v183, 4294901760
    %2798 = vmatpush1.msra.mxu0 %v2797
    %v2799 = vand.u32 %v85, 4294901760
    %2800 = vmatprep.mubr.f32.mxu0 %v2799
    %v2801 = vand.u32 %v84, 4294901760
    %2802 = vmatmul.mubr.f32.gmra.mrb[0].mxu0 %v2801
    %v2803 = vpop.f32.mrb[0].mxu0
    %v2804 = vadd.f32 %v2700, %v2803
    %v2805 = vpop.f32.mrb[0].mxu0
    %2806 = vdwg.mxu0
    %2807 = vmatprep.subr.mxu0 0.0
    %v2808 = vand.u32 %v184, 4294901760
    %2809 = vmatpush1.msra.mxu0 %v2808
    %2810 = vmatprep.subr.mxu0 0.0
    %v2811 = vand.u32 %v185, 4294901760
    %2812 = vmatpush1.msra.mxu0 %v2811
    %2813 = vmatprep.subr.mxu0 0.0
    %v2814 = vand.u32 %v186, 4294901760
    %2815 = vmatpush1.msra.mxu0 %v2814
    %2816 = vmatprep.subr.mxu0 0.0
    %v2817 = vand.u32 %v187, 4294901760
    %2818 = vmatpush1.msra.mxu0 %v2817
    %2819 = vmatprep.subr.mxu0 0.0
    %v2820 = vand.u32 %v188, 4294901760
    %2821 = vmatpush1.msra.mxu0 %v2820
    %2822 = vmatprep.subr.mxu0 0.0
    %v2823 = vand.u32 %v189, 4294901760
    %2824 = vmatpush1.msra.mxu0 %v2823
    %2825 = vmatprep.subr.mxu0 0.0
    %v2826 = vand.u32 %v190, 4294901760
    %2827 = vmatpush1.msra.mxu0 %v2826
    %2828 = vmatprep.subr.mxu0 0.0
    %v2829 = vand.u32 %v191, 4294901760
    %2830 = vmatpush1.msra.mxu0 %v2829
    %2831 = vmatprep.subr.mxu0 0.0
    %v2832 = vand.u32 %v192, 4294901760
    %2833 = vmatpush1.msra.mxu0 %v2832
    %2834 = vmatprep.subr.mxu0 0.0
    %v2835 = vand.u32 %v193, 4294901760
    %2836 = vmatpush1.msra.mxu0 %v2835
    %2837 = vmatprep.subr.mxu0 0.0
    %v2838 = vand.u32 %v194, 4294901760
    %2839 = vmatpush1.msra.mxu0 %v2838
    %2840 = vmatprep.subr.mxu0 0.0
    %v2841 = vand.u32 %v195, 4294901760
    %2842 = vmatpush1.msra.mxu0 %v2841
    %2843 = vmatprep.subr.mxu0 0.0
    %v2844 = vand.u32 %v196, 4294901760
    %2845 = vmatpush1.msra.mxu0 %v2844
    %2846 = vmatprep.subr.mxu0 0.0
    %v2847 = vand.u32 %v197, 4294901760
    %2848 = vmatpush1.msra.mxu0 %v2847
    %2849 = vmatprep.subr.mxu0 0.0
    %v2850 = vand.u32 %v198, 4294901760
    %2851 = vmatpush1.msra.mxu0 %v2850
    %2852 = vmatprep.subr.mxu0 0.0
    %v2853 = vand.u32 %v199, 4294901760
    %2854 = vmatpush1.msra.mxu0 %v2853
    %2855 = vmatprep.subr.mxu0 0.0
    %v2856 = vand.u32 %v200, 4294901760
    %2857 = vmatpush1.msra.mxu0 %v2856
    %2858 = vmatprep.subr.mxu0 0.0
    %v2859 = vand.u32 %v201, 4294901760
    %2860 = vmatpush1.msra.mxu0 %v2859
    %2861 = vmatprep.subr.mxu0 0.0
    %v2862 = vand.u32 %v202, 4294901760
    %2863 = vmatpush1.msra.mxu0 %v2862
    %2864 = vmatprep.subr.mxu0 0.0
    %v2865 = vand.u32 %v203, 4294901760
    %2866 = vmatpush1.msra.mxu0 %v2865
    %2867 = vmatprep.subr.mxu0 0.0
    %v2868 = vand.u32 %v204, 4294901760
    %2869 = vmatpush1.msra.mxu0 %v2868
    %2870 = vmatprep.subr.mxu0 0.0
    %v2871 = vand.u32 %v205, 4294901760
    %2872 = vmatpush1.msra.mxu0 %v2871
    %2873 = vmatprep.subr.mxu0 0.0
    %v2874 = vand.u32 %v206, 4294901760
    %2875 = vmatpush1.msra.mxu0 %v2874
    %2876 = vmatprep.subr.mxu0 0.0
    %v2877 = vand.u32 %v207, 4294901760
    %2878 = vmatpush1.msra.mxu0 %v2877
    %2879 = vmatprep.subr.mxu0 0.0
    %v2880 = vand.u32 %v208, 4294901760
    %2881 = vmatpush1.msra.mxu0 %v2880
    %2882 = vmatprep.subr.mxu0 0.0
    %v2883 = vand.u32 %v209, 4294901760
    %2884 = vmatpush1.msra.mxu0 %v2883
    %2885 = vmatprep.subr.mxu0 0.0
    %v2886 = vand.u32 %v210, 4294901760
    %2887 = vmatpush1.msra.mxu0 %v2886
    %2888 = vmatprep.subr.mxu0 0.0
    %v2889 = vand.u32 %v211, 4294901760
    %2890 = vmatpush1.msra.mxu0 %v2889
    %2891 = vmatprep.subr.mxu0 0.0
    %v2892 = vand.u32 %v212, 4294901760
    %2893 = vmatpush1.msra.mxu0 %v2892
    %2894 = vmatprep.subr.mxu0 0.0
    %v2895 = vand.u32 %v213, 4294901760
    %2896 = vmatpush1.msra.mxu0 %v2895
    %2897 = vmatprep.subr.mxu0 0.0
    %v2898 = vand.u32 %v214, 4294901760
    %2899 = vmatpush1.msra.mxu0 %v2898
    %2900 = vmatprep.subr.mxu0 0.0
    %v2901 = vand.u32 %v215, 4294901760
    %2902 = vmatpush1.msra.mxu0 %v2901
    %v2903 = vand.u32 %v87, 4294901760
    %v2904 = vsub.f32 %v87, %v2903
    %v2905 = vand.u32 %v2904, 4294901760
    %v2906 = vsub.f32 %v2904, %v2905
    %v2907 = vand.u32 %v2906, 4294901760
    %2908 = vmatprep.mubr.f32.mxu0 %v2907
    %v2909 = vand.u32 %v86, 4294901760
    %v2910 = vsub.f32 %v86, %v2909
    %v2911 = vand.u32 %v2910, 4294901760
    %v2912 = vsub.f32 %v2910, %v2911
    %v2913 = vand.u32 %v2912, 4294901760
    %2914 = vmatmul.mubr.f32.gmra.mrb[0].mxu0 %v2913
    %v2915 = vpop.f32.mrb[0].mxu0
    %v2916 = vadd.f32 %v2804, %v2915
    %v2917 = vpop.f32.mrb[0].mxu0
    %2918 = vdwg.mxu0
    %2919 = vmatprep.subr.mxu0 0.0
    %v2920 = vand.u32 %v184, 4294901760
    %v2921 = vsub.f32 %v184, %v2920
    %v2922 = vand.u32 %v2921, 4294901760
    %v2923 = vsub.f32 %v2921, %v2922
    %v2924 = vand.u32 %v2923, 4294901760
    %2925 = vmatpush1.msra.mxu0 %v2924
    %2926 = vmatprep.subr.mxu0 0.0
    %v2927 = vand.u32 %v185, 4294901760
    %v2928 = vsub.f32 %v185, %v2927
    %v2929 = vand.u32 %v2928, 4294901760
    %v2930 = vsub.f32 %v2928, %v2929
    %v2931 = vand.u32 %v2930, 4294901760
    %2932 = vmatpush1.msra.mxu0 %v2931
    %2933 = vmatprep.subr.mxu0 0.0
    %v2934 = vand.u32 %v186, 4294901760
    %v2935 = vsub.f32 %v186, %v2934
    %v2936 = vand.u32 %v2935, 4294901760
    %v2937 = vsub.f32 %v2935, %v2936
    %v2938 = vand.u32 %v2937, 4294901760
    %2939 = vmatpush1.msra.mxu0 %v2938
    %2940 = vmatprep.subr.mxu0 0.0
    %v2941 = vand.u32 %v187, 4294901760
    %v2942 = vsub.f32 %v187, %v2941
    %v2943 = vand.u32 %v2942, 4294901760
    %v2944 = vsub.f32 %v2942, %v2943
    %v2945 = vand.u32 %v2944, 4294901760
    %2946 = vmatpush1.msra.mxu0 %v2945
    %2947 = vmatprep.subr.mxu0 0.0
    %v2948 = vand.u32 %v188, 4294901760
    %v2949 = vsub.f32 %v188, %v2948
    %v2950 = vand.u32 %v2949, 4294901760
    %v2951 = vsub.f32 %v2949, %v2950
    %v2952 = vand.u32 %v2951, 4294901760
    %2953 = vmatpush1.msra.mxu0 %v2952
    %2954 = vmatprep.subr.mxu0 0.0
    %v2955 = vand.u32 %v189, 4294901760
    %v2956 = vsub.f32 %v189, %v2955
    %v2957 = vand.u32 %v2956, 4294901760
    %v2958 = vsub.f32 %v2956, %v2957
    %v2959 = vand.u32 %v2958, 4294901760
    %2960 = vmatpush1.msra.mxu0 %v2959
    %2961 = vmatprep.subr.mxu0 0.0
    %v2962 = vand.u32 %v190, 4294901760
    %v2963 = vsub.f32 %v190, %v2962
    %v2964 = vand.u32 %v2963, 4294901760
    %v2965 = vsub.f32 %v2963, %v2964
    %v2966 = vand.u32 %v2965, 4294901760
    %2967 = vmatpush1.msra.mxu0 %v2966
    %2968 = vmatprep.subr.mxu0 0.0
    %v2969 = vand.u32 %v191, 4294901760
    %v2970 = vsub.f32 %v191, %v2969
    %v2971 = vand.u32 %v2970, 4294901760
    %v2972 = vsub.f32 %v2970, %v2971
    %v2973 = vand.u32 %v2972, 4294901760
    %2974 = vmatpush1.msra.mxu0 %v2973
    %2975 = vmatprep.subr.mxu0 0.0
    %v2976 = vand.u32 %v192, 4294901760
    %v2977 = vsub.f32 %v192, %v2976
    %v2978 = vand.u32 %v2977, 4294901760
    %v2979 = vsub.f32 %v2977, %v2978
    %v2980 = vand.u32 %v2979, 4294901760
    %2981 = vmatpush1.msra.mxu0 %v2980
    %2982 = vmatprep.subr.mxu0 0.0
    %v2983 = vand.u32 %v193, 4294901760
    %v2984 = vsub.f32 %v193, %v2983
    %v2985 = vand.u32 %v2984, 4294901760
    %v2986 = vsub.f32 %v2984, %v2985
    %v2987 = vand.u32 %v2986, 4294901760
    %2988 = vmatpush1.msra.mxu0 %v2987
    %2989 = vmatprep.subr.mxu0 0.0
    %v2990 = vand.u32 %v194, 4294901760
    %v2991 = vsub.f32 %v194, %v2990
    %v2992 = vand.u32 %v2991, 4294901760
    %v2993 = vsub.f32 %v2991, %v2992
    %v2994 = vand.u32 %v2993, 4294901760
    %2995 = vmatpush1.msra.mxu0 %v2994
    %2996 = vmatprep.subr.mxu0 0.0
    %v2997 = vand.u32 %v195, 4294901760
    %v2998 = vsub.f32 %v195, %v2997
    %v2999 = vand.u32 %v2998, 4294901760
    %v3000 = vsub.f32 %v2998, %v2999
    %v3001 = vand.u32 %v3000, 4294901760
    %3002 = vmatpush1.msra.mxu0 %v3001
    %3003 = vmatprep.subr.mxu0 0.0
    %v3004 = vand.u32 %v196, 4294901760
    %v3005 = vsub.f32 %v196, %v3004
    %v3006 = vand.u32 %v3005, 4294901760
    %v3007 = vsub.f32 %v3005, %v3006
    %v3008 = vand.u32 %v3007, 4294901760
    %3009 = vmatpush1.msra.mxu0 %v3008
    %3010 = vmatprep.subr.mxu0 0.0
    %v3011 = vand.u32 %v197, 4294901760
    %v3012 = vsub.f32 %v197, %v3011
    %v3013 = vand.u32 %v3012, 4294901760
    %v3014 = vsub.f32 %v3012, %v3013
    %v3015 = vand.u32 %v3014, 4294901760
    %3016 = vmatpush1.msra.mxu0 %v3015
    %3017 = vmatprep.subr.mxu0 0.0
    %v3018 = vand.u32 %v198, 4294901760
    %v3019 = vsub.f32 %v198, %v3018
    %v3020 = vand.u32 %v3019, 4294901760
    %v3021 = vsub.f32 %v3019, %v3020
    %v3022 = vand.u32 %v3021, 4294901760
    %3023 = vmatpush1.msra.mxu0 %v3022
    %3024 = vmatprep.subr.mxu0 0.0
    %v3025 = vand.u32 %v199, 4294901760
    %v3026 = vsub.f32 %v199, %v3025
    %v3027 = vand.u32 %v3026, 4294901760
    %v3028 = vsub.f32 %v3026, %v3027
    %v3029 = vand.u32 %v3028, 4294901760
    %3030 = vmatpush1.msra.mxu0 %v3029
    %3031 = vmatprep.subr.mxu0 0.0
    %v3032 = vand.u32 %v200, 4294901760
    %v3033 = vsub.f32 %v200, %v3032
    %v3034 = vand.u32 %v3033, 4294901760
    %v3035 = vsub.f32 %v3033, %v3034
    %v3036 = vand.u32 %v3035, 4294901760
    %3037 = vmatpush1.msra.mxu0 %v3036
    %3038 = vmatprep.subr.mxu0 0.0
    %v3039 = vand.u32 %v201, 4294901760
    %v3040 = vsub.f32 %v201, %v3039
    %v3041 = vand.u32 %v3040, 4294901760
    %v3042 = vsub.f32 %v3040, %v3041
    %v3043 = vand.u32 %v3042, 4294901760
    %3044 = vmatpush1.msra.mxu0 %v3043
    %3045 = vmatprep.subr.mxu0 0.0
    %v3046 = vand.u32 %v202, 4294901760
    %v3047 = vsub.f32 %v202, %v3046
    %v3048 = vand.u32 %v3047, 4294901760
    %v3049 = vsub.f32 %v3047, %v3048
    %v3050 = vand.u32 %v3049, 4294901760
    %3051 = vmatpush1.msra.mxu0 %v3050
    %3052 = vmatprep.subr.mxu0 0.0
    %v3053 = vand.u32 %v203, 4294901760
    %v3054 = vsub.f32 %v203, %v3053
    %v3055 = vand.u32 %v3054, 4294901760
    %v3056 = vsub.f32 %v3054, %v3055
    %v3057 = vand.u32 %v3056, 4294901760
    %3058 = vmatpush1.msra.mxu0 %v3057
    %3059 = vmatprep.subr.mxu0 0.0
    %v3060 = vand.u32 %v204, 4294901760
    %v3061 = vsub.f32 %v204, %v3060
    %v3062 = vand.u32 %v3061, 4294901760
    %v3063 = vsub.f32 %v3061, %v3062
    %v3064 = vand.u32 %v3063, 4294901760
    %3065 = vmatpush1.msra.mxu0 %v3064
    %3066 = vmatprep.subr.mxu0 0.0
    %v3067 = vand.u32 %v205, 4294901760
    %v3068 = vsub.f32 %v205, %v3067
    %v3069 = vand.u32 %v3068, 4294901760
    %v3070 = vsub.f32 %v3068, %v3069
    %v3071 = vand.u32 %v3070, 4294901760
    %3072 = vmatpush1.msra.mxu0 %v3071
    %3073 = vmatprep.subr.mxu0 0.0
    %v3074 = vand.u32 %v206, 4294901760
    %v3075 = vsub.f32 %v206, %v3074
    %v3076 = vand.u32 %v3075, 4294901760
    %v3077 = vsub.f32 %v3075, %v3076
    %v3078 = vand.u32 %v3077, 4294901760
    %3079 = vmatpush1.msra.mxu0 %v3078
    %3080 = vmatprep.subr.mxu0 0.0
    %v3081 = vand.u32 %v207, 4294901760
    %v3082 = vsub.f32 %v207, %v3081
    %v3083 = vand.u32 %v3082, 4294901760
    %v3084 = vsub.f32 %v3082, %v3083
    %v3085 = vand.u32 %v3084, 4294901760
    %3086 = vmatpush1.msra.mxu0 %v3085
    %3087 = vmatprep.subr.mxu0 0.0
    %v3088 = vand.u32 %v208, 4294901760
    %v3089 = vsub.f32 %v208, %v3088
    %v3090 = vand.u32 %v3089, 4294901760
    %v3091 = vsub.f32 %v3089, %v3090
    %v3092 = vand.u32 %v3091, 4294901760
    %3093 = vmatpush1.msra.mxu0 %v3092
    %3094 = vmatprep.subr.mxu0 0.0
    %v3095 = vand.u32 %v209, 4294901760
    %v3096 = vsub.f32 %v209, %v3095
    %v3097 = vand.u32 %v3096, 4294901760
    %v3098 = vsub.f32 %v3096, %v3097
    %v3099 = vand.u32 %v3098, 4294901760
    %3100 = vmatpush1.msra.mxu0 %v3099
    %3101 = vmatprep.subr.mxu0 0.0
    %v3102 = vand.u32 %v210, 4294901760
    %v3103 = vsub.f32 %v210, %v3102
    %v3104 = vand.u32 %v3103, 4294901760
    %v3105 = vsub.f32 %v3103, %v3104
    %v3106 = vand.u32 %v3105, 4294901760
    %3107 = vmatpush1.msra.mxu0 %v3106
    %3108 = vmatprep.subr.mxu0 0.0
    %v3109 = vand.u32 %v211, 4294901760
    %v3110 = vsub.f32 %v211, %v3109
    %v3111 = vand.u32 %v3110, 4294901760
    %v3112 = vsub.f32 %v3110, %v3111
    %v3113 = vand.u32 %v3112, 4294901760
    %3114 = vmatpush1.msra.mxu0 %v3113
    %3115 = vmatprep.subr.mxu0 0.0
    %v3116 = vand.u32 %v212, 4294901760
    %v3117 = vsub.f32 %v212, %v3116
    %v3118 = vand.u32 %v3117, 4294901760
    %v3119 = vsub.f32 %v3117, %v3118
    %v3120 = vand.u32 %v3119, 4294901760
    %3121 = vmatpush1.msra.mxu0 %v3120
    %3122 = vmatprep.subr.mxu0 0.0
    %v3123 = vand.u32 %v213, 4294901760
    %v3124 = vsub.f32 %v213, %v3123
    %v3125 = vand.u32 %v3124, 4294901760
    %v3126 = vsub.f32 %v3124, %v3125
    %v3127 = vand.u32 %v3126, 4294901760
    %3128 = vmatpush1.msra.mxu0 %v3127
    %3129 = vmatprep.subr.mxu0 0.0
    %v3130 = vand.u32 %v214, 4294901760
    %v3131 = vsub.f32 %v214, %v3130
    %v3132 = vand.u32 %v3131, 4294901760
    %v3133 = vsub.f32 %v3131, %v3132
    %v3134 = vand.u32 %v3133, 4294901760
    %3135 = vmatpush1.msra.mxu0 %v3134
    %3136 = vmatprep.subr.mxu0 0.0
    %v3137 = vand.u32 %v215, 4294901760
    %v3138 = vsub.f32 %v215, %v3137
    %v3139 = vand.u32 %v3138, 4294901760
    %v3140 = vsub.f32 %v3138, %v3139
    %v3141 = vand.u32 %v3140, 4294901760
    %3142 = vmatpush1.msra.mxu0 %v3141
    %v3143 = vand.u32 %v87, 4294901760
    %3144 = vmatprep.mubr.f32.mxu0 %v3143
    %v3145 = vand.u32 %v86, 4294901760
    %3146 = vmatmul.mubr.f32.gmra.mrb[0].mxu0 %v3145
    %v3147 = vpop.f32.mrb[0].mxu0
    %v3148 = vadd.f32 %v2916, %v3147
    %v3149 = vpop.f32.mrb[0].mxu0
    %3150 = vdwg.mxu0
    %3151 = vmatprep.subr.mxu0 0.0
    %v3152 = vand.u32 %v184, 4294901760
    %v3153 = vsub.f32 %v184, %v3152
    %3154 = vmatpush1.msra.mxu0 %v3153
    %3155 = vmatprep.subr.mxu0 0.0
    %v3156 = vand.u32 %v185, 4294901760
    %v3157 = vsub.f32 %v185, %v3156
    %3158 = vmatpush1.msra.mxu0 %v3157
    %3159 = vmatprep.subr.mxu0 0.0
    %v3160 = vand.u32 %v186, 4294901760
    %v3161 = vsub.f32 %v186, %v3160
    %3162 = vmatpush1.msra.mxu0 %v3161
    %3163 = vmatprep.subr.mxu0 0.0
    %v3164 = vand.u32 %v187, 4294901760
    %v3165 = vsub.f32 %v187, %v3164
    %3166 = vmatpush1.msra.mxu0 %v3165
    %3167 = vmatprep.subr.mxu0 0.0
    %v3168 = vand.u32 %v188, 4294901760
    %v3169 = vsub.f32 %v188, %v3168
    %3170 = vmatpush1.msra.mxu0 %v3169
    %3171 = vmatprep.subr.mxu0 0.0
    %v3172 = vand.u32 %v189, 4294901760
    %v3173 = vsub.f32 %v189, %v3172
    %3174 = vmatpush1.msra.mxu0 %v3173
    %3175 = vmatprep.subr.mxu0 0.0
    %v3176 = vand.u32 %v190, 4294901760
    %v3177 = vsub.f32 %v190, %v3176
    %3178 = vmatpush1.msra.mxu0 %v3177
    %3179 = vmatprep.subr.mxu0 0.0
    %v3180 = vand.u32 %v191, 4294901760
    %v3181 = vsub.f32 %v191, %v3180
    %3182 = vmatpush1.msra.mxu0 %v3181
    %3183 = vmatprep.subr.mxu0 0.0
    %v3184 = vand.u32 %v192, 4294901760
    %v3185 = vsub.f32 %v192, %v3184
    %3186 = vmatpush1.msra.mxu0 %v3185
    %3187 = vmatprep.subr.mxu0 0.0
    %v3188 = vand.u32 %v193, 4294901760
    %v3189 = vsub.f32 %v193, %v3188
    %3190 = vmatpush1.msra.mxu0 %v3189
    %3191 = vmatprep.subr.mxu0 0.0
    %v3192 = vand.u32 %v194, 4294901760
    %v3193 = vsub.f32 %v194, %v3192
    %3194 = vmatpush1.msra.mxu0 %v3193
    %3195 = vmatprep.subr.mxu0 0.0
    %v3196 = vand.u32 %v195, 4294901760
    %v3197 = vsub.f32 %v195, %v3196
    %3198 = vmatpush1.msra.mxu0 %v3197
    %3199 = vmatprep.subr.mxu0 0.0
    %v3200 = vand.u32 %v196, 4294901760
    %v3201 = vsub.f32 %v196, %v3200
    %3202 = vmatpush1.msra.mxu0 %v3201
    %3203 = vmatprep.subr.mxu0 0.0
    %v3204 = vand.u32 %v197, 4294901760
    %v3205 = vsub.f32 %v197, %v3204
    %3206 = vmatpush1.msra.mxu0 %v3205
    %3207 = vmatprep.subr.mxu0 0.0
    %v3208 = vand.u32 %v198, 4294901760
    %v3209 = vsub.f32 %v198, %v3208
    %3210 = vmatpush1.msra.mxu0 %v3209
    %3211 = vmatprep.subr.mxu0 0.0
    %v3212 = vand.u32 %v199, 4294901760
    %v3213 = vsub.f32 %v199, %v3212
    %3214 = vmatpush1.msra.mxu0 %v3213
    %3215 = vmatprep.subr.mxu0 0.0
    %v3216 = vand.u32 %v200, 4294901760
    %v3217 = vsub.f32 %v200, %v3216
    %3218 = vmatpush1.msra.mxu0 %v3217
    %3219 = vmatprep.subr.mxu0 0.0
    %v3220 = vand.u32 %v201, 4294901760
    %v3221 = vsub.f32 %v201, %v3220
    %3222 = vmatpush1.msra.mxu0 %v3221
    %3223 = vmatprep.subr.mxu0 0.0
    %v3224 = vand.u32 %v202, 4294901760
    %v3225 = vsub.f32 %v202, %v3224
    %3226 = vmatpush1.msra.mxu0 %v3225
    %3227 = vmatprep.subr.mxu0 0.0
    %v3228 = vand.u32 %v203, 4294901760
    %v3229 = vsub.f32 %v203, %v3228
    %3230 = vmatpush1.msra.mxu0 %v3229
    %3231 = vmatprep.subr.mxu0 0.0
    %v3232 = vand.u32 %v204, 4294901760
    %v3233 = vsub.f32 %v204, %v3232
    %3234 = vmatpush1.msra.mxu0 %v3233
    %3235 = vmatprep.subr.mxu0 0.0
    %v3236 = vand.u32 %v205, 4294901760
    %v3237 = vsub.f32 %v205, %v3236
    %3238 = vmatpush1.msra.mxu0 %v3237
    %3239 = vmatprep.subr.mxu0 0.0
    %v3240 = vand.u32 %v206, 4294901760
    %v3241 = vsub.f32 %v206, %v3240
    %3242 = vmatpush1.msra.mxu0 %v3241
    %3243 = vmatprep.subr.mxu0 0.0
    %v3244 = vand.u32 %v207, 4294901760
    %v3245 = vsub.f32 %v207, %v3244
    %3246 = vmatpush1.msra.mxu0 %v3245
    %3247 = vmatprep.subr.mxu0 0.0
    %v3248 = vand.u32 %v208, 4294901760
    %v3249 = vsub.f32 %v208, %v3248
    %3250 = vmatpush1.msra.mxu0 %v3249
    %3251 = vmatprep.subr.mxu0 0.0
    %v3252 = vand.u32 %v209, 4294901760
    %v3253 = vsub.f32 %v209, %v3252
    %3254 = vmatpush1.msra.mxu0 %v3253
    %3255 = vmatprep.subr.mxu0 0.0
    %v3256 = vand.u32 %v210, 4294901760
    %v3257 = vsub.f32 %v210, %v3256
    %3258 = vmatpush1.msra.mxu0 %v3257
    %3259 = vmatprep.subr.mxu0 0.0
    %v3260 = vand.u32 %v211, 4294901760
    %v3261 = vsub.f32 %v211, %v3260
    %3262 = vmatpush1.msra.mxu0 %v3261
    %3263 = vmatprep.subr.mxu0 0.0
    %v3264 = vand.u32 %v212, 4294901760
    %v3265 = vsub.f32 %v212, %v3264
    %3266 = vmatpush1.msra.mxu0 %v3265
    %3267 = vmatprep.subr.mxu0 0.0
    %v3268 = vand.u32 %v213, 4294901760
    %v3269 = vsub.f32 %v213, %v3268
    %3270 = vmatpush1.msra.mxu0 %v3269
    %3271 = vmatprep.subr.mxu0 0.0
    %v3272 = vand.u32 %v214, 4294901760
    %v3273 = vsub.f32 %v214, %v3272
    %3274 = vmatpush1.msra.mxu0 %v3273
    %3275 = vmatprep.subr.mxu0 0.0
    %v3276 = vand.u32 %v215, 4294901760
    %v3277 = vsub.f32 %v215, %v3276
    %3278 = vmatpush1.msra.mxu0 %v3277
    %v3279 = vand.u32 %v87, 4294901760
    %v3280 = vsub.f32 %v87, %v3279
    %3281 = vmatprep.mubr.f32.mxu0 %v3280
    %v3282 = vand.u32 %v86, 4294901760
    %v3283 = vsub.f32 %v86, %v3282
    %3284 = vmatmul.mubr.f32.gmra.mrb[0].mxu0 %v3283
    %v3285 = vpop.f32.mrb[0].mxu0
    %v3286 = vadd.f32 %v3148, %v3285
    %v3287 = vpop.f32.mrb[0].mxu0
    %3288 = vdwg.mxu0
    %3289 = vmatprep.subr.mxu0 0.0
    %v3290 = vand.u32 %v184, 4294901760
    %3291 = vmatpush1.msra.mxu0 %v3290
    %3292 = vmatprep.subr.mxu0 0.0
    %v3293 = vand.u32 %v185, 4294901760
    %3294 = vmatpush1.msra.mxu0 %v3293
    %3295 = vmatprep.subr.mxu0 0.0
    %v3296 = vand.u32 %v186, 4294901760
    %3297 = vmatpush1.msra.mxu0 %v3296
    %3298 = vmatprep.subr.mxu0 0.0
    %v3299 = vand.u32 %v187, 4294901760
    %3300 = vmatpush1.msra.mxu0 %v3299
    %3301 = vmatprep.subr.mxu0 0.0
    %v3302 = vand.u32 %v188, 4294901760
    %3303 = vmatpush1.msra.mxu0 %v3302
    %3304 = vmatprep.subr.mxu0 0.0
    %v3305 = vand.u32 %v189, 4294901760
    %3306 = vmatpush1.msra.mxu0 %v3305
    %3307 = vmatprep.subr.mxu0 0.0
    %v3308 = vand.u32 %v190, 4294901760
    %3309 = vmatpush1.msra.mxu0 %v3308
    %3310 = vmatprep.subr.mxu0 0.0
    %v3311 = vand.u32 %v191, 4294901760
    %3312 = vmatpush1.msra.mxu0 %v3311
    %3313 = vmatprep.subr.mxu0 0.0
    %v3314 = vand.u32 %v192, 4294901760
    %3315 = vmatpush1.msra.mxu0 %v3314
    %3316 = vmatprep.subr.mxu0 0.0
    %v3317 = vand.u32 %v193, 4294901760
    %3318 = vmatpush1.msra.mxu0 %v3317
    %3319 = vmatprep.subr.mxu0 0.0
    %v3320 = vand.u32 %v194, 4294901760
    %3321 = vmatpush1.msra.mxu0 %v3320
    %3322 = vmatprep.subr.mxu0 0.0
    %v3323 = vand.u32 %v195, 4294901760
    %3324 = vmatpush1.msra.mxu0 %v3323
    %3325 = vmatprep.subr.mxu0 0.0
    %v3326 = vand.u32 %v196, 4294901760
    %3327 = vmatpush1.msra.mxu0 %v3326
    %3328 = vmatprep.subr.mxu0 0.0
    %v3329 = vand.u32 %v197, 4294901760
    %3330 = vmatpush1.msra.mxu0 %v3329
    %3331 = vmatprep.subr.mxu0 0.0
    %v3332 = vand.u32 %v198, 4294901760
    %3333 = vmatpush1.msra.mxu0 %v3332
    %3334 = vmatprep.subr.mxu0 0.0
    %v3335 = vand.u32 %v199, 4294901760
    %3336 = vmatpush1.msra.mxu0 %v3335
    %3337 = vmatprep.subr.mxu0 0.0
    %v3338 = vand.u32 %v200, 4294901760
    %3339 = vmatpush1.msra.mxu0 %v3338
    %3340 = vmatprep.subr.mxu0 0.0
    %v3341 = vand.u32 %v201, 4294901760
    %3342 = vmatpush1.msra.mxu0 %v3341
    %3343 = vmatprep.subr.mxu0 0.0
    %v3344 = vand.u32 %v202, 4294901760
    %3345 = vmatpush1.msra.mxu0 %v3344
    %3346 = vmatprep.subr.mxu0 0.0
    %v3347 = vand.u32 %v203, 4294901760
    %3348 = vmatpush1.msra.mxu0 %v3347
    %3349 = vmatprep.subr.mxu0 0.0
    %v3350 = vand.u32 %v204, 4294901760
    %3351 = vmatpush1.msra.mxu0 %v3350
    %3352 = vmatprep.subr.mxu0 0.0
    %v3353 = vand.u32 %v205, 4294901760
    %3354 = vmatpush1.msra.mxu0 %v3353
    %3355 = vmatprep.subr.mxu0 0.0
    %v3356 = vand.u32 %v206, 4294901760
    %3357 = vmatpush1.msra.mxu0 %v3356
    %3358 = vmatprep.subr.mxu0 0.0
    %v3359 = vand.u32 %v207, 4294901760
    %3360 = vmatpush1.msra.mxu0 %v3359
    %3361 = vmatprep.subr.mxu0 0.0
    %v3362 = vand.u32 %v208, 4294901760
    %3363 = vmatpush1.msra.mxu0 %v3362
    %3364 = vmatprep.subr.mxu0 0.0
    %v3365 = vand.u32 %v209, 4294901760
    %3366 = vmatpush1.msra.mxu0 %v3365
    %3367 = vmatprep.subr.mxu0 0.0
    %v3368 = vand.u32 %v210, 4294901760
    %3369 = vmatpush1.msra.mxu0 %v3368
    %3370 = vmatprep.subr.mxu0 0.0
    %v3371 = vand.u32 %v211, 4294901760
    %3372 = vmatpush1.msra.mxu0 %v3371
    %3373 = vmatprep.subr.mxu0 0.0
    %v3374 = vand.u32 %v212, 4294901760
    %3375 = vmatpush1.msra.mxu0 %v3374
    %3376 = vmatprep.subr.mxu0 0.0
    %v3377 = vand.u32 %v213, 4294901760
    %3378 = vmatpush1.msra.mxu0 %v3377
    %3379 = vmatprep.subr.mxu0 0.0
    %v3380 = vand.u32 %v214, 4294901760
    %3381 = vmatpush1.msra.mxu0 %v3380
    %3382 = vmatprep.subr.mxu0 0.0
    %v3383 = vand.u32 %v215, 4294901760
    %3384 = vmatpush1.msra.mxu0 %v3383
    %v3385 = vand.u32 %v87, 4294901760
    %v3386 = vsub.f32 %v87, %v3385
    %v3387 = vand.u32 %v3386, 4294901760
    %3388 = vmatprep.mubr.f32.mxu0 %v3387
    %v3389 = vand.u32 %v86, 4294901760
    %v3390 = vsub.f32 %v86, %v3389
    %v3391 = vand.u32 %v3390, 4294901760
    %3392 = vmatmul.mubr.f32.gmra.mrb[0].mxu0 %v3391
    %v3393 = vpop.f32.mrb[0].mxu0
    %v3394 = vadd.f32 %v3286, %v3393
    %v3395 = vpop.f32.mrb[0].mxu0
    %3396 = vdwg.mxu0
    %3397 = vmatprep.subr.mxu0 0.0
    %v3398 = vand.u32 %v184, 4294901760
    %v3399 = vsub.f32 %v184, %v3398
    %v3400 = vand.u32 %v3399, 4294901760
    %3401 = vmatpush1.msra.mxu0 %v3400
    %3402 = vmatprep.subr.mxu0 0.0
    %v3403 = vand.u32 %v185, 4294901760
    %v3404 = vsub.f32 %v185, %v3403
    %v3405 = vand.u32 %v3404, 4294901760
    %3406 = vmatpush1.msra.mxu0 %v3405
    %3407 = vmatprep.subr.mxu0 0.0
    %v3408 = vand.u32 %v186, 4294901760
    %v3409 = vsub.f32 %v186, %v3408
    %v3410 = vand.u32 %v3409, 4294901760
    %3411 = vmatpush1.msra.mxu0 %v3410
    %3412 = vmatprep.subr.mxu0 0.0
    %v3413 = vand.u32 %v187, 4294901760
    %v3414 = vsub.f32 %v187, %v3413
    %v3415 = vand.u32 %v3414, 4294901760
    %3416 = vmatpush1.msra.mxu0 %v3415
    %3417 = vmatprep.subr.mxu0 0.0
    %v3418 = vand.u32 %v188, 4294901760
    %v3419 = vsub.f32 %v188, %v3418
    %v3420 = vand.u32 %v3419, 4294901760
    %3421 = vmatpush1.msra.mxu0 %v3420
    %3422 = vmatprep.subr.mxu0 0.0
    %v3423 = vand.u32 %v189, 4294901760
    %v3424 = vsub.f32 %v189, %v3423
    %v3425 = vand.u32 %v3424, 4294901760
    %3426 = vmatpush1.msra.mxu0 %v3425
    %3427 = vmatprep.subr.mxu0 0.0
    %v3428 = vand.u32 %v190, 4294901760
    %v3429 = vsub.f32 %v190, %v3428
    %v3430 = vand.u32 %v3429, 4294901760
    %3431 = vmatpush1.msra.mxu0 %v3430
    %3432 = vmatprep.subr.mxu0 0.0
    %v3433 = vand.u32 %v191, 4294901760
    %v3434 = vsub.f32 %v191, %v3433
    %v3435 = vand.u32 %v3434, 4294901760
    %3436 = vmatpush1.msra.mxu0 %v3435
    %3437 = vmatprep.subr.mxu0 0.0
    %v3438 = vand.u32 %v192, 4294901760
    %v3439 = vsub.f32 %v192, %v3438
    %v3440 = vand.u32 %v3439, 4294901760
    %3441 = vmatpush1.msra.mxu0 %v3440
    %3442 = vmatprep.subr.mxu0 0.0
    %v3443 = vand.u32 %v193, 4294901760
    %v3444 = vsub.f32 %v193, %v3443
    %v3445 = vand.u32 %v3444, 4294901760
    %3446 = vmatpush1.msra.mxu0 %v3445
    %3447 = vmatprep.subr.mxu0 0.0
    %v3448 = vand.u32 %v194, 4294901760
    %v3449 = vsub.f32 %v194, %v3448
    %v3450 = vand.u32 %v3449, 4294901760
    %3451 = vmatpush1.msra.mxu0 %v3450
    %3452 = vmatprep.subr.mxu0 0.0
    %v3453 = vand.u32 %v195, 4294901760
    %v3454 = vsub.f32 %v195, %v3453
    %v3455 = vand.u32 %v3454, 4294901760
    %3456 = vmatpush1.msra.mxu0 %v3455
    %3457 = vmatprep.subr.mxu0 0.0
    %v3458 = vand.u32 %v196, 4294901760
    %v3459 = vsub.f32 %v196, %v3458
    %v3460 = vand.u32 %v3459, 4294901760
    %3461 = vmatpush1.msra.mxu0 %v3460
    %3462 = vmatprep.subr.mxu0 0.0
    %v3463 = vand.u32 %v197, 4294901760
    %v3464 = vsub.f32 %v197, %v3463
    %v3465 = vand.u32 %v3464, 4294901760
    %3466 = vmatpush1.msra.mxu0 %v3465
    %3467 = vmatprep.subr.mxu0 0.0
    %v3468 = vand.u32 %v198, 4294901760
    %v3469 = vsub.f32 %v198, %v3468
    %v3470 = vand.u32 %v3469, 4294901760
    %3471 = vmatpush1.msra.mxu0 %v3470
    %3472 = vmatprep.subr.mxu0 0.0
    %v3473 = vand.u32 %v199, 4294901760
    %v3474 = vsub.f32 %v199, %v3473
    %v3475 = vand.u32 %v3474, 4294901760
    %3476 = vmatpush1.msra.mxu0 %v3475
    %3477 = vmatprep.subr.mxu0 0.0
    %v3478 = vand.u32 %v200, 4294901760
    %v3479 = vsub.f32 %v200, %v3478
    %v3480 = vand.u32 %v3479, 4294901760
    %3481 = vmatpush1.msra.mxu0 %v3480
    %3482 = vmatprep.subr.mxu0 0.0
    %v3483 = vand.u32 %v201, 4294901760
    %v3484 = vsub.f32 %v201, %v3483
    %v3485 = vand.u32 %v3484, 4294901760
    %3486 = vmatpush1.msra.mxu0 %v3485
    %3487 = vmatprep.subr.mxu0 0.0
    %v3488 = vand.u32 %v202, 4294901760
    %v3489 = vsub.f32 %v202, %v3488
    %v3490 = vand.u32 %v3489, 4294901760
    %3491 = vmatpush1.msra.mxu0 %v3490
    %3492 = vmatprep.subr.mxu0 0.0
    %v3493 = vand.u32 %v203, 4294901760
    %v3494 = vsub.f32 %v203, %v3493
    %v3495 = vand.u32 %v3494, 4294901760
    %3496 = vmatpush1.msra.mxu0 %v3495
    %3497 = vmatprep.subr.mxu0 0.0
    %v3498 = vand.u32 %v204, 4294901760
    %v3499 = vsub.f32 %v204, %v3498
    %v3500 = vand.u32 %v3499, 4294901760
    %3501 = vmatpush1.msra.mxu0 %v3500
    %3502 = vmatprep.subr.mxu0 0.0
    %v3503 = vand.u32 %v205, 4294901760
    %v3504 = vsub.f32 %v205, %v3503
    %v3505 = vand.u32 %v3504, 4294901760
    %3506 = vmatpush1.msra.mxu0 %v3505
    %3507 = vmatprep.subr.mxu0 0.0
    %v3508 = vand.u32 %v206, 4294901760
    %v3509 = vsub.f32 %v206, %v3508
    %v3510 = vand.u32 %v3509, 4294901760
    %3511 = vmatpush1.msra.mxu0 %v3510
    %3512 = vmatprep.subr.mxu0 0.0
    %v3513 = vand.u32 %v207, 4294901760
    %v3514 = vsub.f32 %v207, %v3513
    %v3515 = vand.u32 %v3514, 4294901760
    %3516 = vmatpush1.msra.mxu0 %v3515
    %3517 = vmatprep.subr.mxu0 0.0
    %v3518 = vand.u32 %v208, 4294901760
    %v3519 = vsub.f32 %v208, %v3518
    %v3520 = vand.u32 %v3519, 4294901760
    %3521 = vmatpush1.msra.mxu0 %v3520
    %3522 = vmatprep.subr.mxu0 0.0
    %v3523 = vand.u32 %v209, 4294901760
    %v3524 = vsub.f32 %v209, %v3523
    %v3525 = vand.u32 %v3524, 4294901760
    %3526 = vmatpush1.msra.mxu0 %v3525
    %3527 = vmatprep.subr.mxu0 0.0
    %v3528 = vand.u32 %v210, 4294901760
    %v3529 = vsub.f32 %v210, %v3528
    %v3530 = vand.u32 %v3529, 4294901760
    %3531 = vmatpush1.msra.mxu0 %v3530
    %3532 = vmatprep.subr.mxu0 0.0
    %v3533 = vand.u32 %v211, 4294901760
    %v3534 = vsub.f32 %v211, %v3533
    %v3535 = vand.u32 %v3534, 4294901760
    %3536 = vmatpush1.msra.mxu0 %v3535
    %3537 = vmatprep.subr.mxu0 0.0
    %v3538 = vand.u32 %v212, 4294901760
    %v3539 = vsub.f32 %v212, %v3538
    %v3540 = vand.u32 %v3539, 4294901760
    %3541 = vmatpush1.msra.mxu0 %v3540
    %3542 = vmatprep.subr.mxu0 0.0
    %v3543 = vand.u32 %v213, 4294901760
    %v3544 = vsub.f32 %v213, %v3543
    %v3545 = vand.u32 %v3544, 4294901760
    %3546 = vmatpush1.msra.mxu0 %v3545
    %3547 = vmatprep.subr.mxu0 0.0
    %v3548 = vand.u32 %v214, 4294901760
    %v3549 = vsub.f32 %v214, %v3548
    %v3550 = vand.u32 %v3549, 4294901760
    %3551 = vmatpush1.msra.mxu0 %v3550
    %3552 = vmatprep.subr.mxu0 0.0
    %v3553 = vand.u32 %v215, 4294901760
    %v3554 = vsub.f32 %v215, %v3553
    %v3555 = vand.u32 %v3554, 4294901760
    %3556 = vmatpush1.msra.mxu0 %v3555
    %v3557 = vand.u32 %v87, 4294901760
    %3558 = vmatprep.mubr.f32.mxu0 %v3557
    %v3559 = vand.u32 %v86, 4294901760
    %3560 = vmatmul.mubr.f32.gmra.mrb[0].mxu0 %v3559
    %v3561 = vpop.f32.mrb[0].mxu0
    %v3562 = vadd.f32 %v3394, %v3561
    %v3563 = vpop.f32.mrb[0].mxu0
    %3564 = vdwg.mxu0
    %3565 = vmatprep.subr.mxu0 0.0
    %v3566 = vand.u32 %v184, 4294901760
    %3567 = vmatpush1.msra.mxu0 %v3566
    %3568 = vmatprep.subr.mxu0 0.0
    %v3569 = vand.u32 %v185, 4294901760
    %3570 = vmatpush1.msra.mxu0 %v3569
    %3571 = vmatprep.subr.mxu0 0.0
    %v3572 = vand.u32 %v186, 4294901760
    %3573 = vmatpush1.msra.mxu0 %v3572
    %3574 = vmatprep.subr.mxu0 0.0
    %v3575 = vand.u32 %v187, 4294901760
    %3576 = vmatpush1.msra.mxu0 %v3575
    %3577 = vmatprep.subr.mxu0 0.0
    %v3578 = vand.u32 %v188, 4294901760
    %3579 = vmatpush1.msra.mxu0 %v3578
    %3580 = vmatprep.subr.mxu0 0.0
    %v3581 = vand.u32 %v189, 4294901760
    %3582 = vmatpush1.msra.mxu0 %v3581
    %3583 = vmatprep.subr.mxu0 0.0
    %v3584 = vand.u32 %v190, 4294901760
    %3585 = vmatpush1.msra.mxu0 %v3584
    %3586 = vmatprep.subr.mxu0 0.0
    %v3587 = vand.u32 %v191, 4294901760
    %3588 = vmatpush1.msra.mxu0 %v3587
    %3589 = vmatprep.subr.mxu0 0.0
    %v3590 = vand.u32 %v192, 4294901760
    %3591 = vmatpush1.msra.mxu0 %v3590
    %3592 = vmatprep.subr.mxu0 0.0
    %v3593 = vand.u32 %v193, 4294901760
    %3594 = vmatpush1.msra.mxu0 %v3593
    %3595 = vmatprep.subr.mxu0 0.0
    %v3596 = vand.u32 %v194, 4294901760
    %3597 = vmatpush1.msra.mxu0 %v3596
    %3598 = vmatprep.subr.mxu0 0.0
    %v3599 = vand.u32 %v195, 4294901760
    %3600 = vmatpush1.msra.mxu0 %v3599
    %3601 = vmatprep.subr.mxu0 0.0
    %v3602 = vand.u32 %v196, 4294901760
    %3603 = vmatpush1.msra.mxu0 %v3602
    %3604 = vmatprep.subr.mxu0 0.0
    %v3605 = vand.u32 %v197, 4294901760
    %3606 = vmatpush1.msra.mxu0 %v3605
    %3607 = vmatprep.subr.mxu0 0.0
    %v3608 = vand.u32 %v198, 4294901760
    %3609 = vmatpush1.msra.mxu0 %v3608
    %3610 = vmatprep.subr.mxu0 0.0
    %v3611 = vand.u32 %v199, 4294901760
    %3612 = vmatpush1.msra.mxu0 %v3611
    %3613 = vmatprep.subr.mxu0 0.0
    %v3614 = vand.u32 %v200, 4294901760
    %3615 = vmatpush1.msra.mxu0 %v3614
    %3616 = vmatprep.subr.mxu0 0.0
    %v3617 = vand.u32 %v201, 4294901760
    %3618 = vmatpush1.msra.mxu0 %v3617
    %3619 = vmatprep.subr.mxu0 0.0
    %v3620 = vand.u32 %v202, 4294901760
    %3621 = vmatpush1.msra.mxu0 %v3620
    %3622 = vmatprep.subr.mxu0 0.0
    %v3623 = vand.u32 %v203, 4294901760
    %3624 = vmatpush1.msra.mxu0 %v3623
    %3625 = vmatprep.subr.mxu0 0.0
    %v3626 = vand.u32 %v204, 4294901760
    %3627 = vmatpush1.msra.mxu0 %v3626
    %3628 = vmatprep.subr.mxu0 0.0
    %v3629 = vand.u32 %v205, 4294901760
    %3630 = vmatpush1.msra.mxu0 %v3629
    %3631 = vmatprep.subr.mxu0 0.0
    %v3632 = vand.u32 %v206, 4294901760
    %3633 = vmatpush1.msra.mxu0 %v3632
    %3634 = vmatprep.subr.mxu0 0.0
    %v3635 = vand.u32 %v207, 4294901760
    %3636 = vmatpush1.msra.mxu0 %v3635
    %3637 = vmatprep.subr.mxu0 0.0
    %v3638 = vand.u32 %v208, 4294901760
    %3639 = vmatpush1.msra.mxu0 %v3638
    %3640 = vmatprep.subr.mxu0 0.0
    %v3641 = vand.u32 %v209, 4294901760
    %3642 = vmatpush1.msra.mxu0 %v3641
    %3643 = vmatprep.subr.mxu0 0.0
    %v3644 = vand.u32 %v210, 4294901760
    %3645 = vmatpush1.msra.mxu0 %v3644
    %3646 = vmatprep.subr.mxu0 0.0
    %v3647 = vand.u32 %v211, 4294901760
    %3648 = vmatpush1.msra.mxu0 %v3647
    %3649 = vmatprep.subr.mxu0 0.0
    %v3650 = vand.u32 %v212, 4294901760
    %3651 = vmatpush1.msra.mxu0 %v3650
    %3652 = vmatprep.subr.mxu0 0.0
    %v3653 = vand.u32 %v213, 4294901760
    %3654 = vmatpush1.msra.mxu0 %v3653
    %3655 = vmatprep.subr.mxu0 0.0
    %v3656 = vand.u32 %v214, 4294901760
    %3657 = vmatpush1.msra.mxu0 %v3656
    %3658 = vmatprep.subr.mxu0 0.0
    %v3659 = vand.u32 %v215, 4294901760
    %3660 = vmatpush1.msra.mxu0 %v3659
    %v3661 = vand.u32 %v87, 4294901760
    %3662 = vmatprep.mubr.f32.mxu0 %v3661
    %v3663 = vand.u32 %v86, 4294901760
    %3664 = vmatmul.mubr.f32.gmra.mrb[0].mxu0 %v3663
    %v3665 = vpop.f32.mrb[0].mxu0
    %v3666 = vadd.f32 %v3562, %v3665
    %v3667 = vpop.f32.mrb[0].mxu0
    %3668 = vdwg.mxu0
    %v3669 = vld [vmem:[%s2 + $0x1] sm:$0x1]
    %v3670 = vld [vmem:[%s2 + $0x2] sm:$0x1]
    %3671 = vadd.xlane.f32.xlu0 %v3666
    %v3672 = vpop.xlane.xlu0 %3671
    %v3673 = vmul.f32 %v3672, 0.03125
    %v3674 = vlaneseq
    %v3675 = vand.u32 %v3674, 127
    %vm3676 = vcmp.lt.s32.totalorder %v3675, 32
    %v3677 = vsub.f32 %v3666, %v3673
    %v3678 = vsel %vm3676, %v3677, 0.0
    %v3679 = vmul.f32 %v3678, %v3678
    %3680 = vadd.xlane.f32.xlu0 %v3679
    %v3681 = vpop.xlane.xlu0 %3680
    %v3682 = vmul.f32 %v3681, 0.03125
    %v3683 = vadd.f32 %v3682, 1e-05
    %v3684 = vrsqrt.pop %v3683
    %v3685 = vmul.f32 %v3677, %v3684
    %v3686 = vlaneseq
    %v3687 = vshrl.u32 %v3686, 7
    %v3688 = vsub.s32 0, %v3687
    %v3689 = vrot.slane %v3669, %v3688
    %v3690 = vmul.f32 %v3685, %v3689
    %v3691 = vlaneseq
    %v3692 = vshrl.u32 %v3691, 7
    %v3693 = vsub.s32 0, %v3692
    %v3694 = vrot.slane %v3670, %v3693
    %v3695 = vadd.f32 %v3690, %v3694
    %v3696 = vmax.f32 %v3695, 0.0
    %v3697 = vld [vmem:[#allocation7] sm:$0xff]
    %v3698 = vld [vmem:[#allocation7 + $0x8] sm:$0xff]
    %v3699 = vld [vmem:[#allocation7 + $0x10] sm:$0xff]
    %v3700 = vld [vmem:[#allocation7 + $0x18] sm:$0xff]
    %v3701 = vld [vmem:[#allocation7 + $0x20] sm:$0xff]
    %v3702 = vld [vmem:[#allocation7 + $0x28] sm:$0xff]
    %v3703 = vld [vmem:[#allocation7 + $0x30] sm:$0xff]
    %v3704 = vld [vmem:[#allocation7 + $0x38] sm:$0xff]
    %v3705 = vld [vmem:[#allocation7 + $0x40] sm:$0xff]
    %v3706 = vld [vmem:[#allocation7 + $0x48] sm:$0xff]
    %v3707 = vld [vmem:[#allocation7 + $0x50] sm:$0xff]
    %v3708 = vld [vmem:[#allocation7 + $0x58] sm:$0xff]
    %v3709 = vld [vmem:[#allocation7 + $0x60] sm:$0xff]
    %v3710 = vld [vmem:[#allocation7 + $0x68] sm:$0xff]
    %v3711 = vld [vmem:[#allocation7 + $0x70] sm:$0xff]
    %v3712 = vld [vmem:[#allocation7 + $0x78] sm:$0xff]
    %v3713 = vld [vmem:[%s4] sm:$0x1]
    %v3714 = vlaneseq
    %v3715 = vshrl.u32 %v3714, 7
    %v3716 = vsub.s32 0, %v3715
    %v3717 = vrot.slane %v3713, %v3716
    %3718 = vmatprep.subr.mxu0 0.0
    %v3719 = vand.u32 %v3697, 4294901760
    %3720 = vmatpush1.msra.mxu0 %v3719
    %3721 = vmatprep.subr.mxu0 0.0
    %v3722 = vand.u32 %v3698, 4294901760
    %3723 = vmatpush1.msra.mxu0 %v3722
    %3724 = vmatprep.subr.mxu0 0.0
    %v3725 = vand.u32 %v3699, 4294901760
    %3726 = vmatpush1.msra.mxu0 %v3725
    %3727 = vmatprep.subr.mxu0 0.0
    %v3728 = vand.u32 %v3700, 4294901760
    %3729 = vmatpush1.msra.mxu0 %v3728
    %3730 = vmatprep.subr.mxu0 0.0
    %v3731 = vand.u32 %v3701, 4294901760
    %3732 = vmatpush1.msra.mxu0 %v3731
    %3733 = vmatprep.subr.mxu0 0.0
    %v3734 = vand.u32 %v3702, 4294901760
    %3735 = vmatpush1.msra.mxu0 %v3734
    %3736 = vmatprep.subr.mxu0 0.0
    %v3737 = vand.u32 %v3703, 4294901760
    %3738 = vmatpush1.msra.mxu0 %v3737
    %3739 = vmatprep.subr.mxu0 0.0
    %v3740 = vand.u32 %v3704, 4294901760
    %3741 = vmatpush1.msra.mxu0 %v3740
    %3742 = vmatprep.subr.mxu0 0.0
    %v3743 = vand.u32 %v3705, 4294901760
    %3744 = vmatpush1.msra.mxu0 %v3743
    %3745 = vmatprep.subr.mxu0 0.0
    %v3746 = vand.u32 %v3706, 4294901760
    %3747 = vmatpush1.msra.mxu0 %v3746
    %3748 = vmatprep.subr.mxu0 0.0
    %v3749 = vand.u32 %v3707, 4294901760
    %3750 = vmatpush1.msra.mxu0 %v3749
    %3751 = vmatprep.subr.mxu0 0.0
    %v3752 = vand.u32 %v3708, 4294901760
    %3753 = vmatpush1.msra.mxu0 %v3752
    %3754 = vmatprep.subr.mxu0 0.0
    %v3755 = vand.u32 %v3709, 4294901760
    %3756 = vmatpush1.msra.mxu0 %v3755
    %3757 = vmatprep.subr.mxu0 0.0
    %v3758 = vand.u32 %v3710, 4294901760
    %3759 = vmatpush1.msra.mxu0 %v3758
    %3760 = vmatprep.subr.mxu0 0.0
    %v3761 = vand.u32 %v3711, 4294901760
    %3762 = vmatpush1.msra.mxu0 %v3761
    %3763 = vmatprep.subr.mxu0 0.0
    %v3764 = vand.u32 %v3712, 4294901760
    %3765 = vmatpush1.msra.mxu0 %v3764
    %3766 = vmatprep.subr.mxu0 0.0
    %3767 = vmatpush1.msra.mxu0 0.0
    %3768 = vmatprep.subr.mxu0 0.0
    %3769 = vmatpush1.msra.mxu0 0.0
    %3770 = vmatprep.subr.mxu0 0.0
    %3771 = vmatpush1.msra.mxu0 0.0
    %3772 = vmatprep.subr.mxu0 0.0
    %3773 = vmatpush1.msra.mxu0 0.0
    %3774 = vmatprep.subr.mxu0 0.0
    %3775 = vmatpush1.msra.mxu0 0.0
    %3776 = vmatprep.subr.mxu0 0.0
    %3777 = vmatpush1.msra.mxu0 0.0
    %3778 = vmatprep.subr.mxu0 0.0
    %3779 = vmatpush1.msra.mxu0 0.0
    %3780 = vmatprep.subr.mxu0 0.0
    %3781 = vmatpush1.msra.mxu0 0.0
    %3782 = vmatprep.subr.mxu0 0.0
    %3783 = vmatpush1.msra.mxu0 0.0
    %3784 = vmatprep.subr.mxu0 0.0
    %3785 = vmatpush1.msra.mxu0 0.0
    %3786 = vmatprep.subr.mxu0 0.0
    %3787 = vmatpush1.msra.mxu0 0.0
    %3788 = vmatprep.subr.mxu0 0.0
    %3789 = vmatpush1.msra.mxu0 0.0
    %3790 = vmatprep.subr.mxu0 0.0
    %3791 = vmatpush1.msra.mxu0 0.0
    %3792 = vmatprep.subr.mxu0 0.0
    %3793 = vmatpush1.msra.mxu0 0.0
    %3794 = vmatprep.subr.mxu0 0.0
    %3795 = vmatpush1.msra.mxu0 0.0
    %3796 = vmatprep.subr.mxu0 0.0
    %3797 = vmatpush1.msra.mxu0 0.0
    %3798 = vmatprep.mubr.f32.mxu0 0.0
    %v3799 = vand.u32 %v3696, 4294901760
    %v3800 = vsub.f32 %v3696, %v3799
    %v3801 = vand.u32 %v3800, 4294901760
    %v3802 = vsub.f32 %v3800, %v3801
    %v3803 = vand.u32 %v3802, 4294901760
    %3804 = vmatmul.mubr.f32.gmra.mrb[0].mxu0 %v3803
    %v3805 = vpop.f32.mrb[0].mxu0
    %v3806 = vadd.f32 %v3717, %v3805
    %v3807 = vpop.f32.mrb[0].mxu0
    %3808 = vdwg.mxu0
    %3809 = vmatprep.subr.mxu0 0.0
    %v3810 = vand.u32 %v3697, 4294901760
    %v3811 = vsub.f32 %v3697, %v3810
    %v3812 = vand.u32 %v3811, 4294901760
    %v3813 = vsub.f32 %v3811, %v3812
    %v3814 = vand.u32 %v3813, 4294901760
    %3815 = vmatpush1.msra.mxu0 %v3814
    %3816 = vmatprep.subr.mxu0 0.0
    %v3817 = vand.u32 %v3698, 4294901760
    %v3818 = vsub.f32 %v3698, %v3817
    %v3819 = vand.u32 %v3818, 4294901760
    %v3820 = vsub.f32 %v3818, %v3819
    %v3821 = vand.u32 %v3820, 4294901760
    %3822 = vmatpush1.msra.mxu0 %v3821
    %3823 = vmatprep.subr.mxu0 0.0
    %v3824 = vand.u32 %v3699, 4294901760
    %v3825 = vsub.f32 %v3699, %v3824
    %v3826 = vand.u32 %v3825, 4294901760
    %v3827 = vsub.f32 %v3825, %v3826
    %v3828 = vand.u32 %v3827, 4294901760
    %3829 = vmatpush1.msra.mxu0 %v3828
    %3830 = vmatprep.subr.mxu0 0.0
    %v3831 = vand.u32 %v3700, 4294901760
    %v3832 = vsub.f32 %v3700, %v3831
    %v3833 = vand.u32 %v3832, 4294901760
    %v3834 = vsub.f32 %v3832, %v3833
    %v3835 = vand.u32 %v3834, 4294901760
    %3836 = vmatpush1.msra.mxu0 %v3835
    %3837 = vmatprep.subr.mxu0 0.0
    %v3838 = vand.u32 %v3701, 4294901760
    %v3839 = vsub.f32 %v3701, %v3838
    %v3840 = vand.u32 %v3839, 4294901760
    %v3841 = vsub.f32 %v3839, %v3840
    %v3842 = vand.u32 %v3841, 4294901760
    %3843 = vmatpush1.msra.mxu0 %v3842
    %3844 = vmatprep.subr.mxu0 0.0
    %v3845 = vand.u32 %v3702, 4294901760
    %v3846 = vsub.f32 %v3702, %v3845
    %v3847 = vand.u32 %v3846, 4294901760
    %v3848 = vsub.f32 %v3846, %v3847
    %v3849 = vand.u32 %v3848, 4294901760
    %3850 = vmatpush1.msra.mxu0 %v3849
    %3851 = vmatprep.subr.mxu0 0.0
    %v3852 = vand.u32 %v3703, 4294901760
    %v3853 = vsub.f32 %v3703, %v3852
    %v3854 = vand.u32 %v3853, 4294901760
    %v3855 = vsub.f32 %v3853, %v3854
    %v3856 = vand.u32 %v3855, 4294901760
    %3857 = vmatpush1.msra.mxu0 %v3856
    %3858 = vmatprep.subr.mxu0 0.0
    %v3859 = vand.u32 %v3704, 4294901760
    %v3860 = vsub.f32 %v3704, %v3859
    %v3861 = vand.u32 %v3860, 4294901760
    %v3862 = vsub.f32 %v3860, %v3861
    %v3863 = vand.u32 %v3862, 4294901760
    %3864 = vmatpush1.msra.mxu0 %v3863
    %3865 = vmatprep.subr.mxu0 0.0
    %v3866 = vand.u32 %v3705, 4294901760
    %v3867 = vsub.f32 %v3705, %v3866
    %v3868 = vand.u32 %v3867, 4294901760
    %v3869 = vsub.f32 %v3867, %v3868
    %v3870 = vand.u32 %v3869, 4294901760
    %3871 = vmatpush1.msra.mxu0 %v3870
    %3872 = vmatprep.subr.mxu0 0.0
    %v3873 = vand.u32 %v3706, 4294901760
    %v3874 = vsub.f32 %v3706, %v3873
    %v3875 = vand.u32 %v3874, 4294901760
    %v3876 = vsub.f32 %v3874, %v3875
    %v3877 = vand.u32 %v3876, 4294901760
    %3878 = vmatpush1.msra.mxu0 %v3877
    %3879 = vmatprep.subr.mxu0 0.0
    %v3880 = vand.u32 %v3707, 4294901760
    %v3881 = vsub.f32 %v3707, %v3880
    %v3882 = vand.u32 %v3881, 4294901760
    %v3883 = vsub.f32 %v3881, %v3882
    %v3884 = vand.u32 %v3883, 4294901760
    %3885 = vmatpush1.msra.mxu0 %v3884
    %3886 = vmatprep.subr.mxu0 0.0
    %v3887 = vand.u32 %v3708, 4294901760
    %v3888 = vsub.f32 %v3708, %v3887
    %v3889 = vand.u32 %v3888, 4294901760
    %v3890 = vsub.f32 %v3888, %v3889
    %v3891 = vand.u32 %v3890, 4294901760
    %3892 = vmatpush1.msra.mxu0 %v3891
    %3893 = vmatprep.subr.mxu0 0.0
    %v3894 = vand.u32 %v3709, 4294901760
    %v3895 = vsub.f32 %v3709, %v3894
    %v3896 = vand.u32 %v3895, 4294901760
    %v3897 = vsub.f32 %v3895, %v3896
    %v3898 = vand.u32 %v3897, 4294901760
    %3899 = vmatpush1.msra.mxu0 %v3898
    %3900 = vmatprep.subr.mxu0 0.0
    %v3901 = vand.u32 %v3710, 4294901760
    %v3902 = vsub.f32 %v3710, %v3901
    %v3903 = vand.u32 %v3902, 4294901760
    %v3904 = vsub.f32 %v3902, %v3903
    %v3905 = vand.u32 %v3904, 4294901760
    %3906 = vmatpush1.msra.mxu0 %v3905
    %3907 = vmatprep.subr.mxu0 0.0
    %v3908 = vand.u32 %v3711, 4294901760
    %v3909 = vsub.f32 %v3711, %v3908
    %v3910 = vand.u32 %v3909, 4294901760
    %v3911 = vsub.f32 %v3909, %v3910
    %v3912 = vand.u32 %v3911, 4294901760
    %3913 = vmatpush1.msra.mxu0 %v3912
    %3914 = vmatprep.subr.mxu0 0.0
    %v3915 = vand.u32 %v3712, 4294901760
    %v3916 = vsub.f32 %v3712, %v3915
    %v3917 = vand.u32 %v3916, 4294901760
    %v3918 = vsub.f32 %v3916, %v3917
    %v3919 = vand.u32 %v3918, 4294901760
    %3920 = vmatpush1.msra.mxu0 %v3919
    %3921 = vmatprep.subr.mxu0 0.0
    %3922 = vmatpush1.msra.mxu0 0.0
    %3923 = vmatprep.subr.mxu0 0.0
    %3924 = vmatpush1.msra.mxu0 0.0
    %3925 = vmatprep.subr.mxu0 0.0
    %3926 = vmatpush1.msra.mxu0 0.0
    %3927 = vmatprep.subr.mxu0 0.0
    %3928 = vmatpush1.msra.mxu0 0.0
    %3929 = vmatprep.subr.mxu0 0.0
    %3930 = vmatpush1.msra.mxu0 0.0
    %3931 = vmatprep.subr.mxu0 0.0
    %3932 = vmatpush1.msra.mxu0 0.0
    %3933 = vmatprep.subr.mxu0 0.0
    %3934 = vmatpush1.msra.mxu0 0.0
    %3935 = vmatprep.subr.mxu0 0.0
    %3936 = vmatpush1.msra.mxu0 0.0
    %3937 = vmatprep.subr.mxu0 0.0
    %3938 = vmatpush1.msra.mxu0 0.0
    %3939 = vmatprep.subr.mxu0 0.0
    %3940 = vmatpush1.msra.mxu0 0.0
    %3941 = vmatprep.subr.mxu0 0.0
    %3942 = vmatpush1.msra.mxu0 0.0
    %3943 = vmatprep.subr.mxu0 0.0
    %3944 = vmatpush1.msra.mxu0 0.0
    %3945 = vmatprep.subr.mxu0 0.0
    %3946 = vmatpush1.msra.mxu0 0.0
    %3947 = vmatprep.subr.mxu0 0.0
    %3948 = vmatpush1.msra.mxu0 0.0
    %3949 = vmatprep.subr.mxu0 0.0
    %3950 = vmatpush1.msra.mxu0 0.0
    %3951 = vmatprep.subr.mxu0 0.0
    %3952 = vmatpush1.msra.mxu0 0.0
    %3953 = vmatprep.mubr.f32.mxu0 0.0
    %v3954 = vand.u32 %v3696, 4294901760
    %3955 = vmatmul.mubr.f32.gmra.mrb[0].mxu0 %v3954
    %v3956 = vpop.f32.mrb[0].mxu0
    %v3957 = vadd.f32 %v3806, %v3956
    %v3958 = vpop.f32.mrb[0].mxu0
    %3959 = vdwg.mxu0
    %3960 = vmatprep.subr.mxu0 0.0
    %v3961 = vand.u32 %v3697, 4294901760
    %v3962 = vsub.f32 %v3697, %v3961
    %3963 = vmatpush1.msra.mxu0 %v3962
    %3964 = vmatprep.subr.mxu0 0.0
    %v3965 = vand.u32 %v3698, 4294901760
    %v3966 = vsub.f32 %v3698, %v3965
    %3967 = vmatpush1.msra.mxu0 %v3966
    %3968 = vmatprep.subr.mxu0 0.0
    %v3969 = vand.u32 %v3699, 4294901760
    %v3970 = vsub.f32 %v3699, %v3969
    %3971 = vmatpush1.msra.mxu0 %v3970
    %3972 = vmatprep.subr.mxu0 0.0
    %v3973 = vand.u32 %v3700, 4294901760
    %v3974 = vsub.f32 %v3700, %v3973
    %3975 = vmatpush1.msra.mxu0 %v3974
    %3976 = vmatprep.subr.mxu0 0.0
    %v3977 = vand.u32 %v3701, 4294901760
    %v3978 = vsub.f32 %v3701, %v3977
    %3979 = vmatpush1.msra.mxu0 %v3978
    %3980 = vmatprep.subr.mxu0 0.0
    %v3981 = vand.u32 %v3702, 4294901760
    %v3982 = vsub.f32 %v3702, %v3981
    %3983 = vmatpush1.msra.mxu0 %v3982
    %3984 = vmatprep.subr.mxu0 0.0
    %v3985 = vand.u32 %v3703, 4294901760
    %v3986 = vsub.f32 %v3703, %v3985
    %3987 = vmatpush1.msra.mxu0 %v3986
    %3988 = vmatprep.subr.mxu0 0.0
    %v3989 = vand.u32 %v3704, 4294901760
    %v3990 = vsub.f32 %v3704, %v3989
    %3991 = vmatpush1.msra.mxu0 %v3990
    %3992 = vmatprep.subr.mxu0 0.0
    %v3993 = vand.u32 %v3705, 4294901760
    %v3994 = vsub.f32 %v3705, %v3993
    %3995 = vmatpush1.msra.mxu0 %v3994
    %3996 = vmatprep.subr.mxu0 0.0
    %v3997 = vand.u32 %v3706, 4294901760
    %v3998 = vsub.f32 %v3706, %v3997
    %3999 = vmatpush1.msra.mxu0 %v3998
    %4000 = vmatprep.subr.mxu0 0.0
    %v4001 = vand.u32 %v3707, 4294901760
    %v4002 = vsub.f32 %v3707, %v4001
    %4003 = vmatpush1.msra.mxu0 %v4002
    %4004 = vmatprep.subr.mxu0 0.0
    %v4005 = vand.u32 %v3708, 4294901760
    %v4006 = vsub.f32 %v3708, %v4005
    %4007 = vmatpush1.msra.mxu0 %v4006
    %4008 = vmatprep.subr.mxu0 0.0
    %v4009 = vand.u32 %v3709, 4294901760
    %v4010 = vsub.f32 %v3709, %v4009
    %4011 = vmatpush1.msra.mxu0 %v4010
    %4012 = vmatprep.subr.mxu0 0.0
    %v4013 = vand.u32 %v3710, 4294901760
    %v4014 = vsub.f32 %v3710, %v4013
    %4015 = vmatpush1.msra.mxu0 %v4014
    %4016 = vmatprep.subr.mxu0 0.0
    %v4017 = vand.u32 %v3711, 4294901760
    %v4018 = vsub.f32 %v3711, %v4017
    %4019 = vmatpush1.msra.mxu0 %v4018
    %4020 = vmatprep.subr.mxu0 0.0
    %v4021 = vand.u32 %v3712, 4294901760
    %v4022 = vsub.f32 %v3712, %v4021
    %4023 = vmatpush1.msra.mxu0 %v4022
    %4024 = vmatprep.subr.mxu0 0.0
    %4025 = vmatpush1.msra.mxu0 0.0
    %4026 = vmatprep.subr.mxu0 0.0
    %4027 = vmatpush1.msra.mxu0 0.0
    %4028 = vmatprep.subr.mxu0 0.0
    %4029 = vmatpush1.msra.mxu0 0.0
    %4030 = vmatprep.subr.mxu0 0.0
    %4031 = vmatpush1.msra.mxu0 0.0
    %4032 = vmatprep.subr.mxu0 0.0
    %4033 = vmatpush1.msra.mxu0 0.0
    %4034 = vmatprep.subr.mxu0 0.0
    %4035 = vmatpush1.msra.mxu0 0.0
    %4036 = vmatprep.subr.mxu0 0.0
    %4037 = vmatpush1.msra.mxu0 0.0
    %4038 = vmatprep.subr.mxu0 0.0
    %4039 = vmatpush1.msra.mxu0 0.0
    %4040 = vmatprep.subr.mxu0 0.0
    %4041 = vmatpush1.msra.mxu0 0.0
    %4042 = vmatprep.subr.mxu0 0.0
    %4043 = vmatpush1.msra.mxu0 0.0
    %4044 = vmatprep.subr.mxu0 0.0
    %4045 = vmatpush1.msra.mxu0 0.0
    %4046 = vmatprep.subr.mxu0 0.0
    %4047 = vmatpush1.msra.mxu0 0.0
    %4048 = vmatprep.subr.mxu0 0.0
    %4049 = vmatpush1.msra.mxu0 0.0
    %4050 = vmatprep.subr.mxu0 0.0
    %4051 = vmatpush1.msra.mxu0 0.0
    %4052 = vmatprep.subr.mxu0 0.0
    %4053 = vmatpush1.msra.mxu0 0.0
    %4054 = vmatprep.subr.mxu0 0.0
    %4055 = vmatpush1.msra.mxu0 0.0
    %4056 = vmatprep.mubr.f32.mxu0 0.0
    %v4057 = vand.u32 %v3696, 4294901760
    %v4058 = vsub.f32 %v3696, %v4057
    %4059 = vmatmul.mubr.f32.gmra.mrb[0].mxu0 %v4058
    %v4060 = vpop.f32.mrb[0].mxu0
    %v4061 = vadd.f32 %v3957, %v4060
    %v4062 = vpop.f32.mrb[0].mxu0
    %4063 = vdwg.mxu0
    %4064 = vmatprep.subr.mxu0 0.0
    %v4065 = vand.u32 %v3697, 4294901760
    %4066 = vmatpush1.msra.mxu0 %v4065
    %4067 = vmatprep.subr.mxu0 0.0
    %v4068 = vand.u32 %v3698, 4294901760
    %4069 = vmatpush1.msra.mxu0 %v4068
    %4070 = vmatprep.subr.mxu0 0.0
    %v4071 = vand.u32 %v3699, 4294901760
    %4072 = vmatpush1.msra.mxu0 %v4071
    %4073 = vmatprep.subr.mxu0 0.0
    %v4074 = vand.u32 %v3700, 4294901760
    %4075 = vmatpush1.msra.mxu0 %v4074
    %4076 = vmatprep.subr.mxu0 0.0
    %v4077 = vand.u32 %v3701, 4294901760
    %4078 = vmatpush1.msra.mxu0 %v4077
    %4079 = vmatprep.subr.mxu0 0.0
    %v4080 = vand.u32 %v3702, 4294901760
    %4081 = vmatpush1.msra.mxu0 %v4080
    %4082 = vmatprep.subr.mxu0 0.0
    %v4083 = vand.u32 %v3703, 4294901760
    %4084 = vmatpush1.msra.mxu0 %v4083
    %4085 = vmatprep.subr.mxu0 0.0
    %v4086 = vand.u32 %v3704, 4294901760
    %4087 = vmatpush1.msra.mxu0 %v4086
    %4088 = vmatprep.subr.mxu0 0.0
    %v4089 = vand.u32 %v3705, 4294901760
    %4090 = vmatpush1.msra.mxu0 %v4089
    %4091 = vmatprep.subr.mxu0 0.0
    %v4092 = vand.u32 %v3706, 4294901760
    %4093 = vmatpush1.msra.mxu0 %v4092
    %4094 = vmatprep.subr.mxu0 0.0
    %v4095 = vand.u32 %v3707, 4294901760
    %4096 = vmatpush1.msra.mxu0 %v4095
    %4097 = vmatprep.subr.mxu0 0.0
    %v4098 = vand.u32 %v3708, 4294901760
    %4099 = vmatpush1.msra.mxu0 %v4098
    %4100 = vmatprep.subr.mxu0 0.0
    %v4101 = vand.u32 %v3709, 4294901760
    %4102 = vmatpush1.msra.mxu0 %v4101
    %4103 = vmatprep.subr.mxu0 0.0
    %v4104 = vand.u32 %v3710, 4294901760
    %4105 = vmatpush1.msra.mxu0 %v4104
    %4106 = vmatprep.subr.mxu0 0.0
    %v4107 = vand.u32 %v3711, 4294901760
    %4108 = vmatpush1.msra.mxu0 %v4107
    %4109 = vmatprep.subr.mxu0 0.0
    %v4110 = vand.u32 %v3712, 4294901760
    %4111 = vmatpush1.msra.mxu0 %v4110
    %4112 = vmatprep.subr.mxu0 0.0
    %4113 = vmatpush1.msra.mxu0 0.0
    %4114 = vmatprep.subr.mxu0 0.0
    %4115 = vmatpush1.msra.mxu0 0.0
    %4116 = vmatprep.subr.mxu0 0.0
    %4117 = vmatpush1.msra.mxu0 0.0
    %4118 = vmatprep.subr.mxu0 0.0
    %4119 = vmatpush1.msra.mxu0 0.0
    %4120 = vmatprep.subr.mxu0 0.0
    %4121 = vmatpush1.msra.mxu0 0.0
    %4122 = vmatprep.subr.mxu0 0.0
    %4123 = vmatpush1.msra.mxu0 0.0
    %4124 = vmatprep.subr.mxu0 0.0
    %4125 = vmatpush1.msra.mxu0 0.0
    %4126 = vmatprep.subr.mxu0 0.0
    %4127 = vmatpush1.msra.mxu0 0.0
    %4128 = vmatprep.subr.mxu0 0.0
    %4129 = vmatpush1.msra.mxu0 0.0
    %4130 = vmatprep.subr.mxu0 0.0
    %4131 = vmatpush1.msra.mxu0 0.0
    %4132 = vmatprep.subr.mxu0 0.0
    %4133 = vmatpush1.msra.mxu0 0.0
    %4134 = vmatprep.subr.mxu0 0.0
    %4135 = vmatpush1.msra.mxu0 0.0
    %4136 = vmatprep.subr.mxu0 0.0
    %4137 = vmatpush1.msra.mxu0 0.0
    %4138 = vmatprep.subr.mxu0 0.0
    %4139 = vmatpush1.msra.mxu0 0.0
    %4140 = vmatprep.subr.mxu0 0.0
    %4141 = vmatpush1.msra.mxu0 0.0
    %4142 = vmatprep.subr.mxu0 0.0
    %4143 = vmatpush1.msra.mxu0 0.0
    %4144 = vmatprep.mubr.f32.mxu0 0.0
    %v4145 = vand.u32 %v3696, 4294901760
    %v4146 = vsub.f32 %v3696, %v4145
    %v4147 = vand.u32 %v4146, 4294901760
    %4148 = vmatmul.mubr.f32.gmra.mrb[0].mxu0 %v4147
    %v4149 = vpop.f32.mrb[0].mxu0
    %v4150 = vadd.f32 %v4061, %v4149
    %v4151 = vpop.f32.mrb[0].mxu0
    %4152 = vdwg.mxu0
    %4153 = vmatprep.subr.mxu0 0.0
    %v4154 = vand.u32 %v3697, 4294901760
    %v4155 = vsub.f32 %v3697, %v4154
    %v4156 = vand.u32 %v4155, 4294901760
    %4157 = vmatpush1.msra.mxu0 %v4156
    %4158 = vmatprep.subr.mxu0 0.0
    %v4159 = vand.u32 %v3698, 4294901760
    %v4160 = vsub.f32 %v3698, %v4159
    %v4161 = vand.u32 %v4160, 4294901760
    %4162 = vmatpush1.msra.mxu0 %v4161
    %4163 = vmatprep.subr.mxu0 0.0
    %v4164 = vand.u32 %v3699, 4294901760
    %v4165 = vsub.f32 %v3699, %v4164
    %v4166 = vand.u32 %v4165, 4294901760
    %4167 = vmatpush1.msra.mxu0 %v4166
    %4168 = vmatprep.subr.mxu0 0.0
    %v4169 = vand.u32 %v3700, 4294901760
    %v4170 = vsub.f32 %v3700, %v4169
    %v4171 = vand.u32 %v4170, 4294901760
    %4172 = vmatpush1.msra.mxu0 %v4171
    %4173 = vmatprep.subr.mxu0 0.0
    %v4174 = vand.u32 %v3701, 4294901760
    %v4175 = vsub.f32 %v3701, %v4174
    %v4176 = vand.u32 %v4175, 4294901760
    %4177 = vmatpush1.msra.mxu0 %v4176
    %4178 = vmatprep.subr.mxu0 0.0
    %v4179 = vand.u32 %v3702, 4294901760
    %v4180 = vsub.f32 %v3702, %v4179
    %v4181 = vand.u32 %v4180, 4294901760
    %4182 = vmatpush1.msra.mxu0 %v4181
    %4183 = vmatprep.subr.mxu0 0.0
    %v4184 = vand.u32 %v3703, 4294901760
    %v4185 = vsub.f32 %v3703, %v4184
    %v4186 = vand.u32 %v4185, 4294901760
    %4187 = vmatpush1.msra.mxu0 %v4186
    %4188 = vmatprep.subr.mxu0 0.0
    %v4189 = vand.u32 %v3704, 4294901760
    %v4190 = vsub.f32 %v3704, %v4189
    %v4191 = vand.u32 %v4190, 4294901760
    %4192 = vmatpush1.msra.mxu0 %v4191
    %4193 = vmatprep.subr.mxu0 0.0
    %v4194 = vand.u32 %v3705, 4294901760
    %v4195 = vsub.f32 %v3705, %v4194
    %v4196 = vand.u32 %v4195, 4294901760
    %4197 = vmatpush1.msra.mxu0 %v4196
    %4198 = vmatprep.subr.mxu0 0.0
    %v4199 = vand.u32 %v3706, 4294901760
    %v4200 = vsub.f32 %v3706, %v4199
    %v4201 = vand.u32 %v4200, 4294901760
    %4202 = vmatpush1.msra.mxu0 %v4201
    %4203 = vmatprep.subr.mxu0 0.0
    %v4204 = vand.u32 %v3707, 4294901760
    %v4205 = vsub.f32 %v3707, %v4204
    %v4206 = vand.u32 %v4205, 4294901760
    %4207 = vmatpush1.msra.mxu0 %v4206
    %4208 = vmatprep.subr.mxu0 0.0
    %v4209 = vand.u32 %v3708, 4294901760
    %v4210 = vsub.f32 %v3708, %v4209
    %v4211 = vand.u32 %v4210, 4294901760
    %4212 = vmatpush1.msra.mxu0 %v4211
    %4213 = vmatprep.subr.mxu0 0.0
    %v4214 = vand.u32 %v3709, 4294901760
    %v4215 = vsub.f32 %v3709, %v4214
    %v4216 = vand.u32 %v4215, 4294901760
    %4217 = vmatpush1.msra.mxu0 %v4216
    %4218 = vmatprep.subr.mxu0 0.0
    %v4219 = vand.u32 %v3710, 4294901760
    %v4220 = vsub.f32 %v3710, %v4219
    %v4221 = vand.u32 %v4220, 4294901760
    %4222 = vmatpush1.msra.mxu0 %v4221
    %4223 = vmatprep.subr.mxu0 0.0
    %v4224 = vand.u32 %v3711, 4294901760
    %v4225 = vsub.f32 %v3711, %v4224
    %v4226 = vand.u32 %v4225, 4294901760
    %4227 = vmatpush1.msra.mxu0 %v4226
    %4228 = vmatprep.subr.mxu0 0.0
    %v4229 = vand.u32 %v3712, 4294901760
    %v4230 = vsub.f32 %v3712, %v4229
    %v4231 = vand.u32 %v4230, 4294901760
    %4232 = vmatpush1.msra.mxu0 %v4231
    %4233 = vmatprep.subr.mxu0 0.0
    %4234 = vmatpush1.msra.mxu0 0.0
    %4235 = vmatprep.subr.mxu0 0.0
    %4236 = vmatpush1.msra.mxu0 0.0
    %4237 = vmatprep.subr.mxu0 0.0
    %4238 = vmatpush1.msra.mxu0 0.0
    %4239 = vmatprep.subr.mxu0 0.0
    %4240 = vmatpush1.msra.mxu0 0.0
    %4241 = vmatprep.subr.mxu0 0.0
    %4242 = vmatpush1.msra.mxu0 0.0
    %4243 = vmatprep.subr.mxu0 0.0
    %4244 = vmatpush1.msra.mxu0 0.0
    %4245 = vmatprep.subr.mxu0 0.0
    %4246 = vmatpush1.msra.mxu0 0.0
    %4247 = vmatprep.subr.mxu0 0.0
    %4248 = vmatpush1.msra.mxu0 0.0
    %4249 = vmatprep.subr.mxu0 0.0
    %4250 = vmatpush1.msra.mxu0 0.0
    %4251 = vmatprep.subr.mxu0 0.0
    %4252 = vmatpush1.msra.mxu0 0.0
    %4253 = vmatprep.subr.mxu0 0.0
    %4254 = vmatpush1.msra.mxu0 0.0
    %4255 = vmatprep.subr.mxu0 0.0
    %4256 = vmatpush1.msra.mxu0 0.0
    %4257 = vmatprep.subr.mxu0 0.0
    %4258 = vmatpush1.msra.mxu0 0.0
    %4259 = vmatprep.subr.mxu0 0.0
    %4260 = vmatpush1.msra.mxu0 0.0
    %4261 = vmatprep.subr.mxu0 0.0
    %4262 = vmatpush1.msra.mxu0 0.0
    %4263 = vmatprep.subr.mxu0 0.0
    %4264 = vmatpush1.msra.mxu0 0.0
    %4265 = vmatprep.mubr.f32.mxu0 0.0
    %v4266 = vand.u32 %v3696, 4294901760
    %4267 = vmatmul.mubr.f32.gmra.mrb[0].mxu0 %v4266
    %v4268 = vpop.f32.mrb[0].mxu0
    %v4269 = vadd.f32 %v4150, %v4268
    %v4270 = vpop.f32.mrb[0].mxu0
    %4271 = vdwg.mxu0
    %4272 = vmatprep.subr.mxu0 0.0
    %v4273 = vand.u32 %v3697, 4294901760
    %4274 = vmatpush1.msra.mxu0 %v4273
    %4275 = vmatprep.subr.mxu0 0.0
    %v4276 = vand.u32 %v3698, 4294901760
    %4277 = vmatpush1.msra.mxu0 %v4276
    %4278 = vmatprep.subr.mxu0 0.0
    %v4279 = vand.u32 %v3699, 4294901760
    %4280 = vmatpush1.msra.mxu0 %v4279
    %4281 = vmatprep.subr.mxu0 0.0
    %v4282 = vand.u32 %v3700, 4294901760
    %4283 = vmatpush1.msra.mxu0 %v4282
    %4284 = vmatprep.subr.mxu0 0.0
    %v4285 = vand.u32 %v3701, 4294901760
    %4286 = vmatpush1.msra.mxu0 %v4285
    %4287 = vmatprep.subr.mxu0 0.0
    %v4288 = vand.u32 %v3702, 4294901760
    %4289 = vmatpush1.msra.mxu0 %v4288
    %4290 = vmatprep.subr.mxu0 0.0
    %v4291 = vand.u32 %v3703, 4294901760
    %4292 = vmatpush1.msra.mxu0 %v4291
    %4293 = vmatprep.subr.mxu0 0.0
    %v4294 = vand.u32 %v3704, 4294901760
    %4295 = vmatpush1.msra.mxu0 %v4294
    %4296 = vmatprep.subr.mxu0 0.0
    %v4297 = vand.u32 %v3705, 4294901760
    %4298 = vmatpush1.msra.mxu0 %v4297
    %4299 = vmatprep.subr.mxu0 0.0
    %v4300 = vand.u32 %v3706, 4294901760
    %4301 = vmatpush1.msra.mxu0 %v4300
    %4302 = vmatprep.subr.mxu0 0.0
    %v4303 = vand.u32 %v3707, 4294901760
    %4304 = vmatpush1.msra.mxu0 %v4303
    %4305 = vmatprep.subr.mxu0 0.0
    %v4306 = vand.u32 %v3708, 4294901760
    %4307 = vmatpush1.msra.mxu0 %v4306
    %4308 = vmatprep.subr.mxu0 0.0
    %v4309 = vand.u32 %v3709, 4294901760
    %4310 = vmatpush1.msra.mxu0 %v4309
    %4311 = vmatprep.subr.mxu0 0.0
    %v4312 = vand.u32 %v3710, 4294901760
    %4313 = vmatpush1.msra.mxu0 %v4312
    %4314 = vmatprep.subr.mxu0 0.0
    %v4315 = vand.u32 %v3711, 4294901760
    %4316 = vmatpush1.msra.mxu0 %v4315
    %4317 = vmatprep.subr.mxu0 0.0
    %v4318 = vand.u32 %v3712, 4294901760
    %4319 = vmatpush1.msra.mxu0 %v4318
    %4320 = vmatprep.subr.mxu0 0.0
    %4321 = vmatpush1.msra.mxu0 0.0
    %4322 = vmatprep.subr.mxu0 0.0
    %4323 = vmatpush1.msra.mxu0 0.0
    %4324 = vmatprep.subr.mxu0 0.0
    %4325 = vmatpush1.msra.mxu0 0.0
    %4326 = vmatprep.subr.mxu0 0.0
    %4327 = vmatpush1.msra.mxu0 0.0
    %4328 = vmatprep.subr.mxu0 0.0
    %4329 = vmatpush1.msra.mxu0 0.0
    %4330 = vmatprep.subr.mxu0 0.0
    %4331 = vmatpush1.msra.mxu0 0.0
    %4332 = vmatprep.subr.mxu0 0.0
    %4333 = vmatpush1.msra.mxu0 0.0
    %4334 = vmatprep.subr.mxu0 0.0
    %4335 = vmatpush1.msra.mxu0 0.0
    %4336 = vmatprep.subr.mxu0 0.0
    %4337 = vmatpush1.msra.mxu0 0.0
    %4338 = vmatprep.subr.mxu0 0.0
    %4339 = vmatpush1.msra.mxu0 0.0
    %4340 = vmatprep.subr.mxu0 0.0
    %4341 = vmatpush1.msra.mxu0 0.0
    %4342 = vmatprep.subr.mxu0 0.0
    %4343 = vmatpush1.msra.mxu0 0.0
    %4344 = vmatprep.subr.mxu0 0.0
    %4345 = vmatpush1.msra.mxu0 0.0
    %4346 = vmatprep.subr.mxu0 0.0
    %4347 = vmatpush1.msra.mxu0 0.0
    %4348 = vmatprep.subr.mxu0 0.0
    %4349 = vmatpush1.msra.mxu0 0.0
    %4350 = vmatprep.subr.mxu0 0.0
    %4351 = vmatpush1.msra.mxu0 0.0
    %4352 = vmatprep.mubr.f32.mxu0 0.0
    %v4353 = vand.u32 %v3696, 4294901760
    %4354 = vmatmul.mubr.f32.gmra.mrb[0].mxu0 %v4353
    %v4355 = vpop.f32.mrb[0].mxu0
    %v4356 = vadd.f32 %v4269, %v4355
    %v4357 = vpop.f32.mrb[0].mxu0
    %4358 = vdwg.mxu0
    %v4359 = vld [vmem:[%s4 + $0x1] sm:$0x1]
    %v4360 = vld [vmem:[%s4 + $0x2] sm:$0x1]
    %4361 = vadd.xlane.f32.xlu0 %v4356
    %v4362 = vpop.xlane.xlu0 %4361
    %v4363 = vmul.f32 %v4362, 0.03125
    %v4364 = vsub.f32 %v4356, %v4363
    %v4365 = vsel %vm3676, %v4364, 0.0
    %v4366 = vmul.f32 %v4365, %v4365
    %4367 = vadd.xlane.f32.xlu0 %v4366
    %v4368 = vpop.xlane.xlu0 %4367
    %v4369 = vmul.f32 %v4368, 0.03125
    %v4370 = vadd.f32 %v4369, 1e-05
    %v4371 = vrsqrt.pop %v4370
    %v4372 = vmul.f32 %v4364, %v4371
    %v4373 = vlaneseq
    %v4374 = vshrl.u32 %v4373, 7
    %v4375 = vsub.s32 0, %v4374
    %v4376 = vrot.slane %v4359, %v4375
    %v4377 = vmul.f32 %v4372, %v4376
    %v4378 = vlaneseq
    %v4379 = vshrl.u32 %v4378, 7
    %v4380 = vsub.s32 0, %v4379
    %v4381 = vrot.slane %v4360, %v4380
    %v4382 = vadd.f32 %v4377, %v4381
    %v4383 = vmax.f32 %v4382, 0.0
    %v4384 = vld [vmem:[#allocation8] sm:$0xff]
    %v4385 = vld [vmem:[#allocation8 + $0x8] sm:$0xff]
    %v4386 = vld [vmem:[#allocation8 + $0x10] sm:$0xff]
    %v4387 = vld [vmem:[#allocation8 + $0x18] sm:$0xff]
    %v4388 = vld [vmem:[#allocation8 + $0x20] sm:$0xff]
    %v4389 = vld [vmem:[#allocation8 + $0x28] sm:$0xff]
    %v4390 = vld [vmem:[#allocation8 + $0x30] sm:$0xff]
    %v4391 = vld [vmem:[#allocation8 + $0x38] sm:$0xff]
    %v4392 = vld [vmem:[#allocation8 + $0x40] sm:$0xff]
    %v4393 = vld [vmem:[#allocation8 + $0x48] sm:$0xff]
    %v4394 = vld [vmem:[#allocation8 + $0x50] sm:$0xff]
    %v4395 = vld [vmem:[#allocation8 + $0x58] sm:$0xff]
    %v4396 = vld [vmem:[#allocation8 + $0x60] sm:$0xff]
    %v4397 = vld [vmem:[#allocation8 + $0x68] sm:$0xff]
    %v4398 = vld [vmem:[#allocation8 + $0x70] sm:$0xff]
    %v4399 = vld [vmem:[#allocation8 + $0x78] sm:$0xff]
    %v4400 = vld [vmem:[%s6] sm:$0x1]
    %v4401 = vlaneseq
    %v4402 = vshrl.u32 %v4401, 7
    %v4403 = vsub.s32 0, %v4402
    %v4404 = vrot.slane %v4400, %v4403
    %4405 = vmatprep.subr.mxu0 0.0
    %v4406 = vand.u32 %v4384, 4294901760
    %4407 = vmatpush1.msra.mxu0 %v4406
    %4408 = vmatprep.subr.mxu0 0.0
    %v4409 = vand.u32 %v4385, 4294901760
    %4410 = vmatpush1.msra.mxu0 %v4409
    %4411 = vmatprep.subr.mxu0 0.0
    %v4412 = vand.u32 %v4386, 4294901760
    %4413 = vmatpush1.msra.mxu0 %v4412
    %4414 = vmatprep.subr.mxu0 0.0
    %v4415 = vand.u32 %v4387, 4294901760
    %4416 = vmatpush1.msra.mxu0 %v4415
    %4417 = vmatprep.subr.mxu0 0.0
    %v4418 = vand.u32 %v4388, 4294901760
    %4419 = vmatpush1.msra.mxu0 %v4418
    %4420 = vmatprep.subr.mxu0 0.0
    %v4421 = vand.u32 %v4389, 4294901760
    %4422 = vmatpush1.msra.mxu0 %v4421
    %4423 = vmatprep.subr.mxu0 0.0
    %v4424 = vand.u32 %v4390, 4294901760
    %4425 = vmatpush1.msra.mxu0 %v4424
    %4426 = vmatprep.subr.mxu0 0.0
    %v4427 = vand.u32 %v4391, 4294901760
    %4428 = vmatpush1.msra.mxu0 %v4427
    %4429 = vmatprep.subr.mxu0 0.0
    %v4430 = vand.u32 %v4392, 4294901760
    %4431 = vmatpush1.msra.mxu0 %v4430
    %4432 = vmatprep.subr.mxu0 0.0
    %v4433 = vand.u32 %v4393, 4294901760
    %4434 = vmatpush1.msra.mxu0 %v4433
    %4435 = vmatprep.subr.mxu0 0.0
    %v4436 = vand.u32 %v4394, 4294901760
    %4437 = vmatpush1.msra.mxu0 %v4436
    %4438 = vmatprep.subr.mxu0 0.0
    %v4439 = vand.u32 %v4395, 4294901760
    %4440 = vmatpush1.msra.mxu0 %v4439
    %4441 = vmatprep.subr.mxu0 0.0
    %v4442 = vand.u32 %v4396, 4294901760
    %4443 = vmatpush1.msra.mxu0 %v4442
    %4444 = vmatprep.subr.mxu0 0.0
    %v4445 = vand.u32 %v4397, 4294901760
    %4446 = vmatpush1.msra.mxu0 %v4445
    %4447 = vmatprep.subr.mxu0 0.0
    %v4448 = vand.u32 %v4398, 4294901760
    %4449 = vmatpush1.msra.mxu0 %v4448
    %4450 = vmatprep.subr.mxu0 0.0
    %v4451 = vand.u32 %v4399, 4294901760
    %4452 = vmatpush1.msra.mxu0 %v4451
    %4453 = vmatprep.subr.mxu0 0.0
    %4454 = vmatpush1.msra.mxu0 0.0
    %4455 = vmatprep.subr.mxu0 0.0
    %4456 = vmatpush1.msra.mxu0 0.0
    %4457 = vmatprep.subr.mxu0 0.0
    %4458 = vmatpush1.msra.mxu0 0.0
    %4459 = vmatprep.subr.mxu0 0.0
    %4460 = vmatpush1.msra.mxu0 0.0
    %4461 = vmatprep.subr.mxu0 0.0
    %4462 = vmatpush1.msra.mxu0 0.0
    %4463 = vmatprep.subr.mxu0 0.0
    %4464 = vmatpush1.msra.mxu0 0.0
    %4465 = vmatprep.subr.mxu0 0.0
    %4466 = vmatpush1.msra.mxu0 0.0
    %4467 = vmatprep.subr.mxu0 0.0
    %4468 = vmatpush1.msra.mxu0 0.0
    %4469 = vmatprep.subr.mxu0 0.0
    %4470 = vmatpush1.msra.mxu0 0.0
    %4471 = vmatprep.subr.mxu0 0.0
    %4472 = vmatpush1.msra.mxu0 0.0
    %4473 = vmatprep.subr.mxu0 0.0
    %4474 = vmatpush1.msra.mxu0 0.0
    %4475 = vmatprep.subr.mxu0 0.0
    %4476 = vmatpush1.msra.mxu0 0.0
    %4477 = vmatprep.subr.mxu0 0.0
    %4478 = vmatpush1.msra.mxu0 0.0
    %4479 = vmatprep.subr.mxu0 0.0
    %4480 = vmatpush1.msra.mxu0 0.0
    %4481 = vmatprep.subr.mxu0 0.0
    %4482 = vmatpush1.msra.mxu0 0.0
    %4483 = vmatprep.subr.mxu0 0.0
    %4484 = vmatpush1.msra.mxu0 0.0
    %4485 = vmatprep.mubr.f32.mxu0 0.0
    %v4486 = vand.u32 %v4383, 4294901760
    %v4487 = vsub.f32 %v4383, %v4486
    %v4488 = vand.u32 %v4487, 4294901760
    %v4489 = vsub.f32 %v4487, %v4488
    %v4490 = vand.u32 %v4489, 4294901760
    %4491 = vmatmul.mubr.f32.gmra.mrb[0].mxu0 %v4490
    %v4492 = vpop.f32.mrb[0].mxu0
    %v4493 = vadd.f32 %v4404, %v4492
    %v4494 = vpop.f32.mrb[0].mxu0
    %4495 = vdwg.mxu0
    %4496 = vmatprep.subr.mxu0 0.0
    %v4497 = vand.u32 %v4384, 4294901760
    %v4498 = vsub.f32 %v4384, %v4497
    %v4499 = vand.u32 %v4498, 4294901760
    %v4500 = vsub.f32 %v4498, %v4499
    %v4501 = vand.u32 %v4500, 4294901760
    %4502 = vmatpush1.msra.mxu0 %v4501
    %4503 = vmatprep.subr.mxu0 0.0
    %v4504 = vand.u32 %v4385, 4294901760
    %v4505 = vsub.f32 %v4385, %v4504
    %v4506 = vand.u32 %v4505, 4294901760
    %v4507 = vsub.f32 %v4505, %v4506
    %v4508 = vand.u32 %v4507, 4294901760
    %4509 = vmatpush1.msra.mxu0 %v4508
    %4510 = vmatprep.subr.mxu0 0.0
    %v4511 = vand.u32 %v4386, 4294901760
    %v4512 = vsub.f32 %v4386, %v4511
    %v4513 = vand.u32 %v4512, 4294901760
    %v4514 = vsub.f32 %v4512, %v4513
    %v4515 = vand.u32 %v4514, 4294901760
    %4516 = vmatpush1.msra.mxu0 %v4515
    %4517 = vmatprep.subr.mxu0 0.0
    %v4518 = vand.u32 %v4387, 4294901760
    %v4519 = vsub.f32 %v4387, %v4518
    %v4520 = vand.u32 %v4519, 4294901760
    %v4521 = vsub.f32 %v4519, %v4520
    %v4522 = vand.u32 %v4521, 4294901760
    %4523 = vmatpush1.msra.mxu0 %v4522
    %4524 = vmatprep.subr.mxu0 0.0
    %v4525 = vand.u32 %v4388, 4294901760
    %v4526 = vsub.f32 %v4388, %v4525
    %v4527 = vand.u32 %v4526, 4294901760
    %v4528 = vsub.f32 %v4526, %v4527
    %v4529 = vand.u32 %v4528, 4294901760
    %4530 = vmatpush1.msra.mxu0 %v4529
    %4531 = vmatprep.subr.mxu0 0.0
    %v4532 = vand.u32 %v4389, 4294901760
    %v4533 = vsub.f32 %v4389, %v4532
    %v4534 = vand.u32 %v4533, 4294901760
    %v4535 = vsub.f32 %v4533, %v4534
    %v4536 = vand.u32 %v4535, 4294901760
    %4537 = vmatpush1.msra.mxu0 %v4536
    %4538 = vmatprep.subr.mxu0 0.0
    %v4539 = vand.u32 %v4390, 4294901760
    %v4540 = vsub.f32 %v4390, %v4539
    %v4541 = vand.u32 %v4540, 4294901760
    %v4542 = vsub.f32 %v4540, %v4541
    %v4543 = vand.u32 %v4542, 4294901760
    %4544 = vmatpush1.msra.mxu0 %v4543
    %4545 = vmatprep.subr.mxu0 0.0
    %v4546 = vand.u32 %v4391, 4294901760
    %v4547 = vsub.f32 %v4391, %v4546
    %v4548 = vand.u32 %v4547, 4294901760
    %v4549 = vsub.f32 %v4547, %v4548
    %v4550 = vand.u32 %v4549, 4294901760
    %4551 = vmatpush1.msra.mxu0 %v4550
    %4552 = vmatprep.subr.mxu0 0.0
    %v4553 = vand.u32 %v4392, 4294901760
    %v4554 = vsub.f32 %v4392, %v4553
    %v4555 = vand.u32 %v4554, 4294901760
    %v4556 = vsub.f32 %v4554, %v4555
    %v4557 = vand.u32 %v4556, 4294901760
    %4558 = vmatpush1.msra.mxu0 %v4557
    %4559 = vmatprep.subr.mxu0 0.0
    %v4560 = vand.u32 %v4393, 4294901760
    %v4561 = vsub.f32 %v4393, %v4560
    %v4562 = vand.u32 %v4561, 4294901760
    %v4563 = vsub.f32 %v4561, %v4562
    %v4564 = vand.u32 %v4563, 4294901760
    %4565 = vmatpush1.msra.mxu0 %v4564
    %4566 = vmatprep.subr.mxu0 0.0
    %v4567 = vand.u32 %v4394, 4294901760
    %v4568 = vsub.f32 %v4394, %v4567
    %v4569 = vand.u32 %v4568, 4294901760
    %v4570 = vsub.f32 %v4568, %v4569
    %v4571 = vand.u32 %v4570, 4294901760
    %4572 = vmatpush1.msra.mxu0 %v4571
    %4573 = vmatprep.subr.mxu0 0.0
    %v4574 = vand.u32 %v4395, 4294901760
    %v4575 = vsub.f32 %v4395, %v4574
    %v4576 = vand.u32 %v4575, 4294901760
    %v4577 = vsub.f32 %v4575, %v4576
    %v4578 = vand.u32 %v4577, 4294901760
    %4579 = vmatpush1.msra.mxu0 %v4578
    %4580 = vmatprep.subr.mxu0 0.0
    %v4581 = vand.u32 %v4396, 4294901760
    %v4582 = vsub.f32 %v4396, %v4581
    %v4583 = vand.u32 %v4582, 4294901760
    %v4584 = vsub.f32 %v4582, %v4583
    %v4585 = vand.u32 %v4584, 4294901760
    %4586 = vmatpush1.msra.mxu0 %v4585
    %4587 = vmatprep.subr.mxu0 0.0
    %v4588 = vand.u32 %v4397, 4294901760
    %v4589 = vsub.f32 %v4397, %v4588
    %v4590 = vand.u32 %v4589, 4294901760
    %v4591 = vsub.f32 %v4589, %v4590
    %v4592 = vand.u32 %v4591, 4294901760
    %4593 = vmatpush1.msra.mxu0 %v4592
    %4594 = vmatprep.subr.mxu0 0.0
    %v4595 = vand.u32 %v4398, 4294901760
    %v4596 = vsub.f32 %v4398, %v4595
    %v4597 = vand.u32 %v4596, 4294901760
    %v4598 = vsub.f32 %v4596, %v4597
    %v4599 = vand.u32 %v4598, 4294901760
    %4600 = vmatpush1.msra.mxu0 %v4599
    %4601 = vmatprep.subr.mxu0 0.0
    %v4602 = vand.u32 %v4399, 4294901760
    %v4603 = vsub.f32 %v4399, %v4602
    %v4604 = vand.u32 %v4603, 4294901760
    %v4605 = vsub.f32 %v4603, %v4604
    %v4606 = vand.u32 %v4605, 4294901760
    %4607 = vmatpush1.msra.mxu0 %v4606
    %4608 = vmatprep.subr.mxu0 0.0
    %4609 = vmatpush1.msra.mxu0 0.0
    %4610 = vmatprep.subr.mxu0 0.0
    %4611 = vmatpush1.msra.mxu0 0.0
    %4612 = vmatprep.subr.mxu0 0.0
    %4613 = vmatpush1.msra.mxu0 0.0
    %4614 = vmatprep.subr.mxu0 0.0
    %4615 = vmatpush1.msra.mxu0 0.0
    %4616 = vmatprep.subr.mxu0 0.0
    %4617 = vmatpush1.msra.mxu0 0.0
    %4618 = vmatprep.subr.mxu0 0.0
    %4619 = vmatpush1.msra.mxu0 0.0
    %4620 = vmatprep.subr.mxu0 0.0
    %4621 = vmatpush1.msra.mxu0 0.0
    %4622 = vmatprep.subr.mxu0 0.0
    %4623 = vmatpush1.msra.mxu0 0.0
    %4624 = vmatprep.subr.mxu0 0.0
    %4625 = vmatpush1.msra.mxu0 0.0
    %4626 = vmatprep.subr.mxu0 0.0
    %4627 = vmatpush1.msra.mxu0 0.0
    %4628 = vmatprep.subr.mxu0 0.0
    %4629 = vmatpush1.msra.mxu0 0.0
    %4630 = vmatprep.subr.mxu0 0.0
    %4631 = vmatpush1.msra.mxu0 0.0
    %4632 = vmatprep.subr.mxu0 0.0
    %4633 = vmatpush1.msra.mxu0 0.0
    %4634 = vmatprep.subr.mxu0 0.0
    %4635 = vmatpush1.msra.mxu0 0.0
    %4636 = vmatprep.subr.mxu0 0.0
    %4637 = vmatpush1.msra.mxu0 0.0
    %4638 = vmatprep.subr.mxu0 0.0
    %4639 = vmatpush1.msra.mxu0 0.0
    %4640 = vmatprep.mubr.f32.mxu0 0.0
    %v4641 = vand.u32 %v4383, 4294901760
    %4642 = vmatmul.mubr.f32.gmra.mrb[0].mxu0 %v4641
    %v4643 = vpop.f32.mrb[0].mxu0
    %v4644 = vadd.f32 %v4493, %v4643
    %v4645 = vpop.f32.mrb[0].mxu0
    %4646 = vdwg.mxu0
    %4647 = vmatprep.subr.mxu0 0.0
    %v4648 = vand.u32 %v4384, 4294901760
    %v4649 = vsub.f32 %v4384, %v4648
    %4650 = vmatpush1.msra.mxu0 %v4649
    %4651 = vmatprep.subr.mxu0 0.0
    %v4652 = vand.u32 %v4385, 4294901760
    %v4653 = vsub.f32 %v4385, %v4652
    %4654 = vmatpush1.msra.mxu0 %v4653
    %4655 = vmatprep.subr.mxu0 0.0
    %v4656 = vand.u32 %v4386, 4294901760
    %v4657 = vsub.f32 %v4386, %v4656
    %4658 = vmatpush1.msra.mxu0 %v4657
    %4659 = vmatprep.subr.mxu0 0.0
    %v4660 = vand.u32 %v4387, 4294901760
    %v4661 = vsub.f32 %v4387, %v4660
    %4662 = vmatpush1.msra.mxu0 %v4661
    %4663 = vmatprep.subr.mxu0 0.0
    %v4664 = vand.u32 %v4388, 4294901760
    %v4665 = vsub.f32 %v4388, %v4664
    %4666 = vmatpush1.msra.mxu0 %v4665
    %4667 = vmatprep.subr.mxu0 0.0
    %v4668 = vand.u32 %v4389, 4294901760
    %v4669 = vsub.f32 %v4389, %v4668
    %4670 = vmatpush1.msra.mxu0 %v4669
    %4671 = vmatprep.subr.mxu0 0.0
    %v4672 = vand.u32 %v4390, 4294901760
    %v4673 = vsub.f32 %v4390, %v4672
    %4674 = vmatpush1.msra.mxu0 %v4673
    %4675 = vmatprep.subr.mxu0 0.0
    %v4676 = vand.u32 %v4391, 4294901760
    %v4677 = vsub.f32 %v4391, %v4676
    %4678 = vmatpush1.msra.mxu0 %v4677
    %4679 = vmatprep.subr.mxu0 0.0
    %v4680 = vand.u32 %v4392, 4294901760
    %v4681 = vsub.f32 %v4392, %v4680
    %4682 = vmatpush1.msra.mxu0 %v4681
    %4683 = vmatprep.subr.mxu0 0.0
    %v4684 = vand.u32 %v4393, 4294901760
    %v4685 = vsub.f32 %v4393, %v4684
    %4686 = vmatpush1.msra.mxu0 %v4685
    %4687 = vmatprep.subr.mxu0 0.0
    %v4688 = vand.u32 %v4394, 4294901760
    %v4689 = vsub.f32 %v4394, %v4688
    %4690 = vmatpush1.msra.mxu0 %v4689
    %4691 = vmatprep.subr.mxu0 0.0
    %v4692 = vand.u32 %v4395, 4294901760
    %v4693 = vsub.f32 %v4395, %v4692
    %4694 = vmatpush1.msra.mxu0 %v4693
    %4695 = vmatprep.subr.mxu0 0.0
    %v4696 = vand.u32 %v4396, 4294901760
    %v4697 = vsub.f32 %v4396, %v4696
    %4698 = vmatpush1.msra.mxu0 %v4697
    %4699 = vmatprep.subr.mxu0 0.0
    %v4700 = vand.u32 %v4397, 4294901760
    %v4701 = vsub.f32 %v4397, %v4700
    %4702 = vmatpush1.msra.mxu0 %v4701
    %4703 = vmatprep.subr.mxu0 0.0
    %v4704 = vand.u32 %v4398, 4294901760
    %v4705 = vsub.f32 %v4398, %v4704
    %4706 = vmatpush1.msra.mxu0 %v4705
    %4707 = vmatprep.subr.mxu0 0.0
    %v4708 = vand.u32 %v4399, 4294901760
    %v4709 = vsub.f32 %v4399, %v4708
    %4710 = vmatpush1.msra.mxu0 %v4709
    %4711 = vmatprep.subr.mxu0 0.0
    %4712 = vmatpush1.msra.mxu0 0.0
    %4713 = vmatprep.subr.mxu0 0.0
    %4714 = vmatpush1.msra.mxu0 0.0
    %4715 = vmatprep.subr.mxu0 0.0
    %4716 = vmatpush1.msra.mxu0 0.0
    %4717 = vmatprep.subr.mxu0 0.0
    %4718 = vmatpush1.msra.mxu0 0.0
    %4719 = vmatprep.subr.mxu0 0.0
    %4720 = vmatpush1.msra.mxu0 0.0
    %4721 = vmatprep.subr.mxu0 0.0
    %4722 = vmatpush1.msra.mxu0 0.0
    %4723 = vmatprep.subr.mxu0 0.0
    %4724 = vmatpush1.msra.mxu0 0.0
    %4725 = vmatprep.subr.mxu0 0.0
    %4726 = vmatpush1.msra.mxu0 0.0
    %4727 = vmatprep.subr.mxu0 0.0
    %4728 = vmatpush1.msra.mxu0 0.0
    %4729 = vmatprep.subr.mxu0 0.0
    %4730 = vmatpush1.msra.mxu0 0.0
    %4731 = vmatprep.subr.mxu0 0.0
    %4732 = vmatpush1.msra.mxu0 0.0
    %4733 = vmatprep.subr.mxu0 0.0
    %4734 = vmatpush1.msra.mxu0 0.0
    %4735 = vmatprep.subr.mxu0 0.0
    %4736 = vmatpush1.msra.mxu0 0.0
    %4737 = vmatprep.subr.mxu0 0.0
    %4738 = vmatpush1.msra.mxu0 0.0
    %4739 = vmatprep.subr.mxu0 0.0
    %4740 = vmatpush1.msra.mxu0 0.0
    %4741 = vmatprep.subr.mxu0 0.0
    %4742 = vmatpush1.msra.mxu0 0.0
    %4743 = vmatprep.mubr.f32.mxu0 0.0
    %v4744 = vand.u32 %v4383, 4294901760
    %v4745 = vsub.f32 %v4383, %v4744
    %4746 = vmatmul.mubr.f32.gmra.mrb[0].mxu0 %v4745
    %v4747 = vpop.f32.mrb[0].mxu0
    %v4748 = vadd.f32 %v4644, %v4747
    %v4749 = vpop.f32.mrb[0].mxu0
    %4750 = vdwg.mxu0
    %4751 = vmatprep.subr.mxu0 0.0
    %v4752 = vand.u32 %v4384, 4294901760
    %4753 = vmatpush1.msra.mxu0 %v4752
    %4754 = vmatprep.subr.mxu0 0.0
    %v4755 = vand.u32 %v4385, 4294901760
    %4756 = vmatpush1.msra.mxu0 %v4755
    %4757 = vmatprep.subr.mxu0 0.0
    %v4758 = vand.u32 %v4386, 4294901760
    %4759 = vmatpush1.msra.mxu0 %v4758
    %4760 = vmatprep.subr.mxu0 0.0
    %v4761 = vand.u32 %v4387, 4294901760
    %4762 = vmatpush1.msra.mxu0 %v4761
    %4763 = vmatprep.subr.mxu0 0.0
    %v4764 = vand.u32 %v4388, 4294901760
    %4765 = vmatpush1.msra.mxu0 %v4764
    %4766 = vmatprep.subr.mxu0 0.0
    %v4767 = vand.u32 %v4389, 4294901760
    %4768 = vmatpush1.msra.mxu0 %v4767
    %4769 = vmatprep.subr.mxu0 0.0
    %v4770 = vand.u32 %v4390, 4294901760
    %4771 = vmatpush1.msra.mxu0 %v4770
    %4772 = vmatprep.subr.mxu0 0.0
    %v4773 = vand.u32 %v4391, 4294901760
    %4774 = vmatpush1.msra.mxu0 %v4773
    %4775 = vmatprep.subr.mxu0 0.0
    %v4776 = vand.u32 %v4392, 4294901760
    %4777 = vmatpush1.msra.mxu0 %v4776
    %4778 = vmatprep.subr.mxu0 0.0
    %v4779 = vand.u32 %v4393, 4294901760
    %4780 = vmatpush1.msra.mxu0 %v4779
    %4781 = vmatprep.subr.mxu0 0.0
    %v4782 = vand.u32 %v4394, 4294901760
    %4783 = vmatpush1.msra.mxu0 %v4782
    %4784 = vmatprep.subr.mxu0 0.0
    %v4785 = vand.u32 %v4395, 4294901760
    %4786 = vmatpush1.msra.mxu0 %v4785
    %4787 = vmatprep.subr.mxu0 0.0
    %v4788 = vand.u32 %v4396, 4294901760
    %4789 = vmatpush1.msra.mxu0 %v4788
    %4790 = vmatprep.subr.mxu0 0.0
    %v4791 = vand.u32 %v4397, 4294901760
    %4792 = vmatpush1.msra.mxu0 %v4791
    %4793 = vmatprep.subr.mxu0 0.0
    %v4794 = vand.u32 %v4398, 4294901760
    %4795 = vmatpush1.msra.mxu0 %v4794
    %4796 = vmatprep.subr.mxu0 0.0
    %v4797 = vand.u32 %v4399, 4294901760
    %4798 = vmatpush1.msra.mxu0 %v4797
    %4799 = vmatprep.subr.mxu0 0.0
    %4800 = vmatpush1.msra.mxu0 0.0
    %4801 = vmatprep.subr.mxu0 0.0
    %4802 = vmatpush1.msra.mxu0 0.0
    %4803 = vmatprep.subr.mxu0 0.0
    %4804 = vmatpush1.msra.mxu0 0.0
    %4805 = vmatprep.subr.mxu0 0.0
    %4806 = vmatpush1.msra.mxu0 0.0
    %4807 = vmatprep.subr.mxu0 0.0
    %4808 = vmatpush1.msra.mxu0 0.0
    %4809 = vmatprep.subr.mxu0 0.0
    %4810 = vmatpush1.msra.mxu0 0.0
    %4811 = vmatprep.subr.mxu0 0.0
    %4812 = vmatpush1.msra.mxu0 0.0
    %4813 = vmatprep.subr.mxu0 0.0
    %4814 = vmatpush1.msra.mxu0 0.0
    %4815 = vmatprep.subr.mxu0 0.0
    %4816 = vmatpush1.msra.mxu0 0.0
    %4817 = vmatprep.subr.mxu0 0.0
    %4818 = vmatpush1.msra.mxu0 0.0
    %4819 = vmatprep.subr.mxu0 0.0
    %4820 = vmatpush1.msra.mxu0 0.0
    %4821 = vmatprep.subr.mxu0 0.0
    %4822 = vmatpush1.msra.mxu0 0.0
    %4823 = vmatprep.subr.mxu0 0.0
    %4824 = vmatpush1.msra.mxu0 0.0
    %4825 = vmatprep.subr.mxu0 0.0
    %4826 = vmatpush1.msra.mxu0 0.0
    %4827 = vmatprep.subr.mxu0 0.0
    %4828 = vmatpush1.msra.mxu0 0.0
    %4829 = vmatprep.subr.mxu0 0.0
    %4830 = vmatpush1.msra.mxu0 0.0
    %4831 = vmatprep.mubr.f32.mxu0 0.0
    %v4832 = vand.u32 %v4383, 4294901760
    %v4833 = vsub.f32 %v4383, %v4832
    %v4834 = vand.u32 %v4833, 4294901760
    %4835 = vmatmul.mubr.f32.gmra.mrb[0].mxu0 %v4834
    %v4836 = vpop.f32.mrb[0].mxu0
    %v4837 = vadd.f32 %v4748, %v4836
    %v4838 = vpop.f32.mrb[0].mxu0
    %4839 = vdwg.mxu0
    %4840 = vmatprep.subr.mxu0 0.0
    %v4841 = vand.u32 %v4384, 4294901760
    %v4842 = vsub.f32 %v4384, %v4841
    %v4843 = vand.u32 %v4842, 4294901760
    %4844 = vmatpush1.msra.mxu0 %v4843
    %4845 = vmatprep.subr.mxu0 0.0
    %v4846 = vand.u32 %v4385, 4294901760
    %v4847 = vsub.f32 %v4385, %v4846
    %v4848 = vand.u32 %v4847, 4294901760
    %4849 = vmatpush1.msra.mxu0 %v4848
    %4850 = vmatprep.subr.mxu0 0.0
    %v4851 = vand.u32 %v4386, 4294901760
    %v4852 = vsub.f32 %v4386, %v4851
    %v4853 = vand.u32 %v4852, 4294901760
    %4854 = vmatpush1.msra.mxu0 %v4853
    %4855 = vmatprep.subr.mxu0 0.0
    %v4856 = vand.u32 %v4387, 4294901760
    %v4857 = vsub.f32 %v4387, %v4856
    %v4858 = vand.u32 %v4857, 4294901760
    %4859 = vmatpush1.msra.mxu0 %v4858
    %4860 = vmatprep.subr.mxu0 0.0
    %v4861 = vand.u32 %v4388, 4294901760
    %v4862 = vsub.f32 %v4388, %v4861
    %v4863 = vand.u32 %v4862, 4294901760
    %4864 = vmatpush1.msra.mxu0 %v4863
    %4865 = vmatprep.subr.mxu0 0.0
    %v4866 = vand.u32 %v4389, 4294901760
    %v4867 = vsub.f32 %v4389, %v4866
    %v4868 = vand.u32 %v4867, 4294901760
    %4869 = vmatpush1.msra.mxu0 %v4868
    %4870 = vmatprep.subr.mxu0 0.0
    %v4871 = vand.u32 %v4390, 4294901760
    %v4872 = vsub.f32 %v4390, %v4871
    %v4873 = vand.u32 %v4872, 4294901760
    %4874 = vmatpush1.msra.mxu0 %v4873
    %4875 = vmatprep.subr.mxu0 0.0
    %v4876 = vand.u32 %v4391, 4294901760
    %v4877 = vsub.f32 %v4391, %v4876
    %v4878 = vand.u32 %v4877, 4294901760
    %4879 = vmatpush1.msra.mxu0 %v4878
    %4880 = vmatprep.subr.mxu0 0.0
    %v4881 = vand.u32 %v4392, 4294901760
    %v4882 = vsub.f32 %v4392, %v4881
    %v4883 = vand.u32 %v4882, 4294901760
    %4884 = vmatpush1.msra.mxu0 %v4883
    %4885 = vmatprep.subr.mxu0 0.0
    %v4886 = vand.u32 %v4393, 4294901760
    %v4887 = vsub.f32 %v4393, %v4886
    %v4888 = vand.u32 %v4887, 4294901760
    %4889 = vmatpush1.msra.mxu0 %v4888
    %4890 = vmatprep.subr.mxu0 0.0
    %v4891 = vand.u32 %v4394, 4294901760
    %v4892 = vsub.f32 %v4394, %v4891
    %v4893 = vand.u32 %v4892, 4294901760
    %4894 = vmatpush1.msra.mxu0 %v4893
    %4895 = vmatprep.subr.mxu0 0.0
    %v4896 = vand.u32 %v4395, 4294901760
    %v4897 = vsub.f32 %v4395, %v4896
    %v4898 = vand.u32 %v4897, 4294901760
    %4899 = vmatpush1.msra.mxu0 %v4898
    %4900 = vmatprep.subr.mxu0 0.0
    %v4901 = vand.u32 %v4396, 4294901760
    %v4902 = vsub.f32 %v4396, %v4901
    %v4903 = vand.u32 %v4902, 4294901760
    %4904 = vmatpush1.msra.mxu0 %v4903
    %4905 = vmatprep.subr.mxu0 0.0
    %v4906 = vand.u32 %v4397, 4294901760
    %v4907 = vsub.f32 %v4397, %v4906
    %v4908 = vand.u32 %v4907, 4294901760
    %4909 = vmatpush1.msra.mxu0 %v4908
    %4910 = vmatprep.subr.mxu0 0.0
    %v4911 = vand.u32 %v4398, 4294901760
    %v4912 = vsub.f32 %v4398, %v4911
    %v4913 = vand.u32 %v4912, 4294901760
    %4914 = vmatpush1.msra.mxu0 %v4913
    %4915 = vmatprep.subr.mxu0 0.0
    %v4916 = vand.u32 %v4399, 4294901760
    %v4917 = vsub.f32 %v4399, %v4916
    %v4918 = vand.u32 %v4917, 4294901760
    %4919 = vmatpush1.msra.mxu0 %v4918
    %4920 = vmatprep.subr.mxu0 0.0
    %4921 = vmatpush1.msra.mxu0 0.0
    %4922 = vmatprep.subr.mxu0 0.0
    %4923 = vmatpush1.msra.mxu0 0.0
    %4924 = vmatprep.subr.mxu0 0.0
    %4925 = vmatpush1.msra.mxu0 0.0
    %4926 = vmatprep.subr.mxu0 0.0
    %4927 = vmatpush1.msra.mxu0 0.0
    %4928 = vmatprep.subr.mxu0 0.0
    %4929 = vmatpush1.msra.mxu0 0.0
    %4930 = vmatprep.subr.mxu0 0.0
    %4931 = vmatpush1.msra.mxu0 0.0
    %4932 = vmatprep.subr.mxu0 0.0
    %4933 = vmatpush1.msra.mxu0 0.0
    %4934 = vmatprep.subr.mxu0 0.0
    %4935 = vmatpush1.msra.mxu0 0.0
    %4936 = vmatprep.subr.mxu0 0.0
    %4937 = vmatpush1.msra.mxu0 0.0
    %4938 = vmatprep.subr.mxu0 0.0
    %4939 = vmatpush1.msra.mxu0 0.0
    %4940 = vmatprep.subr.mxu0 0.0
    %4941 = vmatpush1.msra.mxu0 0.0
    %4942 = vmatprep.subr.mxu0 0.0
    %4943 = vmatpush1.msra.mxu0 0.0
    %4944 = vmatprep.subr.mxu0 0.0
    %4945 = vmatpush1.msra.mxu0 0.0
    %4946 = vmatprep.subr.mxu0 0.0
    %4947 = vmatpush1.msra.mxu0 0.0
    %4948 = vmatprep.subr.mxu0 0.0
    %4949 = vmatpush1.msra.mxu0 0.0
    %4950 = vmatprep.subr.mxu0 0.0
    %4951 = vmatpush1.msra.mxu0 0.0
    %4952 = vmatprep.mubr.f32.mxu0 0.0
    %v4953 = vand.u32 %v4383, 4294901760
    %4954 = vmatmul.mubr.f32.gmra.mrb[0].mxu0 %v4953
    %v4955 = vpop.f32.mrb[0].mxu0
    %v4956 = vadd.f32 %v4837, %v4955
    %v4957 = vpop.f32.mrb[0].mxu0
    %4958 = vdwg.mxu0
    %4959 = vmatprep.subr.mxu0 0.0
    %v4960 = vand.u32 %v4384, 4294901760
    %4961 = vmatpush1.msra.mxu0 %v4960
    %4962 = vmatprep.subr.mxu0 0.0
    %v4963 = vand.u32 %v4385, 4294901760
    %4964 = vmatpush1.msra.mxu0 %v4963
    %4965 = vmatprep.subr.mxu0 0.0
    %v4966 = vand.u32 %v4386, 4294901760
    %4967 = vmatpush1.msra.mxu0 %v4966
    %4968 = vmatprep.subr.mxu0 0.0
    %v4969 = vand.u32 %v4387, 4294901760
    %4970 = vmatpush1.msra.mxu0 %v4969
    %4971 = vmatprep.subr.mxu0 0.0
    %v4972 = vand.u32 %v4388, 4294901760
    %4973 = vmatpush1.msra.mxu0 %v4972
    %4974 = vmatprep.subr.mxu0 0.0
    %v4975 = vand.u32 %v4389, 4294901760
    %4976 = vmatpush1.msra.mxu0 %v4975
    %4977 = vmatprep.subr.mxu0 0.0
    %v4978 = vand.u32 %v4390, 4294901760
    %4979 = vmatpush1.msra.mxu0 %v4978
    %4980 = vmatprep.subr.mxu0 0.0
    %v4981 = vand.u32 %v4391, 4294901760
    %4982 = vmatpush1.msra.mxu0 %v4981
    %4983 = vmatprep.subr.mxu0 0.0
    %v4984 = vand.u32 %v4392, 4294901760
    %4985 = vmatpush1.msra.mxu0 %v4984
    %4986 = vmatprep.subr.mxu0 0.0
    %v4987 = vand.u32 %v4393, 4294901760
    %4988 = vmatpush1.msra.mxu0 %v4987
    %4989 = vmatprep.subr.mxu0 0.0
    %v4990 = vand.u32 %v4394, 4294901760
    %4991 = vmatpush1.msra.mxu0 %v4990
    %4992 = vmatprep.subr.mxu0 0.0
    %v4993 = vand.u32 %v4395, 4294901760
    %4994 = vmatpush1.msra.mxu0 %v4993
    %4995 = vmatprep.subr.mxu0 0.0
    %v4996 = vand.u32 %v4396, 4294901760
    %4997 = vmatpush1.msra.mxu0 %v4996
    %4998 = vmatprep.subr.mxu0 0.0
    %v4999 = vand.u32 %v4397, 4294901760
    %5000 = vmatpush1.msra.mxu0 %v4999
    %5001 = vmatprep.subr.mxu0 0.0
    %v5002 = vand.u32 %v4398, 4294901760
    %5003 = vmatpush1.msra.mxu0 %v5002
    %5004 = vmatprep.subr.mxu0 0.0
    %v5005 = vand.u32 %v4399, 4294901760
    %5006 = vmatpush1.msra.mxu0 %v5005
    %5007 = vmatprep.subr.mxu0 0.0
    %5008 = vmatpush1.msra.mxu0 0.0
    %5009 = vmatprep.subr.mxu0 0.0
    %5010 = vmatpush1.msra.mxu0 0.0
    %5011 = vmatprep.subr.mxu0 0.0
    %5012 = vmatpush1.msra.mxu0 0.0
    %5013 = vmatprep.subr.mxu0 0.0
    %5014 = vmatpush1.msra.mxu0 0.0
    %5015 = vmatprep.subr.mxu0 0.0
    %5016 = vmatpush1.msra.mxu0 0.0
    %5017 = vmatprep.subr.mxu0 0.0
    %5018 = vmatpush1.msra.mxu0 0.0
    %5019 = vmatprep.subr.mxu0 0.0
    %5020 = vmatpush1.msra.mxu0 0.0
    %5021 = vmatprep.subr.mxu0 0.0
    %5022 = vmatpush1.msra.mxu0 0.0
    %5023 = vmatprep.subr.mxu0 0.0
    %5024 = vmatpush1.msra.mxu0 0.0
    %5025 = vmatprep.subr.mxu0 0.0
    %5026 = vmatpush1.msra.mxu0 0.0
    %5027 = vmatprep.subr.mxu0 0.0
    %5028 = vmatpush1.msra.mxu0 0.0
    %5029 = vmatprep.subr.mxu0 0.0
    %5030 = vmatpush1.msra.mxu0 0.0
    %5031 = vmatprep.subr.mxu0 0.0
    %5032 = vmatpush1.msra.mxu0 0.0
    %5033 = vmatprep.subr.mxu0 0.0
    %5034 = vmatpush1.msra.mxu0 0.0
    %5035 = vmatprep.subr.mxu0 0.0
    %5036 = vmatpush1.msra.mxu0 0.0
    %5037 = vmatprep.subr.mxu0 0.0
    %5038 = vmatpush1.msra.mxu0 0.0
    %5039 = vmatprep.mubr.f32.mxu0 0.0
    %v5040 = vand.u32 %v4383, 4294901760
    %5041 = vmatmul.mubr.f32.gmra.mrb[0].mxu0 %v5040
    %v5042 = vpop.f32.mrb[0].mxu0
    %v5043 = vadd.f32 %v4956, %v5042
    %v5044 = vpop.f32.mrb[0].mxu0
    %5045 = vdwg.mxu0
    %5046 = vst [vmem:[#allocation10] sm:$0xff] %v5043
    // Predicated region
    $region46: #{tpu_custom_call.1} parent=1 // pred_check
      _
    $region47: #{tpu_custom_call.1} parent=1 // pred_check_branch
      %5048 = sbr.rel (0) target = $region49
    $region48: #{tpu_custom_call.1} parent=1 // pred_region
      %s5050 = ssub.s32 128, 128
      %5051 = vsyncadd [#allocation4], %s5050
      %s5053 = sshll.u32 [#allocation10], 4
      %s5054 = int_to_ptr.vmem [resolvable:$true] %s5053
      %5056 = dma.vmem_to_hbm [thread:$0]  %s5054, 128, %s7, [#allocation4]
    $region49: #{tpu_custom_call.1} parent=1 // pred_fallthru
      _
    // Predicated region
    $region50: #{tpu_custom_call.1} parent=1 // pred_check
      _
    $region51: #{tpu_custom_call.1} parent=1 // pred_check_branch
      %5058 = sbr.rel (0) target = $region53
    $region52: #{tpu_custom_call.1} parent=1 // pred_region
      %5059 = dma.done [#allocation4], 128
    $region53: #{tpu_custom_call.1} parent=1 // pred_fallthru
      _
    %5060 = vsyncpa [#allocation3], 1
    %5061 = vsyncpa [#allocation6], 1
    %5062 = vsyncpa [#allocation9], 1
    %5063 = vsyncpa [#allocation4], 1

// kernel: tpu_custom_call.1
$region0: #{tpu_custom_call.1}
  #allocation0 [shape = 'u32[]', space=smem, size = 0x4, offset = 0x4, fixed_abs, tag = 'smem constant byte address 0x4 - core index']
  #allocation1 [shape = 'u32[144,128]{1,0:T(1,128)}', space=vmem, size = 0x12000, scoped, tag = 'internal scratch']
  %s0 = inlined_call_operand.hbm [shape: f32[8,1024], index: 0, kind: input, shape index: {}]
  %s1 = inlined_call_operand.hbm [shape: f32[1024,128], index: 1, kind: input, shape index: {}]
  %s2 = inlined_call_operand.vmem [shape: f32[3,128], index: 2, kind: input, shape index: {}]
  %s3 = inlined_call_operand.hbm [shape: f32[128,128], index: 3, kind: input, shape index: {}]
  %s4 = inlined_call_operand.vmem [shape: f32[3,128], index: 4, kind: input, shape index: {}]
  %s5 = inlined_call_operand.hbm [shape: f32[128,128], index: 5, kind: input, shape index: {}]
  %s6 = inlined_call_operand.vmem [shape: f32[3,128], index: 6, kind: input, shape index: {}]
  %s7 = inlined_call_operand.hbm [shape: f32[8,128], index: 7, kind: output, shape index: {}]
  %s8 = sld [smem:[#allocation0]]
  $region54: #{tpu_custom_call.1} parent=0
    _
  %s10 = ssub.s32 1, %s8
  %s11 = scalar_select 0, %s10, %s8
  $region1: #{tpu_custom_call.1} parent=0
    #allocation2 [shape = 'u8[32768]{0}', space=vmem, size = 0x8000, scoped, tag = 'input window, operand 0, single buffered']
    #allocation3 [shape = 's32[1]{0}', space=sflag, size = 0x4, scoped, tag = 'scoped memory for tpu_custom_call.1']
    #allocation4 [shape = 's32[1]{0}', space=sflag, size = 0x4, scoped, tag = 'scoped memory for tpu_custom_call.1']
    #allocation5 [shape = 'u8[524288]{0}', space=vmem, size = 0x80000, scoped, tag = 'input window, operand 1, single buffered']
    #allocation6 [shape = 's32[1]{0}', space=sflag, size = 0x4, scoped, tag = 'scoped memory for tpu_custom_call.1']
    #allocation7 [shape = 'u8[65536]{0}', space=vmem, size = 0x10000, scoped, tag = 'input window, operand 3, single buffered']
    #allocation8 [shape = 'u8[65536]{0}', space=vmem, size = 0x10000, scoped, tag = 'input window, operand 5, single buffered']
    #allocation9 [shape = 's32[1]{0}', space=sflag, size = 0x4, scoped, tag = 'scoped memory for tpu_custom_call.1']
    #allocation10 [shape = 'u8[4096]{0}', space=vmem, size = 0x1000, scoped, tag = 'output window, operand 0, single buffered']
    %12 = vsyncpa [#allocation3], 0
    %13 = vsyncpa [#allocation6], 0
    %14 = vsyncpa [#allocation9], 0
    %15 = vsyncpa [#allocation4], 0
    // Predicated region
    $region2: #{tpu_custom_call.1} parent=1 // pred_check
      _
    $region3: #{tpu_custom_call.1} parent=1 // pred_check_branch
      %17 = sbr.rel (0) target = $region5
    $region4: #{tpu_custom_call.1} parent=1 // pred_region
      %s19 = ssub.s32 1024, 1024
      %20 = vsyncadd [#allocation3], %s19
      %s22 = sshll.u32 [#allocation2], 4
      %s23 = int_to_ptr.vmem [resolvable:$true] %s22
      %25 = dma.hbm_to_vmem [thread:$0]  %s0, 1024, %s23, [#allocation3]
    $region5: #{tpu_custom_call.1} parent=1 // pred_fallthru
      _
    // Predicated region
    $region6: #{tpu_custom_call.1} parent=1 // pred_check
      _
    $region7: #{tpu_custom_call.1} parent=1 // pred_check_branch
      %27 = sbr.rel (0) target = $region9
    $region8: #{tpu_custom_call.1} parent=1 // pred_region
      %s29 = ssub.s32 16384, 16384
      %30 = vsyncadd [#allocation6], %s29
      %s31 = sshll.u32 [#allocation5], 4
      %s32 = int_to_ptr.vmem [resolvable:$true] %s31
      %37 = dma.hbm_to_vmem [thread:$0]  %s1, 16384, %s32, [#allocation6], 128, 128, 8
    $region9: #{tpu_custom_call.1} parent=1 // pred_fallthru
      _
    // Predicated region
    $region10: #{tpu_custom_call.1} parent=1 // pred_check
      _
    $region11: #{tpu_custom_call.1} parent=1 // pred_check_branch
      %39 = sbr.rel (0) target = $region13
    $region12: #{tpu_custom_call.1} parent=1 // pred_region
      _
    $region13: #{tpu_custom_call.1} parent=1 // pred_fallthru
      _
    // Predicated region
    $region14: #{tpu_custom_call.1} parent=1 // pred_check
      _
    $region15: #{tpu_custom_call.1} parent=1 // pred_check_branch
      %41 = sbr.rel (0) target = $region17
    $region16: #{tpu_custom_call.1} parent=1 // pred_region
      %s43 = ssub.s32 2048, 2048
      %44 = vsyncadd [#allocation6], %s43
      %s45 = sshll.u32 [#allocation7], 4
      %s46 = int_to_ptr.vmem [resolvable:$true] %s45
      %51 = dma.hbm_to_vmem [thread:$0]  %s3, 2048, %s46, [#allocation6], 128, 128, 8
    $region17: #{tpu_custom_call.1} parent=1 // pred_fallthru
      _
    // Predicated region
    $region18: #{tpu_custom_call.1} parent=1 // pred_check
      _
    $region19: #{tpu_custom_call.1} parent=1 // pred_check_branch
      %53 = sbr.rel (0) target = $region21
    $region20: #{tpu_custom_call.1} parent=1 // pred_region
      _
    $region21: #{tpu_custom_call.1} parent=1 // pred_fallthru
      _
    // Predicated region
    $region22: #{tpu_custom_call.1} parent=1 // pred_check
      _
    $region23: #{tpu_custom_call.1} parent=1 // pred_check_branch
      %55 = sbr.rel (0) target = $region25
    $region24: #{tpu_custom_call.1} parent=1 // pred_region
      %s57 = ssub.s32 2048, 2048
      %58 = vsyncadd [#allocation9], %s57
      %s59 = sshll.u32 [#allocation8], 4
      %s60 = int_to_ptr.vmem [resolvable:$true] %s59
      %65 = dma.hbm_to_vmem [thread:$0]  %s5, 2048, %s60, [#allocation9], 128, 128, 8
    $region25: #{tpu_custom_call.1} parent=1 // pred_fallthru
      _
    // Predicated region
    $region26: #{tpu_custom_call.1} parent=1 // pred_check
      _
    $region27: #{tpu_custom_call.1} parent=1 // pred_check_branch
      %67 = sbr.rel (0) target = $region29
    $region28: #{tpu_custom_call.1} parent=1 // pred_region
      _
    $region29: #{tpu_custom_call.1} parent=1 // pred_fallthru
      _
    // Predicated region
    $region30: #{tpu_custom_call.1} parent=1 // pred_check
      _
    $region31: #{tpu_custom_call.1} parent=1 // pred_check_branch
      %69 = sbr.rel (0) target = $region33
    $region32: #{tpu_custom_call.1} parent=1 // pred_region
      %70 = dma.done [#allocation3], 1024
    $region33: #{tpu_custom_call.1} parent=1 // pred_fallthru
      _
    // Predicated region
    $region34: #{tpu_custom_call.1} parent=1 // pred_check
      _
    $region35: #{tpu_custom_call.1} parent=1 // pred_check_branch
      %72 = sbr.rel (0) target = $region37
    $region36: #{tpu_custom_call.1} parent=1 // pred_region
      %73 = dma.done [#allocation6], 16384
    $region37: #{tpu_custom_call.1} parent=1 // pred_fallthru
      _
    // Predicated region
    $region38: #{tpu_custom_call.1} parent=1 // pred_check
      _
    $region39: #{tpu_custom_call.1} parent=1 // pred_check_branch
      %75 = sbr.rel (0) target = $region41
    $region40: #{tpu_custom_call.1} parent=1 // pred_region
      %76 = dma.done [#allocation6], 2048
    $region41: #{tpu_custom_call.1} parent=1 // pred_fallthru
      _
    // Predicated region
    $region42: #{tpu_custom_call.1} parent=1 // pred_check
      _
    $region43: #{tpu_custom_call.1} parent=1 // pred_check_branch
      %78 = sbr.rel (0) target = $region45
    $region44: #{tpu_custom_call.1} parent=1 // pred_region
      %79 = dma.done [#allocation9], 2048
    $region45: #{tpu_custom_call.1} parent=1 // pred_fallthru
      _
    %v80 = vld [vmem:[#allocation2] sm:$0xff]
    %v81 = vld [vmem:[#allocation2 + $0x8] sm:$0xff]
    %v82 = vld [vmem:[#allocation2 + $0x10] sm:$0xff]
    %v83 = vld [vmem:[#allocation2 + $0x18] sm:$0xff]
    %v84 = vld [vmem:[#allocation2 + $0x20] sm:$0xff]
    %v85 = vld [vmem:[#allocation2 + $0x28] sm:$0xff]
    %v86 = vld [vmem:[#allocation2 + $0x30] sm:$0xff]
    %v87 = vld [vmem:[#allocation2 + $0x38] sm:$0xff]
    %v88 = vld [vmem:[#allocation5] sm:$0xff]
    %v89 = vld [vmem:[#allocation5 + $0x8] sm:$0xff]
    %v90 = vld [vmem:[#allocation5 + $0x10] sm:$0xff]
    %v91 = vld [vmem:[#allocation5 + $0x18] sm:$0xff]
    %v92 = vld [vmem:[#allocation5 + $0x20] sm:$0xff]
    %v93 = vld [vmem:[#allocation5 + $0x28] sm:$0xff]
    %v94 = vld [vmem:[#allocation5 + $0x30] sm:$0xff]
    %v95 = vld [vmem:[#allocation5 + $0x38] sm:$0xff]
    %v96 = vld [vmem:[#allocation5 + $0x40] sm:$0xff]
    %v97 = vld [vmem:[#allocation5 + $0x48] sm:$0xff]
    %v98 = vld [vmem:[#allocation5 + $0x50] sm:$0xff]
    %v99 = vld [vmem:[#allocation5 + $0x58] sm:$0xff]
    %v100 = vld [vmem:[#allocation5 + $0x60] sm:$0xff]
    %v101 = vld [vmem:[#allocation5 + $0x68] sm:$0xff]
    %v102 = vld [vmem:[#allocation5 + $0x70] sm:$0xff]
    %v103 = vld [vmem:[#allocation5 + $0x78] sm:$0xff]
    %v104 = vld [vmem:[#allocation5 + $0x80] sm:$0xff]
    %v105 = vld [vmem:[#allocation5 + $0x88] sm:$0xff]
    %v106 = vld [vmem:[#allocation5 + $0x90] sm:$0xff]
    %v107 = vld [vmem:[#allocation5 + $0x98] sm:$0xff]
    %v108 = vld [vmem:[#allocation5 + $0xa0] sm:$0xff]
    %v109 = vld [vmem:[#allocation5 + $0xa8] sm:$0xff]
    %v110 = vld [vmem:[#allocation5 + $0xb0] sm:$0xff]
    %v111 = vld [vmem:[#allocation5 + $0xb8] sm:$0xff]
    %v112 = vld [vmem:[#allocation5 + $0xc0] sm:$0xff]
    %v113 = vld [vmem:[#allocation5 + $0xc8] sm:$0xff]
    %v114 = vld [vmem:[#allocation5 + $0xd0] sm:$0xff]
    %v115 = vld [vmem:[#allocation5 + $0xd8] sm:$0xff]
    %v116 = vld [vmem:[#allocation5 + $0xe0] sm:$0xff]
    %v117 = vld [vmem:[#allocation5 + $0xe8] sm:$0xff]
    %v118 = vld [vmem:[#allocation5 + $0xf0] sm:$0xff]
    %v119 = vld [vmem:[#allocation5 + $0xf8] sm:$0xff]
    %v120 = vld [vmem:[#allocation5 + $0x100] sm:$0xff]
    %v121 = vld [vmem:[#allocation5 + $0x108] sm:$0xff]
    %v122 = vld [vmem:[#allocation5 + $0x110] sm:$0xff]
    %v123 = vld [vmem:[#allocation5 + $0x118] sm:$0xff]
    %v124 = vld [vmem:[#allocation5 + $0x120] sm:$0xff]
    %v125 = vld [vmem:[#allocation5 + $0x128] sm:$0xff]
    %v126 = vld [vmem:[#allocation5 + $0x130] sm:$0xff]
    %v127 = vld [vmem:[#allocation5 + $0x138] sm:$0xff]
    %v128 = vld [vmem:[#allocation5 + $0x140] sm:$0xff]
    %v129 = vld [vmem:[#allocation5 + $0x148] sm:$0xff]
    %v130 = vld [vmem:[#allocation5 + $0x150] sm:$0xff]
    %v131 = vld [vmem:[#allocation5 + $0x158] sm:$0xff]
    %v132 = vld [vmem:[#allocation5 + $0x160] sm:$0xff]
    %v133 = vld [vmem:[#allocation5 + $0x168] sm:$0xff]
    %v134 = vld [vmem:[#allocation5 + $0x170] sm:$0xff]
    %v135 = vld [vmem:[#allocation5 + $0x178] sm:$0xff]
    %v136 = vld [vmem:[#allocation5 + $0x180] sm:$0xff]
    %v137 = vld [vmem:[#allocation5 + $0x188] sm:$0xff]
    %v138 = vld [vmem:[#allocation5 + $0x190] sm:$0xff]
    %v139 = vld [vmem:[#allocation5 + $0x198] sm:$0xff]
    %v140 = vld [vmem:[#allocation5 + $0x1a0] sm:$0xff]
    %v141 = vld [vmem:[#allocation5 + $0x1a8] sm:$0xff]
    %v142 = vld [vmem:[#allocation5 + $0x1b0] sm:$0xff]
    %v143 = vld [vmem:[#allocation5 + $0x1b8] sm:$0xff]
    %v144 = vld [vmem:[#allocation5 + $0x1c0] sm:$0xff]
    %v145 = vld [vmem:[#allocation5 + $0x1c8] sm:$0xff]
    %v146 = vld [vmem:[#allocation5 + $0x1d0] sm:$0xff]
    %v147 = vld [vmem:[#allocation5 + $0x1d8] sm:$0xff]
    %v148 = vld [vmem:[#allocation5 + $0x1e0] sm:$0xff]
    %v149 = vld [vmem:[#allocation5 + $0x1e8] sm:$0xff]
    %v150 = vld [vmem:[#allocation5 + $0x1f0] sm:$0xff]
    %v151 = vld [vmem:[#allocation5 + $0x1f8] sm:$0xff]
    %v152 = vld [vmem:[#allocation5 + $0x200] sm:$0xff]
    %v153 = vld [vmem:[#allocation5 + $0x208] sm:$0xff]
    %v154 = vld [vmem:[#allocation5 + $0x210] sm:$0xff]
    %v155 = vld [vmem:[#allocation5 + $0x218] sm:$0xff]
    %v156 = vld [vmem:[#allocation5 + $0x220] sm:$0xff]
    %v157 = vld [vmem:[#allocation5 + $0x228] sm:$0xff]
    %v158 = vld [vmem:[#allocation5 + $0x230] sm:$0xff]
    %v159 = vld [vmem:[#allocation5 + $0x238] sm:$0xff]
    %v160 = vld [vmem:[#allocation5 + $0x240] sm:$0xff]
    %v161 = vld [vmem:[#allocation5 + $0x248] sm:$0xff]
    %v162 = vld [vmem:[#allocation5 + $0x250] sm:$0xff]
    %v163 = vld [vmem:[#allocation5 + $0x258] sm:$0xff]
    %v164 = vld [vmem:[#allocation5 + $0x260] sm:$0xff]
    %v165 = vld [vmem:[#allocation5 + $0x268] sm:$0xff]
    %v166 = vld [vmem:[#allocation5 + $0x270] sm:$0xff]
    %v167 = vld [vmem:[#allocation5 + $0x278] sm:$0xff]
    %v168 = vld [vmem:[#allocation5 + $0x280] sm:$0xff]
    %v169 = vld [vmem:[#allocation5 + $0x288] sm:$0xff]
    %v170 = vld [vmem:[#allocation5 + $0x290] sm:$0xff]
    %v171 = vld [vmem:[#allocation5 + $0x298] sm:$0xff]
    %v172 = vld [vmem:[#allocation5 + $0x2a0] sm:$0xff]
    %v173 = vld [vmem:[#allocation5 + $0x2a8] sm:$0xff]
    %v174 = vld [vmem:[#allocation5 + $0x2b0] sm:$0xff]
    %v175 = vld [vmem:[#allocation5 + $0x2b8] sm:$0xff]
    %v176 = vld [vmem:[#allocation5 + $0x2c0] sm:$0xff]
    %v177 = vld [vmem:[#allocation5 + $0x2c8] sm:$0xff]
    %v178 = vld [vmem:[#allocation5 + $0x2d0] sm:$0xff]
    %v179 = vld [vmem:[#allocation5 + $0x2d8] sm:$0xff]
    %v180 = vld [vmem:[#allocation5 + $0x2e0] sm:$0xff]
    %v181 = vld [vmem:[#allocation5 + $0x2e8] sm:$0xff]
    %v182 = vld [vmem:[#allocation5 + $0x2f0] sm:$0xff]
    %v183 = vld [vmem:[#allocation5 + $0x2f8] sm:$0xff]
    %v184 = vld [vmem:[#allocation5 + $0x300] sm:$0xff]
    %v185 = vld [vmem:[#allocation5 + $0x308] sm:$0xff]
    %v186 = vld [vmem:[#allocation5 + $0x310] sm:$0xff]
    %v187 = vld [vmem:[#allocation5 + $0x318] sm:$0xff]
    %v188 = vld [vmem:[#allocation5 + $0x320] sm:$0xff]
    %v189 = vld [vmem:[#allocation5 + $0x328] sm:$0xff]
    %v190 = vld [vmem:[#allocation5 + $0x330] sm:$0xff]
    %v191 = vld [vmem:[#allocation5 + $0x338] sm:$0xff]
    %v192 = vld [vmem:[#allocation5 + $0x340] sm:$0xff]
    %v193 = vld [vmem:[#allocation5 + $0x348] sm:$0xff]
    %v194 = vld [vmem:[#allocation5 + $0x350] sm:$0xff]
    %v195 = vld [vmem:[#allocation5 + $0x358] sm:$0xff]
    %v196 = vld [vmem:[#allocation5 + $0x360] sm:$0xff]
    %v197 = vld [vmem:[#allocation5 + $0x368] sm:$0xff]
    %v198 = vld [vmem:[#allocation5 + $0x370] sm:$0xff]
    %v199 = vld [vmem:[#allocation5 + $0x378] sm:$0xff]
    %v200 = vld [vmem:[#allocation5 + $0x380] sm:$0xff]
    %v201 = vld [vmem:[#allocation5 + $0x388] sm:$0xff]
    %v202 = vld [vmem:[#allocation5 + $0x390] sm:$0xff]
    %v203 = vld [vmem:[#allocation5 + $0x398] sm:$0xff]
    %v204 = vld [vmem:[#allocation5 + $0x3a0] sm:$0xff]
    %v205 = vld [vmem:[#allocation5 + $0x3a8] sm:$0xff]
    %v206 = vld [vmem:[#allocation5 + $0x3b0] sm:$0xff]
    %v207 = vld [vmem:[#allocation5 + $0x3b8] sm:$0xff]
    %v208 = vld [vmem:[#allocation5 + $0x3c0] sm:$0xff]
    %v209 = vld [vmem:[#allocation5 + $0x3c8] sm:$0xff]
    %v210 = vld [vmem:[#allocation5 + $0x3d0] sm:$0xff]
    %v211 = vld [vmem:[#allocation5 + $0x3d8] sm:$0xff]
    %v212 = vld [vmem:[#allocation5 + $0x3e0] sm:$0xff]
    %v213 = vld [vmem:[#allocation5 + $0x3e8] sm:$0xff]
    %v214 = vld [vmem:[#allocation5 + $0x3f0] sm:$0xff]
    %v215 = vld [vmem:[#allocation5 + $0x3f8] sm:$0xff]
    %v216 = vld [vmem:[%s2] sm:$0x1]
    %v217 = vlaneseq
    %v218 = vshrl.u32 %v217, 7
    %v219 = vsub.s32 0, %v218
    %v220 = vrot.slane %v216, %v219
    %221 = vmatprep.subr.mxu0 0.0
    %v222 = vand.u32 %v88, 4294901760
    %223 = vmatpush1.msra.mxu0 %v222
    %224 = vmatprep.subr.mxu0 0.0
    %v225 = vand.u32 %v89, 4294901760
    %226 = vmatpush1.msra.mxu0 %v225
    %227 = vmatprep.subr.mxu0 0.0
    %v228 = vand.u32 %v90, 4294901760
    %229 = vmatpush1.msra.mxu0 %v228
    %230 = vmatprep.subr.mxu0 0.0
    %v231 = vand.u32 %v91, 4294901760
    %232 = vmatpush1.msra.mxu0 %v231
    %233 = vmatprep.subr.mxu0 0.0
    %v234 = vand.u32 %v92, 4294901760
    %235 = vmatpush1.msra.mxu0 %v234
    %236 = vmatprep.subr.mxu0 0.0
    %v237 = vand.u32 %v93, 4294901760
    %238 = vmatpush1.msra.mxu0 %v237
    %239 = vmatprep.subr.mxu0 0.0
    %v240 = vand.u32 %v94, 4294901760
    %241 = vmatpush1.msra.mxu0 %v240
    %242 = vmatprep.subr.mxu0 0.0
    %v243 = vand.u32 %v95, 4294901760
    %244 = vmatpush1.msra.mxu0 %v243
    %245 = vmatprep.subr.mxu0 0.0
    %v246 = vand.u32 %v96, 4294901760
    %247 = vmatpush1.msra.mxu0 %v246
    %248 = vmatprep.subr.mxu0 0.0
    %v249 = vand.u32 %v97, 4294901760
    %250 = vmatpush1.msra.mxu0 %v249
    %251 = vmatprep.subr.mxu0 0.0
    %v252 = vand.u32 %v98, 4294901760
    %253 = vmatpush1.msra.mxu0 %v252
    %254 = vmatprep.subr.mxu0 0.0
    %v255 = vand.u32 %v99, 4294901760
    %256 = vmatpush1.msra.mxu0 %v255
    %257 = vmatprep.subr.mxu0 0.0
    %v258 = vand.u32 %v100, 4294901760
    %259 = vmatpush1.msra.mxu0 %v258
    %260 = vmatprep.subr.mxu0 0.0
    %v261 = vand.u32 %v101, 4294901760
    %262 = vmatpush1.msra.mxu0 %v261
    %263 = vmatprep.subr.mxu0 0.0
    %v264 = vand.u32 %v102, 4294901760
    %265 = vmatpush1.msra.mxu0 %v264
    %266 = vmatprep.subr.mxu0 0.0
    %v267 = vand.u32 %v103, 4294901760
    %268 = vmatpush1.msra.mxu0 %v267
    %269 = vmatprep.subr.mxu0 0.0
    %v270 = vand.u32 %v104, 4294901760
    %271 = vmatpush1.msra.mxu0 %v270
    %272 = vmatprep.subr.mxu0 0.0
    %v273 = vand.u32 %v105, 4294901760
    %274 = vmatpush1.msra.mxu0 %v273
    %275 = vmatprep.subr.mxu0 0.0
    %v276 = vand.u32 %v106, 4294901760
    %277 = vmatpush1.msra.mxu0 %v276
    %278 = vmatprep.subr.mxu0 0.0
    %v279 = vand.u32 %v107, 4294901760
    %280 = vmatpush1.msra.mxu0 %v279
    %281 = vmatprep.subr.mxu0 0.0
    %v282 = vand.u32 %v108, 4294901760
    %283 = vmatpush1.msra.mxu0 %v282
    %284 = vmatprep.subr.mxu0 0.0
    %v285 = vand.u32 %v109, 4294901760
    %286 = vmatpush1.msra.mxu0 %v285
    %287 = vmatprep.subr.mxu0 0.0
    %v288 = vand.u32 %v110, 4294901760
    %289 = vmatpush1.msra.mxu0 %v288
    %290 = vmatprep.subr.mxu0 0.0
    %v291 = vand.u32 %v111, 4294901760
    %292 = vmatpush1.msra.mxu0 %v291
    %293 = vmatprep.subr.mxu0 0.0
    %v294 = vand.u32 %v112, 4294901760
    %295 = vmatpush1.msra.mxu0 %v294
    %296 = vmatprep.subr.mxu0 0.0
    %v297 = vand.u32 %v113, 4294901760
    %298 = vmatpush1.msra.mxu0 %v297
    %299 = vmatprep.subr.mxu0 0.0
    %v300 = vand.u32 %v114, 4294901760
    %301 = vmatpush1.msra.mxu0 %v300
    %302 = vmatprep.subr.mxu0 0.0
    %v303 = vand.u32 %v115, 4294901760
    %304 = vmatpush1.msra.mxu0 %v303
    %305 = vmatprep.subr.mxu0 0.0
    %v306 = vand.u32 %v116, 4294901760
    %307 = vmatpush1.msra.mxu0 %v306
    %308 = vmatprep.subr.mxu0 0.0
    %v309 = vand.u32 %v117, 4294901760
    %310 = vmatpush1.msra.mxu0 %v309
    %311 = vmatprep.subr.mxu0 0.0
    %v312 = vand.u32 %v118, 4294901760
    %313 = vmatpush1.msra.mxu0 %v312
    %314 = vmatprep.subr.mxu0 0.0
    %v315 = vand.u32 %v119, 4294901760
    %316 = vmatpush1.msra.mxu0 %v315
    %v317 = vand.u32 %v81, 4294901760
    %v318 = vsub.f32 %v81, %v317
    %v319 = vand.u32 %v318, 4294901760
    %v320 = vsub.f32 %v318, %v319
    %v321 = vand.u32 %v320, 4294901760
    %322 = vmatprep.mubr.f32.mxu0 %v321
    %v323 = vand.u32 %v80, 4294901760
    %v324 = vsub.f32 %v80, %v323
    %v325 = vand.u32 %v324, 4294901760
    %v326 = vsub.f32 %v324, %v325
    %v327 = vand.u32 %v326, 4294901760
    %328 = vmatmul.mubr.f32.gmra.mrb[0].mxu0 %v327
    %v329 = vpop.f32.mrb[0].mxu0
    %v330 = vadd.f32 %v220, %v329
    %v331 = vpop.f32.mrb[0].mxu0
    %332 = vdwg.mxu0
    %333 = vmatprep.subr.mxu0 0.0
    %v334 = vand.u32 %v88, 4294901760
    %v335 = vsub.f32 %v88, %v334
    %v336 = vand.u32 %v335, 4294901760
    %v337 = vsub.f32 %v335, %v336
    %v338 = vand.u32 %v337, 4294901760
    %339 = vmatpush1.msra.mxu0 %v338
    %340 = vmatprep.subr.mxu0 0.0
    %v341 = vand.u32 %v89, 4294901760
    %v342 = vsub.f32 %v89, %v341
    %v343 = vand.u32 %v342, 4294901760
    %v344 = vsub.f32 %v342, %v343
    %v345 = vand.u32 %v344, 4294901760
    %346 = vmatpush1.msra.mxu0 %v345
    %347 = vmatprep.subr.mxu0 0.0
    %v348 = vand.u32 %v90, 4294901760
    %v349 = vsub.f32 %v90, %v348
    %v350 = vand.u32 %v349, 4294901760
    %v351 = vsub.f32 %v349, %v350
    %v352 = vand.u32 %v351, 4294901760
    %353 = vmatpush1.msra.mxu0 %v352
    %354 = vmatprep.subr.mxu0 0.0
    %v355 = vand.u32 %v91, 4294901760
    %v356 = vsub.f32 %v91, %v355
    %v357 = vand.u32 %v356, 4294901760
    %v358 = vsub.f32 %v356, %v357
    %v359 = vand.u32 %v358, 4294901760
    %360 = vmatpush1.msra.mxu0 %v359
    %361 = vmatprep.subr.mxu0 0.0
    %v362 = vand.u32 %v92, 4294901760
    %v363 = vsub.f32 %v92, %v362
    %v364 = vand.u32 %v363, 4294901760
    %v365 = vsub.f32 %v363, %v364
    %v366 = vand.u32 %v365, 4294901760
    %367 = vmatpush1.msra.mxu0 %v366
    %368 = vmatprep.subr.mxu0 0.0
    %v369 = vand.u32 %v93, 4294901760
    %v370 = vsub.f32 %v93, %v369
    %v371 = vand.u32 %v370, 4294901760
    %v372 = vsub.f32 %v370, %v371
    %v373 = vand.u32 %v372, 4294901760
    %374 = vmatpush1.msra.mxu0 %v373
    %375 = vmatprep.subr.mxu0 0.0
    %v376 = vand.u32 %v94, 4294901760
    %v377 = vsub.f32 %v94, %v376
    %v378 = vand.u32 %v377, 4294901760
    %v379 = vsub.f32 %v377, %v378
    %v380 = vand.u32 %v379, 4294901760
    %381 = vmatpush1.msra.mxu0 %v380
    %382 = vmatprep.subr.mxu0 0.0
    %v383 = vand.u32 %v95, 4294901760
    %v384 = vsub.f32 %v95, %v383
    %v385 = vand.u32 %v384, 4294901760
    %v386 = vsub.f32 %v384, %v385
    %v387 = vand.u32 %v386, 4294901760
    %388 = vmatpush1.msra.mxu0 %v387
    %389 = vmatprep.subr.mxu0 0.0
    %v390 = vand.u32 %v96, 4294901760
    %v391 = vsub.f32 %v96, %v390
    %v392 = vand.u32 %v391, 4294901760
    %v393 = vsub.f32 %v391, %v392
    %v394 = vand.u32 %v393, 4294901760
    %395 = vmatpush1.msra.mxu0 %v394
    %396 = vmatprep.subr.mxu0 0.0
    %v397 = vand.u32 %v97, 4294901760
    %v398 = vsub.f32 %v97, %v397
    %v399 = vand.u32 %v398, 4294901760
    %v400 = vsub.f32 %v398, %v399
    %v401 = vand.u32 %v400, 4294901760
    %402 = vmatpush1.msra.mxu0 %v401
    %403 = vmatprep.subr.mxu0 0.0
    %v404 = vand.u32 %v98, 4294901760
    %v405 = vsub.f32 %v98, %v404
    %v406 = vand.u32 %v405, 4294901760
    %v407 = vsub.f32 %v405, %v406
    %v408 = vand.u32 %v407, 4294901760
    %409 = vmatpush1.msra.mxu0 %v408
    %410 = vmatprep.subr.mxu0 0.0
    %v411 = vand.u32 %v99, 4294901760
    %v412 = vsub.f32 %v99, %v411
    %v413 = vand.u32 %v412, 4294901760
    %v414 = vsub.f32 %v412, %v413
    %v415 = vand.u32 %v414, 4294901760
    %416 = vmatpush1.msra.mxu0 %v415
    %417 = vmatprep.subr.mxu0 0.0
    %v418 = vand.u32 %v100, 4294901760
    %v419 = vsub.f32 %v100, %v418
    %v420 = vand.u32 %v419, 4294901760
    %v421 = vsub.f32 %v419, %v420
    %v422 = vand.u32 %v421, 4294901760
    %423 = vmatpush1.msra.mxu0 %v422
    %424 = vmatprep.subr.mxu0 0.0
    %v425 = vand.u32 %v101, 4294901760
    %v426 = vsub.f32 %v101, %v425
    %v427 = vand.u32 %v426, 4294901760
    %v428 = vsub.f32 %v426, %v427
    %v429 = vand.u32 %v428, 4294901760
    %430 = vmatpush1.msra.mxu0 %v429
    %431 = vmatprep.subr.mxu0 0.0
    %v432 = vand.u32 %v102, 4294901760
    %v433 = vsub.f32 %v102, %v432
    %v434 = vand.u32 %v433, 4294901760
    %v435 = vsub.f32 %v433, %v434
    %v436 = vand.u32 %v435, 4294901760
    %437 = vmatpush1.msra.mxu0 %v436
    %438 = vmatprep.subr.mxu0 0.0
    %v439 = vand.u32 %v103, 4294901760
    %v440 = vsub.f32 %v103, %v439
    %v441 = vand.u32 %v440, 4294901760
    %v442 = vsub.f32 %v440, %v441
    %v443 = vand.u32 %v442, 4294901760
    %444 = vmatpush1.msra.mxu0 %v443
    %445 = vmatprep.subr.mxu0 0.0
    %v446 = vand.u32 %v104, 4294901760
    %v447 = vsub.f32 %v104, %v446
    %v448 = vand.u32 %v447, 4294901760
    %v449 = vsub.f32 %v447, %v448
    %v450 = vand.u32 %v449, 4294901760
    %451 = vmatpush1.msra.mxu0 %v450
    %452 = vmatprep.subr.mxu0 0.0
    %v453 = vand.u32 %v105, 4294901760
    %v454 = vsub.f32 %v105, %v453
    %v455 = vand.u32 %v454, 4294901760
    %v456 = vsub.f32 %v454, %v455
    %v457 = vand.u32 %v456, 4294901760
    %458 = vmatpush1.msra.mxu0 %v457
    %459 = vmatprep.subr.mxu0 0.0
    %v460 = vand.u32 %v106, 4294901760
    %v461 = vsub.f32 %v106, %v460
    %v462 = vand.u32 %v461, 4294901760
    %v463 = vsub.f32 %v461, %v462
    %v464 = vand.u32 %v463, 4294901760
    %465 = vmatpush1.msra.mxu0 %v464
    %466 = vmatprep.subr.mxu0 0.0
    %v467 = vand.u32 %v107, 4294901760
    %v468 = vsub.f32 %v107, %v467
    %v469 = vand.u32 %v468, 4294901760
    %v470 = vsub.f32 %v468, %v469
    %v471 = vand.u32 %v470, 4294901760
    %472 = vmatpush1.msra.mxu0 %v471
    %473 = vmatprep.subr.mxu0 0.0
    %v474 = vand.u32 %v108, 4294901760
    %v475 = vsub.f32 %v108, %v474
    %v476 = vand.u32 %v475, 4294901760
    %v477 = vsub.f32 %v475, %v476
    %v478 = vand.u32 %v477, 4294901760
    %479 = vmatpush1.msra.mxu0 %v478
    %480 = vmatprep.subr.mxu0 0.0
    %v481 = vand.u32 %v109, 4294901760
    %v482 = vsub.f32 %v109, %v481
    %v483 = vand.u32 %v482, 4294901760
    %v484 = vsub.f32 %v482, %v483
    %v485 = vand.u32 %v484, 4294901760
    %486 = vmatpush1.msra.mxu0 %v485
    %487 = vmatprep.subr.mxu0 0.0
    %v488 = vand.u32 %v110, 4294901760
    %v489 = vsub.f32 %v110, %v488
    %v490 = vand.u32 %v489, 4294901760
    %v491 = vsub.f32 %v489, %v490
    %v492 = vand.u32 %v491, 4294901760
    %493 = vmatpush1.msra.mxu0 %v492
    %494 = vmatprep.subr.mxu0 0.0
    %v495 = vand.u32 %v111, 4294901760
    %v496 = vsub.f32 %v111, %v495
    %v497 = vand.u32 %v496, 4294901760
    %v498 = vsub.f32 %v496, %v497
    %v499 = vand.u32 %v498, 4294901760
    %500 = vmatpush1.msra.mxu0 %v499
    %501 = vmatprep.subr.mxu0 0.0
    %v502 = vand.u32 %v112, 4294901760
    %v503 = vsub.f32 %v112, %v502
    %v504 = vand.u32 %v503, 4294901760
    %v505 = vsub.f32 %v503, %v504
    %v506 = vand.u32 %v505, 4294901760
    %507 = vmatpush1.msra.mxu0 %v506
    %508 = vmatprep.subr.mxu0 0.0
    %v509 = vand.u32 %v113, 4294901760
    %v510 = vsub.f32 %v113, %v509
    %v511 = vand.u32 %v510, 4294901760
    %v512 = vsub.f32 %v510, %v511
    %v513 = vand.u32 %v512, 4294901760
    %514 = vmatpush1.msra.mxu0 %v513
    %515 = vmatprep.subr.mxu0 0.0
    %v516 = vand.u32 %v114, 4294901760
    %v517 = vsub.f32 %v114, %v516
    %v518 = vand.u32 %v517, 4294901760
    %v519 = vsub.f32 %v517, %v518
    %v520 = vand.u32 %v519, 4294901760
    %521 = vmatpush1.msra.mxu0 %v520
    %522 = vmatprep.subr.mxu0 0.0
    %v523 = vand.u32 %v115, 4294901760
    %v524 = vsub.f32 %v115, %v523
    %v525 = vand.u32 %v524, 4294901760
    %v526 = vsub.f32 %v524, %v525
    %v527 = vand.u32 %v526, 4294901760
    %528 = vmatpush1.msra.mxu0 %v527
    %529 = vmatprep.subr.mxu0 0.0
    %v530 = vand.u32 %v116, 4294901760
    %v531 = vsub.f32 %v116, %v530
    %v532 = vand.u32 %v531, 4294901760
    %v533 = vsub.f32 %v531, %v532
    %v534 = vand.u32 %v533, 4294901760
    %535 = vmatpush1.msra.mxu0 %v534
    %536 = vmatprep.subr.mxu0 0.0
    %v537 = vand.u32 %v117, 4294901760
    %v538 = vsub.f32 %v117, %v537
    %v539 = vand.u32 %v538, 4294901760
    %v540 = vsub.f32 %v538, %v539
    %v541 = vand.u32 %v540, 4294901760
    %542 = vmatpush1.msra.mxu0 %v541
    %543 = vmatprep.subr.mxu0 0.0
    %v544 = vand.u32 %v118, 4294901760
    %v545 = vsub.f32 %v118, %v544
    %v546 = vand.u32 %v545, 4294901760
    %v547 = vsub.f32 %v545, %v546
    %v548 = vand.u32 %v547, 4294901760
    %549 = vmatpush1.msra.mxu0 %v548
    %550 = vmatprep.subr.mxu0 0.0
    %v551 = vand.u32 %v119, 4294901760
    %v552 = vsub.f32 %v119, %v551
    %v553 = vand.u32 %v552, 4294901760
    %v554 = vsub.f32 %v552, %v553
    %v555 = vand.u32 %v554, 4294901760
    %556 = vmatpush1.msra.mxu0 %v555
    %v557 = vand.u32 %v81, 4294901760
    %558 = vmatprep.mubr.f32.mxu0 %v557
    %v559 = vand.u32 %v80, 4294901760
    %560 = vmatmul.mubr.f32.gmra.mrb[0].mxu0 %v559
    %v561 = vpop.f32.mrb[0].mxu0
    %v562 = vadd.f32 %v330, %v561
    %v563 = vpop.f32.mrb[0].mxu0
    %564 = vdwg.mxu0
    %565 = vmatprep.subr.mxu0 0.0
    %v566 = vand.u32 %v88, 4294901760
    %v567 = vsub.f32 %v88, %v566
    %568 = vmatpush1.msra.mxu0 %v567
    %569 = vmatprep.subr.mxu0 0.0
    %v570 = vand.u32 %v89, 4294901760
    %v571 = vsub.f32 %v89, %v570
    %572 = vmatpush1.msra.mxu0 %v571
    %573 = vmatprep.subr.mxu0 0.0
    %v574 = vand.u32 %v90, 4294901760
    %v575 = vsub.f32 %v90, %v574
    %576 = vmatpush1.msra.mxu0 %v575
    %577 = vmatprep.subr.mxu0 0.0
    %v578 = vand.u32 %v91, 4294901760
    %v579 = vsub.f32 %v91, %v578
    %580 = vmatpush1.msra.mxu0 %v579
    %581 = vmatprep.subr.mxu0 0.0
    %v582 = vand.u32 %v92, 4294901760
    %v583 = vsub.f32 %v92, %v582
    %584 = vmatpush1.msra.mxu0 %v583
    %585 = vmatprep.subr.mxu0 0.0
    %v586 = vand.u32 %v93, 4294901760
    %v587 = vsub.f32 %v93, %v586
    %588 = vmatpush1.msra.mxu0 %v587
    %589 = vmatprep.subr.mxu0 0.0
    %v590 = vand.u32 %v94, 4294901760
    %v591 = vsub.f32 %v94, %v590
    %592 = vmatpush1.msra.mxu0 %v591
    %593 = vmatprep.subr.mxu0 0.0
    %v594 = vand.u32 %v95, 4294901760
    %v595 = vsub.f32 %v95, %v594
    %596 = vmatpush1.msra.mxu0 %v595
    %597 = vmatprep.subr.mxu0 0.0
    %v598 = vand.u32 %v96, 4294901760
    %v599 = vsub.f32 %v96, %v598
    %600 = vmatpush1.msra.mxu0 %v599
    %601 = vmatprep.subr.mxu0 0.0
    %v602 = vand.u32 %v97, 4294901760
    %v603 = vsub.f32 %v97, %v602
    %604 = vmatpush1.msra.mxu0 %v603
    %605 = vmatprep.subr.mxu0 0.0
    %v606 = vand.u32 %v98, 4294901760
    %v607 = vsub.f32 %v98, %v606
    %608 = vmatpush1.msra.mxu0 %v607
    %609 = vmatprep.subr.mxu0 0.0
    %v610 = vand.u32 %v99, 4294901760
    %v611 = vsub.f32 %v99, %v610
    %612 = vmatpush1.msra.mxu0 %v611
    %613 = vmatprep.subr.mxu0 0.0
    %v614 = vand.u32 %v100, 4294901760
    %v615 = vsub.f32 %v100, %v614
    %616 = vmatpush1.msra.mxu0 %v615
    %617 = vmatprep.subr.mxu0 0.0
    %v618 = vand.u32 %v101, 4294901760
    %v619 = vsub.f32 %v101, %v618
    %620 = vmatpush1.msra.mxu0 %v619
    %621 = vmatprep.subr.mxu0 0.0
    %v622 = vand.u32 %v102, 4294901760
    %v623 = vsub.f32 %v102, %v622
    %624 = vmatpush1.msra.mxu0 %v623
    %625 = vmatprep.subr.mxu0 0.0
    %v626 = vand.u32 %v103, 4294901760
    %v627 = vsub.f32 %v103, %v626
    %628 = vmatpush1.msra.mxu0 %v627
    %629 = vmatprep.subr.mxu0 0.0
    %v630 = vand.u32 %v104, 4294901760
    %v631 = vsub.f32 %v104, %v630
    %632 = vmatpush1.msra.mxu0 %v631
    %633 = vmatprep.subr.mxu0 0.0
    %v634 = vand.u32 %v105, 4294901760
    %v635 = vsub.f32 %v105, %v634
    %636 = vmatpush1.msra.mxu0 %v635
    %637 = vmatprep.subr.mxu0 0.0
    %v638 = vand.u32 %v106, 4294901760
    %v639 = vsub.f32 %v106, %v638
    %640 = vmatpush1.msra.mxu0 %v639
    %641 = vmatprep.subr.mxu0 0.0
    %v642 = vand.u32 %v107, 4294901760
    %v643 = vsub.f32 %v107, %v642
    %644 = vmatpush1.msra.mxu0 %v643
    %645 = vmatprep.subr.mxu0 0.0
    %v646 = vand.u32 %v108, 4294901760
    %v647 = vsub.f32 %v108, %v646
    %648 = vmatpush1.msra.mxu0 %v647
    %649 = vmatprep.subr.mxu0 0.0
    %v650 = vand.u32 %v109, 4294901760
    %v651 = vsub.f32 %v109, %v650
    %652 = vmatpush1.msra.mxu0 %v651
    %653 = vmatprep.subr.mxu0 0.0
    %v654 = vand.u32 %v110, 4294901760
    %v655 = vsub.f32 %v110, %v654
    %656 = vmatpush1.msra.mxu0 %v655
    %657 = vmatprep.subr.mxu0 0.0
    %v658 = vand.u32 %v111, 4294901760
    %v659 = vsub.f32 %v111, %v658
    %660 = vmatpush1.msra.mxu0 %v659
    %661 = vmatprep.subr.mxu0 0.0
    %v662 = vand.u32 %v112, 4294901760
    %v663 = vsub.f32 %v112, %v662
    %664 = vmatpush1.msra.mxu0 %v663
    %665 = vmatprep.subr.mxu0 0.0
    %v666 = vand.u32 %v113, 4294901760
    %v667 = vsub.f32 %v113, %v666
    %668 = vmatpush1.msra.mxu0 %v667
    %669 = vmatprep.subr.mxu0 0.0
    %v670 = vand.u32 %v114, 4294901760
    %v671 = vsub.f32 %v114, %v670
    %672 = vmatpush1.msra.mxu0 %v671
    %673 = vmatprep.subr.mxu0 0.0
    %v674 = vand.u32 %v115, 4294901760
    %v675 = vsub.f32 %v115, %v674
    %676 = vmatpush1.msra.mxu0 %v675
    %677 = vmatprep.subr.mxu0 0.0
    %v678 = vand.u32 %v116, 4294901760
    %v679 = vsub.f32 %v116, %v678
    %680 = vmatpush1.msra.mxu0 %v679
    %681 = vmatprep.subr.mxu0 0.0
    %v682 = vand.u32 %v117, 4294901760
    %v683 = vsub.f32 %v117, %v682
    %684 = vmatpush1.msra.mxu0 %v683
    %685 = vmatprep.subr.mxu0 0.0
    %v686 = vand.u32 %v118, 4294901760
    %v687 = vsub.f32 %v118, %v686
    %688 = vmatpush1.msra.mxu0 %v687
    %689 = vmatprep.subr.mxu0 0.0
    %v690 = vand.u32 %v119, 4294901760
    %v691 = vsub.f32 %v119, %v690
    %692 = vmatpush1.msra.mxu0 %v691
    %v693 = vand.u32 %v81, 4294901760
    %v694 = vsub.f32 %v81, %v693
    %695 = vmatprep.mubr.f32.mxu0 %v694
    %v696 = vand.u32 %v80, 4294901760
    %v697 = vsub.f32 %v80, %v696
    %698 = vmatmul.mubr.f32.gmra.mrb[0].mxu0 %v697
    %v699 = vpop.f32.mrb[0].mxu0
    %v700 = vadd.f32 %v562, %v699
    %v701 = vpop.f32.mrb[0].mxu0
    %702 = vdwg.mxu0
    %703 = vmatprep.subr.mxu0 0.0
    %v704 = vand.u32 %v88, 4294901760
    %705 = vmatpush1.msra.mxu0 %v704
    %706 = vmatprep.subr.mxu0 0.0
    %v707 = vand.u32 %v89, 4294901760
    %708 = vmatpush1.msra.mxu0 %v707
    %709 = vmatprep.subr.mxu0 0.0
    %v710 = vand.u32 %v90, 4294901760
    %711 = vmatpush1.msra.mxu0 %v710
    %712 = vmatprep.subr.mxu0 0.0
    %v713 = vand.u32 %v91, 4294901760
    %714 = vmatpush1.msra.mxu0 %v713
    %715 = vmatprep.subr.mxu0 0.0
    %v716 = vand.u32 %v92, 4294901760
    %717 = vmatpush1.msra.mxu0 %v716
    %718 = vmatprep.subr.mxu0 0.0
    %v719 = vand.u32 %v93, 4294901760
    %720 = vmatpush1.msra.mxu0 %v719
    %721 = vmatprep.subr.mxu0 0.0
    %v722 = vand.u32 %v94, 4294901760
    %723 = vmatpush1.msra.mxu0 %v722
    %724 = vmatprep.subr.mxu0 0.0
    %v725 = vand.u32 %v95, 4294901760
    %726 = vmatpush1.msra.mxu0 %v725
    %727 = vmatprep.subr.mxu0 0.0
    %v728 = vand.u32 %v96, 4294901760
    %729 = vmatpush1.msra.mxu0 %v728
    %730 = vmatprep.subr.mxu0 0.0
    %v731 = vand.u32 %v97, 4294901760
    %732 = vmatpush1.msra.mxu0 %v731
    %733 = vmatprep.subr.mxu0 0.0
    %v734 = vand.u32 %v98, 4294901760
    %735 = vmatpush1.msra.mxu0 %v734
    %736 = vmatprep.subr.mxu0 0.0
    %v737 = vand.u32 %v99, 4294901760
    %738 = vmatpush1.msra.mxu0 %v737
    %739 = vmatprep.subr.mxu0 0.0
    %v740 = vand.u32 %v100, 4294901760
    %741 = vmatpush1.msra.mxu0 %v740
    %742 = vmatprep.subr.mxu0 0.0
    %v743 = vand.u32 %v101, 4294901760
    %744 = vmatpush1.msra.mxu0 %v743
    %745 = vmatprep.subr.mxu0 0.0
    %v746 = vand.u32 %v102, 4294901760
    %747 = vmatpush1.msra.mxu0 %v746
    %748 = vmatprep.subr.mxu0 0.0
    %v749 = vand.u32 %v103, 4294901760
    %750 = vmatpush1.msra.mxu0 %v749
    %751 = vmatprep.subr.mxu0 0.0
    %v752 = vand.u32 %v104, 4294901760
    %753 = vmatpush1.msra.mxu0 %v752
    %754 = vmatprep.subr.mxu0 0.0
    %v755 = vand.u32 %v105, 4294901760
    %756 = vmatpush1.msra.mxu0 %v755
    %757 = vmatprep.subr.mxu0 0.0
    %v758 = vand.u32 %v106, 4294901760
    %759 = vmatpush1.msra.mxu0 %v758
    %760 = vmatprep.subr.mxu0 0.0
    %v761 = vand.u32 %v107, 4294901760
    %762 = vmatpush1.msra.mxu0 %v761
    %763 = vmatprep.subr.mxu0 0.0
    %v764 = vand.u32 %v108, 4294901760
    %765 = vmatpush1.msra.mxu0 %v764
    %766 = vmatprep.subr.mxu0 0.0
    %v767 = vand.u32 %v109, 4294901760
    %768 = vmatpush1.msra.mxu0 %v767
    %769 = vmatprep.subr.mxu0 0.0
    %v770 = vand.u32 %v110, 4294901760
    %771 = vmatpush1.msra.mxu0 %v770
    %772 = vmatprep.subr.mxu0 0.0
    %v773 = vand.u32 %v111, 4294901760
    %774 = vmatpush1.msra.mxu0 %v773
    %775 = vmatprep.subr.mxu0 0.0
    %v776 = vand.u32 %v112, 4294901760
    %777 = vmatpush1.msra.mxu0 %v776
    %778 = vmatprep.subr.mxu0 0.0
    %v779 = vand.u32 %v113, 4294901760
    %780 = vmatpush1.msra.mxu0 %v779
    %781 = vmatprep.subr.mxu0 0.0
    %v782 = vand.u32 %v114, 4294901760
    %783 = vmatpush1.msra.mxu0 %v782
    %784 = vmatprep.subr.mxu0 0.0
    %v785 = vand.u32 %v115, 4294901760
    %786 = vmatpush1.msra.mxu0 %v785
    %787 = vmatprep.subr.mxu0 0.0
    %v788 = vand.u32 %v116, 4294901760
    %789 = vmatpush1.msra.mxu0 %v788
    %790 = vmatprep.subr.mxu0 0.0
    %v791 = vand.u32 %v117, 4294901760
    %792 = vmatpush1.msra.mxu0 %v791
    %793 = vmatprep.subr.mxu0 0.0
    %v794 = vand.u32 %v118, 4294901760
    %795 = vmatpush1.msra.mxu0 %v794
    %796 = vmatprep.subr.mxu0 0.0
    %v797 = vand.u32 %v119, 4294901760
    %798 = vmatpush1.msra.mxu0 %v797
    %v799 = vand.u32 %v81, 4294901760
    %v800 = vsub.f32 %v81, %v799
    %v801 = vand.u32 %v800, 4294901760
    %802 = vmatprep.mubr.f32.mxu0 %v801
    %v803 = vand.u32 %v80, 4294901760
    %v804 = vsub.f32 %v80, %v803
    %v805 = vand.u32 %v804, 4294901760
    %806 = vmatmul.mubr.f32.gmra.mrb[0].mxu0 %v805
    %v807 = vpop.f32.mrb[0].mxu0
    %v808 = vadd.f32 %v700, %v807
    %v809 = vpop.f32.mrb[0].mxu0
    %810 = vdwg.mxu0
    %811 = vmatprep.subr.mxu0 0.0
    %v812 = vand.u32 %v88, 4294901760
    %v813 = vsub.f32 %v88, %v812
    %v814 = vand.u32 %v813, 4294901760
    %815 = vmatpush1.msra.mxu0 %v814
    %816 = vmatprep.subr.mxu0 0.0
    %v817 = vand.u32 %v89, 4294901760
    %v818 = vsub.f32 %v89, %v817
    %v819 = vand.u32 %v818, 4294901760
    %820 = vmatpush1.msra.mxu0 %v819
    %821 = vmatprep.subr.mxu0 0.0
    %v822 = vand.u32 %v90, 4294901760
    %v823 = vsub.f32 %v90, %v822
    %v824 = vand.u32 %v823, 4294901760
    %825 = vmatpush1.msra.mxu0 %v824
    %826 = vmatprep.subr.mxu0 0.0
    %v827 = vand.u32 %v91, 4294901760
    %v828 = vsub.f32 %v91, %v827
    %v829 = vand.u32 %v828, 4294901760
    %830 = vmatpush1.msra.mxu0 %v829
    %831 = vmatprep.subr.mxu0 0.0
    %v832 = vand.u32 %v92, 4294901760
    %v833 = vsub.f32 %v92, %v832
    %v834 = vand.u32 %v833, 4294901760
    %835 = vmatpush1.msra.mxu0 %v834
    %836 = vmatprep.subr.mxu0 0.0
    %v837 = vand.u32 %v93, 4294901760
    %v838 = vsub.f32 %v93, %v837
    %v839 = vand.u32 %v838, 4294901760
    %840 = vmatpush1.msra.mxu0 %v839
    %841 = vmatprep.subr.mxu0 0.0
    %v842 = vand.u32 %v94, 4294901760
    %v843 = vsub.f32 %v94, %v842
    %v844 = vand.u32 %v843, 4294901760
    %845 = vmatpush1.msra.mxu0 %v844
    %846 = vmatprep.subr.mxu0 0.0
    %v847 = vand.u32 %v95, 4294901760
    %v848 = vsub.f32 %v95, %v847
    %v849 = vand.u32 %v848, 4294901760
    %850 = vmatpush1.msra.mxu0 %v849
    %851 = vmatprep.subr.mxu0 0.0
    %v852 = vand.u32 %v96, 4294901760
    %v853 = vsub.f32 %v96, %v852
    %v854 = vand.u32 %v853, 4294901760
    %855 = vmatpush1.msra.mxu0 %v854
    %856 = vmatprep.subr.mxu0 0.0
    %v857 = vand.u32 %v97, 4294901760
    %v858 = vsub.f32 %v97, %v857
    %v859 = vand.u32 %v858, 4294901760
    %860 = vmatpush1.msra.mxu0 %v859
    %861 = vmatprep.subr.mxu0 0.0
    %v862 = vand.u32 %v98, 4294901760
    %v863 = vsub.f32 %v98, %v862
    %v864 = vand.u32 %v863, 4294901760
    %865 = vmatpush1.msra.mxu0 %v864
    %866 = vmatprep.subr.mxu0 0.0
    %v867 = vand.u32 %v99, 4294901760
    %v868 = vsub.f32 %v99, %v867
    %v869 = vand.u32 %v868, 4294901760
    %870 = vmatpush1.msra.mxu0 %v869
    %871 = vmatprep.subr.mxu0 0.0
    %v872 = vand.u32 %v100, 4294901760
    %v873 = vsub.f32 %v100, %v872
    %v874 = vand.u32 %v873, 4294901760
    %875 = vmatpush1.msra.mxu0 %v874
    %876 = vmatprep.subr.mxu0 0.0
    %v877 = vand.u32 %v101, 4294901760
    %v878 = vsub.f32 %v101, %v877
    %v879 = vand.u32 %v878, 4294901760
    %880 = vmatpush1.msra.mxu0 %v879
    %881 = vmatprep.subr.mxu0 0.0
    %v882 = vand.u32 %v102, 4294901760
    %v883 = vsub.f32 %v102, %v882
    %v884 = vand.u32 %v883, 4294901760
    %885 = vmatpush1.msra.mxu0 %v884
    %886 = vmatprep.subr.mxu0 0.0
    %v887 = vand.u32 %v103, 4294901760
    %v888 = vsub.f32 %v103, %v887
    %v889 = vand.u32 %v888, 4294901760
    %890 = vmatpush1.msra.mxu0 %v889
    %891 = vmatprep.subr.mxu0 0.0
    %v892 = vand.u32 %v104, 4294901760
    %v893 = vsub.f32 %v104, %v892
    %v894 = vand.u32 %v893, 4294901760
    %895 = vmatpush1.msra.mxu0 %v894
    %896 = vmatprep.subr.mxu0 0.0
    %v897 = vand.u32 %v105, 4294901760
    %v898 = vsub.f32 %v105, %v897
    %v899 = vand.u32 %v898, 4294901760
    %900 = vmatpush1.msra.mxu0 %v899
    %901 = vmatprep.subr.mxu0 0.0
    %v902 = vand.u32 %v106, 4294901760
    %v903 = vsub.f32 %v106, %v902
    %v904 = vand.u32 %v903, 4294901760
    %905 = vmatpush1.msra.mxu0 %v904
    %906 = vmatprep.subr.mxu0 0.0
    %v907 = vand.u32 %v107, 4294901760
    %v908 = vsub.f32 %v107, %v907
    %v909 = vand.u32 %v908, 4294901760
    %910 = vmatpush1.msra.mxu0 %v909
    %911 = vmatprep.subr.mxu0 0.0
    %v912 = vand.u32 %v108, 4294901760
    %v913 = vsub.f32 %v108, %v912
    %v914 = vand.u32 %v913, 4294901760
    %915 = vmatpush1.msra.mxu0 %v914
    %916 = vmatprep.subr.mxu0 0.0
    %v917 = vand.u32 %v109, 4294901760
    %v918 = vsub.f32 %v109, %v917
    %v919 = vand.u32 %v918, 4294901760
    %920 = vmatpush1.msra.mxu0 %v919
    %921 = vmatprep.subr.mxu0 0.0
    %v922 = vand.u32 %v110, 4294901760
    %v923 = vsub.f32 %v110, %v922
    %v924 = vand.u32 %v923, 4294901760
    %925 = vmatpush1.msra.mxu0 %v924
    %926 = vmatprep.subr.mxu0 0.0
    %v927 = vand.u32 %v111, 4294901760
    %v928 = vsub.f32 %v111, %v927
    %v929 = vand.u32 %v928, 4294901760
    %930 = vmatpush1.msra.mxu0 %v929
    %931 = vmatprep.subr.mxu0 0.0
    %v932 = vand.u32 %v112, 4294901760
    %v933 = vsub.f32 %v112, %v932
    %v934 = vand.u32 %v933, 4294901760
    %935 = vmatpush1.msra.mxu0 %v934
    %936 = vmatprep.subr.mxu0 0.0
    %v937 = vand.u32 %v113, 4294901760
    %v938 = vsub.f32 %v113, %v937
    %v939 = vand.u32 %v938, 4294901760
    %940 = vmatpush1.msra.mxu0 %v939
    %941 = vmatprep.subr.mxu0 0.0
    %v942 = vand.u32 %v114, 4294901760
    %v943 = vsub.f32 %v114, %v942
    %v944 = vand.u32 %v943, 4294901760
    %945 = vmatpush1.msra.mxu0 %v944
    %946 = vmatprep.subr.mxu0 0.0
    %v947 = vand.u32 %v115, 4294901760
    %v948 = vsub.f32 %v115, %v947
    %v949 = vand.u32 %v948, 4294901760
    %950 = vmatpush1.msra.mxu0 %v949
    %951 = vmatprep.subr.mxu0 0.0
    %v952 = vand.u32 %v116, 4294901760
    %v953 = vsub.f32 %v116, %v952
    %v954 = vand.u32 %v953, 4294901760
    %955 = vmatpush1.msra.mxu0 %v954
    %956 = vmatprep.subr.mxu0 0.0
    %v957 = vand.u32 %v117, 4294901760
    %v958 = vsub.f32 %v117, %v957
    %v959 = vand.u32 %v958, 4294901760
    %960 = vmatpush1.msra.mxu0 %v959
    %961 = vmatprep.subr.mxu0 0.0
    %v962 = vand.u32 %v118, 4294901760
    %v963 = vsub.f32 %v118, %v962
    %v964 = vand.u32 %v963, 4294901760
    %965 = vmatpush1.msra.mxu0 %v964
    %966 = vmatprep.subr.mxu0 0.0
    %v967 = vand.u32 %v119, 4294901760
    %v968 = vsub.f32 %v119, %v967
    %v969 = vand.u32 %v968, 4294901760
    %970 = vmatpush1.msra.mxu0 %v969
    %v971 = vand.u32 %v81, 4294901760
    %972 = vmatprep.mubr.f32.mxu0 %v971
    %v973 = vand.u32 %v80, 4294901760
    %974 = vmatmul.mubr.f32.gmra.mrb[0].mxu0 %v973
    %v975 = vpop.f32.mrb[0].mxu0
    %v976 = vadd.f32 %v808, %v975
    %v977 = vpop.f32.mrb[0].mxu0
    %978 = vdwg.mxu0
    %979 = vmatprep.subr.mxu0 0.0
    %v980 = vand.u32 %v88, 4294901760
    %981 = vmatpush1.msra.mxu0 %v980
    %982 = vmatprep.subr.mxu0 0.0
    %v983 = vand.u32 %v89, 4294901760
    %984 = vmatpush1.msra.mxu0 %v983
    %985 = vmatprep.subr.mxu0 0.0
    %v986 = vand.u32 %v90, 4294901760
    %987 = vmatpush1.msra.mxu0 %v986
    %988 = vmatprep.subr.mxu0 0.0
    %v989 = vand.u32 %v91, 4294901760
    %990 = vmatpush1.msra.mxu0 %v989
    %991 = vmatprep.subr.mxu0 0.0
    %v992 = vand.u32 %v92, 4294901760
    %993 = vmatpush1.msra.mxu0 %v992
    %994 = vmatprep.subr.mxu0 0.0
    %v995 = vand.u32 %v93, 4294901760
    %996 = vmatpush1.msra.mxu0 %v995
    %997 = vmatprep.subr.mxu0 0.0
    %v998 = vand.u32 %v94, 4294901760
    %999 = vmatpush1.msra.mxu0 %v998
    %1000 = vmatprep.subr.mxu0 0.0
    %v1001 = vand.u32 %v95, 4294901760
    %1002 = vmatpush1.msra.mxu0 %v1001
    %1003 = vmatprep.subr.mxu0 0.0
    %v1004 = vand.u32 %v96, 4294901760
    %1005 = vmatpush1.msra.mxu0 %v1004
    %1006 = vmatprep.subr.mxu0 0.0
    %v1007 = vand.u32 %v97, 4294901760
    %1008 = vmatpush1.msra.mxu0 %v1007
    %1009 = vmatprep.subr.mxu0 0.0
    %v1010 = vand.u32 %v98, 4294901760
    %1011 = vmatpush1.msra.mxu0 %v1010
    %1012 = vmatprep.subr.mxu0 0.0
    %v1013 = vand.u32 %v99, 4294901760
    %1014 = vmatpush1.msra.mxu0 %v1013
    %1015 = vmatprep.subr.mxu0 0.0
    %v1016 = vand.u32 %v100, 4294901760
    %1017 = vmatpush1.msra.mxu0 %v1016
    %1018 = vmatprep.subr.mxu0 0.0
    %v1019 = vand.u32 %v101, 4294901760
    %1020 = vmatpush1.msra.mxu0 %v1019
    %1021 = vmatprep.subr.mxu0 0.0
    %v1022 = vand.u32 %v102, 4294901760
    %1023 = vmatpush1.msra.mxu0 %v1022
    %1024 = vmatprep.subr.mxu0 0.0
    %v1025 = vand.u32 %v103, 4294901760
    %1026 = vmatpush1.msra.mxu0 %v1025
    %1027 = vmatprep.subr.mxu0 0.0
    %v1028 = vand.u32 %v104, 4294901760
    %1029 = vmatpush1.msra.mxu0 %v1028
    %1030 = vmatprep.subr.mxu0 0.0
    %v1031 = vand.u32 %v105, 4294901760
    %1032 = vmatpush1.msra.mxu0 %v1031
    %1033 = vmatprep.subr.mxu0 0.0
    %v1034 = vand.u32 %v106, 4294901760
    %1035 = vmatpush1.msra.mxu0 %v1034
    %1036 = vmatprep.subr.mxu0 0.0
    %v1037 = vand.u32 %v107, 4294901760
    %1038 = vmatpush1.msra.mxu0 %v1037
    %1039 = vmatprep.subr.mxu0 0.0
    %v1040 = vand.u32 %v108, 4294901760
    %1041 = vmatpush1.msra.mxu0 %v1040
    %1042 = vmatprep.subr.mxu0 0.0
    %v1043 = vand.u32 %v109, 4294901760
    %1044 = vmatpush1.msra.mxu0 %v1043
    %1045 = vmatprep.subr.mxu0 0.0
    %v1046 = vand.u32 %v110, 4294901760
    %1047 = vmatpush1.msra.mxu0 %v1046
    %1048 = vmatprep.subr.mxu0 0.0
    %v1049 = vand.u32 %v111, 4294901760
    %1050 = vmatpush1.msra.mxu0 %v1049
    %1051 = vmatprep.subr.mxu0 0.0
    %v1052 = vand.u32 %v112, 4294901760
    %1053 = vmatpush1.msra.mxu0 %v1052
    %1054 = vmatprep.subr.mxu0 0.0
    %v1055 = vand.u32 %v113, 4294901760
    %1056 = vmatpush1.msra.mxu0 %v1055
    %1057 = vmatprep.subr.mxu0 0.0
    %v1058 = vand.u32 %v114, 4294901760
    %1059 = vmatpush1.msra.mxu0 %v1058
    %1060 = vmatprep.subr.mxu0 0.0
    %v1061 = vand.u32 %v115, 4294901760
    %1062 = vmatpush1.msra.mxu0 %v1061
    %1063 = vmatprep.subr.mxu0 0.0
    %v1064 = vand.u32 %v116, 4294901760
    %1065 = vmatpush1.msra.mxu0 %v1064
    %1066 = vmatprep.subr.mxu0 0.0
    %v1067 = vand.u32 %v117, 4294901760
    %1068 = vmatpush1.msra.mxu0 %v1067
    %1069 = vmatprep.subr.mxu0 0.0
    %v1070 = vand.u32 %v118, 4294901760
    %1071 = vmatpush1.msra.mxu0 %v1070
    %1072 = vmatprep.subr.mxu0 0.0
    %v1073 = vand.u32 %v119, 4294901760
    %1074 = vmatpush1.msra.mxu0 %v1073
    %v1075 = vand.u32 %v81, 4294901760
    %1076 = vmatprep.mubr.f32.mxu0 %v1075
    %v1077 = vand.u32 %v80, 4294901760
    %1078 = vmatmul.mubr.f32.gmra.mrb[0].mxu0 %v1077
    %v1079 = vpop.f32.mrb[0].mxu0
    %v1080 = vadd.f32 %v976, %v1079
    %v1081 = vpop.f32.mrb[0].mxu0
    %1082 = vdwg.mxu0
    %1083 = vmatprep.subr.mxu0 0.0
    %v1084 = vand.u32 %v120, 4294901760
    %1085 = vmatpush1.msra.mxu0 %v1084
    %1086 = vmatprep.subr.mxu0 0.0
    %v1087 = vand.u32 %v121, 4294901760
    %1088 = vmatpush1.msra.mxu0 %v1087
    %1089 = vmatprep.subr.mxu0 0.0
    %v1090 = vand.u32 %v122, 4294901760
    %1091 = vmatpush1.msra.mxu0 %v1090
    %1092 = vmatprep.subr.mxu0 0.0
    %v1093 = vand.u32 %v123, 4294901760
    %1094 = vmatpush1.msra.mxu0 %v1093
    %1095 = vmatprep.subr.mxu0 0.0
    %v1096 = vand.u32 %v124, 4294901760
    %1097 = vmatpush1.msra.mxu0 %v1096
    %1098 = vmatprep.subr.mxu0 0.0
    %v1099 = vand.u32 %v125, 4294901760
    %1100 = vmatpush1.msra.mxu0 %v1099
    %1101 = vmatprep.subr.mxu0 0.0
    %v1102 = vand.u32 %v126, 4294901760
    %1103 = vmatpush1.msra.mxu0 %v1102
    %1104 = vmatprep.subr.mxu0 0.0
    %v1105 = vand.u32 %v127, 4294901760
    %1106 = vmatpush1.msra.mxu0 %v1105
    %1107 = vmatprep.subr.mxu0 0.0
    %v1108 = vand.u32 %v128, 4294901760
    %1109 = vmatpush1.msra.mxu0 %v1108
    %1110 = vmatprep.subr.mxu0 0.0
    %v1111 = vand.u32 %v129, 4294901760
    %1112 = vmatpush1.msra.mxu0 %v1111
    %1113 = vmatprep.subr.mxu0 0.0
    %v1114 = vand.u32 %v130, 4294901760
    %1115 = vmatpush1.msra.mxu0 %v1114
    %1116 = vmatprep.subr.mxu0 0.0
    %v1117 = vand.u32 %v131, 4294901760
    %1118 = vmatpush1.msra.mxu0 %v1117
    %1119 = vmatprep.subr.mxu0 0.0
    %v1120 = vand.u32 %v132, 4294901760
    %1121 = vmatpush1.msra.mxu0 %v1120
    %1122 = vmatprep.subr.mxu0 0.0
    %v1123 = vand.u32 %v133, 4294901760
    %1124 = vmatpush1.msra.mxu0 %v1123
    %1125 = vmatprep.subr.mxu0 0.0
    %v1126 = vand.u32 %v134, 4294901760
    %1127 = vmatpush1.msra.mxu0 %v1126
    %1128 = vmatprep.subr.mxu0 0.0
    %v1129 = vand.u32 %v135, 4294901760
    %1130 = vmatpush1.msra.mxu0 %v1129
    %1131 = vmatprep.subr.mxu0 0.0
    %v1132 = vand.u32 %v136, 4294901760
    %1133 = vmatpush1.msra.mxu0 %v1132
    %1134 = vmatprep.subr.mxu0 0.0
    %v1135 = vand.u32 %v137, 4294901760
    %1136 = vmatpush1.msra.mxu0 %v1135
    %1137 = vmatprep.subr.mxu0 0.0
    %v1138 = vand.u32 %v138, 4294901760
    %1139 = vmatpush1.msra.mxu0 %v1138
    %1140 = vmatprep.subr.mxu0 0.0
    %v1141 = vand.u32 %v139, 4294901760
    %1142 = vmatpush1.msra.mxu0 %v1141
    %1143 = vmatprep.subr.mxu0 0.0
    %v1144 = vand.u32 %v140, 4294901760
    %1145 = vmatpush1.msra.mxu0 %v1144
    %1146 = vmatprep.subr.mxu0 0.0
    %v1147 = vand.u32 %v141, 4294901760
    %1148 = vmatpush1.msra.mxu0 %v1147
    %1149 = vmatprep.subr.mxu0 0.0
    %v1150 = vand.u32 %v142, 4294901760
    %1151 = vmatpush1.msra.mxu0 %v1150
    %1152 = vmatprep.subr.mxu0 0.0
    %v1153 = vand.u32 %v143, 4294901760
    %1154 = vmatpush1.msra.mxu0 %v1153
    %1155 = vmatprep.subr.mxu0 0.0
    %v1156 = vand.u32 %v144, 4294901760
    %1157 = vmatpush1.msra.mxu0 %v1156
    %1158 = vmatprep.subr.mxu0 0.0
    %v1159 = vand.u32 %v145, 4294901760
    %1160 = vmatpush1.msra.mxu0 %v1159
    %1161 = vmatprep.subr.mxu0 0.0
    %v1162 = vand.u32 %v146, 4294901760
    %1163 = vmatpush1.msra.mxu0 %v1162
    %1164 = vmatprep.subr.mxu0 0.0
    %v1165 = vand.u32 %v147, 4294901760
    %1166 = vmatpush1.msra.mxu0 %v1165
    %1167 = vmatprep.subr.mxu0 0.0
    %v1168 = vand.u32 %v148, 4294901760
    %1169 = vmatpush1.msra.mxu0 %v1168
    %1170 = vmatprep.subr.mxu0 0.0
    %v1171 = vand.u32 %v149, 4294901760
    %1172 = vmatpush1.msra.mxu0 %v1171
    %1173 = vmatprep.subr.mxu0 0.0
    %v1174 = vand.u32 %v150, 4294901760
    %1175 = vmatpush1.msra.mxu0 %v1174
    %1176 = vmatprep.subr.mxu0 0.0
    %v1177 = vand.u32 %v151, 4294901760
    %1178 = vmatpush1.msra.mxu0 %v1177
    %v1179 = vand.u32 %v83, 4294901760
    %v1180 = vsub.f32 %v83, %v1179
    %v1181 = vand.u32 %v1180, 4294901760
    %v1182 = vsub.f32 %v1180, %v1181
    %v1183 = vand.u32 %v1182, 4294901760
    %1184 = vmatprep.mubr.f32.mxu0 %v1183
    %v1185 = vand.u32 %v82, 4294901760
    %v1186 = vsub.f32 %v82, %v1185
    %v1187 = vand.u32 %v1186, 4294901760
    %v1188 = vsub.f32 %v1186, %v1187
    %v1189 = vand.u32 %v1188, 4294901760
    %1190 = vmatmul.mubr.f32.gmra.mrb[0].mxu0 %v1189
    %v1191 = vpop.f32.mrb[0].mxu0
    %v1192 = vadd.f32 %v1080, %v1191
    %v1193 = vpop.f32.mrb[0].mxu0
    %1194 = vdwg.mxu0
    %1195 = vmatprep.subr.mxu0 0.0
    %v1196 = vand.u32 %v120, 4294901760
    %v1197 = vsub.f32 %v120, %v1196
    %v1198 = vand.u32 %v1197, 4294901760
    %v1199 = vsub.f32 %v1197, %v1198
    %v1200 = vand.u32 %v1199, 4294901760
    %1201 = vmatpush1.msra.mxu0 %v1200
    %1202 = vmatprep.subr.mxu0 0.0
    %v1203 = vand.u32 %v121, 4294901760
    %v1204 = vsub.f32 %v121, %v1203
    %v1205 = vand.u32 %v1204, 4294901760
    %v1206 = vsub.f32 %v1204, %v1205
    %v1207 = vand.u32 %v1206, 4294901760
    %1208 = vmatpush1.msra.mxu0 %v1207
    %1209 = vmatprep.subr.mxu0 0.0
    %v1210 = vand.u32 %v122, 4294901760
    %v1211 = vsub.f32 %v122, %v1210
    %v1212 = vand.u32 %v1211, 4294901760
    %v1213 = vsub.f32 %v1211, %v1212
    %v1214 = vand.u32 %v1213, 4294901760
    %1215 = vmatpush1.msra.mxu0 %v1214
    %1216 = vmatprep.subr.mxu0 0.0
    %v1217 = vand.u32 %v123, 4294901760
    %v1218 = vsub.f32 %v123, %v1217
    %v1219 = vand.u32 %v1218, 4294901760
    %v1220 = vsub.f32 %v1218, %v1219
    %v1221 = vand.u32 %v1220, 4294901760
    %1222 = vmatpush1.msra.mxu0 %v1221
    %1223 = vmatprep.subr.mxu0 0.0
    %v1224 = vand.u32 %v124, 4294901760
    %v1225 = vsub.f32 %v124, %v1224
    %v1226 = vand.u32 %v1225, 4294901760
    %v1227 = vsub.f32 %v1225, %v1226
    %v1228 = vand.u32 %v1227, 4294901760
    %1229 = vmatpush1.msra.mxu0 %v1228
    %1230 = vmatprep.subr.mxu0 0.0
    %v1231 = vand.u32 %v125, 4294901760
    %v1232 = vsub.f32 %v125, %v1231
    %v1233 = vand.u32 %v1232, 4294901760
    %v1234 = vsub.f32 %v1232, %v1233
    %v1235 = vand.u32 %v1234, 4294901760
    %1236 = vmatpush1.msra.mxu0 %v1235
    %1237 = vmatprep.subr.mxu0 0.0
    %v1238 = vand.u32 %v126, 4294901760
    %v1239 = vsub.f32 %v126, %v1238
    %v1240 = vand.u32 %v1239, 4294901760
    %v1241 = vsub.f32 %v1239, %v1240
    %v1242 = vand.u32 %v1241, 4294901760
    %1243 = vmatpush1.msra.mxu0 %v1242
    %1244 = vmatprep.subr.mxu0 0.0
    %v1245 = vand.u32 %v127, 4294901760
    %v1246 = vsub.f32 %v127, %v1245
    %v1247 = vand.u32 %v1246, 4294901760
    %v1248 = vsub.f32 %v1246, %v1247
    %v1249 = vand.u32 %v1248, 4294901760
    %1250 = vmatpush1.msra.mxu0 %v1249
    %1251 = vmatprep.subr.mxu0 0.0
    %v1252 = vand.u32 %v128, 4294901760
    %v1253 = vsub.f32 %v128, %v1252
    %v1254 = vand.u32 %v1253, 4294901760
    %v1255 = vsub.f32 %v1253, %v1254
    %v1256 = vand.u32 %v1255, 4294901760
    %1257 = vmatpush1.msra.mxu0 %v1256
    %1258 = vmatprep.subr.mxu0 0.0
    %v1259 = vand.u32 %v129, 4294901760
    %v1260 = vsub.f32 %v129, %v1259
    %v1261 = vand.u32 %v1260, 4294901760
    %v1262 = vsub.f32 %v1260, %v1261
    %v1263 = vand.u32 %v1262, 4294901760
    %1264 = vmatpush1.msra.mxu0 %v1263
    %1265 = vmatprep.subr.mxu0 0.0
    %v1266 = vand.u32 %v130, 4294901760
    %v1267 = vsub.f32 %v130, %v1266
    %v1268 = vand.u32 %v1267, 4294901760
    %v1269 = vsub.f32 %v1267, %v1268
    %v1270 = vand.u32 %v1269, 4294901760
    %1271 = vmatpush1.msra.mxu0 %v1270
    %1272 = vmatprep.subr.mxu0 0.0
    %v1273 = vand.u32 %v131, 4294901760
    %v1274 = vsub.f32 %v131, %v1273
    %v1275 = vand.u32 %v1274, 4294901760
    %v1276 = vsub.f32 %v1274, %v1275
    %v1277 = vand.u32 %v1276, 4294901760
    %1278 = vmatpush1.msra.mxu0 %v1277
    %1279 = vmatprep.subr.mxu0 0.0
    %v1280 = vand.u32 %v132, 4294901760
    %v1281 = vsub.f32 %v132, %v1280
    %v1282 = vand.u32 %v1281, 4294901760
    %v1283 = vsub.f32 %v1281, %v1282
    %v1284 = vand.u32 %v1283, 4294901760
    %1285 = vmatpush1.msra.mxu0 %v1284
    %1286 = vmatprep.subr.mxu0 0.0
    %v1287 = vand.u32 %v133, 4294901760
    %v1288 = vsub.f32 %v133, %v1287
    %v1289 = vand.u32 %v1288, 4294901760
    %v1290 = vsub.f32 %v1288, %v1289
    %v1291 = vand.u32 %v1290, 4294901760
    %1292 = vmatpush1.msra.mxu0 %v1291
    %1293 = vmatprep.subr.mxu0 0.0
    %v1294 = vand.u32 %v134, 4294901760
    %v1295 = vsub.f32 %v134, %v1294
    %v1296 = vand.u32 %v1295, 4294901760
    %v1297 = vsub.f32 %v1295, %v1296
    %v1298 = vand.u32 %v1297, 4294901760
    %1299 = vmatpush1.msra.mxu0 %v1298
    %1300 = vmatprep.subr.mxu0 0.0
    %v1301 = vand.u32 %v135, 4294901760
    %v1302 = vsub.f32 %v135, %v1301
    %v1303 = vand.u32 %v1302, 4294901760
    %v1304 = vsub.f32 %v1302, %v1303
    %v1305 = vand.u32 %v1304, 4294901760
    %1306 = vmatpush1.msra.mxu0 %v1305
    %1307 = vmatprep.subr.mxu0 0.0
    %v1308 = vand.u32 %v136, 4294901760
    %v1309 = vsub.f32 %v136, %v1308
    %v1310 = vand.u32 %v1309, 4294901760
    %v1311 = vsub.f32 %v1309, %v1310
    %v1312 = vand.u32 %v1311, 4294901760
    %1313 = vmatpush1.msra.mxu0 %v1312
    %1314 = vmatprep.subr.mxu0 0.0
    %v1315 = vand.u32 %v137, 4294901760
    %v1316 = vsub.f32 %v137, %v1315
    %v1317 = vand.u32 %v1316, 4294901760
    %v1318 = vsub.f32 %v1316, %v1317
    %v1319 = vand.u32 %v1318, 4294901760
    %1320 = vmatpush1.msra.mxu0 %v1319
    %1321 = vmatprep.subr.mxu0 0.0
    %v1322 = vand.u32 %v138, 4294901760
    %v1323 = vsub.f32 %v138, %v1322
    %v1324 = vand.u32 %v1323, 4294901760
    %v1325 = vsub.f32 %v1323, %v1324
    %v1326 = vand.u32 %v1325, 4294901760
    %1327 = vmatpush1.msra.mxu0 %v1326
    %1328 = vmatprep.subr.mxu0 0.0
    %v1329 = vand.u32 %v139, 4294901760
    %v1330 = vsub.f32 %v139, %v1329
    %v1331 = vand.u32 %v1330, 4294901760
    %v1332 = vsub.f32 %v1330, %v1331
    %v1333 = vand.u32 %v1332, 4294901760
    %1334 = vmatpush1.msra.mxu0 %v1333
    %1335 = vmatprep.subr.mxu0 0.0
    %v1336 = vand.u32 %v140, 4294901760
    %v1337 = vsub.f32 %v140, %v1336
    %v1338 = vand.u32 %v1337, 4294901760
    %v1339 = vsub.f32 %v1337, %v1338
    %v1340 = vand.u32 %v1339, 4294901760
    %1341 = vmatpush1.msra.mxu0 %v1340
    %1342 = vmatprep.subr.mxu0 0.0
    %v1343 = vand.u32 %v141, 4294901760
    %v1344 = vsub.f32 %v141, %v1343
    %v1345 = vand.u32 %v1344, 4294901760
    %v1346 = vsub.f32 %v1344, %v1345
    %v1347 = vand.u32 %v1346, 4294901760
    %1348 = vmatpush1.msra.mxu0 %v1347
    %1349 = vmatprep.subr.mxu0 0.0
    %v1350 = vand.u32 %v142, 4294901760
    %v1351 = vsub.f32 %v142, %v1350
    %v1352 = vand.u32 %v1351, 4294901760
    %v1353 = vsub.f32 %v1351, %v1352
    %v1354 = vand.u32 %v1353, 4294901760
    %1355 = vmatpush1.msra.mxu0 %v1354
    %1356 = vmatprep.subr.mxu0 0.0
    %v1357 = vand.u32 %v143, 4294901760
    %v1358 = vsub.f32 %v143, %v1357
    %v1359 = vand.u32 %v1358, 4294901760
    %v1360 = vsub.f32 %v1358, %v1359
    %v1361 = vand.u32 %v1360, 4294901760
    %1362 = vmatpush1.msra.mxu0 %v1361
    %1363 = vmatprep.subr.mxu0 0.0
    %v1364 = vand.u32 %v144, 4294901760
    %v1365 = vsub.f32 %v144, %v1364
    %v1366 = vand.u32 %v1365, 4294901760
    %v1367 = vsub.f32 %v1365, %v1366
    %v1368 = vand.u32 %v1367, 4294901760
    %1369 = vmatpush1.msra.mxu0 %v1368
    %1370 = vmatprep.subr.mxu0 0.0
    %v1371 = vand.u32 %v145, 4294901760
    %v1372 = vsub.f32 %v145, %v1371
    %v1373 = vand.u32 %v1372, 4294901760
    %v1374 = vsub.f32 %v1372, %v1373
    %v1375 = vand.u32 %v1374, 4294901760
    %1376 = vmatpush1.msra.mxu0 %v1375
    %1377 = vmatprep.subr.mxu0 0.0
    %v1378 = vand.u32 %v146, 4294901760
    %v1379 = vsub.f32 %v146, %v1378
    %v1380 = vand.u32 %v1379, 4294901760
    %v1381 = vsub.f32 %v1379, %v1380
    %v1382 = vand.u32 %v1381, 4294901760
    %1383 = vmatpush1.msra.mxu0 %v1382
    %1384 = vmatprep.subr.mxu0 0.0
    %v1385 = vand.u32 %v147, 4294901760
    %v1386 = vsub.f32 %v147, %v1385
    %v1387 = vand.u32 %v1386, 4294901760
    %v1388 = vsub.f32 %v1386, %v1387
    %v1389 = vand.u32 %v1388, 4294901760
    %1390 = vmatpush1.msra.mxu0 %v1389
    %1391 = vmatprep.subr.mxu0 0.0
    %v1392 = vand.u32 %v148, 4294901760
    %v1393 = vsub.f32 %v148, %v1392
    %v1394 = vand.u32 %v1393, 4294901760
    %v1395 = vsub.f32 %v1393, %v1394
    %v1396 = vand.u32 %v1395, 4294901760
    %1397 = vmatpush1.msra.mxu0 %v1396
    %1398 = vmatprep.subr.mxu0 0.0
    %v1399 = vand.u32 %v149, 4294901760
    %v1400 = vsub.f32 %v149, %v1399
    %v1401 = vand.u32 %v1400, 4294901760
    %v1402 = vsub.f32 %v1400, %v1401
    %v1403 = vand.u32 %v1402, 4294901760
    %1404 = vmatpush1.msra.mxu0 %v1403
    %1405 = vmatprep.subr.mxu0 0.0
    %v1406 = vand.u32 %v150, 4294901760
    %v1407 = vsub.f32 %v150, %v1406
    %v1408 = vand.u32 %v1407, 4294901760
    %v1409 = vsub.f32 %v1407, %v1408
    %v1410 = vand.u32 %v1409, 4294901760
    %1411 = vmatpush1.msra.mxu0 %v1410
    %1412 = vmatprep.subr.mxu0 0.0
    %v1413 = vand.u32 %v151, 4294901760
    %v1414 = vsub.f32 %v151, %v1413
    %v1415 = vand.u32 %v1414, 4294901760
    %v1416 = vsub.f32 %v1414, %v1415
    %v1417 = vand.u32 %v1416, 4294901760
    %1418 = vmatpush1.msra.mxu0 %v1417
    %v1419 = vand.u32 %v83, 4294901760
    %1420 = vmatprep.mubr.f32.mxu0 %v1419
    %v1421 = vand.u32 %v82, 4294901760
    %1422 = vmatmul.mubr.f32.gmra.mrb[0].mxu0 %v1421
    %v1423 = vpop.f32.mrb[0].mxu0
    %v1424 = vadd.f32 %v1192, %v1423
    %v1425 = vpop.f32.mrb[0].mxu0
    %1426 = vdwg.mxu0
    %1427 = vmatprep.subr.mxu0 0.0
    %v1428 = vand.u32 %v120, 4294901760
    %v1429 = vsub.f32 %v120, %v1428
    %1430 = vmatpush1.msra.mxu0 %v1429
    %1431 = vmatprep.subr.mxu0 0.0
    %v1432 = vand.u32 %v121, 4294901760
    %v1433 = vsub.f32 %v121, %v1432
    %1434 = vmatpush1.msra.mxu0 %v1433
    %1435 = vmatprep.subr.mxu0 0.0
    %v1436 = vand.u32 %v122, 4294901760
    %v1437 = vsub.f32 %v122, %v1436
    %1438 = vmatpush1.msra.mxu0 %v1437
    %1439 = vmatprep.subr.mxu0 0.0
    %v1440 = vand.u32 %v123, 4294901760
    %v1441 = vsub.f32 %v123, %v1440
    %1442 = vmatpush1.msra.mxu0 %v1441
    %1443 = vmatprep.subr.mxu0 0.0
    %v1444 = vand.u32 %v124, 4294901760
    %v1445 = vsub.f32 %v124, %v1444
    %1446 = vmatpush1.msra.mxu0 %v1445
    %1447 = vmatprep.subr.mxu0 0.0
    %v1448 = vand.u32 %v125, 4294901760
    %v1449 = vsub.f32 %v125, %v1448
    %1450 = vmatpush1.msra.mxu0 %v1449
    %1451 = vmatprep.subr.mxu0 0.0
    %v1452 = vand.u32 %v126, 4294901760
    %v1453 = vsub.f32 %v126, %v1452
    %1454 = vmatpush1.msra.mxu0 %v1453
    %1455 = vmatprep.subr.mxu0 0.0
    %v1456 = vand.u32 %v127, 4294901760
    %v1457 = vsub.f32 %v127, %v1456
    %1458 = vmatpush1.msra.mxu0 %v1457
    %1459 = vmatprep.subr.mxu0 0.0
    %v1460 = vand.u32 %v128, 4294901760
    %v1461 = vsub.f32 %v128, %v1460
    %1462 = vmatpush1.msra.mxu0 %v1461
    %1463 = vmatprep.subr.mxu0 0.0
    %v1464 = vand.u32 %v129, 4294901760
    %v1465 = vsub.f32 %v129, %v1464
    %1466 = vmatpush1.msra.mxu0 %v1465
    %1467 = vmatprep.subr.mxu0 0.0
    %v1468 = vand.u32 %v130, 4294901760
    %v1469 = vsub.f32 %v130, %v1468
    %1470 = vmatpush1.msra.mxu0 %v1469
    %1471 = vmatprep.subr.mxu0 0.0
    %v1472 = vand.u32 %v131, 4294901760
    %v1473 = vsub.f32 %v131, %v1472
    %1474 = vmatpush1.msra.mxu0 %v1473
    %1475 = vmatprep.subr.mxu0 0.0
    %v1476 = vand.u32 %v132, 4294901760
    %v1477 = vsub.f32 %v132, %v1476
    %1478 = vmatpush1.msra.mxu0 %v1477
    %1479 = vmatprep.subr.mxu0 0.0
    %v1480 = vand.u32 %v133, 4294901760
    %v1481 = vsub.f32 %v133, %v1480
    %1482 = vmatpush1.msra.mxu0 %v1481
    %1483 = vmatprep.subr.mxu0 0.0
    %v1484 = vand.u32 %v134, 4294901760
    %v1485 = vsub.f32 %v134, %v1484
    %1486 = vmatpush1.msra.mxu0 %v1485
    %1487 = vmatprep.subr.mxu0 0.0
    %v1488 = vand.u32 %v135, 4294901760
    %v1489 = vsub.f32 %v135, %v1488
    %1490 = vmatpush1.msra.mxu0 %v1489
    %1491 = vmatprep.subr.mxu0 0.0
    %v1492 = vand.u32 %v136, 4294901760
    %v1493 = vsub.f32 %v136, %v1492
    %1494 = vmatpush1.msra.mxu0 %v1493
    %1495 = vmatprep.subr.mxu0 0.0
    %v1496 = vand.u32 %v137, 4294901760
    %v1497 = vsub.f32 %v137, %v1496
    %1498 = vmatpush1.msra.mxu0 %v1497
    %1499 = vmatprep.subr.mxu0 0.0
    %v1500 = vand.u32 %v138, 4294901760
    %v1501 = vsub.f32 %v138, %v1500
    %1502 = vmatpush1.msra.mxu0 %v1501
    %1503 = vmatprep.subr.mxu0 0.0
    %v1504 = vand.u32 %v139, 4294901760
    %v1505 = vsub.f32 %v139, %v1504
    %1506 = vmatpush1.msra.mxu0 %v1505
    %1507 = vmatprep.subr.mxu0 0.0
    %v1508 = vand.u32 %v140, 4294901760
    %v1509 = vsub.f32 %v140, %v1508
    %1510 = vmatpush1.msra.mxu0 %v1509
    %1511 = vmatprep.subr.mxu0 0.0
    %v1512 = vand.u32 %v141, 4294901760
    %v1513 = vsub.f32 %v141, %v1512
    %1514 = vmatpush1.msra.mxu0 %v1513
    %1515 = vmatprep.subr.mxu0 0.0
    %v1516 = vand.u32 %v142, 4294901760
    %v1517 = vsub.f32 %v142, %v1516
    %1518 = vmatpush1.msra.mxu0 %v1517
    %1519 = vmatprep.subr.mxu0 0.0
    %v1520 = vand.u32 %v143, 4294901760
    %v1521 = vsub.f32 %v143, %v1520
    %1522 = vmatpush1.msra.mxu0 %v1521
    %1523 = vmatprep.subr.mxu0 0.0
    %v1524 = vand.u32 %v144, 4294901760
    %v1525 = vsub.f32 %v144, %v1524
    %1526 = vmatpush1.msra.mxu0 %v1525
    %1527 = vmatprep.subr.mxu0 0.0
    %v1528 = vand.u32 %v145, 4294901760
    %v1529 = vsub.f32 %v145, %v1528
    %1530 = vmatpush1.msra.mxu0 %v1529
    %1531 = vmatprep.subr.mxu0 0.0
    %v1532 = vand.u32 %v146, 4294901760
    %v1533 = vsub.f32 %v146, %v1532
    %1534 = vmatpush1.msra.mxu0 %v1533
    %1535 = vmatprep.subr.mxu0 0.0
    %v1536 = vand.u32 %v147, 4294901760
    %v1537 = vsub.f32 %v147, %v1536
    %1538 = vmatpush1.msra.mxu0 %v1537
    %1539 = vmatprep.subr.mxu0 0.0
    %v1540 = vand.u32 %v148, 4294901760
    %v1541 = vsub.f32 %v148, %v1540
    %1542 = vmatpush1.msra.mxu0 %v1541
    %1543 = vmatprep.subr.mxu0 0.0
    %v1544 = vand.u32 %v149, 4294901760
    %v1545 = vsub.f32 %v149, %v1544
    %1546 = vmatpush1.msra.mxu0 %v1545
    %1547 = vmatprep.subr.mxu0 0.0
    %v1548 = vand.u32 %v150, 4294901760
    %v1549 = vsub.f32 %v150, %v1548
    %1550 = vmatpush1.msra.mxu0 %v1549
    %1551 = vmatprep.subr.mxu0 0.0
    %v1552 = vand.u32 %v151, 4294901760
    %v1553 = vsub.f32 %v151, %v1552
    %1554 = vmatpush1.msra.mxu0 %v1553
    %v1555 = vand.u32 %v83, 4294901760
    %v1556 = vsub.f32 %v83, %v1555
    %1557 = vmatprep.mubr.f32.mxu0 %v1556
    %v1558 = vand.u32 %v82, 4294901760
    %v1559 = vsub.f32 %v82, %v1558
    %1560 = vmatmul.mubr.f32.gmra.mrb[0].mxu0 %v1559
    %v1561 = vpop.f32.mrb[0].mxu0
    %v1562 = vadd.f32 %v1424, %v1561
    %v1563 = vpop.f32.mrb[0].mxu0
    %1564 = vdwg.mxu0
    %1565 = vmatprep.subr.mxu0 0.0
    %v1566 = vand.u32 %v120, 4294901760
    %1567 = vmatpush1.msra.mxu0 %v1566
    %1568 = vmatprep.subr.mxu0 0.0
    %v1569 = vand.u32 %v121, 4294901760
    %1570 = vmatpush1.msra.mxu0 %v1569
    %1571 = vmatprep.subr.mxu0 0.0
    %v1572 = vand.u32 %v122, 4294901760
    %1573 = vmatpush1.msra.mxu0 %v1572
    %1574 = vmatprep.subr.mxu0 0.0
    %v1575 = vand.u32 %v123, 4294901760
    %1576 = vmatpush1.msra.mxu0 %v1575
    %1577 = vmatprep.subr.mxu0 0.0
    %v1578 = vand.u32 %v124, 4294901760
    %1579 = vmatpush1.msra.mxu0 %v1578
    %1580 = vmatprep.subr.mxu0 0.0
    %v1581 = vand.u32 %v125, 4294901760
    %1582 = vmatpush1.msra.mxu0 %v1581
    %1583 = vmatprep.subr.mxu0 0.0
    %v1584 = vand.u32 %v126, 4294901760
    %1585 = vmatpush1.msra.mxu0 %v1584
    %1586 = vmatprep.subr.mxu0 0.0
    %v1587 = vand.u32 %v127, 4294901760
    %1588 = vmatpush1.msra.mxu0 %v1587
    %1589 = vmatprep.subr.mxu0 0.0
    %v1590 = vand.u32 %v128, 4294901760
    %1591 = vmatpush1.msra.mxu0 %v1590
    %1592 = vmatprep.subr.mxu0 0.0
    %v1593 = vand.u32 %v129, 4294901760
    %1594 = vmatpush1.msra.mxu0 %v1593
    %1595 = vmatprep.subr.mxu0 0.0
    %v1596 = vand.u32 %v130, 4294901760
    %1597 = vmatpush1.msra.mxu0 %v1596
    %1598 = vmatprep.subr.mxu0 0.0
    %v1599 = vand.u32 %v131, 4294901760
    %1600 = vmatpush1.msra.mxu0 %v1599
    %1601 = vmatprep.subr.mxu0 0.0
    %v1602 = vand.u32 %v132, 4294901760
    %1603 = vmatpush1.msra.mxu0 %v1602
    %1604 = vmatprep.subr.mxu0 0.0
    %v1605 = vand.u32 %v133, 4294901760
    %1606 = vmatpush1.msra.mxu0 %v1605
    %1607 = vmatprep.subr.mxu0 0.0
    %v1608 = vand.u32 %v134, 4294901760
    %1609 = vmatpush1.msra.mxu0 %v1608
    %1610 = vmatprep.subr.mxu0 0.0
    %v1611 = vand.u32 %v135, 4294901760
    %1612 = vmatpush1.msra.mxu0 %v1611
    %1613 = vmatprep.subr.mxu0 0.0
    %v1614 = vand.u32 %v136, 4294901760
    %1615 = vmatpush1.msra.mxu0 %v1614
    %1616 = vmatprep.subr.mxu0 0.0
    %v1617 = vand.u32 %v137, 4294901760
    %1618 = vmatpush1.msra.mxu0 %v1617
    %1619 = vmatprep.subr.mxu0 0.0
    %v1620 = vand.u32 %v138, 4294901760
    %1621 = vmatpush1.msra.mxu0 %v1620
    %1622 = vmatprep.subr.mxu0 0.0
    %v1623 = vand.u32 %v139, 4294901760
    %1624 = vmatpush1.msra.mxu0 %v1623
    %1625 = vmatprep.subr.mxu0 0.0
    %v1626 = vand.u32 %v140, 4294901760
    %1627 = vmatpush1.msra.mxu0 %v1626
    %1628 = vmatprep.subr.mxu0 0.0
    %v1629 = vand.u32 %v141, 4294901760
    %1630 = vmatpush1.msra.mxu0 %v1629
    %1631 = vmatprep.subr.mxu0 0.0
    %v1632 = vand.u32 %v142, 4294901760
    %1633 = vmatpush1.msra.mxu0 %v1632
    %1634 = vmatprep.subr.mxu0 0.0
    %v1635 = vand.u32 %v143, 4294901760
    %1636 = vmatpush1.msra.mxu0 %v1635
    %1637 = vmatprep.subr.mxu0 0.0
    %v1638 = vand.u32 %v144, 4294901760
    %1639 = vmatpush1.msra.mxu0 %v1638
    %1640 = vmatprep.subr.mxu0 0.0
    %v1641 = vand.u32 %v145, 4294901760
    %1642 = vmatpush1.msra.mxu0 %v1641
    %1643 = vmatprep.subr.mxu0 0.0
    %v1644 = vand.u32 %v146, 4294901760
    %1645 = vmatpush1.msra.mxu0 %v1644
    %1646 = vmatprep.subr.mxu0 0.0
    %v1647 = vand.u32 %v147, 4294901760
    %1648 = vmatpush1.msra.mxu0 %v1647
    %1649 = vmatprep.subr.mxu0 0.0
    %v1650 = vand.u32 %v148, 4294901760
    %1651 = vmatpush1.msra.mxu0 %v1650
    %1652 = vmatprep.subr.mxu0 0.0
    %v1653 = vand.u32 %v149, 4294901760
    %1654 = vmatpush1.msra.mxu0 %v1653
    %1655 = vmatprep.subr.mxu0 0.0
    %v1656 = vand.u32 %v150, 4294901760
    %1657 = vmatpush1.msra.mxu0 %v1656
    %1658 = vmatprep.subr.mxu0 0.0
    %v1659 = vand.u32 %v151, 4294901760
    %1660 = vmatpush1.msra.mxu0 %v1659
    %v1661 = vand.u32 %v83, 4294901760
    %v1662 = vsub.f32 %v83, %v1661
    %v1663 = vand.u32 %v1662, 4294901760
    %1664 = vmatprep.mubr.f32.mxu0 %v1663
    %v1665 = vand.u32 %v82, 4294901760
    %v1666 = vsub.f32 %v82, %v1665
    %v1667 = vand.u32 %v1666, 4294901760
    %1668 = vmatmul.mubr.f32.gmra.mrb[0].mxu0 %v1667
    %v1669 = vpop.f32.mrb[0].mxu0
    %v1670 = vadd.f32 %v1562, %v1669
    %v1671 = vpop.f32.mrb[0].mxu0
    %1672 = vdwg.mxu0
    %1673 = vmatprep.subr.mxu0 0.0
    %v1674 = vand.u32 %v120, 4294901760
    %v1675 = vsub.f32 %v120, %v1674
    %v1676 = vand.u32 %v1675, 4294901760
    %1677 = vmatpush1.msra.mxu0 %v1676
    %1678 = vmatprep.subr.mxu0 0.0
    %v1679 = vand.u32 %v121, 4294901760
    %v1680 = vsub.f32 %v121, %v1679
    %v1681 = vand.u32 %v1680, 4294901760
    %1682 = vmatpush1.msra.mxu0 %v1681
    %1683 = vmatprep.subr.mxu0 0.0
    %v1684 = vand.u32 %v122, 4294901760
    %v1685 = vsub.f32 %v122, %v1684
    %v1686 = vand.u32 %v1685, 4294901760
    %1687 = vmatpush1.msra.mxu0 %v1686
    %1688 = vmatprep.subr.mxu0 0.0
    %v1689 = vand.u32 %v123, 4294901760
    %v1690 = vsub.f32 %v123, %v1689
    %v1691 = vand.u32 %v1690, 4294901760
    %1692 = vmatpush1.msra.mxu0 %v1691
    %1693 = vmatprep.subr.mxu0 0.0
    %v1694 = vand.u32 %v124, 4294901760
    %v1695 = vsub.f32 %v124, %v1694
    %v1696 = vand.u32 %v1695, 4294901760
    %1697 = vmatpush1.msra.mxu0 %v1696
    %1698 = vmatprep.subr.mxu0 0.0
    %v1699 = vand.u32 %v125, 4294901760
    %v1700 = vsub.f32 %v125, %v1699
    %v1701 = vand.u32 %v1700, 4294901760
    %1702 = vmatpush1.msra.mxu0 %v1701
    %1703 = vmatprep.subr.mxu0 0.0
    %v1704 = vand.u32 %v126, 4294901760
    %v1705 = vsub.f32 %v126, %v1704
    %v1706 = vand.u32 %v1705, 4294901760
    %1707 = vmatpush1.msra.mxu0 %v1706
    %1708 = vmatprep.subr.mxu0 0.0
    %v1709 = vand.u32 %v127, 4294901760
    %v1710 = vsub.f32 %v127, %v1709
    %v1711 = vand.u32 %v1710, 4294901760
    %1712 = vmatpush1.msra.mxu0 %v1711
    %1713 = vmatprep.subr.mxu0 0.0
    %v1714 = vand.u32 %v128, 4294901760
    %v1715 = vsub.f32 %v128, %v1714
    %v1716 = vand.u32 %v1715, 4294901760
    %1717 = vmatpush1.msra.mxu0 %v1716
    %1718 = vmatprep.subr.mxu0 0.0
    %v1719 = vand.u32 %v129, 4294901760
    %v1720 = vsub.f32 %v129, %v1719
    %v1721 = vand.u32 %v1720, 4294901760
    %1722 = vmatpush1.msra.mxu0 %v1721
    %1723 = vmatprep.subr.mxu0 0.0
    %v1724 = vand.u32 %v130, 4294901760
    %v1725 = vsub.f32 %v130, %v1724
    %v1726 = vand.u32 %v1725, 4294901760
    %1727 = vmatpush1.msra.mxu0 %v1726
    %1728 = vmatprep.subr.mxu0 0.0
    %v1729 = vand.u32 %v131, 4294901760
    %v1730 = vsub.f32 %v131, %v1729
    %v1731 = vand.u32 %v1730, 4294901760
    %1732 = vmatpush1.msra.mxu0 %v1731
    %1733 = vmatprep.subr.mxu0 0.0
    %v1734 = vand.u32 %v132, 4294901760
    %v1735 = vsub.f32 %v132, %v1734
    %v1736 = vand.u32 %v1735, 4294901760
    %1737 = vmatpush1.msra.mxu0 %v1736
    %1738 = vmatprep.subr.mxu0 0.0
    %v1739 = vand.u32 %v133, 4294901760
    %v1740 = vsub.f32 %v133, %v1739
    %v1741 = vand.u32 %v1740, 4294901760
    %1742 = vmatpush1.msra.mxu0 %v1741
    %1743 = vmatprep.subr.mxu0 0.0
    %v1744 = vand.u32 %v134, 4294901760
    %v1745 = vsub.f32 %v134, %v1744
    %v1746 = vand.u32 %v1745, 4294901760
    %1747 = vmatpush1.msra.mxu0 %v1746
    %1748 = vmatprep.subr.mxu0 0.0
    %v1749 = vand.u32 %v135, 4294901760
    %v1750 = vsub.f32 %v135, %v1749
    %v1751 = vand.u32 %v1750, 4294901760
    %1752 = vmatpush1.msra.mxu0 %v1751
    %1753 = vmatprep.subr.mxu0 0.0
    %v1754 = vand.u32 %v136, 4294901760
    %v1755 = vsub.f32 %v136, %v1754
    %v1756 = vand.u32 %v1755, 4294901760
    %1757 = vmatpush1.msra.mxu0 %v1756
    %1758 = vmatprep.subr.mxu0 0.0
    %v1759 = vand.u32 %v137, 4294901760
    %v1760 = vsub.f32 %v137, %v1759
    %v1761 = vand.u32 %v1760, 4294901760
    %1762 = vmatpush1.msra.mxu0 %v1761
    %1763 = vmatprep.subr.mxu0 0.0
    %v1764 = vand.u32 %v138, 4294901760
    %v1765 = vsub.f32 %v138, %v1764
    %v1766 = vand.u32 %v1765, 4294901760
    %1767 = vmatpush1.msra.mxu0 %v1766
    %1768 = vmatprep.subr.mxu0 0.0
    %v1769 = vand.u32 %v139, 4294901760
    %v1770 = vsub.f32 %v139, %v1769
    %v1771 = vand.u32 %v1770, 4294901760
    %1772 = vmatpush1.msra.mxu0 %v1771
    %1773 = vmatprep.subr.mxu0 0.0
    %v1774 = vand.u32 %v140, 4294901760
    %v1775 = vsub.f32 %v140, %v1774
    %v1776 = vand.u32 %v1775, 4294901760
    %1777 = vmatpush1.msra.mxu0 %v1776
    %1778 = vmatprep.subr.mxu0 0.0
    %v1779 = vand.u32 %v141, 4294901760
    %v1780 = vsub.f32 %v141, %v1779
    %v1781 = vand.u32 %v1780, 4294901760
    %1782 = vmatpush1.msra.mxu0 %v1781
    %1783 = vmatprep.subr.mxu0 0.0
    %v1784 = vand.u32 %v142, 4294901760
    %v1785 = vsub.f32 %v142, %v1784
    %v1786 = vand.u32 %v1785, 4294901760
    %1787 = vmatpush1.msra.mxu0 %v1786
    %1788 = vmatprep.subr.mxu0 0.0
    %v1789 = vand.u32 %v143, 4294901760
    %v1790 = vsub.f32 %v143, %v1789
    %v1791 = vand.u32 %v1790, 4294901760
    %1792 = vmatpush1.msra.mxu0 %v1791
    %1793 = vmatprep.subr.mxu0 0.0
    %v1794 = vand.u32 %v144, 4294901760
    %v1795 = vsub.f32 %v144, %v1794
    %v1796 = vand.u32 %v1795, 4294901760
    %1797 = vmatpush1.msra.mxu0 %v1796
    %1798 = vmatprep.subr.mxu0 0.0
    %v1799 = vand.u32 %v145, 4294901760
    %v1800 = vsub.f32 %v145, %v1799
    %v1801 = vand.u32 %v1800, 4294901760
    %1802 = vmatpush1.msra.mxu0 %v1801
    %1803 = vmatprep.subr.mxu0 0.0
    %v1804 = vand.u32 %v146, 4294901760
    %v1805 = vsub.f32 %v146, %v1804
    %v1806 = vand.u32 %v1805, 4294901760
    %1807 = vmatpush1.msra.mxu0 %v1806
    %1808 = vmatprep.subr.mxu0 0.0
    %v1809 = vand.u32 %v147, 4294901760
    %v1810 = vsub.f32 %v147, %v1809
    %v1811 = vand.u32 %v1810, 4294901760
    %1812 = vmatpush1.msra.mxu0 %v1811
    %1813 = vmatprep.subr.mxu0 0.0
    %v1814 = vand.u32 %v148, 4294901760
    %v1815 = vsub.f32 %v148, %v1814
    %v1816 = vand.u32 %v1815, 4294901760
    %1817 = vmatpush1.msra.mxu0 %v1816
    %1818 = vmatprep.subr.mxu0 0.0
    %v1819 = vand.u32 %v149, 4294901760
    %v1820 = vsub.f32 %v149, %v1819
    %v1821 = vand.u32 %v1820, 4294901760
    %1822 = vmatpush1.msra.mxu0 %v1821
    %1823 = vmatprep.subr.mxu0 0.0
    %v1824 = vand.u32 %v150, 4294901760
    %v1825 = vsub.f32 %v150, %v1824
    %v1826 = vand.u32 %v1825, 4294901760
    %1827 = vmatpush1.msra.mxu0 %v1826
    %1828 = vmatprep.subr.mxu0 0.0
    %v1829 = vand.u32 %v151, 4294901760
    %v1830 = vsub.f32 %v151, %v1829
    %v1831 = vand.u32 %v1830, 4294901760
    %1832 = vmatpush1.msra.mxu0 %v1831
    %v1833 = vand.u32 %v83, 4294901760
    %1834 = vmatprep.mubr.f32.mxu0 %v1833
    %v1835 = vand.u32 %v82, 4294901760
    %1836 = vmatmul.mubr.f32.gmra.mrb[0].mxu0 %v1835
    %v1837 = vpop.f32.mrb[0].mxu0
    %v1838 = vadd.f32 %v1670, %v1837
    %v1839 = vpop.f32.mrb[0].mxu0
    %1840 = vdwg.mxu0
    %1841 = vmatprep.subr.mxu0 0.0
    %v1842 = vand.u32 %v120, 4294901760
    %1843 = vmatpush1.msra.mxu0 %v1842
    %1844 = vmatprep.subr.mxu0 0.0
    %v1845 = vand.u32 %v121, 4294901760
    %1846 = vmatpush1.msra.mxu0 %v1845
    %1847 = vmatprep.subr.mxu0 0.0
    %v1848 = vand.u32 %v122, 4294901760
    %1849 = vmatpush1.msra.mxu0 %v1848
    %1850 = vmatprep.subr.mxu0 0.0
    %v1851 = vand.u32 %v123, 4294901760
    %1852 = vmatpush1.msra.mxu0 %v1851
    %1853 = vmatprep.subr.mxu0 0.0
    %v1854 = vand.u32 %v124, 4294901760
    %1855 = vmatpush1.msra.mxu0 %v1854
    %1856 = vmatprep.subr.mxu0 0.0
    %v1857 = vand.u32 %v125, 4294901760
    %1858 = vmatpush1.msra.mxu0 %v1857
    %1859 = vmatprep.subr.mxu0 0.0
    %v1860 = vand.u32 %v126, 4294901760
    %1861 = vmatpush1.msra.mxu0 %v1860
    %1862 = vmatprep.subr.mxu0 0.0
    %v1863 = vand.u32 %v127, 4294901760
    %1864 = vmatpush1.msra.mxu0 %v1863
    %1865 = vmatprep.subr.mxu0 0.0
    %v1866 = vand.u32 %v128, 4294901760
    %1867 = vmatpush1.msra.mxu0 %v1866
    %1868 = vmatprep.subr.mxu0 0.0
    %v1869 = vand.u32 %v129, 4294901760
    %1870 = vmatpush1.msra.mxu0 %v1869
    %1871 = vmatprep.subr.mxu0 0.0
    %v1872 = vand.u32 %v130, 4294901760
    %1873 = vmatpush1.msra.mxu0 %v1872
    %1874 = vmatprep.subr.mxu0 0.0
    %v1875 = vand.u32 %v131, 4294901760
    %1876 = vmatpush1.msra.mxu0 %v1875
    %1877 = vmatprep.subr.mxu0 0.0
    %v1878 = vand.u32 %v132, 4294901760
    %1879 = vmatpush1.msra.mxu0 %v1878
    %1880 = vmatprep.subr.mxu0 0.0
    %v1881 = vand.u32 %v133, 4294901760
    %1882 = vmatpush1.msra.mxu0 %v1881
    %1883 = vmatprep.subr.mxu0 0.0
    %v1884 = vand.u32 %v134, 4294901760
    %1885 = vmatpush1.msra.mxu0 %v1884
    %1886 = vmatprep.subr.mxu0 0.0
    %v1887 = vand.u32 %v135, 4294901760
    %1888 = vmatpush1.msra.mxu0 %v1887
    %1889 = vmatprep.subr.mxu0 0.0
    %v1890 = vand.u32 %v136, 4294901760
    %1891 = vmatpush1.msra.mxu0 %v1890
    %1892 = vmatprep.subr.mxu0 0.0
    %v1893 = vand.u32 %v137, 4294901760
    %1894 = vmatpush1.msra.mxu0 %v1893
    %1895 = vmatprep.subr.mxu0 0.0
    %v1896 = vand.u32 %v138, 4294901760
    %1897 = vmatpush1.msra.mxu0 %v1896
    %1898 = vmatprep.subr.mxu0 0.0
    %v1899 = vand.u32 %v139, 4294901760
    %1900 = vmatpush1.msra.mxu0 %v1899
    %1901 = vmatprep.subr.mxu0 0.0
    %v1902 = vand.u32 %v140, 4294901760
    %1903 = vmatpush1.msra.mxu0 %v1902
    %1904 = vmatprep.subr.mxu0 0.0
    %v1905 = vand.u32 %v141, 4294901760
    %1906 = vmatpush1.msra.mxu0 %v1905
    %1907 = vmatprep.subr.mxu0 0.0
    %v1908 = vand.u32 %v142, 4294901760
    %1909 = vmatpush1.msra.mxu0 %v1908
    %1910 = vmatprep.subr.mxu0 0.0
    %v1911 = vand.u32 %v143, 4294901760
    %1912 = vmatpush1.msra.mxu0 %v1911
    %1913 = vmatprep.subr.mxu0 0.0
    %v1914 = vand.u32 %v144, 4294901760
    %1915 = vmatpush1.msra.mxu0 %v1914
    %1916 = vmatprep.subr.mxu0 0.0
    %v1917 = vand.u32 %v145, 4294901760
    %1918 = vmatpush1.msra.mxu0 %v1917
    %1919 = vmatprep.subr.mxu0 0.0
    %v1920 = vand.u32 %v146, 4294901760
    %1921 = vmatpush1.msra.mxu0 %v1920
    %1922 = vmatprep.subr.mxu0 0.0
    %v1923 = vand.u32 %v147, 4294901760
    %1924 = vmatpush1.msra.mxu0 %v1923
    %1925 = vmatprep.subr.mxu0 0.0
    %v1926 = vand.u32 %v148, 4294901760
    %1927 = vmatpush1.msra.mxu0 %v1926
    %1928 = vmatprep.subr.mxu0 0.0
    %v1929 = vand.u32 %v149, 4294901760
    %1930 = vmatpush1.msra.mxu0 %v1929
    %1931 = vmatprep.subr.mxu0 0.0
    %v1932 = vand.u32 %v150, 4294901760
    %1933 = vmatpush1.msra.mxu0 %v1932
    %1934 = vmatprep.subr.mxu0 0.0
    %v1935 = vand.u32 %v151, 4294901760
    %1936 = vmatpush1.msra.mxu0 %v1935
    %v1937 = vand.u32 %v83, 4294901760
    %1938 = vmatprep.mubr.f32.mxu0 %v1937
    %v1939 = vand.u32 %v82, 4294901760
    %1940 = vmatmul.mubr.f32.gmra.mrb[0].mxu0 %v1939
    %v1941 = vpop.f32.mrb[0].mxu0
    %v1942 = vadd.f32 %v1838, %v1941
    %v1943 = vpop.f32.mrb[0].mxu0
    %1944 = vdwg.mxu0
    %1945 = vmatprep.subr.mxu0 0.0
    %v1946 = vand.u32 %v152, 4294901760
    %1947 = vmatpush1.msra.mxu0 %v1946
    %1948 = vmatprep.subr.mxu0 0.0
    %v1949 = vand.u32 %v153, 4294901760
    %1950 = vmatpush1.msra.mxu0 %v1949
    %1951 = vmatprep.subr.mxu0 0.0
    %v1952 = vand.u32 %v154, 4294901760
    %1953 = vmatpush1.msra.mxu0 %v1952
    %1954 = vmatprep.subr.mxu0 0.0
    %v1955 = vand.u32 %v155, 4294901760
    %1956 = vmatpush1.msra.mxu0 %v1955
    %1957 = vmatprep.subr.mxu0 0.0
    %v1958 = vand.u32 %v156, 4294901760
    %1959 = vmatpush1.msra.mxu0 %v1958
    %1960 = vmatprep.subr.mxu0 0.0
    %v1961 = vand.u32 %v157, 4294901760
    %1962 = vmatpush1.msra.mxu0 %v1961
    %1963 = vmatprep.subr.mxu0 0.0
    %v1964 = vand.u32 %v158, 4294901760
    %1965 = vmatpush1.msra.mxu0 %v1964
    %1966 = vmatprep.subr.mxu0 0.0
    %v1967 = vand.u32 %v159, 4294901760
    %1968 = vmatpush1.msra.mxu0 %v1967
    %1969 = vmatprep.subr.mxu0 0.0
    %v1970 = vand.u32 %v160, 4294901760
    %1971 = vmatpush1.msra.mxu0 %v1970
    %1972 = vmatprep.subr.mxu0 0.0
    %v1973 = vand.u32 %v161, 4294901760
    %1974 = vmatpush1.msra.mxu0 %v1973
    %1975 = vmatprep.subr.mxu0 0.0
    %v1976 = vand.u32 %v162, 4294901760
    %1977 = vmatpush1.msra.mxu0 %v1976
    %1978 = vmatprep.subr.mxu0 0.0
    %v1979 = vand.u32 %v163, 4294901760
    %1980 = vmatpush1.msra.mxu0 %v1979
    %1981 = vmatprep.subr.mxu0 0.0
    %v1982 = vand.u32 %v164, 4294901760
    %1983 = vmatpush1.msra.mxu0 %v1982
    %1984 = vmatprep.subr.mxu0 0.0
    %v1985 = vand.u32 %v165, 4294901760
    %1986 = vmatpush1.msra.mxu0 %v1985
    %1987 = vmatprep.subr.mxu0 0.0
    %v1988 = vand.u32 %v166, 4294901760
    %1989 = vmatpush1.msra.mxu0 %v1988
    %1990 = vmatprep.subr.mxu0 0.0
    %v1991 = vand.u32 %v167, 4294901760
    %1992 = vmatpush1.msra.mxu0 %v1991
    %1993 = vmatprep.subr.mxu0 0.0
    %v1994 = vand.u32 %v168, 4294901760
    %1995 = vmatpush1.msra.mxu0 %v1994
    %1996 = vmatprep.subr.mxu0 0.0
    %v1997 = vand.u32 %v169, 4294901760
    %1998 = vmatpush1.msra.mxu0 %v1997
    %1999 = vmatprep.subr.mxu0 0.0
    %v2000 = vand.u32 %v170, 4294901760
    %2001 = vmatpush1.msra.mxu0 %v2000
    %2002 = vmatprep.subr.mxu0 0.0
    %v2003 = vand.u32 %v171, 4294901760
    %2004 = vmatpush1.msra.mxu0 %v2003
    %2005 = vmatprep.subr.mxu0 0.0
    %v2006 = vand.u32 %v172, 4294901760
    %2007 = vmatpush1.msra.mxu0 %v2006
    %2008 = vmatprep.subr.mxu0 0.0
    %v2009 = vand.u32 %v173, 4294901760
    %2010 = vmatpush1.msra.mxu0 %v2009
    %2011 = vmatprep.subr.mxu0 0.0
    %v2012 = vand.u32 %v174, 4294901760
    %2013 = vmatpush1.msra.mxu0 %v2012
    %2014 = vmatprep.subr.mxu0 0.0
    %v2015 = vand.u32 %v175, 4294901760
    %2016 = vmatpush1.msra.mxu0 %v2015
    %2017 = vmatprep.subr.mxu0 0.0
    %v2018 = vand.u32 %v176, 4294901760
    %2019 = vmatpush1.msra.mxu0 %v2018
    %2020 = vmatprep.subr.mxu0 0.0
    %v2021 = vand.u32 %v177, 4294901760
    %2022 = vmatpush1.msra.mxu0 %v2021
    %2023 = vmatprep.subr.mxu0 0.0
    %v2024 = vand.u32 %v178, 4294901760
    %2025 = vmatpush1.msra.mxu0 %v2024
    %2026 = vmatprep.subr.mxu0 0.0
    %v2027 = vand.u32 %v179, 4294901760
    %2028 = vmatpush1.msra.mxu0 %v2027
    %2029 = vmatprep.subr.mxu0 0.0
    %v2030 = vand.u32 %v180, 4294901760
    %2031 = vmatpush1.msra.mxu0 %v2030
    %2032 = vmatprep.subr.mxu0 0.0
    %v2033 = vand.u32 %v181, 4294901760
    %2034 = vmatpush1.msra.mxu0 %v2033
    %2035 = vmatprep.subr.mxu0 0.0
    %v2036 = vand.u32 %v182, 4294901760
    %2037 = vmatpush1.msra.mxu0 %v2036
    %2038 = vmatprep.subr.mxu0 0.0
    %v2039 = vand.u32 %v183, 4294901760
    %2040 = vmatpush1.msra.mxu0 %v2039
    %v2041 = vand.u32 %v85, 4294901760
    %v2042 = vsub.f32 %v85, %v2041
    %v2043 = vand.u32 %v2042, 4294901760
    %v2044 = vsub.f32 %v2042, %v2043
    %v2045 = vand.u32 %v2044, 4294901760
    %2046 = vmatprep.mubr.f32.mxu0 %v2045
    %v2047 = vand.u32 %v84, 4294901760
    %v2048 = vsub.f32 %v84, %v2047
    %v2049 = vand.u32 %v2048, 4294901760
    %v2050 = vsub.f32 %v2048, %v2049
    %v2051 = vand.u32 %v2050, 4294901760
    %2052 = vmatmul.mubr.f32.gmra.mrb[0].mxu0 %v2051
    %v2053 = vpop.f32.mrb[0].mxu0
    %v2054 = vadd.f32 %v1942, %v2053
    %v2055 = vpop.f32.mrb[0].mxu0
    %2056 = vdwg.mxu0
    %2057 = vmatprep.subr.mxu0 0.0
    %v2058 = vand.u32 %v152, 4294901760
    %v2059 = vsub.f32 %v152, %v2058
    %v2060 = vand.u32 %v2059, 4294901760
    %v2061 = vsub.f32 %v2059, %v2060
    %v2062 = vand.u32 %v2061, 4294901760
    %2063 = vmatpush1.msra.mxu0 %v2062
    %2064 = vmatprep.subr.mxu0 0.0
    %v2065 = vand.u32 %v153, 4294901760
    %v2066 = vsub.f32 %v153, %v2065
    %v2067 = vand.u32 %v2066, 4294901760
    %v2068 = vsub.f32 %v2066, %v2067
    %v2069 = vand.u32 %v2068, 4294901760
    %2070 = vmatpush1.msra.mxu0 %v2069
    %2071 = vmatprep.subr.mxu0 0.0
    %v2072 = vand.u32 %v154, 4294901760
    %v2073 = vsub.f32 %v154, %v2072
    %v2074 = vand.u32 %v2073, 4294901760
    %v2075 = vsub.f32 %v2073, %v2074
    %v2076 = vand.u32 %v2075, 4294901760
    %2077 = vmatpush1.msra.mxu0 %v2076
    %2078 = vmatprep.subr.mxu0 0.0
    %v2079 = vand.u32 %v155, 4294901760
    %v2080 = vsub.f32 %v155, %v2079
    %v2081 = vand.u32 %v2080, 4294901760
    %v2082 = vsub.f32 %v2080, %v2081
    %v2083 = vand.u32 %v2082, 4294901760
    %2084 = vmatpush1.msra.mxu0 %v2083
    %2085 = vmatprep.subr.mxu0 0.0
    %v2086 = vand.u32 %v156, 4294901760
    %v2087 = vsub.f32 %v156, %v2086
    %v2088 = vand.u32 %v2087, 4294901760
    %v2089 = vsub.f32 %v2087, %v2088
    %v2090 = vand.u32 %v2089, 4294901760
    %2091 = vmatpush1.msra.mxu0 %v2090
    %2092 = vmatprep.subr.mxu0 0.0
    %v2093 = vand.u32 %v157, 4294901760
    %v2094 = vsub.f32 %v157, %v2093
    %v2095 = vand.u32 %v2094, 4294901760
    %v2096 = vsub.f32 %v2094, %v2095
    %v2097 = vand.u32 %v2096, 4294901760
    %2098 = vmatpush1.msra.mxu0 %v2097
    %2099 = vmatprep.subr.mxu0 0.0
    %v2100 = vand.u32 %v158, 4294901760
    %v2101 = vsub.f32 %v158, %v2100
    %v2102 = vand.u32 %v2101, 4294901760
    %v2103 = vsub.f32 %v2101, %v2102
    %v2104 = vand.u32 %v2103, 4294901760
    %2105 = vmatpush1.msra.mxu0 %v2104
    %2106 = vmatprep.subr.mxu0 0.0
    %v2107 = vand.u32 %v159, 4294901760
    %v2108 = vsub.f32 %v159, %v2107
    %v2109 = vand.u32 %v2108, 4294901760
    %v2110 = vsub.f32 %v2108, %v2109
    %v2111 = vand.u32 %v2110, 4294901760
    %2112 = vmatpush1.msra.mxu0 %v2111
    %2113 = vmatprep.subr.mxu0 0.0
    %v2114 = vand.u32 %v160, 4294901760
    %v2115 = vsub.f32 %v160, %v2114
    %v2116 = vand.u32 %v2115, 4294901760
    %v2117 = vsub.f32 %v2115, %v2116
    %v2118 = vand.u32 %v2117, 4294901760
    %2119 = vmatpush1.msra.mxu0 %v2118
    %2120 = vmatprep.subr.mxu0 0.0
    %v2121 = vand.u32 %v161, 4294901760
    %v2122 = vsub.f32 %v161, %v2121
    %v2123 = vand.u32 %v2122, 4294901760
    %v2124 = vsub.f32 %v2122, %v2123
    %v2125 = vand.u32 %v2124, 4294901760
    %2126 = vmatpush1.msra.mxu0 %v2125
    %2127 = vmatprep.subr.mxu0 0.0
    %v2128 = vand.u32 %v162, 4294901760
    %v2129 = vsub.f32 %v162, %v2128
    %v2130 = vand.u32 %v2129, 4294901760
    %v2131 = vsub.f32 %v2129, %v2130
    %v2132 = vand.u32 %v2131, 4294901760
    %2133 = vmatpush1.msra.mxu0 %v2132
    %2134 = vmatprep.subr.mxu0 0.0
    %v2135 = vand.u32 %v163, 4294901760
    %v2136 = vsub.f32 %v163, %v2135
    %v2137 = vand.u32 %v2136, 4294901760
    %v2138 = vsub.f32 %v2136, %v2137
    %v2139 = vand.u32 %v2138, 4294901760
    %2140 = vmatpush1.msra.mxu0 %v2139
    %2141 = vmatprep.subr.mxu0 0.0
    %v2142 = vand.u32 %v164, 4294901760
    %v2143 = vsub.f32 %v164, %v2142
    %v2144 = vand.u32 %v2143, 4294901760
    %v2145 = vsub.f32 %v2143, %v2144
    %v2146 = vand.u32 %v2145, 4294901760
    %2147 = vmatpush1.msra.mxu0 %v2146
    %2148 = vmatprep.subr.mxu0 0.0
    %v2149 = vand.u32 %v165, 4294901760
    %v2150 = vsub.f32 %v165, %v2149
    %v2151 = vand.u32 %v2150, 4294901760
    %v2152 = vsub.f32 %v2150, %v2151
    %v2153 = vand.u32 %v2152, 4294901760
    %2154 = vmatpush1.msra.mxu0 %v2153
    %2155 = vmatprep.subr.mxu0 0.0
    %v2156 = vand.u32 %v166, 4294901760
    %v2157 = vsub.f32 %v166, %v2156
    %v2158 = vand.u32 %v2157, 4294901760
    %v2159 = vsub.f32 %v2157, %v2158
    %v2160 = vand.u32 %v2159, 4294901760
    %2161 = vmatpush1.msra.mxu0 %v2160
    %2162 = vmatprep.subr.mxu0 0.0
    %v2163 = vand.u32 %v167, 4294901760
    %v2164 = vsub.f32 %v167, %v2163
    %v2165 = vand.u32 %v2164, 4294901760
    %v2166 = vsub.f32 %v2164, %v2165
    %v2167 = vand.u32 %v2166, 4294901760
    %2168 = vmatpush1.msra.mxu0 %v2167
    %2169 = vmatprep.subr.mxu0 0.0
    %v2170 = vand.u32 %v168, 4294901760
    %v2171 = vsub.f32 %v168, %v2170
    %v2172 = vand.u32 %v2171, 4294901760
    %v2173 = vsub.f32 %v2171, %v2172
    %v2174 = vand.u32 %v2173, 4294901760
    %2175 = vmatpush1.msra.mxu0 %v2174
    %2176 = vmatprep.subr.mxu0 0.0
    %v2177 = vand.u32 %v169, 4294901760
    %v2178 = vsub.f32 %v169, %v2177
    %v2179 = vand.u32 %v2178, 4294901760
    %v2180 = vsub.f32 %v2178, %v2179
    %v2181 = vand.u32 %v2180, 4294901760
    %2182 = vmatpush1.msra.mxu0 %v2181
    %2183 = vmatprep.subr.mxu0 0.0
    %v2184 = vand.u32 %v170, 4294901760
    %v2185 = vsub.f32 %v170, %v2184
    %v2186 = vand.u32 %v2185, 4294901760
    %v2187 = vsub.f32 %v2185, %v2186
    %v2188 = vand.u32 %v2187, 4294901760
    %2189 = vmatpush1.msra.mxu0 %v2188
    %2190 = vmatprep.subr.mxu0 0.0
    %v2191 = vand.u32 %v171, 4294901760
    %v2192 = vsub.f32 %v171, %v2191
    %v2193 = vand.u32 %v2192, 4294901760
    %v2194 = vsub.f32 %v2192, %v2193
    %v2195 = vand.u32 %v2194, 4294901760
    %2196 = vmatpush1.msra.mxu0 %v2195
    %2197 = vmatprep.subr.mxu0 0.0
    %v2198 = vand.u32 %v172, 4294901760
    %v2199 = vsub.f32 %v172, %v2198
    %v2200 = vand.u32 %v2199, 4294901760
    %v2201 = vsub.f32 %v2199, %v2200
    %v2202 = vand.u32 %v2201, 4294901760
    %2203 = vmatpush1.msra.mxu0 %v2202
    %2204 = vmatprep.subr.mxu0 0.0
    %v2205 = vand.u32 %v173, 4294901760
    %v2206 = vsub.f32 %v173, %v2205
    %v2207 = vand.u32 %v2206, 4294901760
    %v2208 = vsub.f32 %v2206, %v2207
    %v2209 = vand.u32 %v2208, 4294901760
    %2210 = vmatpush1.msra.mxu0 %v2209
    %2211 = vmatprep.subr.mxu0 0.0
    %v2212 = vand.u32 %v174, 4294901760
    %v2213 = vsub.f32 %v174, %v2212
    %v2214 = vand.u32 %v2213, 4294901760
    %v2215 = vsub.f32 %v2213, %v2214
    %v2216 = vand.u32 %v2215, 4294901760
    %2217 = vmatpush1.msra.mxu0 %v2216
    %2218 = vmatprep.subr.mxu0 0.0
    %v2219 = vand.u32 %v175, 4294901760
    %v2220 = vsub.f32 %v175, %v2219
    %v2221 = vand.u32 %v2220, 4294901760
    %v2222 = vsub.f32 %v2220, %v2221
    %v2223 = vand.u32 %v2222, 4294901760
    %2224 = vmatpush1.msra.mxu0 %v2223
    %2225 = vmatprep.subr.mxu0 0.0
    %v2226 = vand.u32 %v176, 4294901760
    %v2227 = vsub.f32 %v176, %v2226
    %v2228 = vand.u32 %v2227, 4294901760
    %v2229 = vsub.f32 %v2227, %v2228
    %v2230 = vand.u32 %v2229, 4294901760
    %2231 = vmatpush1.msra.mxu0 %v2230
    %2232 = vmatprep.subr.mxu0 0.0
    %v2233 = vand.u32 %v177, 4294901760
    %v2234 = vsub.f32 %v177, %v2233
    %v2235 = vand.u32 %v2234, 4294901760
    %v2236 = vsub.f32 %v2234, %v2235
    %v2237 = vand.u32 %v2236, 4294901760
    %2238 = vmatpush1.msra.mxu0 %v2237
    %2239 = vmatprep.subr.mxu0 0.0
    %v2240 = vand.u32 %v178, 4294901760
    %v2241 = vsub.f32 %v178, %v2240
    %v2242 = vand.u32 %v2241, 4294901760
    %v2243 = vsub.f32 %v2241, %v2242
    %v2244 = vand.u32 %v2243, 4294901760
    %2245 = vmatpush1.msra.mxu0 %v2244
    %2246 = vmatprep.subr.mxu0 0.0
    %v2247 = vand.u32 %v179, 4294901760
    %v2248 = vsub.f32 %v179, %v2247
    %v2249 = vand.u32 %v2248, 4294901760
    %v2250 = vsub.f32 %v2248, %v2249
    %v2251 = vand.u32 %v2250, 4294901760
    %2252 = vmatpush1.msra.mxu0 %v2251
    %2253 = vmatprep.subr.mxu0 0.0
    %v2254 = vand.u32 %v180, 4294901760
    %v2255 = vsub.f32 %v180, %v2254
    %v2256 = vand.u32 %v2255, 4294901760
    %v2257 = vsub.f32 %v2255, %v2256
    %v2258 = vand.u32 %v2257, 4294901760
    %2259 = vmatpush1.msra.mxu0 %v2258
    %2260 = vmatprep.subr.mxu0 0.0
    %v2261 = vand.u32 %v181, 4294901760
    %v2262 = vsub.f32 %v181, %v2261
    %v2263 = vand.u32 %v2262, 4294901760
    %v2264 = vsub.f32 %v2262, %v2263
    %v2265 = vand.u32 %v2264, 4294901760
    %2266 = vmatpush1.msra.mxu0 %v2265
    %2267 = vmatprep.subr.mxu0 0.0
    %v2268 = vand.u32 %v182, 4294901760
    %v2269 = vsub.f32 %v182, %v2268
    %v2270 = vand.u32 %v2269, 4294901760
    %v2271 = vsub.f32 %v2269, %v2270
    %v2272 = vand.u32 %v2271, 4294901760
    %2273 = vmatpush1.msra.mxu0 %v2272
    %2274 = vmatprep.subr.mxu0 0.0
    %v2275 = vand.u32 %v183, 4294901760
    %v2276 = vsub.f32 %v183, %v2275
    %v2277 = vand.u32 %v2276, 4294901760
    %v2278 = vsub.f32 %v2276, %v2277
    %v2279 = vand.u32 %v2278, 4294901760
    %2280 = vmatpush1.msra.mxu0 %v2279
    %v2281 = vand.u32 %v85, 4294901760
    %2282 = vmatprep.mubr.f32.mxu0 %v2281
    %v2283 = vand.u32 %v84, 4294901760
    %2284 = vmatmul.mubr.f32.gmra.mrb[0].mxu0 %v2283
    %v2285 = vpop.f32.mrb[0].mxu0
    %v2286 = vadd.f32 %v2054, %v2285
    %v2287 = vpop.f32.mrb[0].mxu0
    %2288 = vdwg.mxu0
    %2289 = vmatprep.subr.mxu0 0.0
    %v2290 = vand.u32 %v152, 4294901760
    %v2291 = vsub.f32 %v152, %v2290
    %2292 = vmatpush1.msra.mxu0 %v2291
    %2293 = vmatprep.subr.mxu0 0.0
    %v2294 = vand.u32 %v153, 4294901760
    %v2295 = vsub.f32 %v153, %v2294
    %2296 = vmatpush1.msra.mxu0 %v2295
    %2297 = vmatprep.subr.mxu0 0.0
    %v2298 = vand.u32 %v154, 4294901760
    %v2299 = vsub.f32 %v154, %v2298
    %2300 = vmatpush1.msra.mxu0 %v2299
    %2301 = vmatprep.subr.mxu0 0.0
    %v2302 = vand.u32 %v155, 4294901760
    %v2303 = vsub.f32 %v155, %v2302
    %2304 = vmatpush1.msra.mxu0 %v2303
    %2305 = vmatprep.subr.mxu0 0.0
    %v2306 = vand.u32 %v156, 4294901760
    %v2307 = vsub.f32 %v156, %v2306
    %2308 = vmatpush1.msra.mxu0 %v2307
    %2309 = vmatprep.subr.mxu0 0.0
    %v2310 = vand.u32 %v157, 4294901760
    %v2311 = vsub.f32 %v157, %v2310
    %2312 = vmatpush1.msra.mxu0 %v2311
    %2313 = vmatprep.subr.mxu0 0.0
    %v2314 = vand.u32 %v158, 4294901760
    %v2315 = vsub.f32 %v158, %v2314
    %2316 = vmatpush1.msra.mxu0 %v2315
    %2317 = vmatprep.subr.mxu0 0.0
    %v2318 = vand.u32 %v159, 4294901760
    %v2319 = vsub.f32 %v159, %v2318
    %2320 = vmatpush1.msra.mxu0 %v2319
    %2321 = vmatprep.subr.mxu0 0.0
    %v2322 = vand.u32 %v160, 4294901760
    %v2323 = vsub.f32 %v160, %v2322
    %2324 = vmatpush1.msra.mxu0 %v2323
    %2325 = vmatprep.subr.mxu0 0.0
    %v2326 = vand.u32 %v161, 4294901760
    %v2327 = vsub.f32 %v161, %v2326
    %2328 = vmatpush1.msra.mxu0 %v2327
    %2329 = vmatprep.subr.mxu0 0.0
    %v2330 = vand.u32 %v162, 4294901760
    %v2331 = vsub.f32 %v162, %v2330
    %2332 = vmatpush1.msra.mxu0 %v2331
    %2333 = vmatprep.subr.mxu0 0.0
    %v2334 = vand.u32 %v163, 4294901760
    %v2335 = vsub.f32 %v163, %v2334
    %2336 = vmatpush1.msra.mxu0 %v2335
    %2337 = vmatprep.subr.mxu0 0.0
    %v2338 = vand.u32 %v164, 4294901760
    %v2339 = vsub.f32 %v164, %v2338
    %2340 = vmatpush1.msra.mxu0 %v2339
    %2341 = vmatprep.subr.mxu0 0.0
    %v2342 = vand.u32 %v165, 4294901760
    %v2343 = vsub.f32 %v165, %v2342
    %2344 = vmatpush1.msra.mxu0 %v2343
    %2345 = vmatprep.subr.mxu0 0.0
    %v2346 = vand.u32 %v166, 4294901760
    %v2347 = vsub.f32 %v166, %v2346
    %2348 = vmatpush1.msra.mxu0 %v2347
    %2349 = vmatprep.subr.mxu0 0.0
    %v2350 = vand.u32 %v167, 4294901760
    %v2351 = vsub.f32 %v167, %v2350
    %2352 = vmatpush1.msra.mxu0 %v2351
    %2353 = vmatprep.subr.mxu0 0.0
    %v2354 = vand.u32 %v168, 4294901760
    %v2355 = vsub.f32 %v168, %v2354
    %2356 = vmatpush1.msra.mxu0 %v2355
    %2357 = vmatprep.subr.mxu0 0.0
    %v2358 = vand.u32 %v169, 4294901760
    %v2359 = vsub.f32 %v169, %v2358
    %2360 = vmatpush1.msra.mxu0 %v2359
    %2361 = vmatprep.subr.mxu0 0.0
    %v2362 = vand.u32 %v170, 4294901760
    %v2363 = vsub.f32 %v170, %v2362
    %2364 = vmatpush1.msra.mxu0 %v2363
    %2365 = vmatprep.subr.mxu0 0.0
    %v2366 = vand.u32 %v171, 4294901760
    %v2367 = vsub.f32 %v171, %v2366
    %2368 = vmatpush1.msra.mxu0 %v2367
    %2369 = vmatprep.subr.mxu0 0.0
    %v2370 = vand.u32 %v172, 4294901760
    %v2371 = vsub.f32 %v172, %v2370
    %2372 = vmatpush1.msra.mxu0 %v2371
    %2373 = vmatprep.subr.mxu0 0.0
    %v2374 = vand.u32 %v173, 4294901760
    %v2375 = vsub.f32 %v173, %v2374
    %2376 = vmatpush1.msra.mxu0 %v2375
    %2377 = vmatprep.subr.mxu0 0.0
    %v2378 = vand.u32 %v174, 4294901760
    %v2379 = vsub.f32 %v174, %v2378
    %2380 = vmatpush1.msra.mxu0 %v2379
    %2381 = vmatprep.subr.mxu0 0.0
    %v2382 = vand.u32 %v175, 4294901760
    %v2383 = vsub.f32 %v175, %v2382
    %2384 = vmatpush1.msra.mxu0 %v2383
    %2385 = vmatprep.subr.mxu0 0.0
    %v2386 = vand.u32 %v176, 4294901760
    %v2387 = vsub.f32 %v176, %v2386
    %2388 = vmatpush1.msra.mxu0 %v2387
    %2389 = vmatprep.subr.mxu0 0.0
    %v2390 = vand.u32 %v177, 4294901760
    %v2391 = vsub.f32 %v177, %v2390
    %2392 = vmatpush1.msra.mxu0 %v2391
    %2393 = vmatprep.subr.mxu0 0.0
    %v2394 = vand.u32 %v178, 4294901760
    %v2395 = vsub.f32 %v178, %v2394
    %2396 = vmatpush1.msra.mxu0 %v2395
    %2397 = vmatprep.subr.mxu0 0.0
    %v2398 = vand.u32 %v179, 4294901760
    %v2399 = vsub.f32 %v179, %v2398
    %2400 = vmatpush1.msra.mxu0 %v2399
    %2401 = vmatprep.subr.mxu0 0.0
    %v2402 = vand.u32 %v180, 4294901760
    %v2403 = vsub.f32 %v180, %v2402
    %2404 = vmatpush1.msra.mxu0 %v2403
    %2405 = vmatprep.subr.mxu0 0.0
    %v2406 = vand.u32 %v181, 4294901760
    %v2407 = vsub.f32 %v181, %v2406
    %2408 = vmatpush1.msra.mxu0 %v2407
    %2409 = vmatprep.subr.mxu0 0.0
    %v2410 = vand.u32 %v182, 4294901760
    %v2411 = vsub.f32 %v182, %v2410
    %2412 = vmatpush1.msra.mxu0 %v2411
    %2413 = vmatprep.subr.mxu0 0.0
    %v2414 = vand.u32 %v183, 4294901760
    %v2415 = vsub.f32 %v183, %v2414
    %2416 = vmatpush1.msra.mxu0 %v2415
    %v2417 = vand.u32 %v85, 4294901760
    %v2418 = vsub.f32 %v85, %v2417
    %2419 = vmatprep.mubr.f32.mxu0 %v2418
    %v2420 = vand.u32 %v84, 4294901760
    %v2421 = vsub.f32 %v84, %v2420
    %2422 = vmatmul.mubr.f32.gmra.mrb[0].mxu0 %v2421
    %v2423 = vpop.f32.mrb[0].mxu0
    %v2424 = vadd.f32 %v2286, %v2423
    %v2425 = vpop.f32.mrb[0].mxu0
    %2426 = vdwg.mxu0
    %2427 = vmatprep.subr.mxu0 0.0
    %v2428 = vand.u32 %v152, 4294901760
    %2429 = vmatpush1.msra.mxu0 %v2428
    %2430 = vmatprep.subr.mxu0 0.0
    %v2431 = vand.u32 %v153, 4294901760
    %2432 = vmatpush1.msra.mxu0 %v2431
    %2433 = vmatprep.subr.mxu0 0.0
    %v2434 = vand.u32 %v154, 4294901760
    %2435 = vmatpush1.msra.mxu0 %v2434
    %2436 = vmatprep.subr.mxu0 0.0
    %v2437 = vand.u32 %v155, 4294901760
    %2438 = vmatpush1.msra.mxu0 %v2437
    %2439 = vmatprep.subr.mxu0 0.0
    %v2440 = vand.u32 %v156, 4294901760
    %2441 = vmatpush1.msra.mxu0 %v2440
    %2442 = vmatprep.subr.mxu0 0.0
    %v2443 = vand.u32 %v157, 4294901760
    %2444 = vmatpush1.msra.mxu0 %v2443
    %2445 = vmatprep.subr.mxu0 0.0
    %v2446 = vand.u32 %v158, 4294901760
    %2447 = vmatpush1.msra.mxu0 %v2446
    %2448 = vmatprep.subr.mxu0 0.0
    %v2449 = vand.u32 %v159, 4294901760
    %2450 = vmatpush1.msra.mxu0 %v2449
    %2451 = vmatprep.subr.mxu0 0.0
    %v2452 = vand.u32 %v160, 4294901760
    %2453 = vmatpush1.msra.mxu0 %v2452
    %2454 = vmatprep.subr.mxu0 0.0
    %v2455 = vand.u32 %v161, 4294901760
    %2456 = vmatpush1.msra.mxu0 %v2455
    %2457 = vmatprep.subr.mxu0 0.0
    %v2458 = vand.u32 %v162, 4294901760
    %2459 = vmatpush1.msra.mxu0 %v2458
    %2460 = vmatprep.subr.mxu0 0.0
    %v2461 = vand.u32 %v163, 4294901760
    %2462 = vmatpush1.msra.mxu0 %v2461
    %2463 = vmatprep.subr.mxu0 0.0
    %v2464 = vand.u32 %v164, 4294901760
    %2465 = vmatpush1.msra.mxu0 %v2464
    %2466 = vmatprep.subr.mxu0 0.0
    %v2467 = vand.u32 %v165, 4294901760
    %2468 = vmatpush1.msra.mxu0 %v2467
    %2469 = vmatprep.subr.mxu0 0.0
    %v2470 = vand.u32 %v166, 4294901760
    %2471 = vmatpush1.msra.mxu0 %v2470
    %2472 = vmatprep.subr.mxu0 0.0
    %v2473 = vand.u32 %v167, 4294901760
    %2474 = vmatpush1.msra.mxu0 %v2473
    %2475 = vmatprep.subr.mxu0 0.0
    %v2476 = vand.u32 %v168, 4294901760
    %2477 = vmatpush1.msra.mxu0 %v2476
    %2478 = vmatprep.subr.mxu0 0.0
    %v2479 = vand.u32 %v169, 4294901760
    %2480 = vmatpush1.msra.mxu0 %v2479
    %2481 = vmatprep.subr.mxu0 0.0
    %v2482 = vand.u32 %v170, 4294901760
    %2483 = vmatpush1.msra.mxu0 %v2482
    %2484 = vmatprep.subr.mxu0 0.0
    %v2485 = vand.u32 %v171, 4294901760
    %2486 = vmatpush1.msra.mxu0 %v2485
    %2487 = vmatprep.subr.mxu0 0.0
    %v2488 = vand.u32 %v172, 4294901760
    %2489 = vmatpush1.msra.mxu0 %v2488
    %2490 = vmatprep.subr.mxu0 0.0
    %v2491 = vand.u32 %v173, 4294901760
    %2492 = vmatpush1.msra.mxu0 %v2491
    %2493 = vmatprep.subr.mxu0 0.0
    %v2494 = vand.u32 %v174, 4294901760
    %2495 = vmatpush1.msra.mxu0 %v2494
    %2496 = vmatprep.subr.mxu0 0.0
    %v2497 = vand.u32 %v175, 4294901760
    %2498 = vmatpush1.msra.mxu0 %v2497
    %2499 = vmatprep.subr.mxu0 0.0
    %v2500 = vand.u32 %v176, 4294901760
    %2501 = vmatpush1.msra.mxu0 %v2500
    %2502 = vmatprep.subr.mxu0 0.0
    %v2503 = vand.u32 %v177, 4294901760
    %2504 = vmatpush1.msra.mxu0 %v2503
    %2505 = vmatprep.subr.mxu0 0.0
    %v2506 = vand.u32 %v178, 4294901760
    %2507 = vmatpush1.msra.mxu0 %v2506
    %2508 = vmatprep.subr.mxu0 0.0
    %v2509 = vand.u32 %v179, 4294901760
    %2510 = vmatpush1.msra.mxu0 %v2509
    %2511 = vmatprep.subr.mxu0 0.0
    %v2512 = vand.u32 %v180, 4294901760
    %2513 = vmatpush1.msra.mxu0 %v2512
    %2514 = vmatprep.subr.mxu0 0.0
    %v2515 = vand.u32 %v181, 4294901760
    %2516 = vmatpush1.msra.mxu0 %v2515
    %2517 = vmatprep.subr.mxu0 0.0
    %v2518 = vand.u32 %v182, 4294901760
    %2519 = vmatpush1.msra.mxu0 %v2518
    %2520 = vmatprep.subr.mxu0 0.0
    %v2521 = vand.u32 %v183, 4294901760
    %2522 = vmatpush1.msra.mxu0 %v2521
    %v2523 = vand.u32 %v85, 4294901760
    %v2524 = vsub.f32 %v85, %v2523
    %v2525 = vand.u32 %v2524, 4294901760
    %2526 = vmatprep.mubr.f32.mxu0 %v2525
    %v2527 = vand.u32 %v84, 4294901760
    %v2528 = vsub.f32 %v84, %v2527
    %v2529 = vand.u32 %v2528, 4294901760
    %2530 = vmatmul.mubr.f32.gmra.mrb[0].mxu0 %v2529
    %v2531 = vpop.f32.mrb[0].mxu0
    %v2532 = vadd.f32 %v2424, %v2531
    %v2533 = vpop.f32.mrb[0].mxu0
    %2534 = vdwg.mxu0
    %2535 = vmatprep.subr.mxu0 0.0
    %v2536 = vand.u32 %v152, 4294901760
    %v2537 = vsub.f32 %v152, %v2536
    %v2538 = vand.u32 %v2537, 4294901760
    %2539 = vmatpush1.msra.mxu0 %v2538
    %2540 = vmatprep.subr.mxu0 0.0
    %v2541 = vand.u32 %v153, 4294901760
    %v2542 = vsub.f32 %v153, %v2541
    %v2543 = vand.u32 %v2542, 4294901760
    %2544 = vmatpush1.msra.mxu0 %v2543
    %2545 = vmatprep.subr.mxu0 0.0
    %v2546 = vand.u32 %v154, 4294901760
    %v2547 = vsub.f32 %v154, %v2546
    %v2548 = vand.u32 %v2547, 4294901760
    %2549 = vmatpush1.msra.mxu0 %v2548
    %2550 = vmatprep.subr.mxu0 0.0
    %v2551 = vand.u32 %v155, 4294901760
    %v2552 = vsub.f32 %v155, %v2551
    %v2553 = vand.u32 %v2552, 4294901760
    %2554 = vmatpush1.msra.mxu0 %v2553
    %2555 = vmatprep.subr.mxu0 0.0
    %v2556 = vand.u32 %v156, 4294901760
    %v2557 = vsub.f32 %v156, %v2556
    %v2558 = vand.u32 %v2557, 4294901760
    %2559 = vmatpush1.msra.mxu0 %v2558
    %2560 = vmatprep.subr.mxu0 0.0
    %v2561 = vand.u32 %v157, 4294901760
    %v2562 = vsub.f32 %v157, %v2561
    %v2563 = vand.u32 %v2562, 4294901760
    %2564 = vmatpush1.msra.mxu0 %v2563
    %2565 = vmatprep.subr.mxu0 0.0
    %v2566 = vand.u32 %v158, 4294901760
    %v2567 = vsub.f32 %v158, %v2566
    %v2568 = vand.u32 %v2567, 4294901760
    %2569 = vmatpush1.msra.mxu0 %v2568
    %2570 = vmatprep.subr.mxu0 0.0
    %v2571 = vand.u32 %v159, 4294901760
    %v2572 = vsub.f32 %v159, %v2571
    %v2573 = vand.u32 %v2572, 4294901760
    %2574 = vmatpush1.msra.mxu0 %v2573
    %2575 = vmatprep.subr.mxu0 0.0
    %v2576 = vand.u32 %v160, 4294901760
    %v2577 = vsub.f32 %v160, %v2576
    %v2578 = vand.u32 %v2577, 4294901760
    %2579 = vmatpush1.msra.mxu0 %v2578
    %2580 = vmatprep.subr.mxu0 0.0
    %v2581 = vand.u32 %v161, 4294901760
    %v2582 = vsub.f32 %v161, %v2581
    %v2583 = vand.u32 %v2582, 4294901760
    %2584 = vmatpush1.msra.mxu0 %v2583
    %2585 = vmatprep.subr.mxu0 0.0
    %v2586 = vand.u32 %v162, 4294901760
    %v2587 = vsub.f32 %v162, %v2586
    %v2588 = vand.u32 %v2587, 4294901760
    %2589 = vmatpush1.msra.mxu0 %v2588
    %2590 = vmatprep.subr.mxu0 0.0
    %v2591 = vand.u32 %v163, 4294901760
    %v2592 = vsub.f32 %v163, %v2591
    %v2593 = vand.u32 %v2592, 4294901760
    %2594 = vmatpush1.msra.mxu0 %v2593
    %2595 = vmatprep.subr.mxu0 0.0
    %v2596 = vand.u32 %v164, 4294901760
    %v2597 = vsub.f32 %v164, %v2596
    %v2598 = vand.u32 %v2597, 4294901760
    %2599 = vmatpush1.msra.mxu0 %v2598
    %2600 = vmatprep.subr.mxu0 0.0
    %v2601 = vand.u32 %v165, 4294901760
    %v2602 = vsub.f32 %v165, %v2601
    %v2603 = vand.u32 %v2602, 4294901760
    %2604 = vmatpush1.msra.mxu0 %v2603
    %2605 = vmatprep.subr.mxu0 0.0
    %v2606 = vand.u32 %v166, 4294901760
    %v2607 = vsub.f32 %v166, %v2606
    %v2608 = vand.u32 %v2607, 4294901760
    %2609 = vmatpush1.msra.mxu0 %v2608
    %2610 = vmatprep.subr.mxu0 0.0
    %v2611 = vand.u32 %v167, 4294901760
    %v2612 = vsub.f32 %v167, %v2611
    %v2613 = vand.u32 %v2612, 4294901760
    %2614 = vmatpush1.msra.mxu0 %v2613
    %2615 = vmatprep.subr.mxu0 0.0
    %v2616 = vand.u32 %v168, 4294901760
    %v2617 = vsub.f32 %v168, %v2616
    %v2618 = vand.u32 %v2617, 4294901760
    %2619 = vmatpush1.msra.mxu0 %v2618
    %2620 = vmatprep.subr.mxu0 0.0
    %v2621 = vand.u32 %v169, 4294901760
    %v2622 = vsub.f32 %v169, %v2621
    %v2623 = vand.u32 %v2622, 4294901760
    %2624 = vmatpush1.msra.mxu0 %v2623
    %2625 = vmatprep.subr.mxu0 0.0
    %v2626 = vand.u32 %v170, 4294901760
    %v2627 = vsub.f32 %v170, %v2626
    %v2628 = vand.u32 %v2627, 4294901760
    %2629 = vmatpush1.msra.mxu0 %v2628
    %2630 = vmatprep.subr.mxu0 0.0
    %v2631 = vand.u32 %v171, 4294901760
    %v2632 = vsub.f32 %v171, %v2631
    %v2633 = vand.u32 %v2632, 4294901760
    %2634 = vmatpush1.msra.mxu0 %v2633
    %2635 = vmatprep.subr.mxu0 0.0
    %v2636 = vand.u32 %v172, 4294901760
    %v2637 = vsub.f32 %v172, %v2636
    %v2638 = vand.u32 %v2637, 4294901760
    %2639 = vmatpush1.msra.mxu0 %v2638
    %2640 = vmatprep.subr.mxu0 0.0
    %v2641 = vand.u32 %v173, 4294901760
    %v2642 = vsub.f32 %v173, %v2641
    %v2643 = vand.u32 %v2642, 4294901760
    %2644 = vmatpush1.msra.mxu0 %v2643
    %2645 = vmatprep.subr.mxu0 0.0
    %v2646 = vand.u32 %v174, 4294901760
    %v2647 = vsub.f32 %v174, %v2646
    %v2648 = vand.u32 %v2647, 4294901760
    %2649 = vmatpush1.msra.mxu0 %v2648
    %2650 = vmatprep.subr.mxu0 0.0
    %v2651 = vand.u32 %v175, 4294901760
    %v2652 = vsub.f32 %v175, %v2651
    %v2653 = vand.u32 %v2652, 4294901760
    %2654 = vmatpush1.msra.mxu0 %v2653
    %2655 = vmatprep.subr.mxu0 0.0
    %v2656 = vand.u32 %v176, 4294901760
    %v2657 = vsub.f32 %v176, %v2656
    %v2658 = vand.u32 %v2657, 4294901760
    %2659 = vmatpush1.msra.mxu0 %v2658
    %2660 = vmatprep.subr.mxu0 0.0
    %v2661 = vand.u32 %v177, 4294901760
    %v2662 = vsub.f32 %v177, %v2661
    %v2663 = vand.u32 %v2662, 4294901760
    %2664 = vmatpush1.msra.mxu0 %v2663
    %2665 = vmatprep.subr.mxu0 0.0
    %v2666 = vand.u32 %v178, 4294901760
    %v2667 = vsub.f32 %v178, %v2666
    %v2668 = vand.u32 %v2667, 4294901760
    %2669 = vmatpush1.msra.mxu0 %v2668
    %2670 = vmatprep.subr.mxu0 0.0
    %v2671 = vand.u32 %v179, 4294901760
    %v2672 = vsub.f32 %v179, %v2671
    %v2673 = vand.u32 %v2672, 4294901760
    %2674 = vmatpush1.msra.mxu0 %v2673
    %2675 = vmatprep.subr.mxu0 0.0
    %v2676 = vand.u32 %v180, 4294901760
    %v2677 = vsub.f32 %v180, %v2676
    %v2678 = vand.u32 %v2677, 4294901760
    %2679 = vmatpush1.msra.mxu0 %v2678
    %2680 = vmatprep.subr.mxu0 0.0
    %v2681 = vand.u32 %v181, 4294901760
    %v2682 = vsub.f32 %v181, %v2681
    %v2683 = vand.u32 %v2682, 4294901760
    %2684 = vmatpush1.msra.mxu0 %v2683
    %2685 = vmatprep.subr.mxu0 0.0
    %v2686 = vand.u32 %v182, 4294901760
    %v2687 = vsub.f32 %v182, %v2686
    %v2688 = vand.u32 %v2687, 4294901760
    %2689 = vmatpush1.msra.mxu0 %v2688
    %2690 = vmatprep.subr.mxu0 0.0
    %v2691 = vand.u32 %v183, 4294901760
    %v2692 = vsub.f32 %v183, %v2691
    %v2693 = vand.u32 %v2692, 4294901760
    %2694 = vmatpush1.msra.mxu0 %v2693
    %v2695 = vand.u32 %v85, 4294901760
    %2696 = vmatprep.mubr.f32.mxu0 %v2695
    %v2697 = vand.u32 %v84, 4294901760
    %2698 = vmatmul.mubr.f32.gmra.mrb[0].mxu0 %v2697
    %v2699 = vpop.f32.mrb[0].mxu0
    %v2700 = vadd.f32 %v2532, %v2699
    %v2701 = vpop.f32.mrb[0].mxu0
    %2702 = vdwg.mxu0
    %2703 = vmatprep.subr.mxu0 0.0
    %v2704 = vand.u32 %v152, 4294901760
    %2705 = vmatpush1.msra.mxu0 %v2704
    %2706 = vmatprep.subr.mxu0 0.0
    %v2707 = vand.u32 %v153, 4294901760
    %2708 = vmatpush1.msra.mxu0 %v2707
    %2709 = vmatprep.subr.mxu0 0.0
    %v2710 = vand.u32 %v154, 4294901760
    %2711 = vmatpush1.msra.mxu0 %v2710
    %2712 = vmatprep.subr.mxu0 0.0
    %v2713 = vand.u32 %v155, 4294901760
    %2714 = vmatpush1.msra.mxu0 %v2713
    %2715 = vmatprep.subr.mxu0 0.0
    %v2716 = vand.u32 %v156, 4294901760
    %2717 = vmatpush1.msra.mxu0 %v2716
    %2718 = vmatprep.subr.mxu0 0.0
    %v2719 = vand.u32 %v157, 4294901760
    %2720 = vmatpush1.msra.mxu0 %v2719
    %2721 = vmatprep.subr.mxu0 0.0
    %v2722 = vand.u32 %v158, 4294901760
    %2723 = vmatpush1.msra.mxu0 %v2722
    %2724 = vmatprep.subr.mxu0 0.0
    %v2725 = vand.u32 %v159, 4294901760
    %2726 = vmatpush1.msra.mxu0 %v2725
    %2727 = vmatprep.subr.mxu0 0.0
    %v2728 = vand.u32 %v160, 4294901760
    %2729 = vmatpush1.msra.mxu0 %v2728
    %2730 = vmatprep.subr.mxu0 0.0
    %v2731 = vand.u32 %v161, 4294901760
    %2732 = vmatpush1.msra.mxu0 %v2731
    %2733 = vmatprep.subr.mxu0 0.0
    %v2734 = vand.u32 %v162, 4294901760
    %2735 = vmatpush1.msra.mxu0 %v2734
    %2736 = vmatprep.subr.mxu0 0.0
    %v2737 = vand.u32 %v163, 4294901760
    %2738 = vmatpush1.msra.mxu0 %v2737
    %2739 = vmatprep.subr.mxu0 0.0
    %v2740 = vand.u32 %v164, 4294901760
    %2741 = vmatpush1.msra.mxu0 %v2740
    %2742 = vmatprep.subr.mxu0 0.0
    %v2743 = vand.u32 %v165, 4294901760
    %2744 = vmatpush1.msra.mxu0 %v2743
    %2745 = vmatprep.subr.mxu0 0.0
    %v2746 = vand.u32 %v166, 4294901760
    %2747 = vmatpush1.msra.mxu0 %v2746
    %2748 = vmatprep.subr.mxu0 0.0
    %v2749 = vand.u32 %v167, 4294901760
    %2750 = vmatpush1.msra.mxu0 %v2749
    %2751 = vmatprep.subr.mxu0 0.0
    %v2752 = vand.u32 %v168, 4294901760
    %2753 = vmatpush1.msra.mxu0 %v2752
    %2754 = vmatprep.subr.mxu0 0.0
    %v2755 = vand.u32 %v169, 4294901760
    %2756 = vmatpush1.msra.mxu0 %v2755
    %2757 = vmatprep.subr.mxu0 0.0
    %v2758 = vand.u32 %v170, 4294901760
    %2759 = vmatpush1.msra.mxu0 %v2758
    %2760 = vmatprep.subr.mxu0 0.0
    %v2761 = vand.u32 %v171, 4294901760
    %2762 = vmatpush1.msra.mxu0 %v2761
    %2763 = vmatprep.subr.mxu0 0.0
    %v2764 = vand.u32 %v172, 4294901760
    %2765 = vmatpush1.msra.mxu0 %v2764
    %2766 = vmatprep.subr.mxu0 0.0
    %v2767 = vand.u32 %v173, 4294901760
    %2768 = vmatpush1.msra.mxu0 %v2767
    %2769 = vmatprep.subr.mxu0 0.0
    %v2770 = vand.u32 %v174, 4294901760
    %2771 = vmatpush1.msra.mxu0 %v2770
    %2772 = vmatprep.subr.mxu0 0.0
    %v2773 = vand.u32 %v175, 4294901760
    %2774 = vmatpush1.msra.mxu0 %v2773
    %2775 = vmatprep.subr.mxu0 0.0
    %v2776 = vand.u32 %v176, 4294901760
    %2777 = vmatpush1.msra.mxu0 %v2776
    %2778 = vmatprep.subr.mxu0 0.0
    %v2779 = vand.u32 %v177, 4294901760
    %2780 = vmatpush1.msra.mxu0 %v2779
    %2781 = vmatprep.subr.mxu0 0.0
    %v2782 = vand.u32 %v178, 4294901760
    %2783 = vmatpush1.msra.mxu0 %v2782
    %2784 = vmatprep.subr.mxu0 0.0
    %v2785 = vand.u32 %v179, 4294901760
    %2786 = vmatpush1.msra.mxu0 %v2785
    %2787 = vmatprep.subr.mxu0 0.0
    %v2788 = vand.u32 %v180, 4294901760
    %2789 = vmatpush1.msra.mxu0 %v2788
    %2790 = vmatprep.subr.mxu0 0.0
    %v2791 = vand.u32 %v181, 4294901760
    %2792 = vmatpush1.msra.mxu0 %v2791
    %2793 = vmatprep.subr.mxu0 0.0
    %v2794 = vand.u32 %v182, 4294901760
    %2795 = vmatpush1.msra.mxu0 %v2794
    %2796 = vmatprep.subr.mxu0 0.0
    %v2797 = vand.u32 %v183, 4294901760
    %2798 = vmatpush1.msra.mxu0 %v2797
    %v2799 = vand.u32 %v85, 4294901760
    %2800 = vmatprep.mubr.f32.mxu0 %v2799
    %v2801 = vand.u32 %v84, 4294901760
    %2802 = vmatmul.mubr.f32.gmra.mrb[0].mxu0 %v2801
    %v2803 = vpop.f32.mrb[0].mxu0
    %v2804 = vadd.f32 %v2700, %v2803
    %v2805 = vpop.f32.mrb[0].mxu0
    %2806 = vdwg.mxu0
    %2807 = vmatprep.subr.mxu0 0.0
    %v2808 = vand.u32 %v184, 4294901760
    %2809 = vmatpush1.msra.mxu0 %v2808
    %2810 = vmatprep.subr.mxu0 0.0
    %v2811 = vand.u32 %v185, 4294901760
    %2812 = vmatpush1.msra.mxu0 %v2811
    %2813 = vmatprep.subr.mxu0 0.0
    %v2814 = vand.u32 %v186, 4294901760
    %2815 = vmatpush1.msra.mxu0 %v2814
    %2816 = vmatprep.subr.mxu0 0.0
    %v2817 = vand.u32 %v187, 4294901760
    %2818 = vmatpush1.msra.mxu0 %v2817
    %2819 = vmatprep.subr.mxu0 0.0
    %v2820 = vand.u32 %v188, 4294901760
    %2821 = vmatpush1.msra.mxu0 %v2820
    %2822 = vmatprep.subr.mxu0 0.0
    %v2823 = vand.u32 %v189, 4294901760
    %2824 = vmatpush1.msra.mxu0 %v2823
    %2825 = vmatprep.subr.mxu0 0.0
    %v2826 = vand.u32 %v190, 4294901760
    %2827 = vmatpush1.msra.mxu0 %v2826
    %2828 = vmatprep.subr.mxu0 0.0
    %v2829 = vand.u32 %v191, 4294901760
    %2830 = vmatpush1.msra.mxu0 %v2829
    %2831 = vmatprep.subr.mxu0 0.0
    %v2832 = vand.u32 %v192, 4294901760
    %2833 = vmatpush1.msra.mxu0 %v2832
    %2834 = vmatprep.subr.mxu0 0.0
    %v2835 = vand.u32 %v193, 4294901760
    %2836 = vmatpush1.msra.mxu0 %v2835
    %2837 = vmatprep.subr.mxu0 0.0
    %v2838 = vand.u32 %v194, 4294901760
    %2839 = vmatpush1.msra.mxu0 %v2838
    %2840 = vmatprep.subr.mxu0 0.0
    %v2841 = vand.u32 %v195, 4294901760
    %2842 = vmatpush1.msra.mxu0 %v2841
    %2843 = vmatprep.subr.mxu0 0.0
    %v2844 = vand.u32 %v196, 4294901760
    %2845 = vmatpush1.msra.mxu0 %v2844
    %2846 = vmatprep.subr.mxu0 0.0
    %v2847 = vand.u32 %v197, 4294901760
    %2848 = vmatpush1.msra.mxu0 %v2847
    %2849 = vmatprep.subr.mxu0 0.0
    %v2850 = vand.u32 %v198, 4294901760
    %2851 = vmatpush1.msra.mxu0 %v2850
    %2852 = vmatprep.subr.mxu0 0.0
    %v2853 = vand.u32 %v199, 4294901760
    %2854 = vmatpush1.msra.mxu0 %v2853
    %2855 = vmatprep.subr.mxu0 0.0
    %v2856 = vand.u32 %v200, 4294901760
    %2857 = vmatpush1.msra.mxu0 %v2856
    %2858 = vmatprep.subr.mxu0 0.0
    %v2859 = vand.u32 %v201, 4294901760
    %2860 = vmatpush1.msra.mxu0 %v2859
    %2861 = vmatprep.subr.mxu0 0.0
    %v2862 = vand.u32 %v202, 4294901760
    %2863 = vmatpush1.msra.mxu0 %v2862
    %2864 = vmatprep.subr.mxu0 0.0
    %v2865 = vand.u32 %v203, 4294901760
    %2866 = vmatpush1.msra.mxu0 %v2865
    %2867 = vmatprep.subr.mxu0 0.0
    %v2868 = vand.u32 %v204, 4294901760
    %2869 = vmatpush1.msra.mxu0 %v2868
    %2870 = vmatprep.subr.mxu0 0.0
    %v2871 = vand.u32 %v205, 4294901760
    %2872 = vmatpush1.msra.mxu0 %v2871
    %2873 = vmatprep.subr.mxu0 0.0
    %v2874 = vand.u32 %v206, 4294901760
    %2875 = vmatpush1.msra.mxu0 %v2874
    %2876 = vmatprep.subr.mxu0 0.0
    %v2877 = vand.u32 %v207, 4294901760
    %2878 = vmatpush1.msra.mxu0 %v2877
    %2879 = vmatprep.subr.mxu0 0.0
    %v2880 = vand.u32 %v208, 4294901760
    %2881 = vmatpush1.msra.mxu0 %v2880
    %2882 = vmatprep.subr.mxu0 0.0
    %v2883 = vand.u32 %v209, 4294901760
    %2884 = vmatpush1.msra.mxu0 %v2883
    %2885 = vmatprep.subr.mxu0 0.0
    %v2886 = vand.u32 %v210, 4294901760
    %2887 = vmatpush1.msra.mxu0 %v2886
    %2888 = vmatprep.subr.mxu0 0.0
    %v2889 = vand.u32 %v211, 4294901760
    %2890 = vmatpush1.msra.mxu0 %v2889
    %2891 = vmatprep.subr.mxu0 0.0
    %v2892 = vand.u32 %v212, 4294901760
    %2893 = vmatpush1.msra.mxu0 %v2892
    %2894 = vmatprep.subr.mxu0 0.0
    %v2895 = vand.u32 %v213, 4294901760
    %2896 = vmatpush1.msra.mxu0 %v2895
    %2897 = vmatprep.subr.mxu0 0.0
    %v2898 = vand.u32 %v214, 4294901760
    %2899 = vmatpush1.msra.mxu0 %v2898
    %2900 = vmatprep.subr.mxu0 0.0
    %v2901 = vand.u32 %v215, 4294901760
    %2902 = vmatpush1.msra.mxu0 %v2901
    %v2903 = vand.u32 %v87, 4294901760
    %v2904 = vsub.f32 %v87, %v2903
    %v2905 = vand.u32 %v2904, 4294901760
    %v2906 = vsub.f32 %v2904, %v2905
    %v2907 = vand.u32 %v2906, 4294901760
    %2908 = vmatprep.mubr.f32.mxu0 %v2907
    %v2909 = vand.u32 %v86, 4294901760
    %v2910 = vsub.f32 %v86, %v2909
    %v2911 = vand.u32 %v2910, 4294901760
    %v2912 = vsub.f32 %v2910, %v2911
    %v2913 = vand.u32 %v2912, 4294901760
    %2914 = vmatmul.mubr.f32.gmra.mrb[0].mxu0 %v2913
    %v2915 = vpop.f32.mrb[0].mxu0
    %v2916 = vadd.f32 %v2804, %v2915
    %v2917 = vpop.f32.mrb[0].mxu0
    %2918 = vdwg.mxu0
    %2919 = vmatprep.subr.mxu0 0.0
    %v2920 = vand.u32 %v184, 4294901760
    %v2921 = vsub.f32 %v184, %v2920
    %v2922 = vand.u32 %v2921, 4294901760
    %v2923 = vsub.f32 %v2921, %v2922
    %v2924 = vand.u32 %v2923, 4294901760
    %2925 = vmatpush1.msra.mxu0 %v2924
    %2926 = vmatprep.subr.mxu0 0.0
    %v2927 = vand.u32 %v185, 4294901760
    %v2928 = vsub.f32 %v185, %v2927
    %v2929 = vand.u32 %v2928, 4294901760
    %v2930 = vsub.f32 %v2928, %v2929
    %v2931 = vand.u32 %v2930, 4294901760
    %2932 = vmatpush1.msra.mxu0 %v2931
    %2933 = vmatprep.subr.mxu0 0.0
    %v2934 = vand.u32 %v186, 4294901760
    %v2935 = vsub.f32 %v186, %v2934
    %v2936 = vand.u32 %v2935, 4294901760
    %v2937 = vsub.f32 %v2935, %v2936
    %v2938 = vand.u32 %v2937, 4294901760
    %2939 = vmatpush1.msra.mxu0 %v2938
    %2940 = vmatprep.subr.mxu0 0.0
    %v2941 = vand.u32 %v187, 4294901760
    %v2942 = vsub.f32 %v187, %v2941
    %v2943 = vand.u32 %v2942, 4294901760
    %v2944 = vsub.f32 %v2942, %v2943
    %v2945 = vand.u32 %v2944, 4294901760
    %2946 = vmatpush1.msra.mxu0 %v2945
    %2947 = vmatprep.subr.mxu0 0.0
    %v2948 = vand.u32 %v188, 4294901760
    %v2949 = vsub.f32 %v188, %v2948
    %v2950 = vand.u32 %v2949, 4294901760
    %v2951 = vsub.f32 %v2949, %v2950
    %v2952 = vand.u32 %v2951, 4294901760
    %2953 = vmatpush1.msra.mxu0 %v2952
    %2954 = vmatprep.subr.mxu0 0.0
    %v2955 = vand.u32 %v189, 4294901760
    %v2956 = vsub.f32 %v189, %v2955
    %v2957 = vand.u32 %v2956, 4294901760
    %v2958 = vsub.f32 %v2956, %v2957
    %v2959 = vand.u32 %v2958, 4294901760
    %2960 = vmatpush1.msra.mxu0 %v2959
    %2961 = vmatprep.subr.mxu0 0.0
    %v2962 = vand.u32 %v190, 4294901760
    %v2963 = vsub.f32 %v190, %v2962
    %v2964 = vand.u32 %v2963, 4294901760
    %v2965 = vsub.f32 %v2963, %v2964
    %v2966 = vand.u32 %v2965, 4294901760
    %2967 = vmatpush1.msra.mxu0 %v2966
    %2968 = vmatprep.subr.mxu0 0.0
    %v2969 = vand.u32 %v191, 4294901760
    %v2970 = vsub.f32 %v191, %v2969
    %v2971 = vand.u32 %v2970, 4294901760
    %v2972 = vsub.f32 %v2970, %v2971
    %v2973 = vand.u32 %v2972, 4294901760
    %2974 = vmatpush1.msra.mxu0 %v2973
    %2975 = vmatprep.subr.mxu0 0.0
    %v2976 = vand.u32 %v192, 4294901760
    %v2977 = vsub.f32 %v192, %v2976
    %v2978 = vand.u32 %v2977, 4294901760
    %v2979 = vsub.f32 %v2977, %v2978
    %v2980 = vand.u32 %v2979, 4294901760
    %2981 = vmatpush1.msra.mxu0 %v2980
    %2982 = vmatprep.subr.mxu0 0.0
    %v2983 = vand.u32 %v193, 4294901760
    %v2984 = vsub.f32 %v193, %v2983
    %v2985 = vand.u32 %v2984, 4294901760
    %v2986 = vsub.f32 %v2984, %v2985
    %v2987 = vand.u32 %v2986, 4294901760
    %2988 = vmatpush1.msra.mxu0 %v2987
    %2989 = vmatprep.subr.mxu0 0.0
    %v2990 = vand.u32 %v194, 4294901760
    %v2991 = vsub.f32 %v194, %v2990
    %v2992 = vand.u32 %v2991, 4294901760
    %v2993 = vsub.f32 %v2991, %v2992
    %v2994 = vand.u32 %v2993, 4294901760
    %2995 = vmatpush1.msra.mxu0 %v2994
    %2996 = vmatprep.subr.mxu0 0.0
    %v2997 = vand.u32 %v195, 4294901760
    %v2998 = vsub.f32 %v195, %v2997
    %v2999 = vand.u32 %v2998, 4294901760
    %v3000 = vsub.f32 %v2998, %v2999
    %v3001 = vand.u32 %v3000, 4294901760
    %3002 = vmatpush1.msra.mxu0 %v3001
    %3003 = vmatprep.subr.mxu0 0.0
    %v3004 = vand.u32 %v196, 4294901760
    %v3005 = vsub.f32 %v196, %v3004
    %v3006 = vand.u32 %v3005, 4294901760
    %v3007 = vsub.f32 %v3005, %v3006
    %v3008 = vand.u32 %v3007, 4294901760
    %3009 = vmatpush1.msra.mxu0 %v3008
    %3010 = vmatprep.subr.mxu0 0.0
    %v3011 = vand.u32 %v197, 4294901760
    %v3012 = vsub.f32 %v197, %v3011
    %v3013 = vand.u32 %v3012, 4294901760
    %v3014 = vsub.f32 %v3012, %v3013
    %v3015 = vand.u32 %v3014, 4294901760
    %3016 = vmatpush1.msra.mxu0 %v3015
    %3017 = vmatprep.subr.mxu0 0.0
    %v3018 = vand.u32 %v198, 4294901760
    %v3019 = vsub.f32 %v198, %v3018
    %v3020 = vand.u32 %v3019, 4294901760
    %v3021 = vsub.f32 %v3019, %v3020
    %v3022 = vand.u32 %v3021, 4294901760
    %3023 = vmatpush1.msra.mxu0 %v3022
    %3024 = vmatprep.subr.mxu0 0.0
    %v3025 = vand.u32 %v199, 4294901760
    %v3026 = vsub.f32 %v199, %v3025
    %v3027 = vand.u32 %v3026, 4294901760
    %v3028 = vsub.f32 %v3026, %v3027
    %v3029 = vand.u32 %v3028, 4294901760
    %3030 = vmatpush1.msra.mxu0 %v3029
    %3031 = vmatprep.subr.mxu0 0.0
    %v3032 = vand.u32 %v200, 4294901760
    %v3033 = vsub.f32 %v200, %v3032
    %v3034 = vand.u32 %v3033, 4294901760
    %v3035 = vsub.f32 %v3033, %v3034
    %v3036 = vand.u32 %v3035, 4294901760
    %3037 = vmatpush1.msra.mxu0 %v3036
    %3038 = vmatprep.subr.mxu0 0.0
    %v3039 = vand.u32 %v201, 4294901760
    %v3040 = vsub.f32 %v201, %v3039
    %v3041 = vand.u32 %v3040, 4294901760
    %v3042 = vsub.f32 %v3040, %v3041
    %v3043 = vand.u32 %v3042, 4294901760
    %3044 = vmatpush1.msra.mxu0 %v3043
    %3045 = vmatprep.subr.mxu0 0.0
    %v3046 = vand.u32 %v202, 4294901760
    %v3047 = vsub.f32 %v202, %v3046
    %v3048 = vand.u32 %v3047, 4294901760
    %v3049 = vsub.f32 %v3047, %v3048
    %v3050 = vand.u32 %v3049, 4294901760
    %3051 = vmatpush1.msra.mxu0 %v3050
    %3052 = vmatprep.subr.mxu0 0.0
    %v3053 = vand.u32 %v203, 4294901760
    %v3054 = vsub.f32 %v203, %v3053
    %v3055 = vand.u32 %v3054, 4294901760
    %v3056 = vsub.f32 %v3054, %v3055
    %v3057 = vand.u32 %v3056, 4294901760
    %3058 = vmatpush1.msra.mxu0 %v3057
    %3059 = vmatprep.subr.mxu0 0.0
    %v3060 = vand.u32 %v204, 4294901760
    %v3061 = vsub.f32 %v204, %v3060
    %v3062 = vand.u32 %v3061, 4294901760
    %v3063 = vsub.f32 %v3061, %v3062
    %v3064 = vand.u32 %v3063, 4294901760
    %3065 = vmatpush1.msra.mxu0 %v3064
    %3066 = vmatprep.subr.mxu0 0.0
    %v3067 = vand.u32 %v205, 4294901760
    %v3068 = vsub.f32 %v205, %v3067
    %v3069 = vand.u32 %v3068, 4294901760
    %v3070 = vsub.f32 %v3068, %v3069
    %v3071 = vand.u32 %v3070, 4294901760
    %3072 = vmatpush1.msra.mxu0 %v3071
    %3073 = vmatprep.subr.mxu0 0.0
    %v3074 = vand.u32 %v206, 4294901760
    %v3075 = vsub.f32 %v206, %v3074
    %v3076 = vand.u32 %v3075, 4294901760
    %v3077 = vsub.f32 %v3075, %v3076
    %v3078 = vand.u32 %v3077, 4294901760
    %3079 = vmatpush1.msra.mxu0 %v3078
    %3080 = vmatprep.subr.mxu0 0.0
    %v3081 = vand.u32 %v207, 4294901760
    %v3082 = vsub.f32 %v207, %v3081
    %v3083 = vand.u32 %v3082, 4294901760
    %v3084 = vsub.f32 %v3082, %v3083
    %v3085 = vand.u32 %v3084, 4294901760
    %3086 = vmatpush1.msra.mxu0 %v3085
    %3087 = vmatprep.subr.mxu0 0.0
    %v3088 = vand.u32 %v208, 4294901760
    %v3089 = vsub.f32 %v208, %v3088
    %v3090 = vand.u32 %v3089, 4294901760
    %v3091 = vsub.f32 %v3089, %v3090
    %v3092 = vand.u32 %v3091, 4294901760
    %3093 = vmatpush1.msra.mxu0 %v3092
    %3094 = vmatprep.subr.mxu0 0.0
    %v3095 = vand.u32 %v209, 4294901760
    %v3096 = vsub.f32 %v209, %v3095
    %v3097 = vand.u32 %v3096, 4294901760
    %v3098 = vsub.f32 %v3096, %v3097
    %v3099 = vand.u32 %v3098, 4294901760
    %3100 = vmatpush1.msra.mxu0 %v3099
    %3101 = vmatprep.subr.mxu0 0.0
    %v3102 = vand.u32 %v210, 4294901760
    %v3103 = vsub.f32 %v210, %v3102
    %v3104 = vand.u32 %v3103, 4294901760
    %v3105 = vsub.f32 %v3103, %v3104
    %v3106 = vand.u32 %v3105, 4294901760
    %3107 = vmatpush1.msra.mxu0 %v3106
    %3108 = vmatprep.subr.mxu0 0.0
    %v3109 = vand.u32 %v211, 4294901760
    %v3110 = vsub.f32 %v211, %v3109
    %v3111 = vand.u32 %v3110, 4294901760
    %v3112 = vsub.f32 %v3110, %v3111
    %v3113 = vand.u32 %v3112, 4294901760
    %3114 = vmatpush1.msra.mxu0 %v3113
    %3115 = vmatprep.subr.mxu0 0.0
    %v3116 = vand.u32 %v212, 4294901760
    %v3117 = vsub.f32 %v212, %v3116
    %v3118 = vand.u32 %v3117, 4294901760
    %v3119 = vsub.f32 %v3117, %v3118
    %v3120 = vand.u32 %v3119, 4294901760
    %3121 = vmatpush1.msra.mxu0 %v3120
    %3122 = vmatprep.subr.mxu0 0.0
    %v3123 = vand.u32 %v213, 4294901760
    %v3124 = vsub.f32 %v213, %v3123
    %v3125 = vand.u32 %v3124, 4294901760
    %v3126 = vsub.f32 %v3124, %v3125
    %v3127 = vand.u32 %v3126, 4294901760
    %3128 = vmatpush1.msra.mxu0 %v3127
    %3129 = vmatprep.subr.mxu0 0.0
    %v3130 = vand.u32 %v214, 4294901760
    %v3131 = vsub.f32 %v214, %v3130
    %v3132 = vand.u32 %v3131, 4294901760
    %v3133 = vsub.f32 %v3131, %v3132
    %v3134 = vand.u32 %v3133, 4294901760
    %3135 = vmatpush1.msra.mxu0 %v3134
    %3136 = vmatprep.subr.mxu0 0.0
    %v3137 = vand.u32 %v215, 4294901760
    %v3138 = vsub.f32 %v215, %v3137
    %v3139 = vand.u32 %v3138, 4294901760
    %v3140 = vsub.f32 %v3138, %v3139
    %v3141 = vand.u32 %v3140, 4294901760
    %3142 = vmatpush1.msra.mxu0 %v3141
    %v3143 = vand.u32 %v87, 4294901760
    %3144 = vmatprep.mubr.f32.mxu0 %v3143
    %v3145 = vand.u32 %v86, 4294901760
    %3146 = vmatmul.mubr.f32.gmra.mrb[0].mxu0 %v3145
    %v3147 = vpop.f32.mrb[0].mxu0
    %v3148 = vadd.f32 %v2916, %v3147
    %v3149 = vpop.f32.mrb[0].mxu0
    %3150 = vdwg.mxu0
    %3151 = vmatprep.subr.mxu0 0.0
    %v3152 = vand.u32 %v184, 4294901760
    %v3153 = vsub.f32 %v184, %v3152
    %3154 = vmatpush1.msra.mxu0 %v3153
    %3155 = vmatprep.subr.mxu0 0.0
    %v3156 = vand.u32 %v185, 4294901760
    %v3157 = vsub.f32 %v185, %v3156
    %3158 = vmatpush1.msra.mxu0 %v3157
    %3159 = vmatprep.subr.mxu0 0.0
    %v3160 = vand.u32 %v186, 4294901760
    %v3161 = vsub.f32 %v186, %v3160
    %3162 = vmatpush1.msra.mxu0 %v3161
    %3163 = vmatprep.subr.mxu0 0.0
    %v3164 = vand.u32 %v187, 4294901760
    %v3165 = vsub.f32 %v187, %v3164
    %3166 = vmatpush1.msra.mxu0 %v3165
    %3167 = vmatprep.subr.mxu0 0.0
    %v3168 = vand.u32 %v188, 4294901760
    %v3169 = vsub.f32 %v188, %v3168
    %3170 = vmatpush1.msra.mxu0 %v3169
    %3171 = vmatprep.subr.mxu0 0.0
    %v3172 = vand.u32 %v189, 4294901760
    %v3173 = vsub.f32 %v189, %v3172
    %3174 = vmatpush1.msra.mxu0 %v3173
    %3175 = vmatprep.subr.mxu0 0.0
    %v3176 = vand.u32 %v190, 4294901760
    %v3177 = vsub.f32 %v190, %v3176
    %3178 = vmatpush1.msra.mxu0 %v3177
    %3179 = vmatprep.subr.mxu0 0.0
    %v3180 = vand.u32 %v191, 4294901760
    %v3181 = vsub.f32 %v191, %v3180
    %3182 = vmatpush1.msra.mxu0 %v3181
    %3183 = vmatprep.subr.mxu0 0.0
    %v3184 = vand.u32 %v192, 4294901760
    %v3185 = vsub.f32 %v192, %v3184
    %3186 = vmatpush1.msra.mxu0 %v3185
    %3187 = vmatprep.subr.mxu0 0.0
    %v3188 = vand.u32 %v193, 4294901760
    %v3189 = vsub.f32 %v193, %v3188
    %3190 = vmatpush1.msra.mxu0 %v3189
    %3191 = vmatprep.subr.mxu0 0.0
    %v3192 = vand.u32 %v194, 4294901760
    %v3193 = vsub.f32 %v194, %v3192
    %3194 = vmatpush1.msra.mxu0 %v3193
    %3195 = vmatprep.subr.mxu0 0.0
    %v3196 = vand.u32 %v195, 4294901760
    %v3197 = vsub.f32 %v195, %v3196
    %3198 = vmatpush1.msra.mxu0 %v3197
    %3199 = vmatprep.subr.mxu0 0.0
    %v3200 = vand.u32 %v196, 4294901760
    %v3201 = vsub.f32 %v196, %v3200
    %3202 = vmatpush1.msra.mxu0 %v3201
    %3203 = vmatprep.subr.mxu0 0.0
    %v3204 = vand.u32 %v197, 4294901760
    %v3205 = vsub.f32 %v197, %v3204
    %3206 = vmatpush1.msra.mxu0 %v3205
    %3207 = vmatprep.subr.mxu0 0.0
    %v3208 = vand.u32 %v198, 4294901760
    %v3209 = vsub.f32 %v198, %v3208
    %3210 = vmatpush1.msra.mxu0 %v3209
    %3211 = vmatprep.subr.mxu0 0.0
    %v3212 = vand.u32 %v199, 4294901760
    %v3213 = vsub.f32 %v199, %v3212
    %3214 = vmatpush1.msra.mxu0 %v3213
    %3215 = vmatprep.subr.mxu0 0.0
    %v3216 = vand.u32 %v200, 4294901760
    %v3217 = vsub.f32 %v200, %v3216
    %3218 = vmatpush1.msra.mxu0 %v3217
    %3219 = vmatprep.subr.mxu0 0.0
    %v3220 = vand.u32 %v201, 4294901760
    %v3221 = vsub.f32 %v201, %v3220
    %3222 = vmatpush1.msra.mxu0 %v3221
    %3223 = vmatprep.subr.mxu0 0.0
    %v3224 = vand.u32 %v202, 4294901760
    %v3225 = vsub.f32 %v202, %v3224
    %3226 = vmatpush1.msra.mxu0 %v3225
    %3227 = vmatprep.subr.mxu0 0.0
    %v3228 = vand.u32 %v203, 4294901760
    %v3229 = vsub.f32 %v203, %v3228
    %3230 = vmatpush1.msra.mxu0 %v3229
    %3231 = vmatprep.subr.mxu0 0.0
    %v3232 = vand.u32 %v204, 4294901760
    %v3233 = vsub.f32 %v204, %v3232
    %3234 = vmatpush1.msra.mxu0 %v3233
    %3235 = vmatprep.subr.mxu0 0.0
    %v3236 = vand.u32 %v205, 4294901760
    %v3237 = vsub.f32 %v205, %v3236
    %3238 = vmatpush1.msra.mxu0 %v3237
    %3239 = vmatprep.subr.mxu0 0.0
    %v3240 = vand.u32 %v206, 4294901760
    %v3241 = vsub.f32 %v206, %v3240
    %3242 = vmatpush1.msra.mxu0 %v3241
    %3243 = vmatprep.subr.mxu0 0.0
    %v3244 = vand.u32 %v207, 4294901760
    %v3245 = vsub.f32 %v207, %v3244
    %3246 = vmatpush1.msra.mxu0 %v3245
    %3247 = vmatprep.subr.mxu0 0.0
    %v3248 = vand.u32 %v208, 4294901760
    %v3249 = vsub.f32 %v208, %v3248
    %3250 = vmatpush1.msra.mxu0 %v3249
    %3251 = vmatprep.subr.mxu0 0.0
    %v3252 = vand.u32 %v209, 4294901760
    %v3253 = vsub.f32 %v209, %v3252
    %3254 = vmatpush1.msra.mxu0 %v3253
    %3255 = vmatprep.subr.mxu0 0.0
    %v3256 = vand.u32 %v210, 4294901760
    %v3257 = vsub.f32 %v210, %v3256
    %3258 = vmatpush1.msra.mxu0 %v3257
    %3259 = vmatprep.subr.mxu0 0.0
    %v3260 = vand.u32 %v211, 4294901760
    %v3261 = vsub.f32 %v211, %v3260
    %3262 = vmatpush1.msra.mxu0 %v3261
    %3263 = vmatprep.subr.mxu0 0.0
    %v3264 = vand.u32 %v212, 4294901760
    %v3265 = vsub.f32 %v212, %v3264
    %3266 = vmatpush1.msra.mxu0 %v3265
    %3267 = vmatprep.subr.mxu0 0.0
    %v3268 = vand.u32 %v213, 4294901760
    %v3269 = vsub.f32 %v213, %v3268
    %3270 = vmatpush1.msra.mxu0 %v3269
    %3271 = vmatprep.subr.mxu0 0.0
    %v3272 = vand.u32 %v214, 4294901760
    %v3273 = vsub.f32 %v214, %v3272
    %3274 = vmatpush1.msra.mxu0 %v3273
    %3275 = vmatprep.subr.mxu0 0.0
    %v3276 = vand.u32 %v215, 4294901760
    %v3277 = vsub.f32 %v215, %v3276
    %3278 = vmatpush1.msra.mxu0 %v3277
    %v3279 = vand.u32 %v87, 4294901760
    %v3280 = vsub.f32 %v87, %v3279
    %3281 = vmatprep.mubr.f32.mxu0 %v3280
    %v3282 = vand.u32 %v86, 4294901760
    %v3283 = vsub.f32 %v86, %v3282
    %3284 = vmatmul.mubr.f32.gmra.mrb[0].mxu0 %v3283
    %v3285 = vpop.f32.mrb[0].mxu0
    %v3286 = vadd.f32 %v3148, %v3285
    %v3287 = vpop.f32.mrb[0].mxu0
    %3288 = vdwg.mxu0
    %3289 = vmatprep.subr.mxu0 0.0
    %v3290 = vand.u32 %v184, 4294901760
    %3291 = vmatpush1.msra.mxu0 %v3290
    %3292 = vmatprep.subr.mxu0 0.0
    %v3293 = vand.u32 %v185, 4294901760
    %3294 = vmatpush1.msra.mxu0 %v3293
    %3295 = vmatprep.subr.mxu0 0.0
    %v3296 = vand.u32 %v186, 4294901760
    %3297 = vmatpush1.msra.mxu0 %v3296
    %3298 = vmatprep.subr.mxu0 0.0
    %v3299 = vand.u32 %v187, 4294901760
    %3300 = vmatpush1.msra.mxu0 %v3299
    %3301 = vmatprep.subr.mxu0 0.0
    %v3302 = vand.u32 %v188, 4294901760
    %3303 = vmatpush1.msra.mxu0 %v3302
    %3304 = vmatprep.subr.mxu0 0.0
    %v3305 = vand.u32 %v189, 4294901760
    %3306 = vmatpush1.msra.mxu0 %v3305
    %3307 = vmatprep.subr.mxu0 0.0
    %v3308 = vand.u32 %v190, 4294901760
    %3309 = vmatpush1.msra.mxu0 %v3308
    %3310 = vmatprep.subr.mxu0 0.0
    %v3311 = vand.u32 %v191, 4294901760
    %3312 = vmatpush1.msra.mxu0 %v3311
    %3313 = vmatprep.subr.mxu0 0.0
    %v3314 = vand.u32 %v192, 4294901760
    %3315 = vmatpush1.msra.mxu0 %v3314
    %3316 = vmatprep.subr.mxu0 0.0
    %v3317 = vand.u32 %v193, 4294901760
    %3318 = vmatpush1.msra.mxu0 %v3317
    %3319 = vmatprep.subr.mxu0 0.0
    %v3320 = vand.u32 %v194, 4294901760
    %3321 = vmatpush1.msra.mxu0 %v3320
    %3322 = vmatprep.subr.mxu0 0.0
    %v3323 = vand.u32 %v195, 4294901760
    %3324 = vmatpush1.msra.mxu0 %v3323
    %3325 = vmatprep.subr.mxu0 0.0
    %v3326 = vand.u32 %v196, 4294901760
    %3327 = vmatpush1.msra.mxu0 %v3326
    %3328 = vmatprep.subr.mxu0 0.0
    %v3329 = vand.u32 %v197, 4294901760
    %3330 = vmatpush1.msra.mxu0 %v3329
    %3331 = vmatprep.subr.mxu0 0.0
    %v3332 = vand.u32 %v198, 4294901760
    %3333 = vmatpush1.msra.mxu0 %v3332
    %3334 = vmatprep.subr.mxu0 0.0
    %v3335 = vand.u32 %v199, 4294901760
    %3336 = vmatpush1.msra.mxu0 %v3335
    %3337 = vmatprep.subr.mxu0 0.0
    %v3338 = vand.u32 %v200, 4294901760
    %3339 = vmatpush1.msra.mxu0 %v3338
    %3340 = vmatprep.subr.mxu0 0.0
    %v3341 = vand.u32 %v201, 4294901760
    %3342 = vmatpush1.msra.mxu0 %v3341
    %3343 = vmatprep.subr.mxu0 0.0
    %v3344 = vand.u32 %v202, 4294901760
    %3345 = vmatpush1.msra.mxu0 %v3344
    %3346 = vmatprep.subr.mxu0 0.0
    %v3347 = vand.u32 %v203, 4294901760
    %3348 = vmatpush1.msra.mxu0 %v3347
    %3349 = vmatprep.subr.mxu0 0.0
    %v3350 = vand.u32 %v204, 4294901760
    %3351 = vmatpush1.msra.mxu0 %v3350
    %3352 = vmatprep.subr.mxu0 0.0
    %v3353 = vand.u32 %v205, 4294901760
    %3354 = vmatpush1.msra.mxu0 %v3353
    %3355 = vmatprep.subr.mxu0 0.0
    %v3356 = vand.u32 %v206, 4294901760
    %3357 = vmatpush1.msra.mxu0 %v3356
    %3358 = vmatprep.subr.mxu0 0.0
    %v3359 = vand.u32 %v207, 4294901760
    %3360 = vmatpush1.msra.mxu0 %v3359
    %3361 = vmatprep.subr.mxu0 0.0
    %v3362 = vand.u32 %v208, 4294901760
    %3363 = vmatpush1.msra.mxu0 %v3362
    %3364 = vmatprep.subr.mxu0 0.0
    %v3365 = vand.u32 %v209, 4294901760
    %3366 = vmatpush1.msra.mxu0 %v3365
    %3367 = vmatprep.subr.mxu0 0.0
    %v3368 = vand.u32 %v210, 4294901760
    %3369 = vmatpush1.msra.mxu0 %v3368
    %3370 = vmatprep.subr.mxu0 0.0
    %v3371 = vand.u32 %v211, 4294901760
    %3372 = vmatpush1.msra.mxu0 %v3371
    %3373 = vmatprep.subr.mxu0 0.0
    %v3374 = vand.u32 %v212, 4294901760
    %3375 = vmatpush1.msra.mxu0 %v3374
    %3376 = vmatprep.subr.mxu0 0.0
    %v3377 = vand.u32 %v213, 4294901760
    %3378 = vmatpush1.msra.mxu0 %v3377
    %3379 = vmatprep.subr.mxu0 0.0
    %v3380 = vand.u32 %v214, 4294901760
    %3381 = vmatpush1.msra.mxu0 %v3380
    %3382 = vmatprep.subr.mxu0 0.0
    %v3383 = vand.u32 %v215, 4294901760
    %3384 = vmatpush1.msra.mxu0 %v3383
    %v3385 = vand.u32 %v87, 4294901760
    %v3386 = vsub.f32 %v87, %v3385
    %v3387 = vand.u32 %v3386, 4294901760
    %3388 = vmatprep.mubr.f32.mxu0 %v3387
    %v3389 = vand.u32 %v86, 4294901760
    %v3390 = vsub.f32 %v86, %v3389
    %v3391 = vand.u32 %v3390, 4294901760
    %3392 = vmatmul.mubr.f32.gmra.mrb[0].mxu0 %v3391
    %v3393 = vpop.f32.mrb[0].mxu0
    %v3394 = vadd.f32 %v3286, %v3393
    %v3395 = vpop.f32.mrb[0].mxu0
    %3396 = vdwg.mxu0
    %3397 = vmatprep.subr.mxu0 0.0
    %v3398 = vand.u32 %v184, 4294901760
    %v3399 = vsub.f32 %v184, %v3398
    %v3400 = vand.u32 %v3399, 4294901760
    %3401 = vmatpush1.msra.mxu0 %v3400
    %3402 = vmatprep.subr.mxu0 0.0
    %v3403 = vand.u32 %v185, 4294901760
    %v3404 = vsub.f32 %v185, %v3403
    %v3405 = vand.u32 %v3404, 4294901760
    %3406 = vmatpush1.msra.mxu0 %v3405
    %3407 = vmatprep.subr.mxu0 0.0
    %v3408 = vand.u32 %v186, 4294901760
    %v3409 = vsub.f32 %v186, %v3408
    %v3410 = vand.u32 %v3409, 4294901760
    %3411 = vmatpush1.msra.mxu0 %v3410
    %3412 = vmatprep.subr.mxu0 0.0
    %v3413 = vand.u32 %v187, 4294901760
    %v3414 = vsub.f32 %v187, %v3413
    %v3415 = vand.u32 %v3414, 4294901760
    %3416 = vmatpush1.msra.mxu0 %v3415
    %3417 = vmatprep.subr.mxu0 0.0
    %v3418 = vand.u32 %v188, 4294901760
    %v3419 = vsub.f32 %v188, %v3418
    %v3420 = vand.u32 %v3419, 4294901760
    %3421 = vmatpush1.msra.mxu0 %v3420
    %3422 = vmatprep.subr.mxu0 0.0
    %v3423 = vand.u32 %v189, 4294901760
    %v3424 = vsub.f32 %v189, %v3423
    %v3425 = vand.u32 %v3424, 4294901760
    %3426 = vmatpush1.msra.mxu0 %v3425
    %3427 = vmatprep.subr.mxu0 0.0
    %v3428 = vand.u32 %v190, 4294901760
    %v3429 = vsub.f32 %v190, %v3428
    %v3430 = vand.u32 %v3429, 4294901760
    %3431 = vmatpush1.msra.mxu0 %v3430
    %3432 = vmatprep.subr.mxu0 0.0
    %v3433 = vand.u32 %v191, 4294901760
    %v3434 = vsub.f32 %v191, %v3433
    %v3435 = vand.u32 %v3434, 4294901760
    %3436 = vmatpush1.msra.mxu0 %v3435
    %3437 = vmatprep.subr.mxu0 0.0
    %v3438 = vand.u32 %v192, 4294901760
    %v3439 = vsub.f32 %v192, %v3438
    %v3440 = vand.u32 %v3439, 4294901760
    %3441 = vmatpush1.msra.mxu0 %v3440
    %3442 = vmatprep.subr.mxu0 0.0
    %v3443 = vand.u32 %v193, 4294901760
    %v3444 = vsub.f32 %v193, %v3443
    %v3445 = vand.u32 %v3444, 4294901760
    %3446 = vmatpush1.msra.mxu0 %v3445
    %3447 = vmatprep.subr.mxu0 0.0
    %v3448 = vand.u32 %v194, 4294901760
    %v3449 = vsub.f32 %v194, %v3448
    %v3450 = vand.u32 %v3449, 4294901760
    %3451 = vmatpush1.msra.mxu0 %v3450
    %3452 = vmatprep.subr.mxu0 0.0
    %v3453 = vand.u32 %v195, 4294901760
    %v3454 = vsub.f32 %v195, %v3453
    %v3455 = vand.u32 %v3454, 4294901760
    %3456 = vmatpush1.msra.mxu0 %v3455
    %3457 = vmatprep.subr.mxu0 0.0
    %v3458 = vand.u32 %v196, 4294901760
    %v3459 = vsub.f32 %v196, %v3458
    %v3460 = vand.u32 %v3459, 4294901760
    %3461 = vmatpush1.msra.mxu0 %v3460
    %3462 = vmatprep.subr.mxu0 0.0
    %v3463 = vand.u32 %v197, 4294901760
    %v3464 = vsub.f32 %v197, %v3463
    %v3465 = vand.u32 %v3464, 4294901760
    %3466 = vmatpush1.msra.mxu0 %v3465
    %3467 = vmatprep.subr.mxu0 0.0
    %v3468 = vand.u32 %v198, 4294901760
    %v3469 = vsub.f32 %v198, %v3468
    %v3470 = vand.u32 %v3469, 4294901760
    %3471 = vmatpush1.msra.mxu0 %v3470
    %3472 = vmatprep.subr.mxu0 0.0
    %v3473 = vand.u32 %v199, 4294901760
    %v3474 = vsub.f32 %v199, %v3473
    %v3475 = vand.u32 %v3474, 4294901760
    %3476 = vmatpush1.msra.mxu0 %v3475
    %3477 = vmatprep.subr.mxu0 0.0
    %v3478 = vand.u32 %v200, 4294901760
    %v3479 = vsub.f32 %v200, %v3478
    %v3480 = vand.u32 %v3479, 4294901760
    %3481 = vmatpush1.msra.mxu0 %v3480
    %3482 = vmatprep.subr.mxu0 0.0
    %v3483 = vand.u32 %v201, 4294901760
    %v3484 = vsub.f32 %v201, %v3483
    %v3485 = vand.u32 %v3484, 4294901760
    %3486 = vmatpush1.msra.mxu0 %v3485
    %3487 = vmatprep.subr.mxu0 0.0
    %v3488 = vand.u32 %v202, 4294901760
    %v3489 = vsub.f32 %v202, %v3488
    %v3490 = vand.u32 %v3489, 4294901760
    %3491 = vmatpush1.msra.mxu0 %v3490
    %3492 = vmatprep.subr.mxu0 0.0
    %v3493 = vand.u32 %v203, 4294901760
    %v3494 = vsub.f32 %v203, %v3493
    %v3495 = vand.u32 %v3494, 4294901760
    %3496 = vmatpush1.msra.mxu0 %v3495
    %3497 = vmatprep.subr.mxu0 0.0
    %v3498 = vand.u32 %v204, 4294901760
    %v3499 = vsub.f32 %v204, %v3498
    %v3500 = vand.u32 %v3499, 4294901760
    %3501 = vmatpush1.msra.mxu0 %v3500
    %3502 = vmatprep.subr.mxu0 0.0
    %v3503 = vand.u32 %v205, 4294901760
    %v3504 = vsub.f32 %v205, %v3503
    %v3505 = vand.u32 %v3504, 4294901760
    %3506 = vmatpush1.msra.mxu0 %v3505
    %3507 = vmatprep.subr.mxu0 0.0
    %v3508 = vand.u32 %v206, 4294901760
    %v3509 = vsub.f32 %v206, %v3508
    %v3510 = vand.u32 %v3509, 4294901760
    %3511 = vmatpush1.msra.mxu0 %v3510
    %3512 = vmatprep.subr.mxu0 0.0
    %v3513 = vand.u32 %v207, 4294901760
    %v3514 = vsub.f32 %v207, %v3513
    %v3515 = vand.u32 %v3514, 4294901760
    %3516 = vmatpush1.msra.mxu0 %v3515
    %3517 = vmatprep.subr.mxu0 0.0
    %v3518 = vand.u32 %v208, 4294901760
    %v3519 = vsub.f32 %v208, %v3518
    %v3520 = vand.u32 %v3519, 4294901760
    %3521 = vmatpush1.msra.mxu0 %v3520
    %3522 = vmatprep.subr.mxu0 0.0
    %v3523 = vand.u32 %v209, 4294901760
    %v3524 = vsub.f32 %v209, %v3523
    %v3525 = vand.u32 %v3524, 4294901760
    %3526 = vmatpush1.msra.mxu0 %v3525
    %3527 = vmatprep.subr.mxu0 0.0
    %v3528 = vand.u32 %v210, 4294901760
    %v3529 = vsub.f32 %v210, %v3528
    %v3530 = vand.u32 %v3529, 4294901760
    %3531 = vmatpush1.msra.mxu0 %v3530
    %3532 = vmatprep.subr.mxu0 0.0
    %v3533 = vand.u32 %v211, 4294901760
    %v3534 = vsub.f32 %v211, %v3533
    %v3535 = vand.u32 %v3534, 4294901760
    %3536 = vmatpush1.msra.mxu0 %v3535
    %3537 = vmatprep.subr.mxu0 0.0
    %v3538 = vand.u32 %v212, 4294901760
    %v3539 = vsub.f32 %v212, %v3538
    %v3540 = vand.u32 %v3539, 4294901760
    %3541 = vmatpush1.msra.mxu0 %v3540
    %3542 = vmatprep.subr.mxu0 0.0
    %v3543 = vand.u32 %v213, 4294901760
    %v3544 = vsub.f32 %v213, %v3543
    %v3545 = vand.u32 %v3544, 4294901760
    %3546 = vmatpush1.msra.mxu0 %v3545
    %3547 = vmatprep.subr.mxu0 0.0
    %v3548 = vand.u32 %v214, 4294901760
    %v3549 = vsub.f32 %v214, %v3548
    %v3550 = vand.u32 %v3549, 4294901760
    %3551 = vmatpush1.msra.mxu0 %v3550
    %3552 = vmatprep.subr.mxu0 0.0
    %v3553 = vand.u32 %v215, 4294901760
    %v3554 = vsub.f32 %v215, %v3553
    %v3555 = vand.u32 %v3554, 4294901760
    %3556 = vmatpush1.msra.mxu0 %v3555
    %v3557 = vand.u32 %v87, 4294901760
    %3558 = vmatprep.mubr.f32.mxu0 %v3557
    %v3559 = vand.u32 %v86, 4294901760
    %3560 = vmatmul.mubr.f32.gmra.mrb[0].mxu0 %v3559
    %v3561 = vpop.f32.mrb[0].mxu0
    %v3562 = vadd.f32 %v3394, %v3561
    %v3563 = vpop.f32.mrb[0].mxu0
    %3564 = vdwg.mxu0
    %3565 = vmatprep.subr.mxu0 0.0
    %v3566 = vand.u32 %v184, 4294901760
    %3567 = vmatpush1.msra.mxu0 %v3566
    %3568 = vmatprep.subr.mxu0 0.0
    %v3569 = vand.u32 %v185, 4294901760
    %3570 = vmatpush1.msra.mxu0 %v3569
    %3571 = vmatprep.subr.mxu0 0.0
    %v3572 = vand.u32 %v186, 4294901760
    %3573 = vmatpush1.msra.mxu0 %v3572
    %3574 = vmatprep.subr.mxu0 0.0
    %v3575 = vand.u32 %v187, 4294901760
    %3576 = vmatpush1.msra.mxu0 %v3575
    %3577 = vmatprep.subr.mxu0 0.0
    %v3578 = vand.u32 %v188, 4294901760
    %3579 = vmatpush1.msra.mxu0 %v3578
    %3580 = vmatprep.subr.mxu0 0.0
    %v3581 = vand.u32 %v189, 4294901760
    %3582 = vmatpush1.msra.mxu0 %v3581
    %3583 = vmatprep.subr.mxu0 0.0
    %v3584 = vand.u32 %v190, 4294901760
    %3585 = vmatpush1.msra.mxu0 %v3584
    %3586 = vmatprep.subr.mxu0 0.0
    %v3587 = vand.u32 %v191, 4294901760
    %3588 = vmatpush1.msra.mxu0 %v3587
    %3589 = vmatprep.subr.mxu0 0.0
    %v3590 = vand.u32 %v192, 4294901760
    %3591 = vmatpush1.msra.mxu0 %v3590
    %3592 = vmatprep.subr.mxu0 0.0
    %v3593 = vand.u32 %v193, 4294901760
    %3594 = vmatpush1.msra.mxu0 %v3593
    %3595 = vmatprep.subr.mxu0 0.0
    %v3596 = vand.u32 %v194, 4294901760
    %3597 = vmatpush1.msra.mxu0 %v3596
    %3598 = vmatprep.subr.mxu0 0.0
    %v3599 = vand.u32 %v195, 4294901760
    %3600 = vmatpush1.msra.mxu0 %v3599
    %3601 = vmatprep.subr.mxu0 0.0
    %v3602 = vand.u32 %v196, 4294901760
    %3603 = vmatpush1.msra.mxu0 %v3602
    %3604 = vmatprep.subr.mxu0 0.0
    %v3605 = vand.u32 %v197, 4294901760
    %3606 = vmatpush1.msra.mxu0 %v3605
    %3607 = vmatprep.subr.mxu0 0.0
    %v3608 = vand.u32 %v198, 4294901760
    %3609 = vmatpush1.msra.mxu0 %v3608
    %3610 = vmatprep.subr.mxu0 0.0
    %v3611 = vand.u32 %v199, 4294901760
    %3612 = vmatpush1.msra.mxu0 %v3611
    %3613 = vmatprep.subr.mxu0 0.0
    %v3614 = vand.u32 %v200, 4294901760
    %3615 = vmatpush1.msra.mxu0 %v3614
    %3616 = vmatprep.subr.mxu0 0.0
    %v3617 = vand.u32 %v201, 4294901760
    %3618 = vmatpush1.msra.mxu0 %v3617
    %3619 = vmatprep.subr.mxu0 0.0
    %v3620 = vand.u32 %v202, 4294901760
    %3621 = vmatpush1.msra.mxu0 %v3620
    %3622 = vmatprep.subr.mxu0 0.0
    %v3623 = vand.u32 %v203, 4294901760
    %3624 = vmatpush1.msra.mxu0 %v3623
    %3625 = vmatprep.subr.mxu0 0.0
    %v3626 = vand.u32 %v204, 4294901760
    %3627 = vmatpush1.msra.mxu0 %v3626
    %3628 = vmatprep.subr.mxu0 0.0
    %v3629 = vand.u32 %v205, 4294901760
    %3630 = vmatpush1.msra.mxu0 %v3629
    %3631 = vmatprep.subr.mxu0 0.0
    %v3632 = vand.u32 %v206, 4294901760
    %3633 = vmatpush1.msra.mxu0 %v3632
    %3634 = vmatprep.subr.mxu0 0.0
    %v3635 = vand.u32 %v207, 4294901760
    %3636 = vmatpush1.msra.mxu0 %v3635
    %3637 = vmatprep.subr.mxu0 0.0
    %v3638 = vand.u32 %v208, 4294901760
    %3639 = vmatpush1.msra.mxu0 %v3638
    %3640 = vmatprep.subr.mxu0 0.0
    %v3641 = vand.u32 %v209, 4294901760
    %3642 = vmatpush1.msra.mxu0 %v3641
    %3643 = vmatprep.subr.mxu0 0.0
    %v3644 = vand.u32 %v210, 4294901760
    %3645 = vmatpush1.msra.mxu0 %v3644
    %3646 = vmatprep.subr.mxu0 0.0
    %v3647 = vand.u32 %v211, 4294901760
    %3648 = vmatpush1.msra.mxu0 %v3647
    %3649 = vmatprep.subr.mxu0 0.0
    %v3650 = vand.u32 %v212, 4294901760
    %3651 = vmatpush1.msra.mxu0 %v3650
    %3652 = vmatprep.subr.mxu0 0.0
    %v3653 = vand.u32 %v213, 4294901760
    %3654 = vmatpush1.msra.mxu0 %v3653
    %3655 = vmatprep.subr.mxu0 0.0
    %v3656 = vand.u32 %v214, 4294901760
    %3657 = vmatpush1.msra.mxu0 %v3656
    %3658 = vmatprep.subr.mxu0 0.0
    %v3659 = vand.u32 %v215, 4294901760
    %3660 = vmatpush1.msra.mxu0 %v3659
    %v3661 = vand.u32 %v87, 4294901760
    %3662 = vmatprep.mubr.f32.mxu0 %v3661
    %v3663 = vand.u32 %v86, 4294901760
    %3664 = vmatmul.mubr.f32.gmra.mrb[0].mxu0 %v3663
    %v3665 = vpop.f32.mrb[0].mxu0
    %v3666 = vadd.f32 %v3562, %v3665
    %v3667 = vpop.f32.mrb[0].mxu0
    %3668 = vdwg.mxu0
    %v3669 = vld [vmem:[%s2 + $0x1] sm:$0x1]
    %v3670 = vld [vmem:[%s2 + $0x2] sm:$0x1]
    %3671 = vadd.xlane.f32.xlu0 %v3666
    %v3672 = vpop.xlane.xlu0 %3671
    %v3673 = vmul.f32 %v3672, 0.03125
    %v3674 = vlaneseq
    %v3675 = vand.u32 %v3674, 127
    %vm3676 = vcmp.lt.s32.totalorder %v3675, 32
    %v3677 = vsub.f32 %v3666, %v3673
    %v3678 = vsel %vm3676, %v3677, 0.0
    %v3679 = vmul.f32 %v3678, %v3678
    %3680 = vadd.xlane.f32.xlu0 %v3679
    %v3681 = vpop.xlane.xlu0 %3680
    %v3682 = vmul.f32 %v3681, 0.03125
    %v3683 = vadd.f32 %v3682, 1e-05
    %v3684 = vrsqrt.pop %v3683
    %v3685 = vmul.f32 %v3677, %v3684
    %v3686 = vlaneseq
    %v3687 = vshrl.u32 %v3686, 7
    %v3688 = vsub.s32 0, %v3687
    %v3689 = vrot.slane %v3669, %v3688
    %v3690 = vmul.f32 %v3685, %v3689
    %v3691 = vlaneseq
    %v3692 = vshrl.u32 %v3691, 7
    %v3693 = vsub.s32 0, %v3692
    %v3694 = vrot.slane %v3670, %v3693
    %v3695 = vadd.f32 %v3690, %v3694
    %v3696 = vmax.f32 %v3695, 0.0
    %v3697 = vld [vmem:[#allocation7] sm:$0xff]
    %v3698 = vld [vmem:[#allocation7 + $0x8] sm:$0xff]
    %v3699 = vld [vmem:[#allocation7 + $0x10] sm:$0xff]
    %v3700 = vld [vmem:[#allocation7 + $0x18] sm:$0xff]
    %v3701 = vld [vmem:[#allocation7 + $0x20] sm:$0xff]
    %v3702 = vld [vmem:[#allocation7 + $0x28] sm:$0xff]
    %v3703 = vld [vmem:[#allocation7 + $0x30] sm:$0xff]
    %v3704 = vld [vmem:[#allocation7 + $0x38] sm:$0xff]
    %v3705 = vld [vmem:[#allocation7 + $0x40] sm:$0xff]
    %v3706 = vld [vmem:[#allocation7 + $0x48] sm:$0xff]
    %v3707 = vld [vmem:[#allocation7 + $0x50] sm:$0xff]
    %v3708 = vld [vmem:[#allocation7 + $0x58] sm:$0xff]
    %v3709 = vld [vmem:[#allocation7 + $0x60] sm:$0xff]
    %v3710 = vld [vmem:[#allocation7 + $0x68] sm:$0xff]
    %v3711 = vld [vmem:[#allocation7 + $0x70] sm:$0xff]
    %v3712 = vld [vmem:[#allocation7 + $0x78] sm:$0xff]
    %v3713 = vld [vmem:[%s4] sm:$0x1]
    %v3714 = vlaneseq
    %v3715 = vshrl.u32 %v3714, 7
    %v3716 = vsub.s32 0, %v3715
    %v3717 = vrot.slane %v3713, %v3716
    %3718 = vmatprep.subr.mxu0 0.0
    %v3719 = vand.u32 %v3697, 4294901760
    %3720 = vmatpush1.msra.mxu0 %v3719
    %3721 = vmatprep.subr.mxu0 0.0
    %v3722 = vand.u32 %v3698, 4294901760
    %3723 = vmatpush1.msra.mxu0 %v3722
    %3724 = vmatprep.subr.mxu0 0.0
    %v3725 = vand.u32 %v3699, 4294901760
    %3726 = vmatpush1.msra.mxu0 %v3725
    %3727 = vmatprep.subr.mxu0 0.0
    %v3728 = vand.u32 %v3700, 4294901760
    %3729 = vmatpush1.msra.mxu0 %v3728
    %3730 = vmatprep.subr.mxu0 0.0
    %v3731 = vand.u32 %v3701, 4294901760
    %3732 = vmatpush1.msra.mxu0 %v3731
    %3733 = vmatprep.subr.mxu0 0.0
    %v3734 = vand.u32 %v3702, 4294901760
    %3735 = vmatpush1.msra.mxu0 %v3734
    %3736 = vmatprep.subr.mxu0 0.0
    %v3737 = vand.u32 %v3703, 4294901760
    %3738 = vmatpush1.msra.mxu0 %v3737
    %3739 = vmatprep.subr.mxu0 0.0
    %v3740 = vand.u32 %v3704, 4294901760
    %3741 = vmatpush1.msra.mxu0 %v3740
    %3742 = vmatprep.subr.mxu0 0.0
    %v3743 = vand.u32 %v3705, 4294901760
    %3744 = vmatpush1.msra.mxu0 %v3743
    %3745 = vmatprep.subr.mxu0 0.0
    %v3746 = vand.u32 %v3706, 4294901760
    %3747 = vmatpush1.msra.mxu0 %v3746
    %3748 = vmatprep.subr.mxu0 0.0
    %v3749 = vand.u32 %v3707, 4294901760
    %3750 = vmatpush1.msra.mxu0 %v3749
    %3751 = vmatprep.subr.mxu0 0.0
    %v3752 = vand.u32 %v3708, 4294901760
    %3753 = vmatpush1.msra.mxu0 %v3752
    %3754 = vmatprep.subr.mxu0 0.0
    %v3755 = vand.u32 %v3709, 4294901760
    %3756 = vmatpush1.msra.mxu0 %v3755
    %3757 = vmatprep.subr.mxu0 0.0
    %v3758 = vand.u32 %v3710, 4294901760
    %3759 = vmatpush1.msra.mxu0 %v3758
    %3760 = vmatprep.subr.mxu0 0.0
    %v3761 = vand.u32 %v3711, 4294901760
    %3762 = vmatpush1.msra.mxu0 %v3761
    %3763 = vmatprep.subr.mxu0 0.0
    %v3764 = vand.u32 %v3712, 4294901760
    %3765 = vmatpush1.msra.mxu0 %v3764
    %3766 = vmatprep.subr.mxu0 0.0
    %3767 = vmatpush1.msra.mxu0 0.0
    %3768 = vmatprep.subr.mxu0 0.0
    %3769 = vmatpush1.msra.mxu0 0.0
    %3770 = vmatprep.subr.mxu0 0.0
    %3771 = vmatpush1.msra.mxu0 0.0
    %3772 = vmatprep.subr.mxu0 0.0
    %3773 = vmatpush1.msra.mxu0 0.0
    %3774 = vmatprep.subr.mxu0 0.0
    %3775 = vmatpush1.msra.mxu0 0.0
    %3776 = vmatprep.subr.mxu0 0.0
    %3777 = vmatpush1.msra.mxu0 0.0
    %3778 = vmatprep.subr.mxu0 0.0
    %3779 = vmatpush1.msra.mxu0 0.0
    %3780 = vmatprep.subr.mxu0 0.0
    %3781 = vmatpush1.msra.mxu0 0.0
    %3782 = vmatprep.subr.mxu0 0.0
    %3783 = vmatpush1.msra.mxu0 0.0
    %3784 = vmatprep.subr.mxu0 0.0
    %3785 = vmatpush1.msra.mxu0 0.0
    %3786 = vmatprep.subr.mxu0 0.0
    %3787 = vmatpush1.msra.mxu0 0.0
    %3788 = vmatprep.subr.mxu0 0.0
    %3789 = vmatpush1.msra.mxu0 0.0
    %3790 = vmatprep.subr.mxu0 0.0
    %3791 = vmatpush1.msra.mxu0 0.0
    %3792 = vmatprep.subr.mxu0 0.0
    %3793 = vmatpush1.msra.mxu0 0.0
    %3794 = vmatprep.subr.mxu0 0.0
    %3795 = vmatpush1.msra.mxu0 0.0
    %3796 = vmatprep.subr.mxu0 0.0
    %3797 = vmatpush1.msra.mxu0 0.0
    %3798 = vmatprep.mubr.f32.mxu0 0.0
    %v3799 = vand.u32 %v3696, 4294901760
    %v3800 = vsub.f32 %v3696, %v3799
    %v3801 = vand.u32 %v3800, 4294901760
    %v3802 = vsub.f32 %v3800, %v3801
    %v3803 = vand.u32 %v3802, 4294901760
    %3804 = vmatmul.mubr.f32.gmra.mrb[0].mxu0 %v3803
    %v3805 = vpop.f32.mrb[0].mxu0
    %v3806 = vadd.f32 %v3717, %v3805
    %v3807 = vpop.f32.mrb[0].mxu0
    %3808 = vdwg.mxu0
    %3809 = vmatprep.subr.mxu0 0.0
    %v3810 = vand.u32 %v3697, 4294901760
    %v3811 = vsub.f32 %v3697, %v3810
    %v3812 = vand.u32 %v3811, 4294901760
    %v3813 = vsub.f32 %v3811, %v3812
    %v3814 = vand.u32 %v3813, 4294901760
    %3815 = vmatpush1.msra.mxu0 %v3814
    %3816 = vmatprep.subr.mxu0 0.0
    %v3817 = vand.u32 %v3698, 4294901760
    %v3818 = vsub.f32 %v3698, %v3817
    %v3819 = vand.u32 %v3818, 4294901760
    %v3820 = vsub.f32 %v3818, %v3819
    %v3821 = vand.u32 %v3820, 4294901760
    %3822 = vmatpush1.msra.mxu0 %v3821
    %3823 = vmatprep.subr.mxu0 0.0
    %v3824 = vand.u32 %v3699, 4294901760
    %v3825 = vsub.f32 %v3699, %v3824
    %v3826 = vand.u32 %v3825, 4294901760
    %v3827 = vsub.f32 %v3825, %v3826
    %v3828 = vand.u32 %v3827, 4294901760
    %3829 = vmatpush1.msra.mxu0 %v3828
    %3830 = vmatprep.subr.mxu0 0.0
    %v3831 = vand.u32 %v3700, 4294901760
    %v3832 = vsub.f32 %v3700, %v3831
    %v3833 = vand.u32 %v3832, 4294901760
    %v3834 = vsub.f32 %v3832, %v3833
    %v3835 = vand.u32 %v3834, 4294901760
    %3836 = vmatpush1.msra.mxu0 %v3835
    %3837 = vmatprep.subr.mxu0 0.0
    %v3838 = vand.u32 %v3701, 4294901760
    %v3839 = vsub.f32 %v3701, %v3838
    %v3840 = vand.u32 %v3839, 4294901760
    %v3841 = vsub.f32 %v3839, %v3840
    %v3842 = vand.u32 %v3841, 4294901760
    %3843 = vmatpush1.msra.mxu0 %v3842
    %3844 = vmatprep.subr.mxu0 0.0
    %v3845 = vand.u32 %v3702, 4294901760
    %v3846 = vsub.f32 %v3702, %v3845
    %v3847 = vand.u32 %v3846, 4294901760
    %v3848 = vsub.f32 %v3846, %v3847
    %v3849 = vand.u32 %v3848, 4294901760
    %3850 = vmatpush1.msra.mxu0 %v3849
    %3851 = vmatprep.subr.mxu0 0.0
    %v3852 = vand.u32 %v3703, 4294901760
    %v3853 = vsub.f32 %v3703, %v3852
    %v3854 = vand.u32 %v3853, 4294901760
    %v3855 = vsub.f32 %v3853, %v3854
    %v3856 = vand.u32 %v3855, 4294901760
    %3857 = vmatpush1.msra.mxu0 %v3856
    %3858 = vmatprep.subr.mxu0 0.0
    %v3859 = vand.u32 %v3704, 4294901760
    %v3860 = vsub.f32 %v3704, %v3859
    %v3861 = vand.u32 %v3860, 4294901760
    %v3862 = vsub.f32 %v3860, %v3861
    %v3863 = vand.u32 %v3862, 4294901760
    %3864 = vmatpush1.msra.mxu0 %v3863
    %3865 = vmatprep.subr.mxu0 0.0
    %v3866 = vand.u32 %v3705, 4294901760
    %v3867 = vsub.f32 %v3705, %v3866
    %v3868 = vand.u32 %v3867, 4294901760
    %v3869 = vsub.f32 %v3867, %v3868
    %v3870 = vand.u32 %v3869, 4294901760
    %3871 = vmatpush1.msra.mxu0 %v3870
    %3872 = vmatprep.subr.mxu0 0.0
    %v3873 = vand.u32 %v3706, 4294901760
    %v3874 = vsub.f32 %v3706, %v3873
    %v3875 = vand.u32 %v3874, 4294901760
    %v3876 = vsub.f32 %v3874, %v3875
    %v3877 = vand.u32 %v3876, 4294901760
    %3878 = vmatpush1.msra.mxu0 %v3877
    %3879 = vmatprep.subr.mxu0 0.0
    %v3880 = vand.u32 %v3707, 4294901760
    %v3881 = vsub.f32 %v3707, %v3880
    %v3882 = vand.u32 %v3881, 4294901760
    %v3883 = vsub.f32 %v3881, %v3882
    %v3884 = vand.u32 %v3883, 4294901760
    %3885 = vmatpush1.msra.mxu0 %v3884
    %3886 = vmatprep.subr.mxu0 0.0
    %v3887 = vand.u32 %v3708, 4294901760
    %v3888 = vsub.f32 %v3708, %v3887
    %v3889 = vand.u32 %v3888, 4294901760
    %v3890 = vsub.f32 %v3888, %v3889
    %v3891 = vand.u32 %v3890, 4294901760
    %3892 = vmatpush1.msra.mxu0 %v3891
    %3893 = vmatprep.subr.mxu0 0.0
    %v3894 = vand.u32 %v3709, 4294901760
    %v3895 = vsub.f32 %v3709, %v3894
    %v3896 = vand.u32 %v3895, 4294901760
    %v3897 = vsub.f32 %v3895, %v3896
    %v3898 = vand.u32 %v3897, 4294901760
    %3899 = vmatpush1.msra.mxu0 %v3898
    %3900 = vmatprep.subr.mxu0 0.0
    %v3901 = vand.u32 %v3710, 4294901760
    %v3902 = vsub.f32 %v3710, %v3901
    %v3903 = vand.u32 %v3902, 4294901760
    %v3904 = vsub.f32 %v3902, %v3903
    %v3905 = vand.u32 %v3904, 4294901760
    %3906 = vmatpush1.msra.mxu0 %v3905
    %3907 = vmatprep.subr.mxu0 0.0
    %v3908 = vand.u32 %v3711, 4294901760
    %v3909 = vsub.f32 %v3711, %v3908
    %v3910 = vand.u32 %v3909, 4294901760
    %v3911 = vsub.f32 %v3909, %v3910
    %v3912 = vand.u32 %v3911, 4294901760
    %3913 = vmatpush1.msra.mxu0 %v3912
    %3914 = vmatprep.subr.mxu0 0.0
    %v3915 = vand.u32 %v3712, 4294901760
    %v3916 = vsub.f32 %v3712, %v3915
    %v3917 = vand.u32 %v3916, 4294901760
    %v3918 = vsub.f32 %v3916, %v3917
    %v3919 = vand.u32 %v3918, 4294901760
    %3920 = vmatpush1.msra.mxu0 %v3919
    %3921 = vmatprep.subr.mxu0 0.0
    %3922 = vmatpush1.msra.mxu0 0.0
    %3923 = vmatprep.subr.mxu0 0.0
    %3924 = vmatpush1.msra.mxu0 0.0
    %3925 = vmatprep.subr.mxu0 0.0
    %3926 = vmatpush1.msra.mxu0 0.0
    %3927 = vmatprep.subr.mxu0 0.0
    %3928 = vmatpush1.msra.mxu0 0.0
    %3929 = vmatprep.subr.mxu0 0.0
    %3930 = vmatpush1.msra.mxu0 0.0
    %3931 = vmatprep.subr.mxu0 0.0
    %3932 = vmatpush1.msra.mxu0 0.0
    %3933 = vmatprep.subr.mxu0 0.0
    %3934 = vmatpush1.msra.mxu0 0.0
    %3935 = vmatprep.subr.mxu0 0.0
    %3936 = vmatpush1.msra.mxu0 0.0
    %3937 = vmatprep.subr.mxu0 0.0
    %3938 = vmatpush1.msra.mxu0 0.0
    %3939 = vmatprep.subr.mxu0 0.0
    %3940 = vmatpush1.msra.mxu0 0.0
    %3941 = vmatprep.subr.mxu0 0.0
    %3942 = vmatpush1.msra.mxu0 0.0
    %3943 = vmatprep.subr.mxu0 0.0
    %3944 = vmatpush1.msra.mxu0 0.0
    %3945 = vmatprep.subr.mxu0 0.0
    %3946 = vmatpush1.msra.mxu0 0.0
    %3947 = vmatprep.subr.mxu0 0.0
    %3948 = vmatpush1.msra.mxu0 0.0
    %3949 = vmatprep.subr.mxu0 0.0
    %3950 = vmatpush1.msra.mxu0 0.0
    %3951 = vmatprep.subr.mxu0 0.0
    %3952 = vmatpush1.msra.mxu0 0.0
    %3953 = vmatprep.mubr.f32.mxu0 0.0
    %v3954 = vand.u32 %v3696, 4294901760
    %3955 = vmatmul.mubr.f32.gmra.mrb[0].mxu0 %v3954
    %v3956 = vpop.f32.mrb[0].mxu0
    %v3957 = vadd.f32 %v3806, %v3956
    %v3958 = vpop.f32.mrb[0].mxu0
    %3959 = vdwg.mxu0
    %3960 = vmatprep.subr.mxu0 0.0
    %v3961 = vand.u32 %v3697, 4294901760
    %v3962 = vsub.f32 %v3697, %v3961
    %3963 = vmatpush1.msra.mxu0 %v3962
    %3964 = vmatprep.subr.mxu0 0.0
    %v3965 = vand.u32 %v3698, 4294901760
    %v3966 = vsub.f32 %v3698, %v3965
    %3967 = vmatpush1.msra.mxu0 %v3966
    %3968 = vmatprep.subr.mxu0 0.0
    %v3969 = vand.u32 %v3699, 4294901760
    %v3970 = vsub.f32 %v3699, %v3969
    %3971 = vmatpush1.msra.mxu0 %v3970
    %3972 = vmatprep.subr.mxu0 0.0
    %v3973 = vand.u32 %v3700, 4294901760
    %v3974 = vsub.f32 %v3700, %v3973
    %3975 = vmatpush1.msra.mxu0 %v3974
    %3976 = vmatprep.subr.mxu0 0.0
    %v3977 = vand.u32 %v3701, 4294901760
    %v3978 = vsub.f32 %v3701, %v3977
    %3979 = vmatpush1.msra.mxu0 %v3978
    %3980 = vmatprep.subr.mxu0 0.0
    %v3981 = vand.u32 %v3702, 4294901760
    %v3982 = vsub.f32 %v3702, %v3981
    %3983 = vmatpush1.msra.mxu0 %v3982
    %3984 = vmatprep.subr.mxu0 0.0
    %v3985 = vand.u32 %v3703, 4294901760
    %v3986 = vsub.f32 %v3703, %v3985
    %3987 = vmatpush1.msra.mxu0 %v3986
    %3988 = vmatprep.subr.mxu0 0.0
    %v3989 = vand.u32 %v3704, 4294901760
    %v3990 = vsub.f32 %v3704, %v3989
    %3991 = vmatpush1.msra.mxu0 %v3990
    %3992 = vmatprep.subr.mxu0 0.0
    %v3993 = vand.u32 %v3705, 4294901760
    %v3994 = vsub.f32 %v3705, %v3993
    %3995 = vmatpush1.msra.mxu0 %v3994
    %3996 = vmatprep.subr.mxu0 0.0
    %v3997 = vand.u32 %v3706, 4294901760
    %v3998 = vsub.f32 %v3706, %v3997
    %3999 = vmatpush1.msra.mxu0 %v3998
    %4000 = vmatprep.subr.mxu0 0.0
    %v4001 = vand.u32 %v3707, 4294901760
    %v4002 = vsub.f32 %v3707, %v4001
    %4003 = vmatpush1.msra.mxu0 %v4002
    %4004 = vmatprep.subr.mxu0 0.0
    %v4005 = vand.u32 %v3708, 4294901760
    %v4006 = vsub.f32 %v3708, %v4005
    %4007 = vmatpush1.msra.mxu0 %v4006
    %4008 = vmatprep.subr.mxu0 0.0
    %v4009 = vand.u32 %v3709, 4294901760
    %v4010 = vsub.f32 %v3709, %v4009
    %4011 = vmatpush1.msra.mxu0 %v4010
    %4012 = vmatprep.subr.mxu0 0.0
    %v4013 = vand.u32 %v3710, 4294901760
    %v4014 = vsub.f32 %v3710, %v4013
    %4015 = vmatpush1.msra.mxu0 %v4014
    %4016 = vmatprep.subr.mxu0 0.0
    %v4017 = vand.u32 %v3711, 4294901760
    %v4018 = vsub.f32 %v3711, %v4017
    %4019 = vmatpush1.msra.mxu0 %v4018
    %4020 = vmatprep.subr.mxu0 0.0
    %v4021 = vand.u32 %v3712, 4294901760
    %v4022 = vsub.f32 %v3712, %v4021
    %4023 = vmatpush1.msra.mxu0 %v4022
    %4024 = vmatprep.subr.mxu0 0.0
    %4025 = vmatpush1.msra.mxu0 0.0
    %4026 = vmatprep.subr.mxu0 0.0
    %4027 = vmatpush1.msra.mxu0 0.0
    %4028 = vmatprep.subr.mxu0 0.0
    %4029 = vmatpush1.msra.mxu0 0.0
    %4030 = vmatprep.subr.mxu0 0.0
    %4031 = vmatpush1.msra.mxu0 0.0
    %4032 = vmatprep.subr.mxu0 0.0
    %4033 = vmatpush1.msra.mxu0 0.0
    %4034 = vmatprep.subr.mxu0 0.0
    %4035 = vmatpush1.msra.mxu0 0.0
    %4036 = vmatprep.subr.mxu0 0.0
    %4037 = vmatpush1.msra.mxu0 0.0
    %4038 = vmatprep.subr.mxu0 0.0
    %4039 = vmatpush1.msra.mxu0 0.0
    %4040 = vmatprep.subr.mxu0 0.0
    %4041 = vmatpush1.msra.mxu0 0.0
    %4042 = vmatprep.subr.mxu0 0.0
    %4043 = vmatpush1.msra.mxu0 0.0
    %4044 = vmatprep.subr.mxu0 0.0
    %4045 = vmatpush1.msra.mxu0 0.0
    %4046 = vmatprep.subr.mxu0 0.0
    %4047 = vmatpush1.msra.mxu0 0.0
    %4048 = vmatprep.subr.mxu0 0.0
    %4049 = vmatpush1.msra.mxu0 0.0
    %4050 = vmatprep.subr.mxu0 0.0
    %4051 = vmatpush1.msra.mxu0 0.0
    %4052 = vmatprep.subr.mxu0 0.0
    %4053 = vmatpush1.msra.mxu0 0.0
    %4054 = vmatprep.subr.mxu0 0.0
    %4055 = vmatpush1.msra.mxu0 0.0
    %4056 = vmatprep.mubr.f32.mxu0 0.0
    %v4057 = vand.u32 %v3696, 4294901760
    %v4058 = vsub.f32 %v3696, %v4057
    %4059 = vmatmul.mubr.f32.gmra.mrb[0].mxu0 %v4058
    %v4060 = vpop.f32.mrb[0].mxu0
    %v4061 = vadd.f32 %v3957, %v4060
    %v4062 = vpop.f32.mrb[0].mxu0
    %4063 = vdwg.mxu0
    %4064 = vmatprep.subr.mxu0 0.0
    %v4065 = vand.u32 %v3697, 4294901760
    %4066 = vmatpush1.msra.mxu0 %v4065
    %4067 = vmatprep.subr.mxu0 0.0
    %v4068 = vand.u32 %v3698, 4294901760
    %4069 = vmatpush1.msra.mxu0 %v4068
    %4070 = vmatprep.subr.mxu0 0.0
    %v4071 = vand.u32 %v3699, 4294901760
    %4072 = vmatpush1.msra.mxu0 %v4071
    %4073 = vmatprep.subr.mxu0 0.0
    %v4074 = vand.u32 %v3700, 4294901760
    %4075 = vmatpush1.msra.mxu0 %v4074
    %4076 = vmatprep.subr.mxu0 0.0
    %v4077 = vand.u32 %v3701, 4294901760
    %4078 = vmatpush1.msra.mxu0 %v4077
    %4079 = vmatprep.subr.mxu0 0.0
    %v4080 = vand.u32 %v3702, 4294901760
    %4081 = vmatpush1.msra.mxu0 %v4080
    %4082 = vmatprep.subr.mxu0 0.0
    %v4083 = vand.u32 %v3703, 4294901760
    %4084 = vmatpush1.msra.mxu0 %v4083
    %4085 = vmatprep.subr.mxu0 0.0
    %v4086 = vand.u32 %v3704, 4294901760
    %4087 = vmatpush1.msra.mxu0 %v4086
    %4088 = vmatprep.subr.mxu0 0.0
    %v4089 = vand.u32 %v3705, 4294901760
    %4090 = vmatpush1.msra.mxu0 %v4089
    %4091 = vmatprep.subr.mxu0 0.0
    %v4092 = vand.u32 %v3706, 4294901760
    %4093 = vmatpush1.msra.mxu0 %v4092
    %4094 = vmatprep.subr.mxu0 0.0
    %v4095 = vand.u32 %v3707, 4294901760
    %4096 = vmatpush1.msra.mxu0 %v4095
    %4097 = vmatprep.subr.mxu0 0.0
    %v4098 = vand.u32 %v3708, 4294901760
    %4099 = vmatpush1.msra.mxu0 %v4098
    %4100 = vmatprep.subr.mxu0 0.0
    %v4101 = vand.u32 %v3709, 4294901760
    %4102 = vmatpush1.msra.mxu0 %v4101
    %4103 = vmatprep.subr.mxu0 0.0
    %v4104 = vand.u32 %v3710, 4294901760
    %4105 = vmatpush1.msra.mxu0 %v4104
    %4106 = vmatprep.subr.mxu0 0.0
    %v4107 = vand.u32 %v3711, 4294901760
    %4108 = vmatpush1.msra.mxu0 %v4107
    %4109 = vmatprep.subr.mxu0 0.0
    %v4110 = vand.u32 %v3712, 4294901760
    %4111 = vmatpush1.msra.mxu0 %v4110
    %4112 = vmatprep.subr.mxu0 0.0
    %4113 = vmatpush1.msra.mxu0 0.0
    %4114 = vmatprep.subr.mxu0 0.0
    %4115 = vmatpush1.msra.mxu0 0.0
    %4116 = vmatprep.subr.mxu0 0.0
    %4117 = vmatpush1.msra.mxu0 0.0
    %4118 = vmatprep.subr.mxu0 0.0
    %4119 = vmatpush1.msra.mxu0 0.0
    %4120 = vmatprep.subr.mxu0 0.0
    %4121 = vmatpush1.msra.mxu0 0.0
    %4122 = vmatprep.subr.mxu0 0.0
    %4123 = vmatpush1.msra.mxu0 0.0
    %4124 = vmatprep.subr.mxu0 0.0
    %4125 = vmatpush1.msra.mxu0 0.0
    %4126 = vmatprep.subr.mxu0 0.0
    %4127 = vmatpush1.msra.mxu0 0.0
    %4128 = vmatprep.subr.mxu0 0.0
    %4129 = vmatpush1.msra.mxu0 0.0
    %4130 = vmatprep.subr.mxu0 0.0
    %4131 = vmatpush1.msra.mxu0 0.0
    %4132 = vmatprep.subr.mxu0 0.0
    %4133 = vmatpush1.msra.mxu0 0.0
    %4134 = vmatprep.subr.mxu0 0.0
    %4135 = vmatpush1.msra.mxu0 0.0
    %4136 = vmatprep.subr.mxu0 0.0
    %4137 = vmatpush1.msra.mxu0 0.0
    %4138 = vmatprep.subr.mxu0 0.0
    %4139 = vmatpush1.msra.mxu0 0.0
    %4140 = vmatprep.subr.mxu0 0.0
    %4141 = vmatpush1.msra.mxu0 0.0
    %4142 = vmatprep.subr.mxu0 0.0
    %4143 = vmatpush1.msra.mxu0 0.0
    %4144 = vmatprep.mubr.f32.mxu0 0.0
    %v4145 = vand.u32 %v3696, 4294901760
    %v4146 = vsub.f32 %v3696, %v4145
    %v4147 = vand.u32 %v4146, 4294901760
    %4148 = vmatmul.mubr.f32.gmra.mrb[0].mxu0 %v4147
    %v4149 = vpop.f32.mrb[0].mxu0
    %v4150 = vadd.f32 %v4061, %v4149
    %v4151 = vpop.f32.mrb[0].mxu0
    %4152 = vdwg.mxu0
    %4153 = vmatprep.subr.mxu0 0.0
    %v4154 = vand.u32 %v3697, 4294901760
    %v4155 = vsub.f32 %v3697, %v4154
    %v4156 = vand.u32 %v4155, 4294901760
    %4157 = vmatpush1.msra.mxu0 %v4156
    %4158 = vmatprep.subr.mxu0 0.0
    %v4159 = vand.u32 %v3698, 4294901760
    %v4160 = vsub.f32 %v3698, %v4159
    %v4161 = vand.u32 %v4160, 4294901760
    %4162 = vmatpush1.msra.mxu0 %v4161
    %4163 = vmatprep.subr.mxu0 0.0
    %v4164 = vand.u32 %v3699, 4294901760
    %v4165 = vsub.f32 %v3699, %v4164
    %v4166 = vand.u32 %v4165, 4294901760
    %4167 = vmatpush1.msra.mxu0 %v4166
    %4168 = vmatprep.subr.mxu0 0.0
    %v4169 = vand.u32 %v3700, 4294901760
    %v4170 = vsub.f32 %v3700, %v4169
    %v4171 = vand.u32 %v4170, 4294901760
    %4172 = vmatpush1.msra.mxu0 %v4171
    %4173 = vmatprep.subr.mxu0 0.0
    %v4174 = vand.u32 %v3701, 4294901760
    %v4175 = vsub.f32 %v3701, %v4174
    %v4176 = vand.u32 %v4175, 4294901760
    %4177 = vmatpush1.msra.mxu0 %v4176
    %4178 = vmatprep.subr.mxu0 0.0
    %v4179 = vand.u32 %v3702, 4294901760
    %v4180 = vsub.f32 %v3702, %v4179
    %v4181 = vand.u32 %v4180, 4294901760
    %4182 = vmatpush1.msra.mxu0 %v4181
    %4183 = vmatprep.subr.mxu0 0.0
    %v4184 = vand.u32 %v3703, 4294901760
    %v4185 = vsub.f32 %v3703, %v4184
    %v4186 = vand.u32 %v4185, 4294901760
    %4187 = vmatpush1.msra.mxu0 %v4186
    %4188 = vmatprep.subr.mxu0 0.0
    %v4189 = vand.u32 %v3704, 4294901760
    %v4190 = vsub.f32 %v3704, %v4189
    %v4191 = vand.u32 %v4190, 4294901760
    %4192 = vmatpush1.msra.mxu0 %v4191
    %4193 = vmatprep.subr.mxu0 0.0
    %v4194 = vand.u32 %v3705, 4294901760
    %v4195 = vsub.f32 %v3705, %v4194
    %v4196 = vand.u32 %v4195, 4294901760
    %4197 = vmatpush1.msra.mxu0 %v4196
    %4198 = vmatprep.subr.mxu0 0.0
    %v4199 = vand.u32 %v3706, 4294901760
    %v4200 = vsub.f32 %v3706, %v4199
    %v4201 = vand.u32 %v4200, 4294901760
    %4202 = vmatpush1.msra.mxu0 %v4201
    %4203 = vmatprep.subr.mxu0 0.0
    %v4204 = vand.u32 %v3707, 4294901760
    %v4205 = vsub.f32 %v3707, %v4204
    %v4206 = vand.u32 %v4205, 4294901760
    %4207 = vmatpush1.msra.mxu0 %v4206
    %4208 = vmatprep.subr.mxu0 0.0
    %v4209 = vand.u32 %v3708, 4294901760
    %v4210 = vsub.f32 %v3708, %v4209
    %v4211 = vand.u32 %v4210, 4294901760
    %4212 = vmatpush1.msra.mxu0 %v4211
    %4213 = vmatprep.subr.mxu0 0.0
    %v4214 = vand.u32 %v3709, 4294901760
    %v4215 = vsub.f32 %v3709, %v4214
    %v4216 = vand.u32 %v4215, 4294901760
    %4217 = vmatpush1.msra.mxu0 %v4216
    %4218 = vmatprep.subr.mxu0 0.0
    %v4219 = vand.u32 %v3710, 4294901760
    %v4220 = vsub.f32 %v3710, %v4219
    %v4221 = vand.u32 %v4220, 4294901760
    %4222 = vmatpush1.msra.mxu0 %v4221
    %4223 = vmatprep.subr.mxu0 0.0
    %v4224 = vand.u32 %v3711, 4294901760
    %v4225 = vsub.f32 %v3711, %v4224
    %v4226 = vand.u32 %v4225, 4294901760
    %4227 = vmatpush1.msra.mxu0 %v4226
    %4228 = vmatprep.subr.mxu0 0.0
    %v4229 = vand.u32 %v3712, 4294901760
    %v4230 = vsub.f32 %v3712, %v4229
    %v4231 = vand.u32 %v4230, 4294901760
    %4232 = vmatpush1.msra.mxu0 %v4231
    %4233 = vmatprep.subr.mxu0 0.0
    %4234 = vmatpush1.msra.mxu0 0.0
    %4235 = vmatprep.subr.mxu0 0.0
    %4236 = vmatpush1.msra.mxu0 0.0
    %4237 = vmatprep.subr.mxu0 0.0
    %4238 = vmatpush1.msra.mxu0 0.0
    %4239 = vmatprep.subr.mxu0 0.0
    %4240 = vmatpush1.msra.mxu0 0.0
    %4241 = vmatprep.subr.mxu0 0.0
    %4242 = vmatpush1.msra.mxu0 0.0
    %4243 = vmatprep.subr.mxu0 0.0
    %4244 = vmatpush1.msra.mxu0 0.0
    %4245 = vmatprep.subr.mxu0 0.0
    %4246 = vmatpush1.msra.mxu0 0.0
    %4247 = vmatprep.subr.mxu0 0.0
    %4248 = vmatpush1.msra.mxu0 0.0
    %4249 = vmatprep.subr.mxu0 0.0
    %4250 = vmatpush1.msra.mxu0 0.0
    %4251 = vmatprep.subr.mxu0 0.0
    %4252 = vmatpush1.msra.mxu0 0.0
    %4253 = vmatprep.subr.mxu0 0.0
    %4254 = vmatpush1.msra.mxu0 0.0
    %4255 = vmatprep.subr.mxu0 0.0
    %4256 = vmatpush1.msra.mxu0 0.0
    %4257 = vmatprep.subr.mxu0 0.0
    %4258 = vmatpush1.msra.mxu0 0.0
    %4259 = vmatprep.subr.mxu0 0.0
    %4260 = vmatpush1.msra.mxu0 0.0
    %4261 = vmatprep.subr.mxu0 0.0
    %4262 = vmatpush1.msra.mxu0 0.0
    %4263 = vmatprep.subr.mxu0 0.0
    %4264 = vmatpush1.msra.mxu0 0.0
    %4265 = vmatprep.mubr.f32.mxu0 0.0
    %v4266 = vand.u32 %v3696, 4294901760
    %4267 = vmatmul.mubr.f32.gmra.mrb[0].mxu0 %v4266
    %v4268 = vpop.f32.mrb[0].mxu0
    %v4269 = vadd.f32 %v4150, %v4268
    %v4270 = vpop.f32.mrb[0].mxu0
    %4271 = vdwg.mxu0
    %4272 = vmatprep.subr.mxu0 0.0
    %v4273 = vand.u32 %v3697, 4294901760
    %4274 = vmatpush1.msra.mxu0 %v4273
    %4275 = vmatprep.subr.mxu0 0.0
    %v4276 = vand.u32 %v3698, 4294901760
    %4277 = vmatpush1.msra.mxu0 %v4276
    %4278 = vmatprep.subr.mxu0 0.0
    %v4279 = vand.u32 %v3699, 4294901760
    %4280 = vmatpush1.msra.mxu0 %v4279
    %4281 = vmatprep.subr.mxu0 0.0
    %v4282 = vand.u32 %v3700, 4294901760
    %4283 = vmatpush1.msra.mxu0 %v4282
    %4284 = vmatprep.subr.mxu0 0.0
    %v4285 = vand.u32 %v3701, 4294901760
    %4286 = vmatpush1.msra.mxu0 %v4285
    %4287 = vmatprep.subr.mxu0 0.0
    %v4288 = vand.u32 %v3702, 4294901760
    %4289 = vmatpush1.msra.mxu0 %v4288
    %4290 = vmatprep.subr.mxu0 0.0
    %v4291 = vand.u32 %v3703, 4294901760
    %4292 = vmatpush1.msra.mxu0 %v4291
    %4293 = vmatprep.subr.mxu0 0.0
    %v4294 = vand.u32 %v3704, 4294901760
    %4295 = vmatpush1.msra.mxu0 %v4294
    %4296 = vmatprep.subr.mxu0 0.0
    %v4297 = vand.u32 %v3705, 4294901760
    %4298 = vmatpush1.msra.mxu0 %v4297
    %4299 = vmatprep.subr.mxu0 0.0
    %v4300 = vand.u32 %v3706, 4294901760
    %4301 = vmatpush1.msra.mxu0 %v4300
    %4302 = vmatprep.subr.mxu0 0.0
    %v4303 = vand.u32 %v3707, 4294901760
    %4304 = vmatpush1.msra.mxu0 %v4303
    %4305 = vmatprep.subr.mxu0 0.0
    %v4306 = vand.u32 %v3708, 4294901760
    %4307 = vmatpush1.msra.mxu0 %v4306
    %4308 = vmatprep.subr.mxu0 0.0
    %v4309 = vand.u32 %v3709, 4294901760
    %4310 = vmatpush1.msra.mxu0 %v4309
    %4311 = vmatprep.subr.mxu0 0.0
    %v4312 = vand.u32 %v3710, 4294901760
    %4313 = vmatpush1.msra.mxu0 %v4312
    %4314 = vmatprep.subr.mxu0 0.0
    %v4315 = vand.u32 %v3711, 4294901760
    %4316 = vmatpush1.msra.mxu0 %v4315
    %4317 = vmatprep.subr.mxu0 0.0
    %v4318 = vand.u32 %v3712, 4294901760
    %4319 = vmatpush1.msra.mxu0 %v4318
    %4320 = vmatprep.subr.mxu0 0.0
    %4321 = vmatpush1.msra.mxu0 0.0
    %4322 = vmatprep.subr.mxu0 0.0
    %4323 = vmatpush1.msra.mxu0 0.0
    %4324 = vmatprep.subr.mxu0 0.0
    %4325 = vmatpush1.msra.mxu0 0.0
    %4326 = vmatprep.subr.mxu0 0.0
    %4327 = vmatpush1.msra.mxu0 0.0
    %4328 = vmatprep.subr.mxu0 0.0
    %4329 = vmatpush1.msra.mxu0 0.0
    %4330 = vmatprep.subr.mxu0 0.0
    %4331 = vmatpush1.msra.mxu0 0.0
    %4332 = vmatprep.subr.mxu0 0.0
    %4333 = vmatpush1.msra.mxu0 0.0
    %4334 = vmatprep.subr.mxu0 0.0
    %4335 = vmatpush1.msra.mxu0 0.0
    %4336 = vmatprep.subr.mxu0 0.0
    %4337 = vmatpush1.msra.mxu0 0.0
    %4338 = vmatprep.subr.mxu0 0.0
    %4339 = vmatpush1.msra.mxu0 0.0
    %4340 = vmatprep.subr.mxu0 0.0
    %4341 = vmatpush1.msra.mxu0 0.0
    %4342 = vmatprep.subr.mxu0 0.0
    %4343 = vmatpush1.msra.mxu0 0.0
    %4344 = vmatprep.subr.mxu0 0.0
    %4345 = vmatpush1.msra.mxu0 0.0
    %4346 = vmatprep.subr.mxu0 0.0
    %4347 = vmatpush1.msra.mxu0 0.0
    %4348 = vmatprep.subr.mxu0 0.0
    %4349 = vmatpush1.msra.mxu0 0.0
    %4350 = vmatprep.subr.mxu0 0.0
    %4351 = vmatpush1.msra.mxu0 0.0
    %4352 = vmatprep.mubr.f32.mxu0 0.0
    %v4353 = vand.u32 %v3696, 4294901760
    %4354 = vmatmul.mubr.f32.gmra.mrb[0].mxu0 %v4353
    %v4355 = vpop.f32.mrb[0].mxu0
    %v4356 = vadd.f32 %v4269, %v4355
    %v4357 = vpop.f32.mrb[0].mxu0
    %4358 = vdwg.mxu0
    %v4359 = vld [vmem:[%s4 + $0x1] sm:$0x1]
    %v4360 = vld [vmem:[%s4 + $0x2] sm:$0x1]
    %4361 = vadd.xlane.f32.xlu0 %v4356
    %v4362 = vpop.xlane.xlu0 %4361
    %v4363 = vmul.f32 %v4362, 0.03125
    %v4364 = vsub.f32 %v4356, %v4363
    %v4365 = vsel %vm3676, %v4364, 0.0
    %v4366 = vmul.f32 %v4365, %v4365
    %4367 = vadd.xlane.f32.xlu0 %v4366
    %v4368 = vpop.xlane.xlu0 %4367
    %v4369 = vmul.f32 %v4368, 0.03125
    %v4370 = vadd.f32 %v4369, 1e-05
    %v4371 = vrsqrt.pop %v4370
    %v4372 = vmul.f32 %v4364, %v4371
    %v4373 = vlaneseq
    %v4374 = vshrl.u32 %v4373, 7
    %v4375 = vsub.s32 0, %v4374
    %v4376 = vrot.slane %v4359, %v4375
    %v4377 = vmul.f32 %v4372, %v4376
    %v4378 = vlaneseq
    %v4379 = vshrl.u32 %v4378, 7
    %v4380 = vsub.s32 0, %v4379
    %v4381 = vrot.slane %v4360, %v4380
    %v4382 = vadd.f32 %v4377, %v4381
    %v4383 = vmax.f32 %v4382, 0.0
    %v4384 = vld [vmem:[#allocation8] sm:$0xff]
    %v4385 = vld [vmem:[#allocation8 + $0x8] sm:$0xff]
    %v4386 = vld [vmem:[#allocation8 + $0x10] sm:$0xff]
    %v4387 = vld [vmem:[#allocation8 + $0x18] sm:$0xff]
    %v4388 = vld [vmem:[#allocation8 + $0x20] sm:$0xff]
    %v4389 = vld [vmem:[#allocation8 + $0x28] sm:$0xff]
    %v4390 = vld [vmem:[#allocation8 + $0x30] sm:$0xff]
    %v4391 = vld [vmem:[#allocation8 + $0x38] sm:$0xff]
    %v4392 = vld [vmem:[#allocation8 + $0x40] sm:$0xff]
    %v4393 = vld [vmem:[#allocation8 + $0x48] sm:$0xff]
    %v4394 = vld [vmem:[#allocation8 + $0x50] sm:$0xff]
    %v4395 = vld [vmem:[#allocation8 + $0x58] sm:$0xff]
    %v4396 = vld [vmem:[#allocation8 + $0x60] sm:$0xff]
    %v4397 = vld [vmem:[#allocation8 + $0x68] sm:$0xff]
    %v4398 = vld [vmem:[#allocation8 + $0x70] sm:$0xff]
    %v4399 = vld [vmem:[#allocation8 + $0x78] sm:$0xff]
    %v4400 = vld [vmem:[%s6] sm:$0x1]
    %v4401 = vlaneseq
    %v4402 = vshrl.u32 %v4401, 7
    %v4403 = vsub.s32 0, %v4402
    %v4404 = vrot.slane %v4400, %v4403
    %4405 = vmatprep.subr.mxu0 0.0
    %v4406 = vand.u32 %v4384, 4294901760
    %4407 = vmatpush1.msra.mxu0 %v4406
    %4408 = vmatprep.subr.mxu0 0.0
    %v4409 = vand.u32 %v4385, 4294901760
    %4410 = vmatpush1.msra.mxu0 %v4409
    %4411 = vmatprep.subr.mxu0 0.0
    %v4412 = vand.u32 %v4386, 4294901760
    %4413 = vmatpush1.msra.mxu0 %v4412
    %4414 = vmatprep.subr.mxu0 0.0
    %v4415 = vand.u32 %v4387, 4294901760
    %4416 = vmatpush1.msra.mxu0 %v4415
    %4417 = vmatprep.subr.mxu0 0.0
    %v4418 = vand.u32 %v4388, 4294901760
    %4419 = vmatpush1.msra.mxu0 %v4418
    %4420 = vmatprep.subr.mxu0 0.0
    %v4421 = vand.u32 %v4389, 4294901760
    %4422 = vmatpush1.msra.mxu0 %v4421
    %4423 = vmatprep.subr.mxu0 0.0
    %v4424 = vand.u32 %v4390, 4294901760
    %4425 = vmatpush1.msra.mxu0 %v4424
    %4426 = vmatprep.subr.mxu0 0.0
    %v4427 = vand.u32 %v4391, 4294901760
    %4428 = vmatpush1.msra.mxu0 %v4427
    %4429 = vmatprep.subr.mxu0 0.0
    %v4430 = vand.u32 %v4392, 4294901760
    %4431 = vmatpush1.msra.mxu0 %v4430
    %4432 = vmatprep.subr.mxu0 0.0
    %v4433 = vand.u32 %v4393, 4294901760
    %4434 = vmatpush1.msra.mxu0 %v4433
    %4435 = vmatprep.subr.mxu0 0.0
    %v4436 = vand.u32 %v4394, 4294901760
    %4437 = vmatpush1.msra.mxu0 %v4436
    %4438 = vmatprep.subr.mxu0 0.0
    %v4439 = vand.u32 %v4395, 4294901760
    %4440 = vmatpush1.msra.mxu0 %v4439
    %4441 = vmatprep.subr.mxu0 0.0
    %v4442 = vand.u32 %v4396, 4294901760
    %4443 = vmatpush1.msra.mxu0 %v4442
    %4444 = vmatprep.subr.mxu0 0.0
    %v4445 = vand.u32 %v4397, 4294901760
    %4446 = vmatpush1.msra.mxu0 %v4445
    %4447 = vmatprep.subr.mxu0 0.0
    %v4448 = vand.u32 %v4398, 4294901760
    %4449 = vmatpush1.msra.mxu0 %v4448
    %4450 = vmatprep.subr.mxu0 0.0
    %v4451 = vand.u32 %v4399, 4294901760
    %4452 = vmatpush1.msra.mxu0 %v4451
    %4453 = vmatprep.subr.mxu0 0.0
    %4454 = vmatpush1.msra.mxu0 0.0
    %4455 = vmatprep.subr.mxu0 0.0
    %4456 = vmatpush1.msra.mxu0 0.0
    %4457 = vmatprep.subr.mxu0 0.0
    %4458 = vmatpush1.msra.mxu0 0.0
    %4459 = vmatprep.subr.mxu0 0.0
    %4460 = vmatpush1.msra.mxu0 0.0
    %4461 = vmatprep.subr.mxu0 0.0
    %4462 = vmatpush1.msra.mxu0 0.0
    %4463 = vmatprep.subr.mxu0 0.0
    %4464 = vmatpush1.msra.mxu0 0.0
    %4465 = vmatprep.subr.mxu0 0.0
    %4466 = vmatpush1.msra.mxu0 0.0
    %4467 = vmatprep.subr.mxu0 0.0
    %4468 = vmatpush1.msra.mxu0 0.0
    %4469 = vmatprep.subr.mxu0 0.0
    %4470 = vmatpush1.msra.mxu0 0.0
    %4471 = vmatprep.subr.mxu0 0.0
    %4472 = vmatpush1.msra.mxu0 0.0
    %4473 = vmatprep.subr.mxu0 0.0
    %4474 = vmatpush1.msra.mxu0 0.0
    %4475 = vmatprep.subr.mxu0 0.0
    %4476 = vmatpush1.msra.mxu0 0.0
    %4477 = vmatprep.subr.mxu0 0.0
    %4478 = vmatpush1.msra.mxu0 0.0
    %4479 = vmatprep.subr.mxu0 0.0
    %4480 = vmatpush1.msra.mxu0 0.0
    %4481 = vmatprep.subr.mxu0 0.0
    %4482 = vmatpush1.msra.mxu0 0.0
    %4483 = vmatprep.subr.mxu0 0.0
    %4484 = vmatpush1.msra.mxu0 0.0
    %4485 = vmatprep.mubr.f32.mxu0 0.0
    %v4486 = vand.u32 %v4383, 4294901760
    %v4487 = vsub.f32 %v4383, %v4486
    %v4488 = vand.u32 %v4487, 4294901760
    %v4489 = vsub.f32 %v4487, %v4488
    %v4490 = vand.u32 %v4489, 4294901760
    %4491 = vmatmul.mubr.f32.gmra.mrb[0].mxu0 %v4490
    %v4492 = vpop.f32.mrb[0].mxu0
    %v4493 = vadd.f32 %v4404, %v4492
    %v4494 = vpop.f32.mrb[0].mxu0
    %4495 = vdwg.mxu0
    %4496 = vmatprep.subr.mxu0 0.0
    %v4497 = vand.u32 %v4384, 4294901760
    %v4498 = vsub.f32 %v4384, %v4497
    %v4499 = vand.u32 %v4498, 4294901760
    %v4500 = vsub.f32 %v4498, %v4499
    %v4501 = vand.u32 %v4500, 4294901760
    %4502 = vmatpush1.msra.mxu0 %v4501
    %4503 = vmatprep.subr.mxu0 0.0
    %v4504 = vand.u32 %v4385, 4294901760
    %v4505 = vsub.f32 %v4385, %v4504
    %v4506 = vand.u32 %v4505, 4294901760
    %v4507 = vsub.f32 %v4505, %v4506
    %v4508 = vand.u32 %v4507, 4294901760
    %4509 = vmatpush1.msra.mxu0 %v4508
    %4510 = vmatprep.subr.mxu0 0.0
    %v4511 = vand.u32 %v4386, 4294901760
    %v4512 = vsub.f32 %v4386, %v4511
    %v4513 = vand.u32 %v4512, 4294901760
    %v4514 = vsub.f32 %v4512, %v4513
    %v4515 = vand.u32 %v4514, 4294901760
    %4516 = vmatpush1.msra.mxu0 %v4515
    %4517 = vmatprep.subr.mxu0 0.0
    %v4518 = vand.u32 %v4387, 4294901760
    %v4519 = vsub.f32 %v4387, %v4518
    %v4520 = vand.u32 %v4519, 4294901760
    %v4521 = vsub.f32 %v4519, %v4520
    %v4522 = vand.u32 %v4521, 4294901760
    %4523 = vmatpush1.msra.mxu0 %v4522
    %4524 = vmatprep.subr.mxu0 0.0
    %v4525 = vand.u32 %v4388, 4294901760
    %v4526 = vsub.f32 %v4388, %v4525
    %v4527 = vand.u32 %v4526, 4294901760
    %v4528 = vsub.f32 %v4526, %v4527
    %v4529 = vand.u32 %v4528, 4294901760
    %4530 = vmatpush1.msra.mxu0 %v4529
    %4531 = vmatprep.subr.mxu0 0.0
    %v4532 = vand.u32 %v4389, 4294901760
    %v4533 = vsub.f32 %v4389, %v4532
    %v4534 = vand.u32 %v4533, 4294901760
    %v4535 = vsub.f32 %v4533, %v4534
    %v4536 = vand.u32 %v4535, 4294901760
    %4537 = vmatpush1.msra.mxu0 %v4536
    %4538 = vmatprep.subr.mxu0 0.0
    %v4539 = vand.u32 %v4390, 4294901760
    %v4540 = vsub.f32 %v4390, %v4539
    %v4541 = vand.u32 %v4540, 4294901760
    %v4542 = vsub.f32 %v4540, %v4541
    %v4543 = vand.u32 %v4542, 4294901760
    %4544 = vmatpush1.msra.mxu0 %v4543
    %4545 = vmatprep.subr.mxu0 0.0
    %v4546 = vand.u32 %v4391, 4294901760
    %v4547 = vsub.f32 %v4391, %v4546
    %v4548 = vand.u32 %v4547, 4294901760
    %v4549 = vsub.f32 %v4547, %v4548
    %v4550 = vand.u32 %v4549, 4294901760
    %4551 = vmatpush1.msra.mxu0 %v4550
    %4552 = vmatprep.subr.mxu0 0.0
    %v4553 = vand.u32 %v4392, 4294901760
    %v4554 = vsub.f32 %v4392, %v4553
    %v4555 = vand.u32 %v4554, 4294901760
    %v4556 = vsub.f32 %v4554, %v4555
    %v4557 = vand.u32 %v4556, 4294901760
    %4558 = vmatpush1.msra.mxu0 %v4557
    %4559 = vmatprep.subr.mxu0 0.0
    %v4560 = vand.u32 %v4393, 4294901760
    %v4561 = vsub.f32 %v4393, %v4560
    %v4562 = vand.u32 %v4561, 4294901760
    %v4563 = vsub.f32 %v4561, %v4562
    %v4564 = vand.u32 %v4563, 4294901760
    %4565 = vmatpush1.msra.mxu0 %v4564
    %4566 = vmatprep.subr.mxu0 0.0
    %v4567 = vand.u32 %v4394, 4294901760
    %v4568 = vsub.f32 %v4394, %v4567
    %v4569 = vand.u32 %v4568, 4294901760
    %v4570 = vsub.f32 %v4568, %v4569
    %v4571 = vand.u32 %v4570, 4294901760
    %4572 = vmatpush1.msra.mxu0 %v4571
    %4573 = vmatprep.subr.mxu0 0.0
    %v4574 = vand.u32 %v4395, 4294901760
    %v4575 = vsub.f32 %v4395, %v4574
    %v4576 = vand.u32 %v4575, 4294901760
    %v4577 = vsub.f32 %v4575, %v4576
    %v4578 = vand.u32 %v4577, 4294901760
    %4579 = vmatpush1.msra.mxu0 %v4578
    %4580 = vmatprep.subr.mxu0 0.0
    %v4581 = vand.u32 %v4396, 4294901760
    %v4582 = vsub.f32 %v4396, %v4581
    %v4583 = vand.u32 %v4582, 4294901760
    %v4584 = vsub.f32 %v4582, %v4583
    %v4585 = vand.u32 %v4584, 4294901760
    %4586 = vmatpush1.msra.mxu0 %v4585
    %4587 = vmatprep.subr.mxu0 0.0
    %v4588 = vand.u32 %v4397, 4294901760
    %v4589 = vsub.f32 %v4397, %v4588
    %v4590 = vand.u32 %v4589, 4294901760
    %v4591 = vsub.f32 %v4589, %v4590
    %v4592 = vand.u32 %v4591, 4294901760
    %4593 = vmatpush1.msra.mxu0 %v4592
    %4594 = vmatprep.subr.mxu0 0.0
    %v4595 = vand.u32 %v4398, 4294901760
    %v4596 = vsub.f32 %v4398, %v4595
    %v4597 = vand.u32 %v4596, 4294901760
    %v4598 = vsub.f32 %v4596, %v4597
    %v4599 = vand.u32 %v4598, 4294901760
    %4600 = vmatpush1.msra.mxu0 %v4599
    %4601 = vmatprep.subr.mxu0 0.0
    %v4602 = vand.u32 %v4399, 4294901760
    %v4603 = vsub.f32 %v4399, %v4602
    %v4604 = vand.u32 %v4603, 4294901760
    %v4605 = vsub.f32 %v4603, %v4604
    %v4606 = vand.u32 %v4605, 4294901760
    %4607 = vmatpush1.msra.mxu0 %v4606
    %4608 = vmatprep.subr.mxu0 0.0
    %4609 = vmatpush1.msra.mxu0 0.0
    %4610 = vmatprep.subr.mxu0 0.0
    %4611 = vmatpush1.msra.mxu0 0.0
    %4612 = vmatprep.subr.mxu0 0.0
    %4613 = vmatpush1.msra.mxu0 0.0
    %4614 = vmatprep.subr.mxu0 0.0
    %4615 = vmatpush1.msra.mxu0 0.0
    %4616 = vmatprep.subr.mxu0 0.0
    %4617 = vmatpush1.msra.mxu0 0.0
    %4618 = vmatprep.subr.mxu0 0.0
    %4619 = vmatpush1.msra.mxu0 0.0
    %4620 = vmatprep.subr.mxu0 0.0
    %4621 = vmatpush1.msra.mxu0 0.0
    %4622 = vmatprep.subr.mxu0 0.0
    %4623 = vmatpush1.msra.mxu0 0.0
    %4624 = vmatprep.subr.mxu0 0.0
    %4625 = vmatpush1.msra.mxu0 0.0
    %4626 = vmatprep.subr.mxu0 0.0
    %4627 = vmatpush1.msra.mxu0 0.0
    %4628 = vmatprep.subr.mxu0 0.0
    %4629 = vmatpush1.msra.mxu0 0.0
    %4630 = vmatprep.subr.mxu0 0.0
    %4631 = vmatpush1.msra.mxu0 0.0
    %4632 = vmatprep.subr.mxu0 0.0
    %4633 = vmatpush1.msra.mxu0 0.0
    %4634 = vmatprep.subr.mxu0 0.0
    %4635 = vmatpush1.msra.mxu0 0.0
    %4636 = vmatprep.subr.mxu0 0.0
    %4637 = vmatpush1.msra.mxu0 0.0
    %4638 = vmatprep.subr.mxu0 0.0
    %4639 = vmatpush1.msra.mxu0 0.0
    %4640 = vmatprep.mubr.f32.mxu0 0.0
    %v4641 = vand.u32 %v4383, 4294901760
    %4642 = vmatmul.mubr.f32.gmra.mrb[0].mxu0 %v4641
    %v4643 = vpop.f32.mrb[0].mxu0
    %v4644 = vadd.f32 %v4493, %v4643
    %v4645 = vpop.f32.mrb[0].mxu0
    %4646 = vdwg.mxu0
    %4647 = vmatprep.subr.mxu0 0.0
    %v4648 = vand.u32 %v4384, 4294901760
    %v4649 = vsub.f32 %v4384, %v4648
    %4650 = vmatpush1.msra.mxu0 %v4649
    %4651 = vmatprep.subr.mxu0 0.0
    %v4652 = vand.u32 %v4385, 4294901760
    %v4653 = vsub.f32 %v4385, %v4652
    %4654 = vmatpush1.msra.mxu0 %v4653
    %4655 = vmatprep.subr.mxu0 0.0
    %v4656 = vand.u32 %v4386, 4294901760
    %v4657 = vsub.f32 %v4386, %v4656
    %4658 = vmatpush1.msra.mxu0 %v4657
    %4659 = vmatprep.subr.mxu0 0.0
    %v4660 = vand.u32 %v4387, 4294901760
    %v4661 = vsub.f32 %v4387, %v4660
    %4662 = vmatpush1.msra.mxu0 %v4661
    %4663 = vmatprep.subr.mxu0 0.0
    %v4664 = vand.u32 %v4388, 4294901760
    %v4665 = vsub.f32 %v4388, %v4664
    %4666 = vmatpush1.msra.mxu0 %v4665
    %4667 = vmatprep.subr.mxu0 0.0
    %v4668 = vand.u32 %v4389, 4294901760
    %v4669 = vsub.f32 %v4389, %v4668
    %4670 = vmatpush1.msra.mxu0 %v4669
    %4671 = vmatprep.subr.mxu0 0.0
    %v4672 = vand.u32 %v4390, 4294901760
    %v4673 = vsub.f32 %v4390, %v4672
    %4674 = vmatpush1.msra.mxu0 %v4673
    %4675 = vmatprep.subr.mxu0 0.0
    %v4676 = vand.u32 %v4391, 4294901760
    %v4677 = vsub.f32 %v4391, %v4676
    %4678 = vmatpush1.msra.mxu0 %v4677
    %4679 = vmatprep.subr.mxu0 0.0
    %v4680 = vand.u32 %v4392, 4294901760
    %v4681 = vsub.f32 %v4392, %v4680
    %4682 = vmatpush1.msra.mxu0 %v4681
    %4683 = vmatprep.subr.mxu0 0.0
    %v4684 = vand.u32 %v4393, 4294901760
    %v4685 = vsub.f32 %v4393, %v4684
    %4686 = vmatpush1.msra.mxu0 %v4685
    %4687 = vmatprep.subr.mxu0 0.0
    %v4688 = vand.u32 %v4394, 4294901760
    %v4689 = vsub.f32 %v4394, %v4688
    %4690 = vmatpush1.msra.mxu0 %v4689
    %4691 = vmatprep.subr.mxu0 0.0
    %v4692 = vand.u32 %v4395, 4294901760
    %v4693 = vsub.f32 %v4395, %v4692
    %4694 = vmatpush1.msra.mxu0 %v4693
    %4695 = vmatprep.subr.mxu0 0.0
    %v4696 = vand.u32 %v4396, 4294901760
    %v4697 = vsub.f32 %v4396, %v4696
    %4698 = vmatpush1.msra.mxu0 %v4697
    %4699 = vmatprep.subr.mxu0 0.0
    %v4700 = vand.u32 %v4397, 4294901760
    %v4701 = vsub.f32 %v4397, %v4700
    %4702 = vmatpush1.msra.mxu0 %v4701
    %4703 = vmatprep.subr.mxu0 0.0
    %v4704 = vand.u32 %v4398, 4294901760
    %v4705 = vsub.f32 %v4398, %v4704
    %4706 = vmatpush1.msra.mxu0 %v4705
    %4707 = vmatprep.subr.mxu0 0.0
    %v4708 = vand.u32 %v4399, 4294901760
    %v4709 = vsub.f32 %v4399, %v4708
    %4710 = vmatpush1.msra.mxu0 %v4709
    %4711 = vmatprep.subr.mxu0 0.0
    %4712 = vmatpush1.msra.mxu0 0.0
    %4713 = vmatprep.subr.mxu0 0.0
    %4714 = vmatpush1.msra.mxu0 0.0
    %4715 = vmatprep.subr.mxu0 0.0
    %4716 = vmatpush1.msra.mxu0 0.0
    %4717 = vmatprep.subr.mxu0 0.0
    %4718 = vmatpush1.msra.mxu0 0.0
    %4719 = vmatprep.subr.mxu0 0.0
    %4720 = vmatpush1.msra.mxu0 0.0
    %4721 = vmatprep.subr.mxu0 0.0
    %4722 = vmatpush1.msra.mxu0 0.0
    %4723 = vmatprep.subr.mxu0 0.0
    %4724 = vmatpush1.msra.mxu0 0.0
    %4725 = vmatprep.subr.mxu0 0.0
    %4726 = vmatpush1.msra.mxu0 0.0
    %4727 = vmatprep.subr.mxu0 0.0
    %4728 = vmatpush1.msra.mxu0 0.0
    %4729 = vmatprep.subr.mxu0 0.0
    %4730 = vmatpush1.msra.mxu0 0.0
    %4731 = vmatprep.subr.mxu0 0.0
    %4732 = vmatpush1.msra.mxu0 0.0
    %4733 = vmatprep.subr.mxu0 0.0
    %4734 = vmatpush1.msra.mxu0 0.0
    %4735 = vmatprep.subr.mxu0 0.0
    %4736 = vmatpush1.msra.mxu0 0.0
    %4737 = vmatprep.subr.mxu0 0.0
    %4738 = vmatpush1.msra.mxu0 0.0
    %4739 = vmatprep.subr.mxu0 0.0
    %4740 = vmatpush1.msra.mxu0 0.0
    %4741 = vmatprep.subr.mxu0 0.0
    %4742 = vmatpush1.msra.mxu0 0.0
    %4743 = vmatprep.mubr.f32.mxu0 0.0
    %v4744 = vand.u32 %v4383, 4294901760
    %v4745 = vsub.f32 %v4383, %v4744
    %4746 = vmatmul.mubr.f32.gmra.mrb[0].mxu0 %v4745
    %v4747 = vpop.f32.mrb[0].mxu0
    %v4748 = vadd.f32 %v4644, %v4747
    %v4749 = vpop.f32.mrb[0].mxu0
    %4750 = vdwg.mxu0
    %4751 = vmatprep.subr.mxu0 0.0
    %v4752 = vand.u32 %v4384, 4294901760
    %4753 = vmatpush1.msra.mxu0 %v4752
    %4754 = vmatprep.subr.mxu0 0.0
    %v4755 = vand.u32 %v4385, 4294901760
    %4756 = vmatpush1.msra.mxu0 %v4755
    %4757 = vmatprep.subr.mxu0 0.0
    %v4758 = vand.u32 %v4386, 4294901760
    %4759 = vmatpush1.msra.mxu0 %v4758
    %4760 = vmatprep.subr.mxu0 0.0
    %v4761 = vand.u32 %v4387, 4294901760
    %4762 = vmatpush1.msra.mxu0 %v4761
    %4763 = vmatprep.subr.mxu0 0.0
    %v4764 = vand.u32 %v4388, 4294901760
    %4765 = vmatpush1.msra.mxu0 %v4764
    %4766 = vmatprep.subr.mxu0 0.0
    %v4767 = vand.u32 %v4389, 4294901760
    %4768 = vmatpush1.msra.mxu0 %v4767
    %4769 = vmatprep.subr.mxu0 0.0
    %v4770 = vand.u32 %v4390, 4294901760
    %4771 = vmatpush1.msra.mxu0 %v4770
    %4772 = vmatprep.subr.mxu0 0.0
    %v4773 = vand.u32 %v4391, 4294901760
    %4774 = vmatpush1.msra.mxu0 %v4773
    %4775 = vmatprep.subr.mxu0 0.0
    %v4776 = vand.u32 %v4392, 4294901760
    %4777 = vmatpush1.msra.mxu0 %v4776
    %4778 = vmatprep.subr.mxu0 0.0
    %v4779 = vand.u32 %v4393, 4294901760
    %4780 = vmatpush1.msra.mxu0 %v4779
    %4781 = vmatprep.subr.mxu0 0.0
    %v4782 = vand.u32 %v4394, 4294901760
    %4783 = vmatpush1.msra.mxu0 %v4782
    %4784 = vmatprep.subr.mxu0 0.0
    %v4785 = vand.u32 %v4395, 4294901760
    %4786 = vmatpush1.msra.mxu0 %v4785
    %4787 = vmatprep.subr.mxu0 0.0
    %v4788 = vand.u32 %v4396, 4294901760
    %4789 = vmatpush1.msra.mxu0 %v4788
    %4790 = vmatprep.subr.mxu0 0.0
    %v4791 = vand.u32 %v4397, 4294901760
    %4792 = vmatpush1.msra.mxu0 %v4791
    %4793 = vmatprep.subr.mxu0 0.0
    %v4794 = vand.u32 %v4398, 4294901760
    %4795 = vmatpush1.msra.mxu0 %v4794
    %4796 = vmatprep.subr.mxu0 0.0
    %v4797 = vand.u32 %v4399, 4294901760
    %4798 = vmatpush1.msra.mxu0 %v4797
    %4799 = vmatprep.subr.mxu0 0.0
    %4800 = vmatpush1.msra.mxu0 0.0
    %4801 = vmatprep.subr.mxu0 0.0
    %4802 = vmatpush1.msra.mxu0 0.0
    %4803 = vmatprep.subr.mxu0 0.0
    %4804 = vmatpush1.msra.mxu0 0.0
    %4805 = vmatprep.subr.mxu0 0.0
    %4806 = vmatpush1.msra.mxu0 0.0
    %4807 = vmatprep.subr.mxu0 0.0
    %4808 = vmatpush1.msra.mxu0 0.0
    %4809 = vmatprep.subr.mxu0 0.0
    %4810 = vmatpush1.msra.mxu0 0.0
    %4811 = vmatprep.subr.mxu0 0.0
    %4812 = vmatpush1.msra.mxu0 0.0
    %4813 = vmatprep.subr.mxu0 0.0
    %4814 = vmatpush1.msra.mxu0 0.0
    %4815 = vmatprep.subr.mxu0 0.0
    %4816 = vmatpush1.msra.mxu0 0.0
    %4817 = vmatprep.subr.mxu0 0.0
    %4818 = vmatpush1.msra.mxu0 0.0
    %4819 = vmatprep.subr.mxu0 0.0
    %4820 = vmatpush1.msra.mxu0 0.0
    %4821 = vmatprep.subr.mxu0 0.0
    %4822 = vmatpush1.msra.mxu0 0.0
    %4823 = vmatprep.subr.mxu0 0.0
    %4824 = vmatpush1.msra.mxu0 0.0
    %4825 = vmatprep.subr.mxu0 0.0
    %4826 = vmatpush1.msra.mxu0 0.0
    %4827 = vmatprep.subr.mxu0 0.0
    %4828 = vmatpush1.msra.mxu0 0.0
    %4829 = vmatprep.subr.mxu0 0.0
    %4830 = vmatpush1.msra.mxu0 0.0
    %4831 = vmatprep.mubr.f32.mxu0 0.0
    %v4832 = vand.u32 %v4383, 4294901760
    %v4833 = vsub.f32 %v4383, %v4832
    %v4834 = vand.u32 %v4833, 4294901760
    %4835 = vmatmul.mubr.f32.gmra.mrb[0].mxu0 %v4834
    %v4836 = vpop.f32.mrb[0].mxu0
    %v4837 = vadd.f32 %v4748, %v4836
    %v4838 = vpop.f32.mrb[0].mxu0
    %4839 = vdwg.mxu0
    %4840 = vmatprep.subr.mxu0 0.0
    %v4841 = vand.u32 %v4384, 4294901760
    %v4842 = vsub.f32 %v4384, %v4841
    %v4843 = vand.u32 %v4842, 4294901760
    %4844 = vmatpush1.msra.mxu0 %v4843
    %4845 = vmatprep.subr.mxu0 0.0
    %v4846 = vand.u32 %v4385, 4294901760
    %v4847 = vsub.f32 %v4385, %v4846
    %v4848 = vand.u32 %v4847, 4294901760
    %4849 = vmatpush1.msra.mxu0 %v4848
    %4850 = vmatprep.subr.mxu0 0.0
    %v4851 = vand.u32 %v4386, 4294901760
    %v4852 = vsub.f32 %v4386, %v4851
    %v4853 = vand.u32 %v4852, 4294901760
    %4854 = vmatpush1.msra.mxu0 %v4853
    %4855 = vmatprep.subr.mxu0 0.0
    %v4856 = vand.u32 %v4387, 4294901760
    %v4857 = vsub.f32 %v4387, %v4856
    %v4858 = vand.u32 %v4857, 4294901760
    %4859 = vmatpush1.msra.mxu0 %v4858
    %4860 = vmatprep.subr.mxu0 0.0
    %v4861 = vand.u32 %v4388, 4294901760
    %v4862 = vsub.f32 %v4388, %v4861
    %v4863 = vand.u32 %v4862, 4294901760
    %4864 = vmatpush1.msra.mxu0 %v4863
    %4865 = vmatprep.subr.mxu0 0.0
    %v4866 = vand.u32 %v4389, 4294901760
    %v4867 = vsub.f32 %v4389, %v4866
    %v4868 = vand.u32 %v4867, 4294901760
    %4869 = vmatpush1.msra.mxu0 %v4868
    %4870 = vmatprep.subr.mxu0 0.0
    %v4871 = vand.u32 %v4390, 4294901760
    %v4872 = vsub.f32 %v4390, %v4871
    %v4873 = vand.u32 %v4872, 4294901760
    %4874 = vmatpush1.msra.mxu0 %v4873
    %4875 = vmatprep.subr.mxu0 0.0
    %v4876 = vand.u32 %v4391, 4294901760
    %v4877 = vsub.f32 %v4391, %v4876
    %v4878 = vand.u32 %v4877, 4294901760
    %4879 = vmatpush1.msra.mxu0 %v4878
    %4880 = vmatprep.subr.mxu0 0.0
    %v4881 = vand.u32 %v4392, 4294901760
    %v4882 = vsub.f32 %v4392, %v4881
    %v4883 = vand.u32 %v4882, 4294901760
    %4884 = vmatpush1.msra.mxu0 %v4883
    %4885 = vmatprep.subr.mxu0 0.0
    %v4886 = vand.u32 %v4393, 4294901760
    %v4887 = vsub.f32 %v4393, %v4886
    %v4888 = vand.u32 %v4887, 4294901760
    %4889 = vmatpush1.msra.mxu0 %v4888
    %4890 = vmatprep.subr.mxu0 0.0
    %v4891 = vand.u32 %v4394, 4294901760
    %v4892 = vsub.f32 %v4394, %v4891
    %v4893 = vand.u32 %v4892, 4294901760
    %4894 = vmatpush1.msra.mxu0 %v4893
    %4895 = vmatprep.subr.mxu0 0.0
    %v4896 = vand.u32 %v4395, 4294901760
    %v4897 = vsub.f32 %v4395, %v4896
    %v4898 = vand.u32 %v4897, 4294901760
    %4899 = vmatpush1.msra.mxu0 %v4898
    %4900 = vmatprep.subr.mxu0 0.0
    %v4901 = vand.u32 %v4396, 4294901760
    %v4902 = vsub.f32 %v4396, %v4901
    %v4903 = vand.u32 %v4902, 4294901760
    %4904 = vmatpush1.msra.mxu0 %v4903
    %4905 = vmatprep.subr.mxu0 0.0
    %v4906 = vand.u32 %v4397, 4294901760
    %v4907 = vsub.f32 %v4397, %v4906
    %v4908 = vand.u32 %v4907, 4294901760
    %4909 = vmatpush1.msra.mxu0 %v4908
    %4910 = vmatprep.subr.mxu0 0.0
    %v4911 = vand.u32 %v4398, 4294901760
    %v4912 = vsub.f32 %v4398, %v4911
    %v4913 = vand.u32 %v4912, 4294901760
    %4914 = vmatpush1.msra.mxu0 %v4913
    %4915 = vmatprep.subr.mxu0 0.0
    %v4916 = vand.u32 %v4399, 4294901760
    %v4917 = vsub.f32 %v4399, %v4916
    %v4918 = vand.u32 %v4917, 4294901760
    %4919 = vmatpush1.msra.mxu0 %v4918
    %4920 = vmatprep.subr.mxu0 0.0
    %4921 = vmatpush1.msra.mxu0 0.0
    %4922 = vmatprep.subr.mxu0 0.0
    %4923 = vmatpush1.msra.mxu0 0.0
    %4924 = vmatprep.subr.mxu0 0.0
    %4925 = vmatpush1.msra.mxu0 0.0
    %4926 = vmatprep.subr.mxu0 0.0
    %4927 = vmatpush1.msra.mxu0 0.0
    %4928 = vmatprep.subr.mxu0 0.0
    %4929 = vmatpush1.msra.mxu0 0.0
    %4930 = vmatprep.subr.mxu0 0.0
    %4931 = vmatpush1.msra.mxu0 0.0
    %4932 = vmatprep.subr.mxu0 0.0
    %4933 = vmatpush1.msra.mxu0 0.0
    %4934 = vmatprep.subr.mxu0 0.0
    %4935 = vmatpush1.msra.mxu0 0.0
    %4936 = vmatprep.subr.mxu0 0.0
    %4937 = vmatpush1.msra.mxu0 0.0
    %4938 = vmatprep.subr.mxu0 0.0
    %4939 = vmatpush1.msra.mxu0 0.0
    %4940 = vmatprep.subr.mxu0 0.0
    %4941 = vmatpush1.msra.mxu0 0.0
    %4942 = vmatprep.subr.mxu0 0.0
    %4943 = vmatpush1.msra.mxu0 0.0
    %4944 = vmatprep.subr.mxu0 0.0
    %4945 = vmatpush1.msra.mxu0 0.0
    %4946 = vmatprep.subr.mxu0 0.0
    %4947 = vmatpush1.msra.mxu0 0.0
    %4948 = vmatprep.subr.mxu0 0.0
    %4949 = vmatpush1.msra.mxu0 0.0
    %4950 = vmatprep.subr.mxu0 0.0
    %4951 = vmatpush1.msra.mxu0 0.0
    %4952 = vmatprep.mubr.f32.mxu0 0.0
    %v4953 = vand.u32 %v4383, 4294901760
    %4954 = vmatmul.mubr.f32.gmra.mrb[0].mxu0 %v4953
    %v4955 = vpop.f32.mrb[0].mxu0
    %v4956 = vadd.f32 %v4837, %v4955
    %v4957 = vpop.f32.mrb[0].mxu0
    %4958 = vdwg.mxu0
    %4959 = vmatprep.subr.mxu0 0.0
    %v4960 = vand.u32 %v4384, 4294901760
    %4961 = vmatpush1.msra.mxu0 %v4960
    %4962 = vmatprep.subr.mxu0 0.0
    %v4963 = vand.u32 %v4385, 4294901760
    %4964 = vmatpush1.msra.mxu0 %v4963
    %4965 = vmatprep.subr.mxu0 0.0
    %v4966 = vand.u32 %v4386, 4294901760
    %4967 = vmatpush1.msra.mxu0 %v4966
    %4968 = vmatprep.subr.mxu0 0.0
    %v4969 = vand.u32 %v4387, 4294901760
    %4970 = vmatpush1.msra.mxu0 %v4969
    %4971 = vmatprep.subr.mxu0 0.0
    %v4972 = vand.u32 %v4388, 4294901760
    %4973 = vmatpush1.msra.mxu0 %v4972
    %4974 = vmatprep.subr.mxu0 0.0
    %v4975 = vand.u32 %v4389, 4294901760
    %4976 = vmatpush1.msra.mxu0 %v4975
    %4977 = vmatprep.subr.mxu0 0.0
    %v4978 = vand.u32 %v4390, 4294901760
    %4979 = vmatpush1.msra.mxu0 %v4978
    %4980 = vmatprep.subr.mxu0 0.0
    %v4981 = vand.u32 %v4391, 4294901760
    %4982 = vmatpush1.msra.mxu0 %v4981
    %4983 = vmatprep.subr.mxu0 0.0
    %v4984 = vand.u32 %v4392, 4294901760
    %4985 = vmatpush1.msra.mxu0 %v4984
    %4986 = vmatprep.subr.mxu0 0.0
    %v4987 = vand.u32 %v4393, 4294901760
    %4988 = vmatpush1.msra.mxu0 %v4987
    %4989 = vmatprep.subr.mxu0 0.0
    %v4990 = vand.u32 %v4394, 4294901760
    %4991 = vmatpush1.msra.mxu0 %v4990
    %4992 = vmatprep.subr.mxu0 0.0
    %v4993 = vand.u32 %v4395, 4294901760
    %4994 = vmatpush1.msra.mxu0 %v4993
    %4995 = vmatprep.subr.mxu0 0.0
    %v4996 = vand.u32 %v4396, 4294901760
    %4997 = vmatpush1.msra.mxu0 %v4996
    %4998 = vmatprep.subr.mxu0 0.0
    %v4999 = vand.u32 %v4397, 4294901760
    %5000 = vmatpush1.msra.mxu0 %v4999
    %5001 = vmatprep.subr.mxu0 0.0
    %v5002 = vand.u32 %v4398, 4294901760
    %5003 = vmatpush1.msra.mxu0 %v5002
    %5004 = vmatprep.subr.mxu0 0.0
    %v5005 = vand.u32 %v4399, 4294901760
    %5006 = vmatpush1.msra.mxu0 %v5005
    %5007 = vmatprep.subr.mxu0 0.0
    %5008 = vmatpush1.msra.mxu0 0.0
    %5009 = vmatprep.subr.mxu0 0.0
    %5010 = vmatpush1.msra.mxu0 0.0
    %5011 = vmatprep.subr.mxu0 0.0
    %5012 = vmatpush1.msra.mxu0 0.0
    %5013 = vmatprep.subr.mxu0 0.0
    %5014 = vmatpush1.msra.mxu0 0.0
    %5015 = vmatprep.subr.mxu0 0.0
    %5016 = vmatpush1.msra.mxu0 0.0
    %5017 = vmatprep.subr.mxu0 0.0
    %5018 = vmatpush1.msra.mxu0 0.0
    %5019 = vmatprep.subr.mxu0 0.0
    %5020 = vmatpush1.msra.mxu0 0.0
    %5021 = vmatprep.subr.mxu0 0.0
    %5022 = vmatpush1.msra.mxu0 0.0
    %5023 = vmatprep.subr.mxu0 0.0
    %5024 = vmatpush1.msra.mxu0 0.0
    %5025 = vmatprep.subr.mxu0 0.0
    %5026 = vmatpush1.msra.mxu0 0.0
    %5027 = vmatprep.subr.mxu0 0.0
    %5028 = vmatpush1.msra.mxu0 0.0
    %5029 = vmatprep.subr.mxu0 0.0
    %5030 = vmatpush1.msra.mxu0 0.0
    %5031 = vmatprep.subr.mxu0 0.0
    %5032 = vmatpush1.msra.mxu0 0.0
    %5033 = vmatprep.subr.mxu0 0.0
    %5034 = vmatpush1.msra.mxu0 0.0
    %5035 = vmatprep.subr.mxu0 0.0
    %5036 = vmatpush1.msra.mxu0 0.0
    %5037 = vmatprep.subr.mxu0 0.0
    %5038 = vmatpush1.msra.mxu0 0.0
    %5039 = vmatprep.mubr.f32.mxu0 0.0
    %v5040 = vand.u32 %v4383, 4294901760
    %5041 = vmatmul.mubr.f32.gmra.mrb[0].mxu0 %v5040
    %v5042 = vpop.f32.mrb[0].mxu0
    %v5043 = vadd.f32 %v4956, %v5042
    %v5044 = vpop.f32.mrb[0].mxu0
    %5045 = vdwg.mxu0
    %5046 = vst [vmem:[#allocation10] sm:$0xff] %v5043
    // Predicated region
    $region46: #{tpu_custom_call.1} parent=1 // pred_check
      _
    $region47: #{tpu_custom_call.1} parent=1 // pred_check_branch
      %5048 = sbr.rel (0) target = $region49
    $region48: #{tpu_custom_call.1} parent=1 // pred_region
      %s5050 = ssub.s32 128, 128
      %5051 = vsyncadd [#allocation4], %s5050
      %s5053 = sshll.u32 [#allocation10], 4
      %s5054 = int_to_ptr.vmem [resolvable:$true] %s5053
      %5056 = dma.vmem_to_hbm [thread:$0]  %s5054, 128, %s7, [#allocation4]
    $region49: #{tpu_custom_call.1} parent=1 // pred_fallthru
      _
    // Predicated region
    $region50: #{tpu_custom_call.1} parent=1 // pred_check
      _
    $region51: #{tpu_custom_call.1} parent=1 // pred_check_branch
      %5058 = sbr.rel (0) target = $region53
    $region52: #{tpu_custom_call.1} parent=1 // pred_region
      %5059 = dma.done [#allocation4], 128
    $region53: #{tpu_custom_call.1} parent=1 // pred_fallthru
      _
    %5060 = vsyncpa [#allocation3], 1
    %5061 = vsyncpa [#allocation6], 1
    %5062 = vsyncpa [#allocation9], 1
    %5063 = vsyncpa [#allocation4], 1

</llo_original>
